<compile_context>
chip_gen: v6e
topology: v6e:2x2x1
jax: 0.10.0
libtpu: 0.0.40
codegen_flags: <defaults>
</compile_context>

<pallas_src>
import functools

import jax
import jax.numpy as jnp
from jax.experimental import pallas as pl
from jax.experimental.pallas import tpu as pltpu


# ----------------------------------------------------------------------------
# Helpers copied from the PyTorch module (pure python)
# ----------------------------------------------------------------------------
def get_same_padding(kernel_size):
    if isinstance(kernel_size, tuple):
        assert len(kernel_size) == 2, "invalid kernel size: %s" % str(kernel_size)
        return (get_same_padding(kernel_size[0]), get_same_padding(kernel_size[1]))
    assert isinstance(kernel_size, int), "kernel size should be either `int` or `tuple`"
    assert kernel_size % 2 > 0, "kernel size should be odd number"
    return kernel_size // 2


def sub_filter_start_end(kernel_size, sub_kernel_size):
    center = kernel_size // 2
    dev = sub_kernel_size // 2
    start, end = center - dev, center + dev + 1
    assert end - start == sub_kernel_size
    return start, end


def _pair(v):
    if isinstance(v, (tuple, list)):
        assert len(v) == 2
        return int(v[0]), int(v[1])
    return int(v), int(v)


# ----------------------------------------------------------------------------
# Pallas kernel: dense (groups=1) 2-D convolution as K*K accumulated matmuls
# ----------------------------------------------------------------------------
def _dyn_conv2d_kernel(x_ref, w_ref, b_ref, y_ref, *,
                       ksize, stride_h, stride_w, dil_h, dil_w, h_out, w_out):
    """One (sample, Cout-tile) grid cell.

    x_ref: (1, Hp, Wp, Cin)      zero-padded NHWC image (VMEM resident)
    w_ref: (K, K, Cin, TCo)      weights for this Cout tile
    b_ref: (1, TCo)              bias row (zeros when bias is disabled)
    y_ref: (1, H_out*W_out, TCo) lane-dense output tile
    """
    cin = x_ref.shape[-1]
    tco = w_ref.shape[-1]
    s = h_out * w_out

    acc = jnp.zeros((s, tco), jnp.float32)
    # Statically unrolled over kernel positions: all slices below are static,
    # so they lower to plain (aligned where possible) VMEM loads and the LLO
    # scheduler is free to interleave the K*K MXU pushes.
    for kh in range(ksize):
        for kw in range(ksize):
            r0 = kh * dil_h
            c0 = kw * dil_w
            if stride_h == 1 and stride_w == 1:
                xs = x_ref[0, r0:r0 + h_out, c0:c0 + w_out, :]
            else:
                xs = x_ref[0,
                           pl.ds(r0, h_out, stride=stride_h),
                           pl.ds(c0, w_out, stride=stride_w), :]
            # (H_out, W_out, Cin) -> (H_out*W_out, Cin): leading-dim collapse,
            # minor (lane) dim unchanged.
            acc = acc + jnp.dot(xs.reshape(s, cin), w_ref[kh, kw],
                                preferred_element_type=jnp.float32)

    y_ref[0] = (acc + b_ref[...]).astype(y_ref.dtype)


def _pick_cout_tile(cout, cap=256):
    """Largest Cout tile that divides cout and keeps blocks lane-aligned."""
    if cout <= cap:
        return cout
    for t in (cap, 128):
        if cout % t == 0:
            return t
    return cout


@functools.partial(jax.jit, static_argnames=("stride", "padding", "dilation"))
def conv2d_pallas(x, filters, bias=None, *, stride=1, padding=0, dilation=1):
    """Dense (groups=1) 2-D convolution, NCHW in / NCHW out, via Pallas."""
    n, cin, h, w = x.shape
    cout, cin_w, kh_, kw_ = filters.shape
    assert cin_w == cin, "filter in-channels must match input channels"
    assert kh_ == kw_, "square kernels only"
    ksize = kh_

    sh, sw = _pair(stride)
    ph, pw = _pair(padding)
    dh, dw = _pair(dilation)

    h_out = (h + 2 * ph - dh * (ksize - 1) - 1) // sh + 1
    w_out = (w + 2 * pw - dw * (ksize - 1) - 1) // sw + 1
    assert h_out > 0 and w_out > 0
    hp, wp = h + 2 * ph, w + 2 * pw
    s = h_out * w_out

    # Single boundary relayout: NCHW -> NHWC + zero pad (one XLA pass).
    xp = jnp.pad(jnp.transpose(x, (0, 2, 3, 1)),
                 ((0, 0), (ph, ph), (pw, pw), (0, 0)))
    # (Cout, Cin, K, K) -> (K, K, Cin, Cout): each kernel position is a
    # lane-dense (Cin, Cout) matrix for the MXU.
    wmat = jnp.transpose(filters, (2, 3, 1, 0)).astype(x.dtype)
    brow = (bias.astype(jnp.float32).reshape(1, cout) if bias is not None
            else jnp.zeros((1, cout), jnp.float32))

    tco = _pick_cout_tile(cout)
    n_co_tiles = cout // tco

    kernel = functools.partial(
        _dyn_conv2d_kernel, ksize=ksize, stride_h=sh, stride_w=sw,
        dil_h=dh, dil_w=dw, h_out=h_out, w_out=w_out)

    y_flat = pl.pallas_call(
        kernel,
        grid=(n, n_co_tiles),
        in_specs=[
            # Padded image: index depends only on the sample -> fetched from
            # HBM once per sample, kept VMEM-resident across all Cout tiles.
            pl.BlockSpec((1, hp, wp, cin), lambda i, j: (i, 0, 0, 0)),
            pl.BlockSpec((ksize, ksize, cin, tco), lambda i, j: (0, 0, 0, j)),
            pl.BlockSpec((1, tco), lambda i, j: (0, j)),
        ],
        out_specs=pl.BlockSpec((1, s, tco), lambda i, j: (i, 0, j)),
        out_shape=jax.ShapeDtypeStruct((n, s, cout), x.dtype),
        compiler_params=pltpu.CompilerParams(
            dimension_semantics=("parallel", "parallel"),
            vmem_limit_bytes=32 * 1024 * 1024,
        ),
    )(xp, wmat, brow)

    # (N, H_out*W_out, Cout) -> NCHW to match the PyTorch module's output.
    y = jnp.transpose(y_flat.reshape(n, h_out, w_out, cout), (0, 3, 1, 2))
    return y


# ----------------------------------------------------------------------------
# DynamicConv2d module wrapper (mirrors the PyTorch forward semantics)
# ----------------------------------------------------------------------------
class DynamicConv2dPallas:
    def __init__(self, candidate_in_channels_list, candidate_out_channels_list,
                 candidate_kernel_size_list, stride=1, padding=0, dilation=1,
                 groups=1, bias=False, *, key, dtype=jnp.float32):
        self.candidate_in_channels_list = list(candidate_in_channels_list)
        self.candidate_out_channels_list = list(candidate_out_channels_list)
        self.candidate_kernel_size_list = list(candidate_kernel_size_list)
        self.stride = stride
        self.padding = padding
        self.dilation = dilation
        self.groups = groups
        self.has_bias = bias

        max_in = max(self.candidate_in_channels_list)
        max_out = max(self.candidate_out_channels_list)
        max_ks = max(self.candidate_kernel_size_list)

        # Deterministic Conv2d-style init (uniform in +-1/sqrt(fan_in)).
        wkey, bkey = jax.random.split(key)
        fan_in = max_in * max_ks * max_ks
        bound = 1.0 / (fan_in ** 0.5)
        self.weight = jax.random.uniform(
            wkey, (max_out, max_in, max_ks, max_ks), dtype, -bound, bound)
        self.bias_param = (jax.random.uniform(bkey, (max_out,), dtype, -bound, bound)
                           if bias else None)

        self.is_depthwise_conv = (self.groups == max_in)
        self._ks_set = sorted(set(self.candidate_kernel_size_list))
        self.active_in_channel = max_in
        self.active_out_channel = max_out
        self.active_kernel_size = max_ks

    def get_active_filter(self, in_channel, out_channel, kernel_size):
        max_kernel_size = max(self.candidate_kernel_size_list)
        if max_kernel_size % 2 > 0:
            start, end = sub_filter_start_end(max_kernel_size, kernel_size)
            return self.weight[:out_channel, :in_channel, start:end, start:end]
        return self.weight[:out_channel, :in_channel, :, :]

    def get_active_bias(self, out_channel):
        return self.bias_param[:out_channel] if self.has_bias else None

    def __call__(self, x, out_channel=None, kernel_size=None):
        if kernel_size is None:
            kernel_size = self.active_kernel_size
        if out_channel is None:
            out_channel = self.active_out_channel
        in_channel = x.shape[1]
        self.active_in_channel = in_channel

        groups = self.groups
        if self.is_depthwise_conv:
            groups = in_channel
            out_channel = in_channel
            self.groups = groups

        filters = self.get_active_filter(in_channel, out_channel, kernel_size)
        bias = self.get_active_bias(out_channel)

        padding = self.padding
        if kernel_size % 2 > 0:
            padding = get_same_padding(kernel_size)
            self.padding = padding

        if groups != 1:
            # TODO(synk): grouped / depthwise conv (groups > 1) has no Pallas path here yet.
            raise NotImplementedError("grouped/depthwise DynamicConv2d not implemented")

        return conv2d_pallas(x, filters, bias, stride=self.stride,
                             padding=padding, dilation=self.dilation)


# ----------------------------------------------------------------------------
# Pure-XLA reference (lax conv) for a silent correctness check
# ----------------------------------------------------------------------------
def _conv_ref(x, filters, bias, stride, padding, dilation):
    dn = jax.lax.conv_dimension_numbers(x.shape, filters.shape,
                                        ("NCHW", "OIHW", "NCHW"))
    sh, sw = _pair(stride)
    ph, pw = _pair(padding)
    dh, dw = _pair(dilation)
    y = jax.lax.conv_general_dilated(
        x, filters, window_strides=(sh, sw),
        padding=[(ph, ph), (pw, pw)], rhs_dilation=(dh, dw),
        dimension_numbers=dn, precision=jax.lax.Precision.HIGHEST)
    if bias is not None:
        y = y + bias.reshape(1, -1, 1, 1)
    return y


if __name__ == "__main__":
    key = jax.random.PRNGKey(0)
    kx, kmod = jax.random.split(key)

    # Small deterministic config: max kernel 5 (odd -> sub-kernel slicing path),
    # max out channels 8, input with 4 channels.
    x = jax.random.normal(kx, (2, 4, 16, 16), dtype=jnp.float32)
    conv = DynamicConv2dPallas(
        candidate_in_channels_list=[2, 4],
        candidate_out_channels_list=[4, 8],
        candidate_kernel_size_list=[3, 5],
        stride=1, padding=0, dilation=1, groups=1, bias=False, key=kmod)

    # (a) Default active config: full 5x5 filter, out_channel=8, same padding=2.
    y_max = conv(x)
    jax.block_until_ready(y_max)
    ref_max = _conv_ref(x, conv.get_active_filter(4, 8, 5), None, 1, 2, 1)
    assert y_max.shape == ref_max.shape, (y_max.shape, ref_max.shape)
    assert jnp.allclose(y_max, ref_max, atol=1e-2, rtol=1e-2), "mismatch (5x5 path)"

    # (b) Dynamic sub-kernel: centered 3x3 slice of the 5x5 weights, out_channel=4.
    y_sub = conv(x, out_channel=4, kernel_size=3)
    jax.block_until_ready(y_sub)
    ref_sub = _conv_ref(x, conv.get_active_filter(4, 4, 3), None, 1, 1, 1)
    assert y_sub.shape == ref_sub.shape, (y_sub.shape, ref_sub.shape)
    assert jnp.allclose(y_sub, ref_sub, atol=1e-2, rtol=1e-2), "mismatch (3x3 path)"

    print("KERNEL_OK")
</pallas_src>

<mosaic_0001>
module attributes {stable_mosaic.version = 11 : i64} {
  func.func @_dyn_conv2d_kernel(%arg0: i32, %arg1: i32, %arg2: memref<1x20x20x4xf32, #tpu.memory_space<vmem>>, %arg3: memref<5x5x4x8xf32, #tpu.memory_space<vmem>>, %arg4: memref<1x8xf32, #tpu.memory_space<vmem>>, %arg5: memref<1x256x8xf32, #tpu.memory_space<vmem>>) attributes {dimension_semantics = [#tpu.dimension_semantics<parallel>, #tpu.dimension_semantics<parallel>], iteration_bounds = array<i64: 2, 1>, scalar_prefetch = 0 : i64, scratch_operands = 0 : i64, tpu.core_type = #tpu.core_type<tc>, window_params = [{transform_indices = @transform_0, window_bounds = array<i64: 1, 20, 20, 4>}, {transform_indices = @transform_1, window_bounds = array<i64: 5, 5, 4, 8>}, {transform_indices = @transform_2, window_bounds = array<i64: 1, 8>}, {transform_indices = @transform_3, window_bounds = array<i64: 1, 256, 8>}]} {
    %cst = arith.constant 0.000000e+00 : f32
    %0 = vector.broadcast %cst : f32 to vector<256x8xf32>
    %c0 = arith.constant 0 : index
    %c0_0 = arith.constant 0 : index
    %c0_1 = arith.constant 0 : index
    %c0_2 = arith.constant 0 : index
    %1 = vector.load %arg2[%c0, %c0_0, %c0_1, %c0_2] : memref<1x20x20x4xf32, #tpu.memory_space<vmem>>, vector<1x16x16x4xf32>
    %2 = vector.shape_cast %1 : vector<1x16x16x4xf32> to vector<16x16x4xf32>
    %3 = vector.shape_cast %2 : vector<16x16x4xf32> to vector<256x4xf32>
    %c0_3 = arith.constant 0 : index
    %c0_4 = arith.constant 0 : index
    %c0_5 = arith.constant 0 : index
    %c0_6 = arith.constant 0 : index
    %4 = vector.load %arg3[%c0_3, %c0_4, %c0_5, %c0_6] : memref<5x5x4x8xf32, #tpu.memory_space<vmem>>, vector<1x1x4x8xf32>
    %5 = vector.shape_cast %4 : vector<1x1x4x8xf32> to vector<4x8xf32>
    %cst_7 = arith.constant dense<0.000000e+00> : vector<256x8xf32>
    %6 = tpu.matmul %3, %5, %cst_7 {dimension_numbers = #tpu.dot_dimension_numbers<[1], [0], [0], [1], [0, 0, 1, 1], [], []>} : vector<256x4xf32>, vector<4x8xf32>, vector<256x8xf32> -> vector<256x8xf32>
    %7 = arith.addf %0, %6 : vector<256x8xf32>
    %c0_8 = arith.constant 0 : index
    %c0_9 = arith.constant 0 : index
    %c1 = arith.constant 1 : index
    %c0_10 = arith.constant 0 : index
    %8 = vector.load %arg2[%c0_8, %c0_9, %c1, %c0_10] : memref<1x20x20x4xf32, #tpu.memory_space<vmem>>, vector<1x16x16x4xf32>
    %9 = vector.shape_cast %8 : vector<1x16x16x4xf32> to vector<16x16x4xf32>
    %10 = vector.shape_cast %9 : vector<16x16x4xf32> to vector<256x4xf32>
    %c0_11 = arith.constant 0 : index
    %c1_12 = arith.constant 1 : index
    %c0_13 = arith.constant 0 : index
    %c0_14 = arith.constant 0 : index
    %11 = vector.load %arg3[%c0_11, %c1_12, %c0_13, %c0_14] : memref<5x5x4x8xf32, #tpu.memory_space<vmem>>, vector<1x1x4x8xf32>
    %12 = vector.shape_cast %11 : vector<1x1x4x8xf32> to vector<4x8xf32>
    %cst_15 = arith.constant dense<0.000000e+00> : vector<256x8xf32>
    %13 = tpu.matmul %10, %12, %cst_15 {dimension_numbers = #tpu.dot_dimension_numbers<[1], [0], [0], [1], [0, 0, 1, 1], [], []>} : vector<256x4xf32>, vector<4x8xf32>, vector<256x8xf32> -> vector<256x8xf32>
    %14 = arith.addf %7, %13 : vector<256x8xf32>
    %c0_16 = arith.constant 0 : index
    %c0_17 = arith.constant 0 : index
    %c2 = arith.constant 2 : index
    %c0_18 = arith.constant 0 : index
    %15 = vector.load %arg2[%c0_16, %c0_17, %c2, %c0_18] : memref<1x20x20x4xf32, #tpu.memory_space<vmem>>, vector<1x16x16x4xf32>
    %16 = vector.shape_cast %15 : vector<1x16x16x4xf32> to vector<16x16x4xf32>
    %17 = vector.shape_cast %16 : vector<16x16x4xf32> to vector<256x4xf32>
    %c0_19 = arith.constant 0 : index
    %c2_20 = arith.constant 2 : index
    %c0_21 = arith.constant 0 : index
    %c0_22 = arith.constant 0 : index
    %18 = vector.load %arg3[%c0_19, %c2_20, %c0_21, %c0_22] : memref<5x5x4x8xf32, #tpu.memory_space<vmem>>, vector<1x1x4x8xf32>
    %19 = vector.shape_cast %18 : vector<1x1x4x8xf32> to vector<4x8xf32>
    %cst_23 = arith.constant dense<0.000000e+00> : vector<256x8xf32>
    %20 = tpu.matmul %17, %19, %cst_23 {dimension_numbers = #tpu.dot_dimension_numbers<[1], [0], [0], [1], [0, 0, 1, 1], [], []>} : vector<256x4xf32>, vector<4x8xf32>, vector<256x8xf32> -> vector<256x8xf32>
    %21 = arith.addf %14, %20 : vector<256x8xf32>
    %c0_24 = arith.constant 0 : index
    %c0_25 = arith.constant 0 : index
    %c3 = arith.constant 3 : index
    %c0_26 = arith.constant 0 : index
    %22 = vector.load %arg2[%c0_24, %c0_25, %c3, %c0_26] : memref<1x20x20x4xf32, #tpu.memory_space<vmem>>, vector<1x16x16x4xf32>
    %23 = vector.shape_cast %22 : vector<1x16x16x4xf32> to vector<16x16x4xf32>
    %24 = vector.shape_cast %23 : vector<16x16x4xf32> to vector<256x4xf32>
    %c0_27 = arith.constant 0 : index
    %c3_28 = arith.constant 3 : index
    %c0_29 = arith.constant 0 : index
    %c0_30 = arith.constant 0 : index
    %25 = vector.load %arg3[%c0_27, %c3_28, %c0_29, %c0_30] : memref<5x5x4x8xf32, #tpu.memory_space<vmem>>, vector<1x1x4x8xf32>
    %26 = vector.shape_cast %25 : vector<1x1x4x8xf32> to vector<4x8xf32>
    %cst_31 = arith.constant dense<0.000000e+00> : vector<256x8xf32>
    %27 = tpu.matmul %24, %26, %cst_31 {dimension_numbers = #tpu.dot_dimension_numbers<[1], [0], [0], [1], [0, 0, 1, 1], [], []>} : vector<256x4xf32>, vector<4x8xf32>, vector<256x8xf32> -> vector<256x8xf32>
    %28 = arith.addf %21, %27 : vector<256x8xf32>
    %c0_32 = arith.constant 0 : index
    %c0_33 = arith.constant 0 : index
    %c4 = arith.constant 4 : index
    %c0_34 = arith.constant 0 : index
    %29 = vector.load %arg2[%c0_32, %c0_33, %c4, %c0_34] : memref<1x20x20x4xf32, #tpu.memory_space<vmem>>, vector<1x16x16x4xf32>
    %30 = vector.shape_cast %29 : vector<1x16x16x4xf32> to vector<16x16x4xf32>
    %31 = vector.shape_cast %30 : vector<16x16x4xf32> to vector<256x4xf32>
    %c0_35 = arith.constant 0 : index
    %c4_36 = arith.constant 4 : index
    %c0_37 = arith.constant 0 : index
    %c0_38 = arith.constant 0 : index
    %32 = vector.load %arg3[%c0_35, %c4_36, %c0_37, %c0_38] : memref<5x5x4x8xf32, #tpu.memory_space<vmem>>, vector<1x1x4x8xf32>
    %33 = vector.shape_cast %32 : vector<1x1x4x8xf32> to vector<4x8xf32>
    %cst_39 = arith.constant dense<0.000000e+00> : vector<256x8xf32>
    %34 = tpu.matmul %31, %33, %cst_39 {dimension_numbers = #tpu.dot_dimension_numbers<[1], [0], [0], [1], [0, 0, 1, 1], [], []>} : vector<256x4xf32>, vector<4x8xf32>, vector<256x8xf32> -> vector<256x8xf32>
    %35 = arith.addf %28, %34 : vector<256x8xf32>
    %c0_40 = arith.constant 0 : index
    %c1_41 = arith.constant 1 : index
    %c0_42 = arith.constant 0 : index
    %c0_43 = arith.constant 0 : index
    %36 = vector.load %arg2[%c0_40, %c1_41, %c0_42, %c0_43] : memref<1x20x20x4xf32, #tpu.memory_space<vmem>>, vector<1x16x16x4xf32>
    %37 = vector.shape_cast %36 : vector<1x16x16x4xf32> to vector<16x16x4xf32>
    %38 = vector.shape_cast %37 : vector<16x16x4xf32> to vector<256x4xf32>
    %c1_44 = arith.constant 1 : index
    %c0_45 = arith.constant 0 : index
    %c0_46 = arith.constant 0 : index
    %c0_47 = arith.constant 0 : index
    %39 = vector.load %arg3[%c1_44, %c0_45, %c0_46, %c0_47] : memref<5x5x4x8xf32, #tpu.memory_space<vmem>>, vector<1x1x4x8xf32>
    %40 = vector.shape_cast %39 : vector<1x1x4x8xf32> to vector<4x8xf32>
    %cst_48 = arith.constant dense<0.000000e+00> : vector<256x8xf32>
    %41 = tpu.matmul %38, %40, %cst_48 {dimension_numbers = #tpu.dot_dimension_numbers<[1], [0], [0], [1], [0, 0, 1, 1], [], []>} : vector<256x4xf32>, vector<4x8xf32>, vector<256x8xf32> -> vector<256x8xf32>
    %42 = arith.addf %35, %41 : vector<256x8xf32>
    %c0_49 = arith.constant 0 : index
    %c1_50 = arith.constant 1 : index
    %c1_51 = arith.constant 1 : index
    %c0_52 = arith.constant 0 : index
    %43 = vector.load %arg2[%c0_49, %c1_50, %c1_51, %c0_52] : memref<1x20x20x4xf32, #tpu.memory_space<vmem>>, vector<1x16x16x4xf32>
    %44 = vector.shape_cast %43 : vector<1x16x16x4xf32> to vector<16x16x4xf32>
    %45 = vector.shape_cast %44 : vector<16x16x4xf32> to vector<256x4xf32>
    %c1_53 = arith.constant 1 : index
    %c1_54 = arith.constant 1 : index
    %c0_55 = arith.constant 0 : index
    %c0_56 = arith.constant 0 : index
    %46 = vector.load %arg3[%c1_53, %c1_54, %c0_55, %c0_56] : memref<5x5x4x8xf32, #tpu.memory_space<vmem>>, vector<1x1x4x8xf32>
    %47 = vector.shape_cast %46 : vector<1x1x4x8xf32> to vector<4x8xf32>
    %cst_57 = arith.constant dense<0.000000e+00> : vector<256x8xf32>
    %48 = tpu.matmul %45, %47, %cst_57 {dimension_numbers = #tpu.dot_dimension_numbers<[1], [0], [0], [1], [0, 0, 1, 1], [], []>} : vector<256x4xf32>, vector<4x8xf32>, vector<256x8xf32> -> vector<256x8xf32>
    %49 = arith.addf %42, %48 : vector<256x8xf32>
    %c0_58 = arith.constant 0 : index
    %c1_59 = arith.constant 1 : index
    %c2_60 = arith.constant 2 : index
    %c0_61 = arith.constant 0 : index
    %50 = vector.load %arg2[%c0_58, %c1_59, %c2_60, %c0_61] : memref<1x20x20x4xf32, #tpu.memory_space<vmem>>, vector<1x16x16x4xf32>
    %51 = vector.shape_cast %50 : vector<1x16x16x4xf32> to vector<16x16x4xf32>
    %52 = vector.shape_cast %51 : vector<16x16x4xf32> to vector<256x4xf32>
    %c1_62 = arith.constant 1 : index
    %c2_63 = arith.constant 2 : index
    %c0_64 = arith.constant 0 : index
    %c0_65 = arith.constant 0 : index
    %53 = vector.load %arg3[%c1_62, %c2_63, %c0_64, %c0_65] : memref<5x5x4x8xf32, #tpu.memory_space<vmem>>, vector<1x1x4x8xf32>
    %54 = vector.shape_cast %53 : vector<1x1x4x8xf32> to vector<4x8xf32>
    %cst_66 = arith.constant dense<0.000000e+00> : vector<256x8xf32>
    %55 = tpu.matmul %52, %54, %cst_66 {dimension_numbers = #tpu.dot_dimension_numbers<[1], [0], [0], [1], [0, 0, 1, 1], [], []>} : vector<256x4xf32>, vector<4x8xf32>, vector<256x8xf32> -> vector<256x8xf32>
    %56 = arith.addf %49, %55 : vector<256x8xf32>
    %c0_67 = arith.constant 0 : index
    %c1_68 = arith.constant 1 : index
    %c3_69 = arith.constant 3 : index
    %c0_70 = arith.constant 0 : index
    %57 = vector.load %arg2[%c0_67, %c1_68, %c3_69, %c0_70] : memref<1x20x20x4xf32, #tpu.memory_space<vmem>>, vector<1x16x16x4xf32>
    %58 = vector.shape_cast %57 : vector<1x16x16x4xf32> to vector<16x16x4xf32>
    %59 = vector.shape_cast %58 : vector<16x16x4xf32> to vector<256x4xf32>
    %c1_71 = arith.constant 1 : index
    %c3_72 = arith.constant 3 : index
    %c0_73 = arith.constant 0 : index
    %c0_74 = arith.constant 0 : index
    %60 = vector.load %arg3[%c1_71, %c3_72, %c0_73, %c0_74] : memref<5x5x4x8xf32, #tpu.memory_space<vmem>>, vector<1x1x4x8xf32>
    %61 = vector.shape_cast %60 : vector<1x1x4x8xf32> to vector<4x8xf32>
    %cst_75 = arith.constant dense<0.000000e+00> : vector<256x8xf32>
    %62 = tpu.matmul %59, %61, %cst_75 {dimension_numbers = #tpu.dot_dimension_numbers<[1], [0], [0], [1], [0, 0, 1, 1], [], []>} : vector<256x4xf32>, vector<4x8xf32>, vector<256x8xf32> -> vector<256x8xf32>
    %63 = arith.addf %56, %62 : vector<256x8xf32>
    %c0_76 = arith.constant 0 : index
    %c1_77 = arith.constant 1 : index
    %c4_78 = arith.constant 4 : index
    %c0_79 = arith.constant 0 : index
    %64 = vector.load %arg2[%c0_76, %c1_77, %c4_78, %c0_79] : memref<1x20x20x4xf32, #tpu.memory_space<vmem>>, vector<1x16x16x4xf32>
    %65 = vector.shape_cast %64 : vector<1x16x16x4xf32> to vector<16x16x4xf32>
    %66 = vector.shape_cast %65 : vector<16x16x4xf32> to vector<256x4xf32>
    %c1_80 = arith.constant 1 : index
    %c4_81 = arith.constant 4 : index
    %c0_82 = arith.constant 0 : index
    %c0_83 = arith.constant 0 : index
    %67 = vector.load %arg3[%c1_80, %c4_81, %c0_82, %c0_83] : memref<5x5x4x8xf32, #tpu.memory_space<vmem>>, vector<1x1x4x8xf32>
    %68 = vector.shape_cast %67 : vector<1x1x4x8xf32> to vector<4x8xf32>
    %cst_84 = arith.constant dense<0.000000e+00> : vector<256x8xf32>
    %69 = tpu.matmul %66, %68, %cst_84 {dimension_numbers = #tpu.dot_dimension_numbers<[1], [0], [0], [1], [0, 0, 1, 1], [], []>} : vector<256x4xf32>, vector<4x8xf32>, vector<256x8xf32> -> vector<256x8xf32>
    %70 = arith.addf %63, %69 : vector<256x8xf32>
    %c0_85 = arith.constant 0 : index
    %c2_86 = arith.constant 2 : index
    %c0_87 = arith.constant 0 : index
    %c0_88 = arith.constant 0 : index
    %71 = vector.load %arg2[%c0_85, %c2_86, %c0_87, %c0_88] : memref<1x20x20x4xf32, #tpu.memory_space<vmem>>, vector<1x16x16x4xf32>
    %72 = vector.shape_cast %71 : vector<1x16x16x4xf32> to vector<16x16x4xf32>
    %73 = vector.shape_cast %72 : vector<16x16x4xf32> to vector<256x4xf32>
    %c2_89 = arith.constant 2 : index
    %c0_90 = arith.constant 0 : index
    %c0_91 = arith.constant 0 : index
    %c0_92 = arith.constant 0 : index
    %74 = vector.load %arg3[%c2_89, %c0_90, %c0_91, %c0_92] : memref<5x5x4x8xf32, #tpu.memory_space<vmem>>, vector<1x1x4x8xf32>
    %75 = vector.shape_cast %74 : vector<1x1x4x8xf32> to vector<4x8xf32>
    %cst_93 = arith.constant dense<0.000000e+00> : vector<256x8xf32>
    %76 = tpu.matmul %73, %75, %cst_93 {dimension_numbers = #tpu.dot_dimension_numbers<[1], [0], [0], [1], [0, 0, 1, 1], [], []>} : vector<256x4xf32>, vector<4x8xf32>, vector<256x8xf32> -> vector<256x8xf32>
    %77 = arith.addf %70, %76 : vector<256x8xf32>
    %c0_94 = arith.constant 0 : index
    %c2_95 = arith.constant 2 : index
    %c1_96 = arith.constant 1 : index
    %c0_97 = arith.constant 0 : index
    %78 = vector.load %arg2[%c0_94, %c2_95, %c1_96, %c0_97] : memref<1x20x20x4xf32, #tpu.memory_space<vmem>>, vector<1x16x16x4xf32>
    %79 = vector.shape_cast %78 : vector<1x16x16x4xf32> to vector<16x16x4xf32>
    %80 = vector.shape_cast %79 : vector<16x16x4xf32> to vector<256x4xf32>
    %c2_98 = arith.constant 2 : index
    %c1_99 = arith.constant 1 : index
    %c0_100 = arith.constant 0 : index
    %c0_101 = arith.constant 0 : index
    %81 = vector.load %arg3[%c2_98, %c1_99, %c0_100, %c0_101] : memref<5x5x4x8xf32, #tpu.memory_space<vmem>>, vector<1x1x4x8xf32>
    %82 = vector.shape_cast %81 : vector<1x1x4x8xf32> to vector<4x8xf32>
    %cst_102 = arith.constant dense<0.000000e+00> : vector<256x8xf32>
    %83 = tpu.matmul %80, %82, %cst_102 {dimension_numbers = #tpu.dot_dimension_numbers<[1], [0], [0], [1], [0, 0, 1, 1], [], []>} : vector<256x4xf32>, vector<4x8xf32>, vector<256x8xf32> -> vector<256x8xf32>
    %84 = arith.addf %77, %83 : vector<256x8xf32>
    %c0_103 = arith.constant 0 : index
    %c2_104 = arith.constant 2 : index
    %c2_105 = arith.constant 2 : index
    %c0_106 = arith.constant 0 : index
    %85 = vector.load %arg2[%c0_103, %c2_104, %c2_105, %c0_106] : memref<1x20x20x4xf32, #tpu.memory_space<vmem>>, vector<1x16x16x4xf32>
    %86 = vector.shape_cast %85 : vector<1x16x16x4xf32> to vector<16x16x4xf32>
    %87 = vector.shape_cast %86 : vector<16x16x4xf32> to vector<256x4xf32>
    %c2_107 = arith.constant 2 : index
    %c2_108 = arith.constant 2 : index
    %c0_109 = arith.constant 0 : index
    %c0_110 = arith.constant 0 : index
    %88 = vector.load %arg3[%c2_107, %c2_108, %c0_109, %c0_110] : memref<5x5x4x8xf32, #tpu.memory_space<vmem>>, vector<1x1x4x8xf32>
    %89 = vector.shape_cast %88 : vector<1x1x4x8xf32> to vector<4x8xf32>
    %cst_111 = arith.constant dense<0.000000e+00> : vector<256x8xf32>
    %90 = tpu.matmul %87, %89, %cst_111 {dimension_numbers = #tpu.dot_dimension_numbers<[1], [0], [0], [1], [0, 0, 1, 1], [], []>} : vector<256x4xf32>, vector<4x8xf32>, vector<256x8xf32> -> vector<256x8xf32>
    %91 = arith.addf %84, %90 : vector<256x8xf32>
    %c0_112 = arith.constant 0 : index
    %c2_113 = arith.constant 2 : index
    %c3_114 = arith.constant 3 : index
    %c0_115 = arith.constant 0 : index
    %92 = vector.load %arg2[%c0_112, %c2_113, %c3_114, %c0_115] : memref<1x20x20x4xf32, #tpu.memory_space<vmem>>, vector<1x16x16x4xf32>
    %93 = vector.shape_cast %92 : vector<1x16x16x4xf32> to vector<16x16x4xf32>
    %94 = vector.shape_cast %93 : vector<16x16x4xf32> to vector<256x4xf32>
    %c2_116 = arith.constant 2 : index
    %c3_117 = arith.constant 3 : index
    %c0_118 = arith.constant 0 : index
    %c0_119 = arith.constant 0 : index
    %95 = vector.load %arg3[%c2_116, %c3_117, %c0_118, %c0_119] : memref<5x5x4x8xf32, #tpu.memory_space<vmem>>, vector<1x1x4x8xf32>
    %96 = vector.shape_cast %95 : vector<1x1x4x8xf32> to vector<4x8xf32>
    %cst_120 = arith.constant dense<0.000000e+00> : vector<256x8xf32>
    %97 = tpu.matmul %94, %96, %cst_120 {dimension_numbers = #tpu.dot_dimension_numbers<[1], [0], [0], [1], [0, 0, 1, 1], [], []>} : vector<256x4xf32>, vector<4x8xf32>, vector<256x8xf32> -> vector<256x8xf32>
    %98 = arith.addf %91, %97 : vector<256x8xf32>
    %c0_121 = arith.constant 0 : index
    %c2_122 = arith.constant 2 : index
    %c4_123 = arith.constant 4 : index
    %c0_124 = arith.constant 0 : index
    %99 = vector.load %arg2[%c0_121, %c2_122, %c4_123, %c0_124] : memref<1x20x20x4xf32, #tpu.memory_space<vmem>>, vector<1x16x16x4xf32>
    %100 = vector.shape_cast %99 : vector<1x16x16x4xf32> to vector<16x16x4xf32>
    %101 = vector.shape_cast %100 : vector<16x16x4xf32> to vector<256x4xf32>
    %c2_125 = arith.constant 2 : index
    %c4_126 = arith.constant 4 : index
    %c0_127 = arith.constant 0 : index
    %c0_128 = arith.constant 0 : index
    %102 = vector.load %arg3[%c2_125, %c4_126, %c0_127, %c0_128] : memref<5x5x4x8xf32, #tpu.memory_space<vmem>>, vector<1x1x4x8xf32>
    %103 = vector.shape_cast %102 : vector<1x1x4x8xf32> to vector<4x8xf32>
    %cst_129 = arith.constant dense<0.000000e+00> : vector<256x8xf32>
    %104 = tpu.matmul %101, %103, %cst_129 {dimension_numbers = #tpu.dot_dimension_numbers<[1], [0], [0], [1], [0, 0, 1, 1], [], []>} : vector<256x4xf32>, vector<4x8xf32>, vector<256x8xf32> -> vector<256x8xf32>
    %105 = arith.addf %98, %104 : vector<256x8xf32>
    %c0_130 = arith.constant 0 : index
    %c3_131 = arith.constant 3 : index
    %c0_132 = arith.constant 0 : index
    %c0_133 = arith.constant 0 : index
    %106 = vector.load %arg2[%c0_130, %c3_131, %c0_132, %c0_133] : memref<1x20x20x4xf32, #tpu.memory_space<vmem>>, vector<1x16x16x4xf32>
    %107 = vector.shape_cast %106 : vector<1x16x16x4xf32> to vector<16x16x4xf32>
    %108 = vector.shape_cast %107 : vector<16x16x4xf32> to vector<256x4xf32>
    %c3_134 = arith.constant 3 : index
    %c0_135 = arith.constant 0 : index
    %c0_136 = arith.constant 0 : index
    %c0_137 = arith.constant 0 : index
    %109 = vector.load %arg3[%c3_134, %c0_135, %c0_136, %c0_137] : memref<5x5x4x8xf32, #tpu.memory_space<vmem>>, vector<1x1x4x8xf32>
    %110 = vector.shape_cast %109 : vector<1x1x4x8xf32> to vector<4x8xf32>
    %cst_138 = arith.constant dense<0.000000e+00> : vector<256x8xf32>
    %111 = tpu.matmul %108, %110, %cst_138 {dimension_numbers = #tpu.dot_dimension_numbers<[1], [0], [0], [1], [0, 0, 1, 1], [], []>} : vector<256x4xf32>, vector<4x8xf32>, vector<256x8xf32> -> vector<256x8xf32>
    %112 = arith.addf %105, %111 : vector<256x8xf32>
    %c0_139 = arith.constant 0 : index
    %c3_140 = arith.constant 3 : index
    %c1_141 = arith.constant 1 : index
    %c0_142 = arith.constant 0 : index
    %113 = vector.load %arg2[%c0_139, %c3_140, %c1_141, %c0_142] : memref<1x20x20x4xf32, #tpu.memory_space<vmem>>, vector<1x16x16x4xf32>
    %114 = vector.shape_cast %113 : vector<1x16x16x4xf32> to vector<16x16x4xf32>
    %115 = vector.shape_cast %114 : vector<16x16x4xf32> to vector<256x4xf32>
    %c3_143 = arith.constant 3 : index
    %c1_144 = arith.constant 1 : index
    %c0_145 = arith.constant 0 : index
    %c0_146 = arith.constant 0 : index
    %116 = vector.load %arg3[%c3_143, %c1_144, %c0_145, %c0_146] : memref<5x5x4x8xf32, #tpu.memory_space<vmem>>, vector<1x1x4x8xf32>
    %117 = vector.shape_cast %116 : vector<1x1x4x8xf32> to vector<4x8xf32>
    %cst_147 = arith.constant dense<0.000000e+00> : vector<256x8xf32>
    %118 = tpu.matmul %115, %117, %cst_147 {dimension_numbers = #tpu.dot_dimension_numbers<[1], [0], [0], [1], [0, 0, 1, 1], [], []>} : vector<256x4xf32>, vector<4x8xf32>, vector<256x8xf32> -> vector<256x8xf32>
    %119 = arith.addf %112, %118 : vector<256x8xf32>
    %c0_148 = arith.constant 0 : index
    %c3_149 = arith.constant 3 : index
    %c2_150 = arith.constant 2 : index
    %c0_151 = arith.constant 0 : index
    %120 = vector.load %arg2[%c0_148, %c3_149, %c2_150, %c0_151] : memref<1x20x20x4xf32, #tpu.memory_space<vmem>>, vector<1x16x16x4xf32>
    %121 = vector.shape_cast %120 : vector<1x16x16x4xf32> to vector<16x16x4xf32>
    %122 = vector.shape_cast %121 : vector<16x16x4xf32> to vector<256x4xf32>
    %c3_152 = arith.constant 3 : index
    %c2_153 = arith.constant 2 : index
    %c0_154 = arith.constant 0 : index
    %c0_155 = arith.constant 0 : index
    %123 = vector.load %arg3[%c3_152, %c2_153, %c0_154, %c0_155] : memref<5x5x4x8xf32, #tpu.memory_space<vmem>>, vector<1x1x4x8xf32>
    %124 = vector.shape_cast %123 : vector<1x1x4x8xf32> to vector<4x8xf32>
    %cst_156 = arith.constant dense<0.000000e+00> : vector<256x8xf32>
    %125 = tpu.matmul %122, %124, %cst_156 {dimension_numbers = #tpu.dot_dimension_numbers<[1], [0], [0], [1], [0, 0, 1, 1], [], []>} : vector<256x4xf32>, vector<4x8xf32>, vector<256x8xf32> -> vector<256x8xf32>
    %126 = arith.addf %119, %125 : vector<256x8xf32>
    %c0_157 = arith.constant 0 : index
    %c3_158 = arith.constant 3 : index
    %c3_159 = arith.constant 3 : index
    %c0_160 = arith.constant 0 : index
    %127 = vector.load %arg2[%c0_157, %c3_158, %c3_159, %c0_160] : memref<1x20x20x4xf32, #tpu.memory_space<vmem>>, vector<1x16x16x4xf32>
    %128 = vector.shape_cast %127 : vector<1x16x16x4xf32> to vector<16x16x4xf32>
    %129 = vector.shape_cast %128 : vector<16x16x4xf32> to vector<256x4xf32>
    %c3_161 = arith.constant 3 : index
    %c3_162 = arith.constant 3 : index
    %c0_163 = arith.constant 0 : index
    %c0_164 = arith.constant 0 : index
    %130 = vector.load %arg3[%c3_161, %c3_162, %c0_163, %c0_164] : memref<5x5x4x8xf32, #tpu.memory_space<vmem>>, vector<1x1x4x8xf32>
    %131 = vector.shape_cast %130 : vector<1x1x4x8xf32> to vector<4x8xf32>
    %cst_165 = arith.constant dense<0.000000e+00> : vector<256x8xf32>
    %132 = tpu.matmul %129, %131, %cst_165 {dimension_numbers = #tpu.dot_dimension_numbers<[1], [0], [0], [1], [0, 0, 1, 1], [], []>} : vector<256x4xf32>, vector<4x8xf32>, vector<256x8xf32> -> vector<256x8xf32>
    %133 = arith.addf %126, %132 : vector<256x8xf32>
    %c0_166 = arith.constant 0 : index
    %c3_167 = arith.constant 3 : index
    %c4_168 = arith.constant 4 : index
    %c0_169 = arith.constant 0 : index
    %134 = vector.load %arg2[%c0_166, %c3_167, %c4_168, %c0_169] : memref<1x20x20x4xf32, #tpu.memory_space<vmem>>, vector<1x16x16x4xf32>
    %135 = vector.shape_cast %134 : vector<1x16x16x4xf32> to vector<16x16x4xf32>
    %136 = vector.shape_cast %135 : vector<16x16x4xf32> to vector<256x4xf32>
    %c3_170 = arith.constant 3 : index
    %c4_171 = arith.constant 4 : index
    %c0_172 = arith.constant 0 : index
    %c0_173 = arith.constant 0 : index
    %137 = vector.load %arg3[%c3_170, %c4_171, %c0_172, %c0_173] : memref<5x5x4x8xf32, #tpu.memory_space<vmem>>, vector<1x1x4x8xf32>
    %138 = vector.shape_cast %137 : vector<1x1x4x8xf32> to vector<4x8xf32>
    %cst_174 = arith.constant dense<0.000000e+00> : vector<256x8xf32>
    %139 = tpu.matmul %136, %138, %cst_174 {dimension_numbers = #tpu.dot_dimension_numbers<[1], [0], [0], [1], [0, 0, 1, 1], [], []>} : vector<256x4xf32>, vector<4x8xf32>, vector<256x8xf32> -> vector<256x8xf32>
    %140 = arith.addf %133, %139 : vector<256x8xf32>
    %c0_175 = arith.constant 0 : index
    %c4_176 = arith.constant 4 : index
    %c0_177 = arith.constant 0 : index
    %c0_178 = arith.constant 0 : index
    %141 = vector.load %arg2[%c0_175, %c4_176, %c0_177, %c0_178] : memref<1x20x20x4xf32, #tpu.memory_space<vmem>>, vector<1x16x16x4xf32>
    %142 = vector.shape_cast %141 : vector<1x16x16x4xf32> to vector<16x16x4xf32>
    %143 = vector.shape_cast %142 : vector<16x16x4xf32> to vector<256x4xf32>
    %c4_179 = arith.constant 4 : index
    %c0_180 = arith.constant 0 : index
    %c0_181 = arith.constant 0 : index
    %c0_182 = arith.constant 0 : index
    %144 = vector.load %arg3[%c4_179, %c0_180, %c0_181, %c0_182] : memref<5x5x4x8xf32, #tpu.memory_space<vmem>>, vector<1x1x4x8xf32>
    %145 = vector.shape_cast %144 : vector<1x1x4x8xf32> to vector<4x8xf32>
    %cst_183 = arith.constant dense<0.000000e+00> : vector<256x8xf32>
    %146 = tpu.matmul %143, %145, %cst_183 {dimension_numbers = #tpu.dot_dimension_numbers<[1], [0], [0], [1], [0, 0, 1, 1], [], []>} : vector<256x4xf32>, vector<4x8xf32>, vector<256x8xf32> -> vector<256x8xf32>
    %147 = arith.addf %140, %146 : vector<256x8xf32>
    %c0_184 = arith.constant 0 : index
    %c4_185 = arith.constant 4 : index
    %c1_186 = arith.constant 1 : index
    %c0_187 = arith.constant 0 : index
    %148 = vector.load %arg2[%c0_184, %c4_185, %c1_186, %c0_187] : memref<1x20x20x4xf32, #tpu.memory_space<vmem>>, vector<1x16x16x4xf32>
    %149 = vector.shape_cast %148 : vector<1x16x16x4xf32> to vector<16x16x4xf32>
    %150 = vector.shape_cast %149 : vector<16x16x4xf32> to vector<256x4xf32>
    %c4_188 = arith.constant 4 : index
    %c1_189 = arith.constant 1 : index
    %c0_190 = arith.constant 0 : index
    %c0_191 = arith.constant 0 : index
    %151 = vector.load %arg3[%c4_188, %c1_189, %c0_190, %c0_191] : memref<5x5x4x8xf32, #tpu.memory_space<vmem>>, vector<1x1x4x8xf32>
    %152 = vector.shape_cast %151 : vector<1x1x4x8xf32> to vector<4x8xf32>
    %cst_192 = arith.constant dense<0.000000e+00> : vector<256x8xf32>
    %153 = tpu.matmul %150, %152, %cst_192 {dimension_numbers = #tpu.dot_dimension_numbers<[1], [0], [0], [1], [0, 0, 1, 1], [], []>} : vector<256x4xf32>, vector<4x8xf32>, vector<256x8xf32> -> vector<256x8xf32>
    %154 = arith.addf %147, %153 : vector<256x8xf32>
    %c0_193 = arith.constant 0 : index
    %c4_194 = arith.constant 4 : index
    %c2_195 = arith.constant 2 : index
    %c0_196 = arith.constant 0 : index
    %155 = vector.load %arg2[%c0_193, %c4_194, %c2_195, %c0_196] : memref<1x20x20x4xf32, #tpu.memory_space<vmem>>, vector<1x16x16x4xf32>
    %156 = vector.shape_cast %155 : vector<1x16x16x4xf32> to vector<16x16x4xf32>
    %157 = vector.shape_cast %156 : vector<16x16x4xf32> to vector<256x4xf32>
    %c4_197 = arith.constant 4 : index
    %c2_198 = arith.constant 2 : index
    %c0_199 = arith.constant 0 : index
    %c0_200 = arith.constant 0 : index
    %158 = vector.load %arg3[%c4_197, %c2_198, %c0_199, %c0_200] : memref<5x5x4x8xf32, #tpu.memory_space<vmem>>, vector<1x1x4x8xf32>
    %159 = vector.shape_cast %158 : vector<1x1x4x8xf32> to vector<4x8xf32>
    %cst_201 = arith.constant dense<0.000000e+00> : vector<256x8xf32>
    %160 = tpu.matmul %157, %159, %cst_201 {dimension_numbers = #tpu.dot_dimension_numbers<[1], [0], [0], [1], [0, 0, 1, 1], [], []>} : vector<256x4xf32>, vector<4x8xf32>, vector<256x8xf32> -> vector<256x8xf32>
    %161 = arith.addf %154, %160 : vector<256x8xf32>
    %c0_202 = arith.constant 0 : index
    %c4_203 = arith.constant 4 : index
    %c3_204 = arith.constant 3 : index
    %c0_205 = arith.constant 0 : index
    %162 = vector.load %arg2[%c0_202, %c4_203, %c3_204, %c0_205] : memref<1x20x20x4xf32, #tpu.memory_space<vmem>>, vector<1x16x16x4xf32>
    %163 = vector.shape_cast %162 : vector<1x16x16x4xf32> to vector<16x16x4xf32>
    %164 = vector.shape_cast %163 : vector<16x16x4xf32> to vector<256x4xf32>
    %c4_206 = arith.constant 4 : index
    %c3_207 = arith.constant 3 : index
    %c0_208 = arith.constant 0 : index
    %c0_209 = arith.constant 0 : index
    %165 = vector.load %arg3[%c4_206, %c3_207, %c0_208, %c0_209] : memref<5x5x4x8xf32, #tpu.memory_space<vmem>>, vector<1x1x4x8xf32>
    %166 = vector.shape_cast %165 : vector<1x1x4x8xf32> to vector<4x8xf32>
    %cst_210 = arith.constant dense<0.000000e+00> : vector<256x8xf32>
    %167 = tpu.matmul %164, %166, %cst_210 {dimension_numbers = #tpu.dot_dimension_numbers<[1], [0], [0], [1], [0, 0, 1, 1], [], []>} : vector<256x4xf32>, vector<4x8xf32>, vector<256x8xf32> -> vector<256x8xf32>
    %168 = arith.addf %161, %167 : vector<256x8xf32>
    %c0_211 = arith.constant 0 : index
    %c4_212 = arith.constant 4 : index
    %c4_213 = arith.constant 4 : index
    %c0_214 = arith.constant 0 : index
    %169 = vector.load %arg2[%c0_211, %c4_212, %c4_213, %c0_214] : memref<1x20x20x4xf32, #tpu.memory_space<vmem>>, vector<1x16x16x4xf32>
    %170 = vector.shape_cast %169 : vector<1x16x16x4xf32> to vector<16x16x4xf32>
    %171 = vector.shape_cast %170 : vector<16x16x4xf32> to vector<256x4xf32>
    %c4_215 = arith.constant 4 : index
    %c4_216 = arith.constant 4 : index
    %c0_217 = arith.constant 0 : index
    %c0_218 = arith.constant 0 : index
    %172 = vector.load %arg3[%c4_215, %c4_216, %c0_217, %c0_218] : memref<5x5x4x8xf32, #tpu.memory_space<vmem>>, vector<1x1x4x8xf32>
    %173 = vector.shape_cast %172 : vector<1x1x4x8xf32> to vector<4x8xf32>
    %cst_219 = arith.constant dense<0.000000e+00> : vector<256x8xf32>
    %174 = tpu.matmul %171, %173, %cst_219 {dimension_numbers = #tpu.dot_dimension_numbers<[1], [0], [0], [1], [0, 0, 1, 1], [], []>} : vector<256x4xf32>, vector<4x8xf32>, vector<256x8xf32> -> vector<256x8xf32>
    %175 = arith.addf %168, %174 : vector<256x8xf32>
    %c0_220 = arith.constant 0 : index
    %c0_221 = arith.constant 0 : index
    %176 = vector.load %arg4[%c0_220, %c0_221] : memref<1x8xf32, #tpu.memory_space<vmem>>, vector<1x8xf32>
    %177 = vector.broadcast %176 : vector<1x8xf32> to vector<256x8xf32>
    %178 = arith.addf %175, %177 : vector<256x8xf32>
    %c0_222 = arith.constant 0 : index
    %c0_223 = arith.constant 0 : index
    %c0_224 = arith.constant 0 : index
    %179 = vector.load %arg5[%c0_222, %c0_223, %c0_224] : memref<1x256x8xf32, #tpu.memory_space<vmem>>, vector<1x256x8xf32>
    %180 = vector.shape_cast %179 : vector<1x256x8xf32> to vector<256x8xf32>
    %181 = vector.shape_cast %178 : vector<256x8xf32> to vector<1x256x8xf32>
    tpu.vector_store %arg5[%c0_222, %c0_223, %c0_224], %181 {strides = array<i32>} : memref<1x256x8xf32, #tpu.memory_space<vmem>>, vector<1x256x8xf32>,
    return
  }
  func.func @transform_0(%arg0: i32, %arg1: i32) -> (i32, i32, i32, i32) {
    %c0_i32 = arith.constant 0 : i32
    %c0_i32_0 = arith.constant 0 : i32
    %c0_i32_1 = arith.constant 0 : i32
    %c0_i32_2 = arith.constant 0 : i32
    return %arg0, %c0_i32, %c0_i32_0, %c0_i32_1 : i32, i32, i32, i32
  }
  func.func @transform_1(%arg0: i32, %arg1: i32) -> (i32, i32, i32, i32) {
    %c0_i32 = arith.constant 0 : i32
    %c0_i32_0 = arith.constant 0 : i32
    %c0_i32_1 = arith.constant 0 : i32
    %c0_i32_2 = arith.constant 0 : i32
    return %c0_i32, %c0_i32_0, %c0_i32_1, %arg1 : i32, i32, i32, i32
  }
  func.func @transform_2(%arg0: i32, %arg1: i32) -> (i32, i32) {
    %c0_i32 = arith.constant 0 : i32
    %c0_i32_0 = arith.constant 0 : i32
    return %c0_i32, %arg1 : i32, i32
  }
  func.func @transform_3(%arg0: i32, %arg1: i32) -> (i32, i32, i32) {
    %c0_i32 = arith.constant 0 : i32
    %c0_i32_0 = arith.constant 0 : i32
    return %arg0, %c0_i32, %arg1 : i32, i32, i32
  }
}

</mosaic_0001>

<llo_original>
// kernel: conv2d_pallas.1
$region0: #{conv2d_pallas.1}
  #allocation0 [shape = 'u32[]', space=smem, size = 0x4, offset = 0x4, fixed_abs, tag = 'smem constant byte address 0x4 - core index']
  #allocation1 [shape = 'u32[144,128]{1,0:T(1,128)}', space=vmem, size = 0x12000, scoped, tag = 'internal scratch']
  %s0 = inlined_call_operand.vmem [shape: f32[2,20,20,4], index: 0, kind: input, shape index: {}]
  %s1 = inlined_call_operand.vmem [shape: f32[5,5,4,8], index: 1, kind: input, shape index: {}]
  %s2 = inlined_call_operand.vmem [shape: f32[1,8], index: 2, kind: input, shape index: {}]
  %s3 = inlined_call_operand.vmem [shape: f32[2,256,8], index: 3, kind: output, shape index: {}]
  %s4 = sld [smem:[#allocation0]]
  $region45: #{conv2d_pallas.1} parent=0
    _
  %s6 = ssub.s32 1, %s4
  %s7 = scalar_select 0, %s6, %s4
  loop: start=0, step=1, limit=4
  $region2: #{conv2d_pallas.1} parent=0 // loop_pre_header
    _
  $region3: #{conv2d_pallas.1} parent=0 // loop_header
    %s9 = sphi 0, %s13
    %p10 = scmp.ge.s32.totalorder %s9, 4
    %s16 = sphi 0, %s28
    %s17 = sphi 0, %s24
    %s18 = sphi 0, %s16
    %s19 = sphi 0, %s17
    %s20 = sphi 0, %s18
    %s21 = sphi 0, %s19
    %s31 = sphi 0, %s33
    %s34 = sphi 0, %s31
    %s35 = sphi 0, %s34
    %s51 = sphi 0, %s35
    %s57 = sphi 0, %s59
    %s60 = sphi 0, %s57
    %s61 = sphi 0, %s60
    %s77 = sphi 0, %s61
    %s83 = sphi 0, %s85
    %s86 = sphi 0, %s83
    %s87 = sphi 0, %s86
    %s103 = sphi 0, %s87
    %s111 = sphi 0, %s113
    %s114 = sphi 0, %s111
    %s115 = sphi 0, %s114
    %s131 = sphi 0, %s115
  $region4: #{conv2d_pallas.1} parent=0 // loop_header_branch
    %12 = sbr.rel (%p10) target = $region8
  $region5: #{conv2d_pallas.1} parent=0 // loop_body
    %s14 = ssub.s32 %s9, 1
    %s15 = ssub.s32 %s9, 2
    %s22 = sadd.s32 1, %s17
    %p23 = scmp.ge.s32.totalorder %s22, 1
    %s24 = scalar_select %p23, 0, %s22
    %s25 = sadd.s32 1, %s16
    %s26 = scalar_select %p23, %s25, %s16
    %p27 = scmp.ge.s32.totalorder %s26, 2
    %s28 = scalar_select %p27, 0, %s26
    %s29 = ssub.s32 %s16, %s28
    %p30 = scmp.eq.s32.totalorder %s29, 0
    %s32 = sadd.s32 %s31, 1
    %s33 = scalar_select %p30, %s31, %s32
    %p36 = pneg %p30
    %p37 = scmp.eq.s32.totalorder %s9, 1
    %p38 = por %p36, %p37
    %p39 = scmp.ne.s32.totalorder %s31, %s34
    %p40 = scmp.eq.s32.totalorder %s9, 0
    %p41 = por %p39, %p40
    %p42 = scmp.ne.s32.totalorder %s31, %s34
    %p43 = scmp.eq.s32.totalorder %s14, 1
    %p44 = por %p42, %p43
    %p45 = scmp.ne.s32.totalorder %s34, %s35
    %p46 = scmp.eq.s32.totalorder %s14, 0
    %p47 = por %p45, %p46
    %p48 = scmp.ne.s32.totalorder %s34, %s35
    %p49 = scmp.eq.s32.totalorder %s15, 1
    %p50 = por %p48, %p49
    %p52 = scmp.ne.s32.totalorder %s35, %s51
    %p53 = scmp.eq.s32.totalorder %s15, 0
    %p54 = por %p52, %p53
    %s55 = ssub.s32 %s17, %s24
    %p56 = scmp.eq.s32.totalorder %s55, 0
    %s58 = sadd.s32 %s57, 1
    %s59 = scalar_select %p56, %s57, %s58
    %p62 = pneg %p56
    %p63 = scmp.eq.s32.totalorder %s9, 1
    %p64 = por %p62, %p63
    %p65 = scmp.ne.s32.totalorder %s57, %s60
    %p66 = scmp.eq.s32.totalorder %s9, 0
    %p67 = por %p65, %p66
    %p68 = scmp.ne.s32.totalorder %s57, %s60
    %p69 = scmp.eq.s32.totalorder %s14, 1
    %p70 = por %p68, %p69
    %p71 = scmp.ne.s32.totalorder %s60, %s61
    %p72 = scmp.eq.s32.totalorder %s14, 0
    %p73 = por %p71, %p72
    %p74 = scmp.ne.s32.totalorder %s60, %s61
    %p75 = scmp.eq.s32.totalorder %s15, 1
    %p76 = por %p74, %p75
    %p78 = scmp.ne.s32.totalorder %s61, %s77
    %p79 = scmp.eq.s32.totalorder %s15, 0
    %p80 = por %p78, %p79
    %s81 = ssub.s32 %s17, %s24
    %p82 = scmp.eq.s32.totalorder %s81, 0
    %s84 = sadd.s32 %s83, 1
    %s85 = scalar_select %p82, %s83, %s84
    %p88 = pneg %p82
    %p89 = scmp.eq.s32.totalorder %s9, 1
    %p90 = por %p88, %p89
    %p91 = scmp.ne.s32.totalorder %s83, %s86
    %p92 = scmp.eq.s32.totalorder %s9, 0
    %p93 = por %p91, %p92
    %p94 = scmp.ne.s32.totalorder %s83, %s86
    %p95 = scmp.eq.s32.totalorder %s14, 1
    %p96 = por %p94, %p95
    %p97 = scmp.ne.s32.totalorder %s86, %s87
    %p98 = scmp.eq.s32.totalorder %s14, 0
    %p99 = por %p97, %p98
    %p100 = scmp.ne.s32.totalorder %s86, %s87
    %p101 = scmp.eq.s32.totalorder %s15, 1
    %p102 = por %p100, %p101
    %p104 = scmp.ne.s32.totalorder %s87, %s103
    %p105 = scmp.eq.s32.totalorder %s15, 0
    %p106 = por %p104, %p105
    %s107 = ssub.s32 %s16, %s28
    %s108 = ssub.s32 %s17, %s24
    %s109 = sor.u32 %s107, %s108
    %p110 = scmp.eq.s32.totalorder %s109, 0
    %s112 = sadd.s32 %s111, 1
    %s113 = scalar_select %p110, %s111, %s112
    %p116 = pneg %p110
    %p117 = scmp.eq.s32.totalorder %s9, 1
    %p118 = por %p116, %p117
    %p119 = scmp.ne.s32.totalorder %s111, %s114
    %p120 = scmp.eq.s32.totalorder %s9, 0
    %p121 = por %p119, %p120
    %p122 = scmp.ne.s32.totalorder %s111, %s114
    %p123 = scmp.eq.s32.totalorder %s14, 1
    %p124 = por %p122, %p123
    %p125 = scmp.ne.s32.totalorder %s114, %s115
    %p126 = scmp.eq.s32.totalorder %s14, 0
    %p127 = por %p125, %p126
    %p128 = scmp.ne.s32.totalorder %s114, %s115
    %p129 = scmp.eq.s32.totalorder %s15, 1
    %p130 = por %p128, %p129
    %p132 = scmp.ne.s32.totalorder %s115, %s131
    %p133 = scmp.eq.s32.totalorder %s15, 0
    %p134 = por %p132, %p133
    %p135 = scmp.le.s32.totalorder 1, %s9
    %p136 = scmp.lt.s32.totalorder %s9, 3
    %p137 = pnand %p135, %p136
    %p138 = pneg %p137
    // Predicated region
    $region9: #{conv2d_pallas.1} parent=5 // pred_check
      _
    $region10: #{conv2d_pallas.1} parent=5 // pred_check_branch
      %140 = sbr.rel (%p137) target = $region12
    $region11: #{conv2d_pallas.1} parent=5 // pred_region
      %s141 = ssub.s32 %s9, 1
      // Predicated region
      $region13: #{conv2d_pallas.1} parent=11 // pred_check
        %p142 = pneg %p73
      $region14: #{conv2d_pallas.1} parent=11 // pred_check_branch
        %144 = sbr.rel (%p142) target = $region16
      $region15: #{conv2d_pallas.1} parent=11 // pred_region
        %p145 = scmp.lt.s32.totalorder %s19, 0
        %s146 = scalar_select %p145, %s19, 0
        %s147 = smul.addr %s146, 4
        %s148 = scalar_lea.vmem %s1, %s147
      $region16: #{conv2d_pallas.1} parent=11 // pred_fallthru
        _
      // Predicated region
      $region17: #{conv2d_pallas.1} parent=11 // pred_check
        %p149 = pneg %p99
      $region18: #{conv2d_pallas.1} parent=11 // pred_check_branch
        %151 = sbr.rel (%p149) target = $region20
      $region19: #{conv2d_pallas.1} parent=11 // pred_region
        %p152 = scmp.lt.s32.totalorder %s19, 0
        %s153 = scalar_select %p152, %s19, 0
        %s154 = scalar_lea.vmem %s2, %s153
      $region20: #{conv2d_pallas.1} parent=11 // pred_fallthru
        _
    $region12: #{conv2d_pallas.1} parent=5 // pred_fallthru
      _
    %p155 = scmp.lt.s32.totalorder %s9, 2
    // Predicated region
    $region21: #{conv2d_pallas.1} parent=5 // pred_check
      %p156 = pneg %p155
    $region22: #{conv2d_pallas.1} parent=5 // pred_check_branch
      %158 = sbr.rel (%p156) target = $region24
    $region23: #{conv2d_pallas.1} parent=5 // pred_region
      // Predicated region
      $region25: #{conv2d_pallas.1} parent=23 // pred_check
        %p159 = pneg %p41
      $region26: #{conv2d_pallas.1} parent=23 // pred_check_branch
        %161 = sbr.rel (%p159) target = $region28
      $region27: #{conv2d_pallas.1} parent=23 // pred_region
        %p162 = scmp.lt.s32.totalorder %s16, 1
        %s163 = scalar_select %p162, %s16, 1
        %s164 = smul.addr %s163, 60
        %s165 = smul.addr %s164, 8
        %s166 = scalar_lea.vmem %s0, %s165
      $region28: #{conv2d_pallas.1} parent=23 // pred_fallthru
        _
    $region24: #{conv2d_pallas.1} parent=5 // pred_fallthru
      _
    %p167 = scmp.le.s32.totalorder 1, %s9
    %p168 = scmp.lt.s32.totalorder %s9, 3
    %p169 = pnand %p167, %p168
    %p170 = pneg %p169
    // Predicated region
    $region29: #{conv2d_pallas.1} parent=5 // pred_check
      _
    $region30: #{conv2d_pallas.1} parent=5 // pred_check_branch
      %172 = sbr.rel (%p169) target = $region32
    $region31: #{conv2d_pallas.1} parent=5 // pred_region
      %s173 = ssub.s32 %s9, 1
      %p174 = scmp.lt.s32.totalorder %s18, 1
      %s175 = scalar_select %p174, %s18, 1
      %s176 = smul.addr %s175, 60
      %s177 = smul.addr %s176, 8
      %s178 = scalar_lea.vmem %s0, %s177
      %p179 = pneg %p47
      %p180 = pneg %p44
      %p181 = scmp.lt.s32.totalorder %s19, 0
      %s182 = scalar_select %p181, %s19, 0
      %s183 = smul.addr %s182, 4
      %s184 = scalar_lea.vmem %s1, %s183
      %p185 = pneg %p73
      %p186 = pneg %p70
      %p187 = scmp.lt.s32.totalorder %s19, 0
      %s188 = scalar_select %p187, %s19, 0
      %s189 = scalar_lea.vmem %s2, %s188
      %p190 = pneg %p99
      %p191 = pneg %p96
      %p192 = pneg %p127
      %p193 = pneg %p124
      %p194 = scmp.lt.s32.totalorder %s18, 1
      %s195 = scalar_select %p194, %s18, 1
      %p196 = scmp.lt.s32.totalorder %s19, 0
      %s197 = scalar_select %p196, %s19, 0
      %s198 = smul.addr %s195, 32
      %s199 = sadd.s32 %s197, %s198
      %s200 = smul.addr %s199, 8
      %s201 = scalar_lea.vmem %s3, %s200
      %p202 = scmp.lt.s32.totalorder %s18, 1
      %s203 = scalar_select %p202, %s18, 1
      %s204 = smul.addr %s203, 60
      %s205 = smul.addr %s204, 8
      %s206 = scalar_lea.vmem %s0, %s205
      %p207 = scmp.lt.s32.totalorder %s19, 0
      %s208 = scalar_select %p207, %s19, 0
      %s209 = smul.addr %s208, 4
      %s210 = scalar_lea.vmem %s1, %s209
      %p211 = scmp.lt.s32.totalorder %s19, 0
      %s212 = scalar_select %p211, %s19, 0
      %s213 = scalar_lea.vmem %s2, %s212
      %p214 = scmp.lt.s32.totalorder %s18, 1
      %s215 = scalar_select %p214, %s18, 1
      %p216 = scmp.lt.s32.totalorder %s19, 0
      %s217 = scalar_select %p216, %s19, 0
      %s218 = smul.addr %s215, 32
      %s219 = sadd.s32 %s217, %s218
      %s220 = smul.addr %s219, 8
      %s221 = scalar_lea.vmem %s3, %s220
      %v222 = vld [vmem:[%s206] sm:$0xff]
      %v223 = vld [vmem:[%s206 + $0x8] sm:$0xff]
      %v224 = vld [vmem:[%s206 + $0x18] sm:$0xff]
      %v225 = vld [vmem:[%s206 + $0x20] sm:$0xff]
      %v226 = vld [vmem:[%s206 + $0x30] sm:$0xff]
      %v227 = vld [vmem:[%s206 + $0x38] sm:$0xff]
      %v228 = vld [vmem:[%s206 + $0x48] sm:$0xff]
      %v229 = vld [vmem:[%s206 + $0x50] sm:$0xff]
      %v230 = vld [vmem:[%s206 + $0x60] sm:$0xff]
      %v231 = vld [vmem:[%s206 + $0x68] sm:$0xff]
      %v232 = vld [vmem:[%s206 + $0x78] sm:$0xff]
      %v233 = vld [vmem:[%s206 + $0x80] sm:$0xff]
      %v234 = vld [vmem:[%s206 + $0x90] sm:$0xff]
      %v235 = vld [vmem:[%s206 + $0x98] sm:$0xff]
      %v236 = vld [vmem:[%s206 + $0xa8] sm:$0xff]
      %v237 = vld [vmem:[%s206 + $0xb0] sm:$0xff]
      %v238 = vld [vmem:[%s206 + $0xc0] sm:$0xff]
      %v239 = vld [vmem:[%s206 + $0xc8] sm:$0xff]
      %v240 = vld [vmem:[%s206 + $0xd8] sm:$0xff]
      %v241 = vld [vmem:[%s206 + $0xe0] sm:$0xff]
      %v242 = vld [vmem:[%s206 + $0xf0] sm:$0xff]
      %v243 = vld [vmem:[%s206 + $0xf8] sm:$0xff]
      %v244 = vld [vmem:[%s206 + $0x108] sm:$0xff]
      %v245 = vld [vmem:[%s206 + $0x110] sm:$0xff]
      %v246 = vld [vmem:[%s206 + $0x120] sm:$0xff]
      %v247 = vld [vmem:[%s206 + $0x128] sm:$0xff]
      %v248 = vld [vmem:[%s206 + $0x138] sm:$0xff]
      %v249 = vld [vmem:[%s206 + $0x140] sm:$0xff]
      %v250 = vld [vmem:[%s206 + $0x150] sm:$0xff]
      %v251 = vld [vmem:[%s206 + $0x158] sm:$0xff]
      %v252 = vld [vmem:[%s206 + $0x168] sm:$0xff]
      %v253 = vld [vmem:[%s206 + $0x170] sm:$0xff]
      %v254 = vld [vmem:[%s210] sm:$0xf]
      %v255 = vld [vmem:[%s206 + $0x1] sm:$0xff]
      %v256 = vld [vmem:[%s206 + $0x9] sm:$0xff]
      %v257 = vld [vmem:[%s206 + $0x19] sm:$0xff]
      %v258 = vld [vmem:[%s206 + $0x21] sm:$0xff]
      %v259 = vld [vmem:[%s206 + $0x31] sm:$0xff]
      %v260 = vld [vmem:[%s206 + $0x39] sm:$0xff]
      %v261 = vld [vmem:[%s206 + $0x49] sm:$0xff]
      %v262 = vld [vmem:[%s206 + $0x51] sm:$0xff]
      %v263 = vld [vmem:[%s206 + $0x61] sm:$0xff]
      %v264 = vld [vmem:[%s206 + $0x69] sm:$0xff]
      %v265 = vld [vmem:[%s206 + $0x79] sm:$0xff]
      %v266 = vld [vmem:[%s206 + $0x81] sm:$0xff]
      %v267 = vld [vmem:[%s206 + $0x91] sm:$0xff]
      %v268 = vld [vmem:[%s206 + $0x99] sm:$0xff]
      %v269 = vld [vmem:[%s206 + $0xa9] sm:$0xff]
      %v270 = vld [vmem:[%s206 + $0xb1] sm:$0xff]
      %v271 = vld [vmem:[%s206 + $0xc1] sm:$0xff]
      %v272 = vld [vmem:[%s206 + $0xc9] sm:$0xff]
      %v273 = vld [vmem:[%s206 + $0xd9] sm:$0xff]
      %v274 = vld [vmem:[%s206 + $0xe1] sm:$0xff]
      %v275 = vld [vmem:[%s206 + $0xf1] sm:$0xff]
      %v276 = vld [vmem:[%s206 + $0xf9] sm:$0xff]
      %v277 = vld [vmem:[%s206 + $0x109] sm:$0xff]
      %v278 = vld [vmem:[%s206 + $0x111] sm:$0xff]
      %v279 = vld [vmem:[%s206 + $0x121] sm:$0xff]
      %v280 = vld [vmem:[%s206 + $0x129] sm:$0xff]
      %v281 = vld [vmem:[%s206 + $0x139] sm:$0xff]
      %v282 = vld [vmem:[%s206 + $0x141] sm:$0xff]
      %v283 = vld [vmem:[%s206 + $0x151] sm:$0xff]
      %v284 = vld [vmem:[%s206 + $0x159] sm:$0xff]
      %v285 = vld [vmem:[%s206 + $0x169] sm:$0xff]
      %v286 = vld [vmem:[%s206 + $0x171] sm:$0xff]
      %s287 = scalar_lea.vmem %s210, 4
      %v288 = vld [vmem:[%s287] sm:$0xf]
      %vm289 = vcmask 31744
      %v291 = vsel %vm289, %v255, 0
      %v294 = vsel %vm289, %v256, 0
      %v297 = vsel %vm289, %v257, 0
      %v300 = vsel %vm289, %v258, 0
      %v303 = vsel %vm289, %v259, 0
      %v306 = vsel %vm289, %v260, 0
      %v309 = vsel %vm289, %v261, 0
      %v312 = vsel %vm289, %v262, 0
      %v315 = vsel %vm289, %v263, 0
      %v318 = vsel %vm289, %v264, 0
      %v321 = vsel %vm289, %v265, 0
      %v324 = vsel %vm289, %v266, 0
      %v327 = vsel %vm289, %v267, 0
      %v330 = vsel %vm289, %v268, 0
      %v333 = vsel %vm289, %v269, 0
      %v336 = vsel %vm289, %v270, 0
      %v339 = vsel %vm289, %v271, 0
      %v342 = vsel %vm289, %v272, 0
      %v345 = vsel %vm289, %v273, 0
      %v348 = vsel %vm289, %v274, 0
      %v351 = vsel %vm289, %v275, 0
      %v354 = vsel %vm289, %v276, 0
      %v357 = vsel %vm289, %v277, 0
      %v360 = vsel %vm289, %v278, 0
      %v363 = vsel %vm289, %v279, 0
      %v366 = vsel %vm289, %v280, 0
      %v369 = vsel %vm289, %v281, 0
      %v372 = vsel %vm289, %v282, 0
      %v375 = vsel %vm289, %v283, 0
      %v378 = vsel %vm289, %v284, 0
      %v381 = vsel %vm289, %v285, 0
      %v384 = vsel %vm289, %v286, 0
      %vm386 = vcmask 1043456
      %v388 = vsel %vm386, %v288, 0
      %390 = vmatprep.subr.mxu0 0.0
      %391 = vmatpush1.msra.mxu0 0.0
      %392 = vmatprep.subr.mxu0 0.0
      %393 = vmatpush1.msra.mxu0 0.0
      %394 = vmatprep.subr.mxu0 0.0
      %395 = vmatpush1.msra.mxu0 0.0
      %396 = vmatprep.subr.mxu0 0.0
      %397 = vmatpush1.msra.mxu0 0.0
      %398 = vmatprep.subr.mxu0 0.0
      %399 = vmatpush1.msra.mxu0 0.0
      %400 = vmatprep.subr.mxu0 0.0
      %401 = vmatpush1.msra.mxu0 0.0
      %402 = vmatprep.subr.mxu0 0.0
      %403 = vmatpush1.msra.mxu0 0.0
      %404 = vmatprep.subr.mxu0 0.0
      %405 = vmatpush1.msra.mxu0 0.0
      %406 = vmatprep.subr.mxu0 0.0
      %407 = vmatpush1.msra.mxu0 0.0
      %408 = vmatprep.subr.mxu0 0.0
      %409 = vmatpush1.msra.mxu0 0.0
      %410 = vmatprep.subr.mxu0 0.0
      %411 = vmatpush1.msra.mxu0 0.0
      %412 = vmatprep.subr.mxu0 0.0
      %413 = vmatpush1.msra.mxu0 0.0
      %414 = vmatprep.subr.mxu0 0.0
      %415 = vmatpush1.msra.mxu0 0.0
      %416 = vmatprep.subr.mxu0 0.0
      %417 = vmatpush1.msra.mxu0 0.0
      %418 = vmatprep.subr.mxu0 0.0
      %419 = vmatpush1.msra.mxu0 0.0
      %420 = vmatprep.subr.mxu0 0.0
      %421 = vmatpush1.msra.mxu0 %v388
      %422 = vmatprep.subr.mxu0 0.0
      %423 = vmatpush2.msra.mxu0 0.0
      %424 = vmatprep.subr.mxu0 0.0
      %425 = vmatpush2.msra.mxu0 0.0
      %426 = vmatprep.subr.mxu0 0.0
      %427 = vmatpush2.msra.mxu0 0.0
      %428 = vmatprep.subr.mxu0 0.0
      %429 = vmatpush2.msra.mxu0 0.0
      %430 = vmatprep.subr.mxu0 0.0
      %431 = vmatpush2.msra.mxu0 0.0
      %432 = vmatprep.subr.mxu0 0.0
      %433 = vmatpush2.msra.mxu0 0.0
      %434 = vmatprep.subr.mxu0 0.0
      %435 = vmatpush2.msra.mxu0 0.0
      %436 = vmatprep.subr.mxu0 0.0
      %437 = vmatpush2.msra.mxu0 0.0
      %438 = vmatprep.subr.mxu0 0.0
      %439 = vmatpush2.msra.mxu0 0.0
      %440 = vmatprep.subr.mxu0 0.0
      %441 = vmatpush2.msra.mxu0 0.0
      %442 = vmatprep.subr.mxu0 0.0
      %443 = vmatpush2.msra.mxu0 0.0
      %444 = vmatprep.subr.mxu0 0.0
      %445 = vmatpush2.msra.mxu0 0.0
      %446 = vmatprep.subr.mxu0 0.0
      %447 = vmatpush2.msra.mxu0 0.0
      %448 = vmatprep.subr.mxu0 0.0
      %449 = vmatpush2.msra.mxu0 0.0
      %450 = vmatprep.subr.mxu0 0.0
      %451 = vmatpush2.msra.mxu0 0.0
      %452 = vmatprep.subr.mxu0 0.0
      %453 = vmatpush2.msra.mxu0 0.0
      %454 = vmatprep.mubr.f32.mxu0 0.0
      %455 = vmatmul.mubr.f32.gmra.mxu0 %v291
      %v456 = vpop.f32.mrf.mxu0
      %v457 = vadd.f32 0.0, %v456
      %v458 = vpop.f32.mrf.mxu0
      %459 = vmatprep.mubr.f32.mxu0 0.0
      %460 = vmatmul.mubr.f32.gmra.mxu0 %v294
      %v461 = vpop.f32.mrf.mxu0
      %v462 = vadd.f32 0.0, %v461
      %v463 = vpop.f32.mrf.mxu0
      %464 = vmatprep.mubr.f32.mxu0 0.0
      %465 = vmatmul.mubr.f32.gmra.mxu0 %v297
      %v466 = vpop.f32.mrf.mxu0
      %v467 = vadd.f32 0.0, %v466
      %v468 = vpop.f32.mrf.mxu0
      %469 = vmatprep.mubr.f32.mxu0 0.0
      %470 = vmatmul.mubr.f32.gmra.mxu0 %v300
      %v471 = vpop.f32.mrf.mxu0
      %v472 = vadd.f32 0.0, %v471
      %v473 = vpop.f32.mrf.mxu0
      %474 = vmatprep.mubr.f32.mxu0 0.0
      %475 = vmatmul.mubr.f32.gmra.mxu0 %v303
      %v476 = vpop.f32.mrf.mxu0
      %v477 = vadd.f32 0.0, %v476
      %v478 = vpop.f32.mrf.mxu0
      %479 = vmatprep.mubr.f32.mxu0 0.0
      %480 = vmatmul.mubr.f32.gmra.mxu0 %v306
      %v481 = vpop.f32.mrf.mxu0
      %v482 = vadd.f32 0.0, %v481
      %v483 = vpop.f32.mrf.mxu0
      %484 = vmatprep.mubr.f32.mxu0 0.0
      %485 = vmatmul.mubr.f32.gmra.mxu0 %v309
      %v486 = vpop.f32.mrf.mxu0
      %v487 = vadd.f32 0.0, %v486
      %v488 = vpop.f32.mrf.mxu0
      %489 = vmatprep.mubr.f32.mxu0 0.0
      %490 = vmatmul.mubr.f32.gmra.mxu0 %v312
      %v491 = vpop.f32.mrf.mxu0
      %v492 = vadd.f32 0.0, %v491
      %v493 = vpop.f32.mrf.mxu0
      %494 = vmatprep.mubr.f32.mxu0 0.0
      %495 = vmatmul.mubr.f32.gmra.mxu0 %v315
      %v496 = vpop.f32.mrf.mxu0
      %v497 = vadd.f32 0.0, %v496
      %v498 = vpop.f32.mrf.mxu0
      %499 = vmatprep.mubr.f32.mxu0 0.0
      %500 = vmatmul.mubr.f32.gmra.mxu0 %v318
      %v501 = vpop.f32.mrf.mxu0
      %v502 = vadd.f32 0.0, %v501
      %v503 = vpop.f32.mrf.mxu0
      %504 = vmatprep.mubr.f32.mxu0 0.0
      %505 = vmatmul.mubr.f32.gmra.mxu0 %v321
      %v506 = vpop.f32.mrf.mxu0
      %v507 = vadd.f32 0.0, %v506
      %v508 = vpop.f32.mrf.mxu0
      %509 = vmatprep.mubr.f32.mxu0 0.0
      %510 = vmatmul.mubr.f32.gmra.mxu0 %v324
      %v511 = vpop.f32.mrf.mxu0
      %v512 = vadd.f32 0.0, %v511
      %v513 = vpop.f32.mrf.mxu0
      %514 = vmatprep.mubr.f32.mxu0 0.0
      %515 = vmatmul.mubr.f32.gmra.mxu0 %v327
      %v516 = vpop.f32.mrf.mxu0
      %v517 = vadd.f32 0.0, %v516
      %v518 = vpop.f32.mrf.mxu0
      %519 = vmatprep.mubr.f32.mxu0 0.0
      %520 = vmatmul.mubr.f32.gmra.mxu0 %v330
      %v521 = vpop.f32.mrf.mxu0
      %v522 = vadd.f32 0.0, %v521
      %v523 = vpop.f32.mrf.mxu0
      %524 = vmatprep.mubr.f32.mxu0 0.0
      %525 = vmatmul.mubr.f32.gmra.mxu0 %v333
      %v526 = vpop.f32.mrf.mxu0
      %v527 = vadd.f32 0.0, %v526
      %v528 = vpop.f32.mrf.mxu0
      %529 = vmatprep.mubr.f32.mxu0 0.0
      %530 = vmatmul.mubr.f32.gmra.mxu0 %v336
      %v531 = vpop.f32.mrf.mxu0
      %v532 = vadd.f32 0.0, %v531
      %v533 = vpop.f32.mrf.mxu0
      %534 = vmatprep.mubr.f32.mxu0 0.0
      %535 = vmatmul.mubr.f32.gmra.mxu0 %v339
      %v536 = vpop.f32.mrf.mxu0
      %v537 = vadd.f32 0.0, %v536
      %v538 = vpop.f32.mrf.mxu0
      %539 = vmatprep.mubr.f32.mxu0 0.0
      %540 = vmatmul.mubr.f32.gmra.mxu0 %v342
      %v541 = vpop.f32.mrf.mxu0
      %v542 = vadd.f32 0.0, %v541
      %v543 = vpop.f32.mrf.mxu0
      %544 = vmatprep.mubr.f32.mxu0 0.0
      %545 = vmatmul.mubr.f32.gmra.mxu0 %v345
      %v546 = vpop.f32.mrf.mxu0
      %v547 = vadd.f32 0.0, %v546
      %v548 = vpop.f32.mrf.mxu0
      %549 = vmatprep.mubr.f32.mxu0 0.0
      %550 = vmatmul.mubr.f32.gmra.mxu0 %v348
      %v551 = vpop.f32.mrf.mxu0
      %v552 = vadd.f32 0.0, %v551
      %v553 = vpop.f32.mrf.mxu0
      %554 = vmatprep.mubr.f32.mxu0 0.0
      %555 = vmatmul.mubr.f32.gmra.mxu0 %v351
      %v556 = vpop.f32.mrf.mxu0
      %v557 = vadd.f32 0.0, %v556
      %v558 = vpop.f32.mrf.mxu0
      %559 = vmatprep.mubr.f32.mxu0 0.0
      %560 = vmatmul.mubr.f32.gmra.mxu0 %v354
      %v561 = vpop.f32.mrf.mxu0
      %v562 = vadd.f32 0.0, %v561
      %v563 = vpop.f32.mrf.mxu0
      %564 = vmatprep.mubr.f32.mxu0 0.0
      %565 = vmatmul.mubr.f32.gmra.mxu0 %v357
      %v566 = vpop.f32.mrf.mxu0
      %v567 = vadd.f32 0.0, %v566
      %v568 = vpop.f32.mrf.mxu0
      %569 = vmatprep.mubr.f32.mxu0 0.0
      %570 = vmatmul.mubr.f32.gmra.mxu0 %v360
      %v571 = vpop.f32.mrf.mxu0
      %v572 = vadd.f32 0.0, %v571
      %v573 = vpop.f32.mrf.mxu0
      %574 = vmatprep.mubr.f32.mxu0 0.0
      %575 = vmatmul.mubr.f32.gmra.mxu0 %v363
      %v576 = vpop.f32.mrf.mxu0
      %v577 = vadd.f32 0.0, %v576
      %v578 = vpop.f32.mrf.mxu0
      %579 = vmatprep.mubr.f32.mxu0 0.0
      %580 = vmatmul.mubr.f32.gmra.mxu0 %v366
      %v581 = vpop.f32.mrf.mxu0
      %v582 = vadd.f32 0.0, %v581
      %v583 = vpop.f32.mrf.mxu0
      %584 = vmatprep.mubr.f32.mxu0 0.0
      %585 = vmatmul.mubr.f32.gmra.mxu0 %v369
      %v586 = vpop.f32.mrf.mxu0
      %v587 = vadd.f32 0.0, %v586
      %v588 = vpop.f32.mrf.mxu0
      %589 = vmatprep.mubr.f32.mxu0 0.0
      %590 = vmatmul.mubr.f32.gmra.mxu0 %v372
      %v591 = vpop.f32.mrf.mxu0
      %v592 = vadd.f32 0.0, %v591
      %v593 = vpop.f32.mrf.mxu0
      %594 = vmatprep.mubr.f32.mxu0 0.0
      %595 = vmatmul.mubr.f32.gmra.mxu0 %v375
      %v596 = vpop.f32.mrf.mxu0
      %v597 = vadd.f32 0.0, %v596
      %v598 = vpop.f32.mrf.mxu0
      %599 = vmatprep.mubr.f32.mxu0 0.0
      %600 = vmatmul.mubr.f32.gmra.mxu0 %v378
      %v601 = vpop.f32.mrf.mxu0
      %v602 = vadd.f32 0.0, %v601
      %v603 = vpop.f32.mrf.mxu0
      %604 = vmatprep.mubr.f32.mxu0 0.0
      %605 = vmatmul.mubr.f32.gmra.mxu0 %v381
      %v606 = vpop.f32.mrf.mxu0
      %v607 = vadd.f32 0.0, %v606
      %v608 = vpop.f32.mrf.mxu0
      %609 = vmatprep.mubr.f32.mxu0 0.0
      %610 = vmatmul.mubr.f32.gmra.mxu0 %v384
      %v611 = vpop.f32.mrf.mxu0
      %v612 = vadd.f32 0.0, %v611
      %v613 = vpop.f32.mrf.mxu0
      %614 = vdwg.mxu0
      %v616 = vsel %vm289, %v222, 0
      %v619 = vsel %vm289, %v223, 0
      %v622 = vsel %vm289, %v224, 0
      %v625 = vsel %vm289, %v225, 0
      %v628 = vsel %vm289, %v226, 0
      %v631 = vsel %vm289, %v227, 0
      %v634 = vsel %vm289, %v228, 0
      %v637 = vsel %vm289, %v229, 0
      %v640 = vsel %vm289, %v230, 0
      %v643 = vsel %vm289, %v231, 0
      %v646 = vsel %vm289, %v232, 0
      %v649 = vsel %vm289, %v233, 0
      %v652 = vsel %vm289, %v234, 0
      %v655 = vsel %vm289, %v235, 0
      %v658 = vsel %vm289, %v236, 0
      %v661 = vsel %vm289, %v237, 0
      %v664 = vsel %vm289, %v238, 0
      %v667 = vsel %vm289, %v239, 0
      %v670 = vsel %vm289, %v240, 0
      %v673 = vsel %vm289, %v241, 0
      %v676 = vsel %vm289, %v242, 0
      %v679 = vsel %vm289, %v243, 0
      %v682 = vsel %vm289, %v244, 0
      %v685 = vsel %vm289, %v245, 0
      %v688 = vsel %vm289, %v246, 0
      %v691 = vsel %vm289, %v247, 0
      %v694 = vsel %vm289, %v248, 0
      %v697 = vsel %vm289, %v249, 0
      %v700 = vsel %vm289, %v250, 0
      %v703 = vsel %vm289, %v251, 0
      %v706 = vsel %vm289, %v252, 0
      %v709 = vsel %vm289, %v253, 0
      %v712 = vsel %vm386, %v254, 0
      %714 = vmatprep.subr.mxu0 0.0
      %715 = vmatpush1.msra.mxu0 0.0
      %716 = vmatprep.subr.mxu0 0.0
      %717 = vmatpush1.msra.mxu0 0.0
      %718 = vmatprep.subr.mxu0 0.0
      %719 = vmatpush1.msra.mxu0 0.0
      %720 = vmatprep.subr.mxu0 0.0
      %721 = vmatpush1.msra.mxu0 0.0
      %722 = vmatprep.subr.mxu0 0.0
      %723 = vmatpush1.msra.mxu0 0.0
      %724 = vmatprep.subr.mxu0 0.0
      %725 = vmatpush1.msra.mxu0 0.0
      %726 = vmatprep.subr.mxu0 0.0
      %727 = vmatpush1.msra.mxu0 0.0
      %728 = vmatprep.subr.mxu0 0.0
      %729 = vmatpush1.msra.mxu0 0.0
      %730 = vmatprep.subr.mxu0 0.0
      %731 = vmatpush1.msra.mxu0 0.0
      %732 = vmatprep.subr.mxu0 0.0
      %733 = vmatpush1.msra.mxu0 0.0
      %734 = vmatprep.subr.mxu0 0.0
      %735 = vmatpush1.msra.mxu0 0.0
      %736 = vmatprep.subr.mxu0 0.0
      %737 = vmatpush1.msra.mxu0 0.0
      %738 = vmatprep.subr.mxu0 0.0
      %739 = vmatpush1.msra.mxu0 0.0
      %740 = vmatprep.subr.mxu0 0.0
      %741 = vmatpush1.msra.mxu0 0.0
      %742 = vmatprep.subr.mxu0 0.0
      %743 = vmatpush1.msra.mxu0 0.0
      %744 = vmatprep.subr.mxu0 0.0
      %745 = vmatpush1.msra.mxu0 %v712
      %746 = vmatprep.subr.mxu0 0.0
      %747 = vmatpush2.msra.mxu0 0.0
      %748 = vmatprep.subr.mxu0 0.0
      %749 = vmatpush2.msra.mxu0 0.0
      %750 = vmatprep.subr.mxu0 0.0
      %751 = vmatpush2.msra.mxu0 0.0
      %752 = vmatprep.subr.mxu0 0.0
      %753 = vmatpush2.msra.mxu0 0.0
      %754 = vmatprep.subr.mxu0 0.0
      %755 = vmatpush2.msra.mxu0 0.0
      %756 = vmatprep.subr.mxu0 0.0
      %757 = vmatpush2.msra.mxu0 0.0
      %758 = vmatprep.subr.mxu0 0.0
      %759 = vmatpush2.msra.mxu0 0.0
      %760 = vmatprep.subr.mxu0 0.0
      %761 = vmatpush2.msra.mxu0 0.0
      %762 = vmatprep.subr.mxu0 0.0
      %763 = vmatpush2.msra.mxu0 0.0
      %764 = vmatprep.subr.mxu0 0.0
      %765 = vmatpush2.msra.mxu0 0.0
      %766 = vmatprep.subr.mxu0 0.0
      %767 = vmatpush2.msra.mxu0 0.0
      %768 = vmatprep.subr.mxu0 0.0
      %769 = vmatpush2.msra.mxu0 0.0
      %770 = vmatprep.subr.mxu0 0.0
      %771 = vmatpush2.msra.mxu0 0.0
      %772 = vmatprep.subr.mxu0 0.0
      %773 = vmatpush2.msra.mxu0 0.0
      %774 = vmatprep.subr.mxu0 0.0
      %775 = vmatpush2.msra.mxu0 0.0
      %776 = vmatprep.subr.mxu0 0.0
      %777 = vmatpush2.msra.mxu0 0.0
      %778 = vmatprep.mubr.f32.mxu0 0.0
      %779 = vmatmul.mubr.f32.gmra.mxu0 %v616
      %v780 = vpop.f32.mrf.mxu0
      %v781 = vadd.f32 %v457, %v780
      %v782 = vpop.f32.mrf.mxu0
      %783 = vmatprep.mubr.f32.mxu0 0.0
      %784 = vmatmul.mubr.f32.gmra.mxu0 %v619
      %v785 = vpop.f32.mrf.mxu0
      %v786 = vadd.f32 %v462, %v785
      %v787 = vpop.f32.mrf.mxu0
      %788 = vmatprep.mubr.f32.mxu0 0.0
      %789 = vmatmul.mubr.f32.gmra.mxu0 %v622
      %v790 = vpop.f32.mrf.mxu0
      %v791 = vadd.f32 %v467, %v790
      %v792 = vpop.f32.mrf.mxu0
      %793 = vmatprep.mubr.f32.mxu0 0.0
      %794 = vmatmul.mubr.f32.gmra.mxu0 %v625
      %v795 = vpop.f32.mrf.mxu0
      %v796 = vadd.f32 %v472, %v795
      %v797 = vpop.f32.mrf.mxu0
      %798 = vmatprep.mubr.f32.mxu0 0.0
      %799 = vmatmul.mubr.f32.gmra.mxu0 %v628
      %v800 = vpop.f32.mrf.mxu0
      %v801 = vadd.f32 %v477, %v800
      %v802 = vpop.f32.mrf.mxu0
      %803 = vmatprep.mubr.f32.mxu0 0.0
      %804 = vmatmul.mubr.f32.gmra.mxu0 %v631
      %v805 = vpop.f32.mrf.mxu0
      %v806 = vadd.f32 %v482, %v805
      %v807 = vpop.f32.mrf.mxu0
      %808 = vmatprep.mubr.f32.mxu0 0.0
      %809 = vmatmul.mubr.f32.gmra.mxu0 %v634
      %v810 = vpop.f32.mrf.mxu0
      %v811 = vadd.f32 %v487, %v810
      %v812 = vpop.f32.mrf.mxu0
      %813 = vmatprep.mubr.f32.mxu0 0.0
      %814 = vmatmul.mubr.f32.gmra.mxu0 %v637
      %v815 = vpop.f32.mrf.mxu0
      %v816 = vadd.f32 %v492, %v815
      %v817 = vpop.f32.mrf.mxu0
      %818 = vmatprep.mubr.f32.mxu0 0.0
      %819 = vmatmul.mubr.f32.gmra.mxu0 %v640
      %v820 = vpop.f32.mrf.mxu0
      %v821 = vadd.f32 %v497, %v820
      %v822 = vpop.f32.mrf.mxu0
      %823 = vmatprep.mubr.f32.mxu0 0.0
      %824 = vmatmul.mubr.f32.gmra.mxu0 %v643
      %v825 = vpop.f32.mrf.mxu0
      %v826 = vadd.f32 %v502, %v825
      %v827 = vpop.f32.mrf.mxu0
      %828 = vmatprep.mubr.f32.mxu0 0.0
      %829 = vmatmul.mubr.f32.gmra.mxu0 %v646
      %v830 = vpop.f32.mrf.mxu0
      %v831 = vadd.f32 %v507, %v830
      %v832 = vpop.f32.mrf.mxu0
      %833 = vmatprep.mubr.f32.mxu0 0.0
      %834 = vmatmul.mubr.f32.gmra.mxu0 %v649
      %v835 = vpop.f32.mrf.mxu0
      %v836 = vadd.f32 %v512, %v835
      %v837 = vpop.f32.mrf.mxu0
      %838 = vmatprep.mubr.f32.mxu0 0.0
      %839 = vmatmul.mubr.f32.gmra.mxu0 %v652
      %v840 = vpop.f32.mrf.mxu0
      %v841 = vadd.f32 %v517, %v840
      %v842 = vpop.f32.mrf.mxu0
      %843 = vmatprep.mubr.f32.mxu0 0.0
      %844 = vmatmul.mubr.f32.gmra.mxu0 %v655
      %v845 = vpop.f32.mrf.mxu0
      %v846 = vadd.f32 %v522, %v845
      %v847 = vpop.f32.mrf.mxu0
      %848 = vmatprep.mubr.f32.mxu0 0.0
      %849 = vmatmul.mubr.f32.gmra.mxu0 %v658
      %v850 = vpop.f32.mrf.mxu0
      %v851 = vadd.f32 %v527, %v850
      %v852 = vpop.f32.mrf.mxu0
      %853 = vmatprep.mubr.f32.mxu0 0.0
      %854 = vmatmul.mubr.f32.gmra.mxu0 %v661
      %v855 = vpop.f32.mrf.mxu0
      %v856 = vadd.f32 %v532, %v855
      %v857 = vpop.f32.mrf.mxu0
      %858 = vmatprep.mubr.f32.mxu0 0.0
      %859 = vmatmul.mubr.f32.gmra.mxu0 %v664
      %v860 = vpop.f32.mrf.mxu0
      %v861 = vadd.f32 %v537, %v860
      %v862 = vpop.f32.mrf.mxu0
      %863 = vmatprep.mubr.f32.mxu0 0.0
      %864 = vmatmul.mubr.f32.gmra.mxu0 %v667
      %v865 = vpop.f32.mrf.mxu0
      %v866 = vadd.f32 %v542, %v865
      %v867 = vpop.f32.mrf.mxu0
      %868 = vmatprep.mubr.f32.mxu0 0.0
      %869 = vmatmul.mubr.f32.gmra.mxu0 %v670
      %v870 = vpop.f32.mrf.mxu0
      %v871 = vadd.f32 %v547, %v870
      %v872 = vpop.f32.mrf.mxu0
      %873 = vmatprep.mubr.f32.mxu0 0.0
      %874 = vmatmul.mubr.f32.gmra.mxu0 %v673
      %v875 = vpop.f32.mrf.mxu0
      %v876 = vadd.f32 %v552, %v875
      %v877 = vpop.f32.mrf.mxu0
      %878 = vmatprep.mubr.f32.mxu0 0.0
      %879 = vmatmul.mubr.f32.gmra.mxu0 %v676
      %v880 = vpop.f32.mrf.mxu0
      %v881 = vadd.f32 %v557, %v880
      %v882 = vpop.f32.mrf.mxu0
      %883 = vmatprep.mubr.f32.mxu0 0.0
      %884 = vmatmul.mubr.f32.gmra.mxu0 %v679
      %v885 = vpop.f32.mrf.mxu0
      %v886 = vadd.f32 %v562, %v885
      %v887 = vpop.f32.mrf.mxu0
      %888 = vmatprep.mubr.f32.mxu0 0.0
      %889 = vmatmul.mubr.f32.gmra.mxu0 %v682
      %v890 = vpop.f32.mrf.mxu0
      %v891 = vadd.f32 %v567, %v890
      %v892 = vpop.f32.mrf.mxu0
      %893 = vmatprep.mubr.f32.mxu0 0.0
      %894 = vmatmul.mubr.f32.gmra.mxu0 %v685
      %v895 = vpop.f32.mrf.mxu0
      %v896 = vadd.f32 %v572, %v895
      %v897 = vpop.f32.mrf.mxu0
      %898 = vmatprep.mubr.f32.mxu0 0.0
      %899 = vmatmul.mubr.f32.gmra.mxu0 %v688
      %v900 = vpop.f32.mrf.mxu0
      %v901 = vadd.f32 %v577, %v900
      %v902 = vpop.f32.mrf.mxu0
      %903 = vmatprep.mubr.f32.mxu0 0.0
      %904 = vmatmul.mubr.f32.gmra.mxu0 %v691
      %v905 = vpop.f32.mrf.mxu0
      %v906 = vadd.f32 %v582, %v905
      %v907 = vpop.f32.mrf.mxu0
      %908 = vmatprep.mubr.f32.mxu0 0.0
      %909 = vmatmul.mubr.f32.gmra.mxu0 %v694
      %v910 = vpop.f32.mrf.mxu0
      %v911 = vadd.f32 %v587, %v910
      %v912 = vpop.f32.mrf.mxu0
      %913 = vmatprep.mubr.f32.mxu0 0.0
      %914 = vmatmul.mubr.f32.gmra.mxu0 %v697
      %v915 = vpop.f32.mrf.mxu0
      %v916 = vadd.f32 %v592, %v915
      %v917 = vpop.f32.mrf.mxu0
      %918 = vmatprep.mubr.f32.mxu0 0.0
      %919 = vmatmul.mubr.f32.gmra.mxu0 %v700
      %v920 = vpop.f32.mrf.mxu0
      %v921 = vadd.f32 %v597, %v920
      %v922 = vpop.f32.mrf.mxu0
      %923 = vmatprep.mubr.f32.mxu0 0.0
      %924 = vmatmul.mubr.f32.gmra.mxu0 %v703
      %v925 = vpop.f32.mrf.mxu0
      %v926 = vadd.f32 %v602, %v925
      %v927 = vpop.f32.mrf.mxu0
      %928 = vmatprep.mubr.f32.mxu0 0.0
      %929 = vmatmul.mubr.f32.gmra.mxu0 %v706
      %v930 = vpop.f32.mrf.mxu0
      %v931 = vadd.f32 %v607, %v930
      %v932 = vpop.f32.mrf.mxu0
      %933 = vmatprep.mubr.f32.mxu0 0.0
      %934 = vmatmul.mubr.f32.gmra.mxu0 %v709
      %v935 = vpop.f32.mrf.mxu0
      %v936 = vadd.f32 %v612, %v935
      %v937 = vpop.f32.mrf.mxu0
      %938 = vdwg.mxu0
      %v939 = vld [vmem:[%s206 + $0x2] sm:$0xff]
      %v940 = vld [vmem:[%s206 + $0xa] sm:$0xff]
      %v941 = vld [vmem:[%s206 + $0x1a] sm:$0xff]
      %v942 = vld [vmem:[%s206 + $0x22] sm:$0xff]
      %v943 = vld [vmem:[%s206 + $0x32] sm:$0xff]
      %v944 = vld [vmem:[%s206 + $0x3a] sm:$0xff]
      %v945 = vld [vmem:[%s206 + $0x4a] sm:$0xff]
      %v946 = vld [vmem:[%s206 + $0x52] sm:$0xff]
      %v947 = vld [vmem:[%s206 + $0x62] sm:$0xff]
      %v948 = vld [vmem:[%s206 + $0x6a] sm:$0xff]
      %v949 = vld [vmem:[%s206 + $0x7a] sm:$0xff]
      %v950 = vld [vmem:[%s206 + $0x82] sm:$0xff]
      %v951 = vld [vmem:[%s206 + $0x92] sm:$0xff]
      %v952 = vld [vmem:[%s206 + $0x9a] sm:$0xff]
      %v953 = vld [vmem:[%s206 + $0xaa] sm:$0xff]
      %v954 = vld [vmem:[%s206 + $0xb2] sm:$0xff]
      %v955 = vld [vmem:[%s206 + $0xc2] sm:$0xff]
      %v956 = vld [vmem:[%s206 + $0xca] sm:$0xff]
      %v957 = vld [vmem:[%s206 + $0xda] sm:$0xff]
      %v958 = vld [vmem:[%s206 + $0xe2] sm:$0xff]
      %v959 = vld [vmem:[%s206 + $0xf2] sm:$0xff]
      %v960 = vld [vmem:[%s206 + $0xfa] sm:$0xff]
      %v961 = vld [vmem:[%s206 + $0x10a] sm:$0xff]
      %v962 = vld [vmem:[%s206 + $0x112] sm:$0xff]
      %v963 = vld [vmem:[%s206 + $0x122] sm:$0xff]
      %v964 = vld [vmem:[%s206 + $0x12a] sm:$0xff]
      %v965 = vld [vmem:[%s206 + $0x13a] sm:$0xff]
      %v966 = vld [vmem:[%s206 + $0x142] sm:$0xff]
      %v967 = vld [vmem:[%s206 + $0x152] sm:$0xff]
      %v968 = vld [vmem:[%s206 + $0x15a] sm:$0xff]
      %v969 = vld [vmem:[%s206 + $0x16a] sm:$0xff]
      %v970 = vld [vmem:[%s206 + $0x172] sm:$0xff]
      %s971 = scalar_lea.vmem %s210, 8
      %v972 = vld [vmem:[%s971] sm:$0xf]
      %v974 = vsel %vm289, %v939, 0
      %v977 = vsel %vm289, %v940, 0
      %v980 = vsel %vm289, %v941, 0
      %v983 = vsel %vm289, %v942, 0
      %v986 = vsel %vm289, %v943, 0
      %v989 = vsel %vm289, %v944, 0
      %v992 = vsel %vm289, %v945, 0
      %v995 = vsel %vm289, %v946, 0
      %v998 = vsel %vm289, %v947, 0
      %v1001 = vsel %vm289, %v948, 0
      %v1004 = vsel %vm289, %v949, 0
      %v1007 = vsel %vm289, %v950, 0
      %v1010 = vsel %vm289, %v951, 0
      %v1013 = vsel %vm289, %v952, 0
      %v1016 = vsel %vm289, %v953, 0
      %v1019 = vsel %vm289, %v954, 0
      %v1022 = vsel %vm289, %v955, 0
      %v1025 = vsel %vm289, %v956, 0
      %v1028 = vsel %vm289, %v957, 0
      %v1031 = vsel %vm289, %v958, 0
      %v1034 = vsel %vm289, %v959, 0
      %v1037 = vsel %vm289, %v960, 0
      %v1040 = vsel %vm289, %v961, 0
      %v1043 = vsel %vm289, %v962, 0
      %v1046 = vsel %vm289, %v963, 0
      %v1049 = vsel %vm289, %v964, 0
      %v1052 = vsel %vm289, %v965, 0
      %v1055 = vsel %vm289, %v966, 0
      %v1058 = vsel %vm289, %v967, 0
      %v1061 = vsel %vm289, %v968, 0
      %v1064 = vsel %vm289, %v969, 0
      %v1067 = vsel %vm289, %v970, 0
      %v1070 = vsel %vm386, %v972, 0
      %1072 = vmatprep.subr.mxu0 0.0
      %1073 = vmatpush1.msra.mxu0 0.0
      %1074 = vmatprep.subr.mxu0 0.0
      %1075 = vmatpush1.msra.mxu0 0.0
      %1076 = vmatprep.subr.mxu0 0.0
      %1077 = vmatpush1.msra.mxu0 0.0
      %1078 = vmatprep.subr.mxu0 0.0
      %1079 = vmatpush1.msra.mxu0 0.0
      %1080 = vmatprep.subr.mxu0 0.0
      %1081 = vmatpush1.msra.mxu0 0.0
      %1082 = vmatprep.subr.mxu0 0.0
      %1083 = vmatpush1.msra.mxu0 0.0
      %1084 = vmatprep.subr.mxu0 0.0
      %1085 = vmatpush1.msra.mxu0 0.0
      %1086 = vmatprep.subr.mxu0 0.0
      %1087 = vmatpush1.msra.mxu0 0.0
      %1088 = vmatprep.subr.mxu0 0.0
      %1089 = vmatpush1.msra.mxu0 0.0
      %1090 = vmatprep.subr.mxu0 0.0
      %1091 = vmatpush1.msra.mxu0 0.0
      %1092 = vmatprep.subr.mxu0 0.0
      %1093 = vmatpush1.msra.mxu0 0.0
      %1094 = vmatprep.subr.mxu0 0.0
      %1095 = vmatpush1.msra.mxu0 0.0
      %1096 = vmatprep.subr.mxu0 0.0
      %1097 = vmatpush1.msra.mxu0 0.0
      %1098 = vmatprep.subr.mxu0 0.0
      %1099 = vmatpush1.msra.mxu0 0.0
      %1100 = vmatprep.subr.mxu0 0.0
      %1101 = vmatpush1.msra.mxu0 0.0
      %1102 = vmatprep.subr.mxu0 0.0
      %1103 = vmatpush1.msra.mxu0 %v1070
      %1104 = vmatprep.subr.mxu0 0.0
      %1105 = vmatpush2.msra.mxu0 0.0
      %1106 = vmatprep.subr.mxu0 0.0
      %1107 = vmatpush2.msra.mxu0 0.0
      %1108 = vmatprep.subr.mxu0 0.0
      %1109 = vmatpush2.msra.mxu0 0.0
      %1110 = vmatprep.subr.mxu0 0.0
      %1111 = vmatpush2.msra.mxu0 0.0
      %1112 = vmatprep.subr.mxu0 0.0
      %1113 = vmatpush2.msra.mxu0 0.0
      %1114 = vmatprep.subr.mxu0 0.0
      %1115 = vmatpush2.msra.mxu0 0.0
      %1116 = vmatprep.subr.mxu0 0.0
      %1117 = vmatpush2.msra.mxu0 0.0
      %1118 = vmatprep.subr.mxu0 0.0
      %1119 = vmatpush2.msra.mxu0 0.0
      %1120 = vmatprep.subr.mxu0 0.0
      %1121 = vmatpush2.msra.mxu0 0.0
      %1122 = vmatprep.subr.mxu0 0.0
      %1123 = vmatpush2.msra.mxu0 0.0
      %1124 = vmatprep.subr.mxu0 0.0
      %1125 = vmatpush2.msra.mxu0 0.0
      %1126 = vmatprep.subr.mxu0 0.0
      %1127 = vmatpush2.msra.mxu0 0.0
      %1128 = vmatprep.subr.mxu0 0.0
      %1129 = vmatpush2.msra.mxu0 0.0
      %1130 = vmatprep.subr.mxu0 0.0
      %1131 = vmatpush2.msra.mxu0 0.0
      %1132 = vmatprep.subr.mxu0 0.0
      %1133 = vmatpush2.msra.mxu0 0.0
      %1134 = vmatprep.subr.mxu0 0.0
      %1135 = vmatpush2.msra.mxu0 0.0
      %1136 = vmatprep.mubr.f32.mxu0 0.0
      %1137 = vmatmul.mubr.f32.gmra.mxu0 %v974
      %v1138 = vpop.f32.mrf.mxu0
      %v1139 = vadd.f32 0.0, %v1138
      %v1140 = vpop.f32.mrf.mxu0
      %1141 = vmatprep.mubr.f32.mxu0 0.0
      %1142 = vmatmul.mubr.f32.gmra.mxu0 %v977
      %v1143 = vpop.f32.mrf.mxu0
      %v1144 = vadd.f32 0.0, %v1143
      %v1145 = vpop.f32.mrf.mxu0
      %1146 = vmatprep.mubr.f32.mxu0 0.0
      %1147 = vmatmul.mubr.f32.gmra.mxu0 %v980
      %v1148 = vpop.f32.mrf.mxu0
      %v1149 = vadd.f32 0.0, %v1148
      %v1150 = vpop.f32.mrf.mxu0
      %1151 = vmatprep.mubr.f32.mxu0 0.0
      %1152 = vmatmul.mubr.f32.gmra.mxu0 %v983
      %v1153 = vpop.f32.mrf.mxu0
      %v1154 = vadd.f32 0.0, %v1153
      %v1155 = vpop.f32.mrf.mxu0
      %1156 = vmatprep.mubr.f32.mxu0 0.0
      %1157 = vmatmul.mubr.f32.gmra.mxu0 %v986
      %v1158 = vpop.f32.mrf.mxu0
      %v1159 = vadd.f32 0.0, %v1158
      %v1160 = vpop.f32.mrf.mxu0
      %1161 = vmatprep.mubr.f32.mxu0 0.0
      %1162 = vmatmul.mubr.f32.gmra.mxu0 %v989
      %v1163 = vpop.f32.mrf.mxu0
      %v1164 = vadd.f32 0.0, %v1163
      %v1165 = vpop.f32.mrf.mxu0
      %1166 = vmatprep.mubr.f32.mxu0 0.0
      %1167 = vmatmul.mubr.f32.gmra.mxu0 %v992
      %v1168 = vpop.f32.mrf.mxu0
      %v1169 = vadd.f32 0.0, %v1168
      %v1170 = vpop.f32.mrf.mxu0
      %1171 = vmatprep.mubr.f32.mxu0 0.0
      %1172 = vmatmul.mubr.f32.gmra.mxu0 %v995
      %v1173 = vpop.f32.mrf.mxu0
      %v1174 = vadd.f32 0.0, %v1173
      %v1175 = vpop.f32.mrf.mxu0
      %1176 = vmatprep.mubr.f32.mxu0 0.0
      %1177 = vmatmul.mubr.f32.gmra.mxu0 %v998
      %v1178 = vpop.f32.mrf.mxu0
      %v1179 = vadd.f32 0.0, %v1178
      %v1180 = vpop.f32.mrf.mxu0
      %1181 = vmatprep.mubr.f32.mxu0 0.0
      %1182 = vmatmul.mubr.f32.gmra.mxu0 %v1001
      %v1183 = vpop.f32.mrf.mxu0
      %v1184 = vadd.f32 0.0, %v1183
      %v1185 = vpop.f32.mrf.mxu0
      %1186 = vmatprep.mubr.f32.mxu0 0.0
      %1187 = vmatmul.mubr.f32.gmra.mxu0 %v1004
      %v1188 = vpop.f32.mrf.mxu0
      %v1189 = vadd.f32 0.0, %v1188
      %v1190 = vpop.f32.mrf.mxu0
      %1191 = vmatprep.mubr.f32.mxu0 0.0
      %1192 = vmatmul.mubr.f32.gmra.mxu0 %v1007
      %v1193 = vpop.f32.mrf.mxu0
      %v1194 = vadd.f32 0.0, %v1193
      %v1195 = vpop.f32.mrf.mxu0
      %1196 = vmatprep.mubr.f32.mxu0 0.0
      %1197 = vmatmul.mubr.f32.gmra.mxu0 %v1010
      %v1198 = vpop.f32.mrf.mxu0
      %v1199 = vadd.f32 0.0, %v1198
      %v1200 = vpop.f32.mrf.mxu0
      %1201 = vmatprep.mubr.f32.mxu0 0.0
      %1202 = vmatmul.mubr.f32.gmra.mxu0 %v1013
      %v1203 = vpop.f32.mrf.mxu0
      %v1204 = vadd.f32 0.0, %v1203
      %v1205 = vpop.f32.mrf.mxu0
      %1206 = vmatprep.mubr.f32.mxu0 0.0
      %1207 = vmatmul.mubr.f32.gmra.mxu0 %v1016
      %v1208 = vpop.f32.mrf.mxu0
      %v1209 = vadd.f32 0.0, %v1208
      %v1210 = vpop.f32.mrf.mxu0
      %1211 = vmatprep.mubr.f32.mxu0 0.0
      %1212 = vmatmul.mubr.f32.gmra.mxu0 %v1019
      %v1213 = vpop.f32.mrf.mxu0
      %v1214 = vadd.f32 0.0, %v1213
      %v1215 = vpop.f32.mrf.mxu0
      %1216 = vmatprep.mubr.f32.mxu0 0.0
      %1217 = vmatmul.mubr.f32.gmra.mxu0 %v1022
      %v1218 = vpop.f32.mrf.mxu0
      %v1219 = vadd.f32 0.0, %v1218
      %v1220 = vpop.f32.mrf.mxu0
      %1221 = vmatprep.mubr.f32.mxu0 0.0
      %1222 = vmatmul.mubr.f32.gmra.mxu0 %v1025
      %v1223 = vpop.f32.mrf.mxu0
      %v1224 = vadd.f32 0.0, %v1223
      %v1225 = vpop.f32.mrf.mxu0
      %1226 = vmatprep.mubr.f32.mxu0 0.0
      %1227 = vmatmul.mubr.f32.gmra.mxu0 %v1028
      %v1228 = vpop.f32.mrf.mxu0
      %v1229 = vadd.f32 0.0, %v1228
      %v1230 = vpop.f32.mrf.mxu0
      %1231 = vmatprep.mubr.f32.mxu0 0.0
      %1232 = vmatmul.mubr.f32.gmra.mxu0 %v1031
      %v1233 = vpop.f32.mrf.mxu0
      %v1234 = vadd.f32 0.0, %v1233
      %v1235 = vpop.f32.mrf.mxu0
      %1236 = vmatprep.mubr.f32.mxu0 0.0
      %1237 = vmatmul.mubr.f32.gmra.mxu0 %v1034
      %v1238 = vpop.f32.mrf.mxu0
      %v1239 = vadd.f32 0.0, %v1238
      %v1240 = vpop.f32.mrf.mxu0
      %1241 = vmatprep.mubr.f32.mxu0 0.0
      %1242 = vmatmul.mubr.f32.gmra.mxu0 %v1037
      %v1243 = vpop.f32.mrf.mxu0
      %v1244 = vadd.f32 0.0, %v1243
      %v1245 = vpop.f32.mrf.mxu0
      %1246 = vmatprep.mubr.f32.mxu0 0.0
      %1247 = vmatmul.mubr.f32.gmra.mxu0 %v1040
      %v1248 = vpop.f32.mrf.mxu0
      %v1249 = vadd.f32 0.0, %v1248
      %v1250 = vpop.f32.mrf.mxu0
      %1251 = vmatprep.mubr.f32.mxu0 0.0
      %1252 = vmatmul.mubr.f32.gmra.mxu0 %v1043
      %v1253 = vpop.f32.mrf.mxu0
      %v1254 = vadd.f32 0.0, %v1253
      %v1255 = vpop.f32.mrf.mxu0
      %1256 = vmatprep.mubr.f32.mxu0 0.0
      %1257 = vmatmul.mubr.f32.gmra.mxu0 %v1046
      %v1258 = vpop.f32.mrf.mxu0
      %v1259 = vadd.f32 0.0, %v1258
      %v1260 = vpop.f32.mrf.mxu0
      %1261 = vmatprep.mubr.f32.mxu0 0.0
      %1262 = vmatmul.mubr.f32.gmra.mxu0 %v1049
      %v1263 = vpop.f32.mrf.mxu0
      %v1264 = vadd.f32 0.0, %v1263
      %v1265 = vpop.f32.mrf.mxu0
      %1266 = vmatprep.mubr.f32.mxu0 0.0
      %1267 = vmatmul.mubr.f32.gmra.mxu0 %v1052
      %v1268 = vpop.f32.mrf.mxu0
      %v1269 = vadd.f32 0.0, %v1268
      %v1270 = vpop.f32.mrf.mxu0
      %1271 = vmatprep.mubr.f32.mxu0 0.0
      %1272 = vmatmul.mubr.f32.gmra.mxu0 %v1055
      %v1273 = vpop.f32.mrf.mxu0
      %v1274 = vadd.f32 0.0, %v1273
      %v1275 = vpop.f32.mrf.mxu0
      %1276 = vmatprep.mubr.f32.mxu0 0.0
      %1277 = vmatmul.mubr.f32.gmra.mxu0 %v1058
      %v1278 = vpop.f32.mrf.mxu0
      %v1279 = vadd.f32 0.0, %v1278
      %v1280 = vpop.f32.mrf.mxu0
      %1281 = vmatprep.mubr.f32.mxu0 0.0
      %1282 = vmatmul.mubr.f32.gmra.mxu0 %v1061
      %v1283 = vpop.f32.mrf.mxu0
      %v1284 = vadd.f32 0.0, %v1283
      %v1285 = vpop.f32.mrf.mxu0
      %1286 = vmatprep.mubr.f32.mxu0 0.0
      %1287 = vmatmul.mubr.f32.gmra.mxu0 %v1064
      %v1288 = vpop.f32.mrf.mxu0
      %v1289 = vadd.f32 0.0, %v1288
      %v1290 = vpop.f32.mrf.mxu0
      %1291 = vmatprep.mubr.f32.mxu0 0.0
      %1292 = vmatmul.mubr.f32.gmra.mxu0 %v1067
      %v1293 = vpop.f32.mrf.mxu0
      %v1294 = vadd.f32 0.0, %v1293
      %v1295 = vpop.f32.mrf.mxu0
      %1296 = vdwg.mxu0
      %v1297 = vadd.f32 %v781, %v1139
      %v1298 = vadd.f32 %v786, %v1144
      %v1299 = vadd.f32 %v791, %v1149
      %v1300 = vadd.f32 %v796, %v1154
      %v1301 = vadd.f32 %v801, %v1159
      %v1302 = vadd.f32 %v806, %v1164
      %v1303 = vadd.f32 %v811, %v1169
      %v1304 = vadd.f32 %v816, %v1174
      %v1305 = vadd.f32 %v821, %v1179
      %v1306 = vadd.f32 %v826, %v1184
      %v1307 = vadd.f32 %v831, %v1189
      %v1308 = vadd.f32 %v836, %v1194
      %v1309 = vadd.f32 %v841, %v1199
      %v1310 = vadd.f32 %v846, %v1204
      %v1311 = vadd.f32 %v851, %v1209
      %v1312 = vadd.f32 %v856, %v1214
      %v1313 = vadd.f32 %v861, %v1219
      %v1314 = vadd.f32 %v866, %v1224
      %v1315 = vadd.f32 %v871, %v1229
      %v1316 = vadd.f32 %v876, %v1234
      %v1317 = vadd.f32 %v881, %v1239
      %v1318 = vadd.f32 %v886, %v1244
      %v1319 = vadd.f32 %v891, %v1249
      %v1320 = vadd.f32 %v896, %v1254
      %v1321 = vadd.f32 %v901, %v1259
      %v1322 = vadd.f32 %v906, %v1264
      %v1323 = vadd.f32 %v911, %v1269
      %v1324 = vadd.f32 %v916, %v1274
      %v1325 = vadd.f32 %v921, %v1279
      %v1326 = vadd.f32 %v926, %v1284
      %v1327 = vadd.f32 %v931, %v1289
      %v1328 = vadd.f32 %v936, %v1294
      %v1329 = vld [vmem:[%s206 + $0x3] sm:$0xff]
      %v1330 = vld [vmem:[%s206 + $0xb] sm:$0xff]
      %v1331 = vld [vmem:[%s206 + $0x1b] sm:$0xff]
      %v1332 = vld [vmem:[%s206 + $0x23] sm:$0xff]
      %v1333 = vld [vmem:[%s206 + $0x33] sm:$0xff]
      %v1334 = vld [vmem:[%s206 + $0x3b] sm:$0xff]
      %v1335 = vld [vmem:[%s206 + $0x4b] sm:$0xff]
      %v1336 = vld [vmem:[%s206 + $0x53] sm:$0xff]
      %v1337 = vld [vmem:[%s206 + $0x63] sm:$0xff]
      %v1338 = vld [vmem:[%s206 + $0x6b] sm:$0xff]
      %v1339 = vld [vmem:[%s206 + $0x7b] sm:$0xff]
      %v1340 = vld [vmem:[%s206 + $0x83] sm:$0xff]
      %v1341 = vld [vmem:[%s206 + $0x93] sm:$0xff]
      %v1342 = vld [vmem:[%s206 + $0x9b] sm:$0xff]
      %v1343 = vld [vmem:[%s206 + $0xab] sm:$0xff]
      %v1344 = vld [vmem:[%s206 + $0xb3] sm:$0xff]
      %v1345 = vld [vmem:[%s206 + $0xc3] sm:$0xff]
      %v1346 = vld [vmem:[%s206 + $0xcb] sm:$0xff]
      %v1347 = vld [vmem:[%s206 + $0xdb] sm:$0xff]
      %v1348 = vld [vmem:[%s206 + $0xe3] sm:$0xff]
      %v1349 = vld [vmem:[%s206 + $0xf3] sm:$0xff]
      %v1350 = vld [vmem:[%s206 + $0xfb] sm:$0xff]
      %v1351 = vld [vmem:[%s206 + $0x10b] sm:$0xff]
      %v1352 = vld [vmem:[%s206 + $0x113] sm:$0xff]
      %v1353 = vld [vmem:[%s206 + $0x123] sm:$0xff]
      %v1354 = vld [vmem:[%s206 + $0x12b] sm:$0xff]
      %v1355 = vld [vmem:[%s206 + $0x13b] sm:$0xff]
      %v1356 = vld [vmem:[%s206 + $0x143] sm:$0xff]
      %v1357 = vld [vmem:[%s206 + $0x153] sm:$0xff]
      %v1358 = vld [vmem:[%s206 + $0x15b] sm:$0xff]
      %v1359 = vld [vmem:[%s206 + $0x16b] sm:$0xff]
      %v1360 = vld [vmem:[%s206 + $0x173] sm:$0xff]
      %s1361 = scalar_lea.vmem %s210, 12
      %v1362 = vld [vmem:[%s1361] sm:$0xf]
      %v1364 = vsel %vm289, %v1329, 0
      %v1367 = vsel %vm289, %v1330, 0
      %v1370 = vsel %vm289, %v1331, 0
      %v1373 = vsel %vm289, %v1332, 0
      %v1376 = vsel %vm289, %v1333, 0
      %v1379 = vsel %vm289, %v1334, 0
      %v1382 = vsel %vm289, %v1335, 0
      %v1385 = vsel %vm289, %v1336, 0
      %v1388 = vsel %vm289, %v1337, 0
      %v1391 = vsel %vm289, %v1338, 0
      %v1394 = vsel %vm289, %v1339, 0
      %v1397 = vsel %vm289, %v1340, 0
      %v1400 = vsel %vm289, %v1341, 0
      %v1403 = vsel %vm289, %v1342, 0
      %v1406 = vsel %vm289, %v1343, 0
      %v1409 = vsel %vm289, %v1344, 0
      %v1412 = vsel %vm289, %v1345, 0
      %v1415 = vsel %vm289, %v1346, 0
      %v1418 = vsel %vm289, %v1347, 0
      %v1421 = vsel %vm289, %v1348, 0
      %v1424 = vsel %vm289, %v1349, 0
      %v1427 = vsel %vm289, %v1350, 0
      %v1430 = vsel %vm289, %v1351, 0
      %v1433 = vsel %vm289, %v1352, 0
      %v1436 = vsel %vm289, %v1353, 0
      %v1439 = vsel %vm289, %v1354, 0
      %v1442 = vsel %vm289, %v1355, 0
      %v1445 = vsel %vm289, %v1356, 0
      %v1448 = vsel %vm289, %v1357, 0
      %v1451 = vsel %vm289, %v1358, 0
      %v1454 = vsel %vm289, %v1359, 0
      %v1457 = vsel %vm289, %v1360, 0
      %v1460 = vsel %vm386, %v1362, 0
      %1462 = vmatprep.subr.mxu0 0.0
      %1463 = vmatpush1.msra.mxu0 0.0
      %1464 = vmatprep.subr.mxu0 0.0
      %1465 = vmatpush1.msra.mxu0 0.0
      %1466 = vmatprep.subr.mxu0 0.0
      %1467 = vmatpush1.msra.mxu0 0.0
      %1468 = vmatprep.subr.mxu0 0.0
      %1469 = vmatpush1.msra.mxu0 0.0
      %1470 = vmatprep.subr.mxu0 0.0
      %1471 = vmatpush1.msra.mxu0 0.0
      %1472 = vmatprep.subr.mxu0 0.0
      %1473 = vmatpush1.msra.mxu0 0.0
      %1474 = vmatprep.subr.mxu0 0.0
      %1475 = vmatpush1.msra.mxu0 0.0
      %1476 = vmatprep.subr.mxu0 0.0
      %1477 = vmatpush1.msra.mxu0 0.0
      %1478 = vmatprep.subr.mxu0 0.0
      %1479 = vmatpush1.msra.mxu0 0.0
      %1480 = vmatprep.subr.mxu0 0.0
      %1481 = vmatpush1.msra.mxu0 0.0
      %1482 = vmatprep.subr.mxu0 0.0
      %1483 = vmatpush1.msra.mxu0 0.0
      %1484 = vmatprep.subr.mxu0 0.0
      %1485 = vmatpush1.msra.mxu0 0.0
      %1486 = vmatprep.subr.mxu0 0.0
      %1487 = vmatpush1.msra.mxu0 0.0
      %1488 = vmatprep.subr.mxu0 0.0
      %1489 = vmatpush1.msra.mxu0 0.0
      %1490 = vmatprep.subr.mxu0 0.0
      %1491 = vmatpush1.msra.mxu0 0.0
      %1492 = vmatprep.subr.mxu0 0.0
      %1493 = vmatpush1.msra.mxu0 %v1460
      %1494 = vmatprep.subr.mxu0 0.0
      %1495 = vmatpush2.msra.mxu0 0.0
      %1496 = vmatprep.subr.mxu0 0.0
      %1497 = vmatpush2.msra.mxu0 0.0
      %1498 = vmatprep.subr.mxu0 0.0
      %1499 = vmatpush2.msra.mxu0 0.0
      %1500 = vmatprep.subr.mxu0 0.0
      %1501 = vmatpush2.msra.mxu0 0.0
      %1502 = vmatprep.subr.mxu0 0.0
      %1503 = vmatpush2.msra.mxu0 0.0
      %1504 = vmatprep.subr.mxu0 0.0
      %1505 = vmatpush2.msra.mxu0 0.0
      %1506 = vmatprep.subr.mxu0 0.0
      %1507 = vmatpush2.msra.mxu0 0.0
      %1508 = vmatprep.subr.mxu0 0.0
      %1509 = vmatpush2.msra.mxu0 0.0
      %1510 = vmatprep.subr.mxu0 0.0
      %1511 = vmatpush2.msra.mxu0 0.0
      %1512 = vmatprep.subr.mxu0 0.0
      %1513 = vmatpush2.msra.mxu0 0.0
      %1514 = vmatprep.subr.mxu0 0.0
      %1515 = vmatpush2.msra.mxu0 0.0
      %1516 = vmatprep.subr.mxu0 0.0
      %1517 = vmatpush2.msra.mxu0 0.0
      %1518 = vmatprep.subr.mxu0 0.0
      %1519 = vmatpush2.msra.mxu0 0.0
      %1520 = vmatprep.subr.mxu0 0.0
      %1521 = vmatpush2.msra.mxu0 0.0
      %1522 = vmatprep.subr.mxu0 0.0
      %1523 = vmatpush2.msra.mxu0 0.0
      %1524 = vmatprep.subr.mxu0 0.0
      %1525 = vmatpush2.msra.mxu0 0.0
      %1526 = vmatprep.mubr.f32.mxu0 0.0
      %1527 = vmatmul.mubr.f32.gmra.mxu0 %v1364
      %v1528 = vpop.f32.mrf.mxu0
      %v1529 = vadd.f32 0.0, %v1528
      %v1530 = vpop.f32.mrf.mxu0
      %1531 = vmatprep.mubr.f32.mxu0 0.0
      %1532 = vmatmul.mubr.f32.gmra.mxu0 %v1367
      %v1533 = vpop.f32.mrf.mxu0
      %v1534 = vadd.f32 0.0, %v1533
      %v1535 = vpop.f32.mrf.mxu0
      %1536 = vmatprep.mubr.f32.mxu0 0.0
      %1537 = vmatmul.mubr.f32.gmra.mxu0 %v1370
      %v1538 = vpop.f32.mrf.mxu0
      %v1539 = vadd.f32 0.0, %v1538
      %v1540 = vpop.f32.mrf.mxu0
      %1541 = vmatprep.mubr.f32.mxu0 0.0
      %1542 = vmatmul.mubr.f32.gmra.mxu0 %v1373
      %v1543 = vpop.f32.mrf.mxu0
      %v1544 = vadd.f32 0.0, %v1543
      %v1545 = vpop.f32.mrf.mxu0
      %1546 = vmatprep.mubr.f32.mxu0 0.0
      %1547 = vmatmul.mubr.f32.gmra.mxu0 %v1376
      %v1548 = vpop.f32.mrf.mxu0
      %v1549 = vadd.f32 0.0, %v1548
      %v1550 = vpop.f32.mrf.mxu0
      %1551 = vmatprep.mubr.f32.mxu0 0.0
      %1552 = vmatmul.mubr.f32.gmra.mxu0 %v1379
      %v1553 = vpop.f32.mrf.mxu0
      %v1554 = vadd.f32 0.0, %v1553
      %v1555 = vpop.f32.mrf.mxu0
      %1556 = vmatprep.mubr.f32.mxu0 0.0
      %1557 = vmatmul.mubr.f32.gmra.mxu0 %v1382
      %v1558 = vpop.f32.mrf.mxu0
      %v1559 = vadd.f32 0.0, %v1558
      %v1560 = vpop.f32.mrf.mxu0
      %1561 = vmatprep.mubr.f32.mxu0 0.0
      %1562 = vmatmul.mubr.f32.gmra.mxu0 %v1385
      %v1563 = vpop.f32.mrf.mxu0
      %v1564 = vadd.f32 0.0, %v1563
      %v1565 = vpop.f32.mrf.mxu0
      %1566 = vmatprep.mubr.f32.mxu0 0.0
      %1567 = vmatmul.mubr.f32.gmra.mxu0 %v1388
      %v1568 = vpop.f32.mrf.mxu0
      %v1569 = vadd.f32 0.0, %v1568
      %v1570 = vpop.f32.mrf.mxu0
      %1571 = vmatprep.mubr.f32.mxu0 0.0
      %1572 = vmatmul.mubr.f32.gmra.mxu0 %v1391
      %v1573 = vpop.f32.mrf.mxu0
      %v1574 = vadd.f32 0.0, %v1573
      %v1575 = vpop.f32.mrf.mxu0
      %1576 = vmatprep.mubr.f32.mxu0 0.0
      %1577 = vmatmul.mubr.f32.gmra.mxu0 %v1394
      %v1578 = vpop.f32.mrf.mxu0
      %v1579 = vadd.f32 0.0, %v1578
      %v1580 = vpop.f32.mrf.mxu0
      %1581 = vmatprep.mubr.f32.mxu0 0.0
      %1582 = vmatmul.mubr.f32.gmra.mxu0 %v1397
      %v1583 = vpop.f32.mrf.mxu0
      %v1584 = vadd.f32 0.0, %v1583
      %v1585 = vpop.f32.mrf.mxu0
      %1586 = vmatprep.mubr.f32.mxu0 0.0
      %1587 = vmatmul.mubr.f32.gmra.mxu0 %v1400
      %v1588 = vpop.f32.mrf.mxu0
      %v1589 = vadd.f32 0.0, %v1588
      %v1590 = vpop.f32.mrf.mxu0
      %1591 = vmatprep.mubr.f32.mxu0 0.0
      %1592 = vmatmul.mubr.f32.gmra.mxu0 %v1403
      %v1593 = vpop.f32.mrf.mxu0
      %v1594 = vadd.f32 0.0, %v1593
      %v1595 = vpop.f32.mrf.mxu0
      %1596 = vmatprep.mubr.f32.mxu0 0.0
      %1597 = vmatmul.mubr.f32.gmra.mxu0 %v1406
      %v1598 = vpop.f32.mrf.mxu0
      %v1599 = vadd.f32 0.0, %v1598
      %v1600 = vpop.f32.mrf.mxu0
      %1601 = vmatprep.mubr.f32.mxu0 0.0
      %1602 = vmatmul.mubr.f32.gmra.mxu0 %v1409
      %v1603 = vpop.f32.mrf.mxu0
      %v1604 = vadd.f32 0.0, %v1603
      %v1605 = vpop.f32.mrf.mxu0
      %1606 = vmatprep.mubr.f32.mxu0 0.0
      %1607 = vmatmul.mubr.f32.gmra.mxu0 %v1412
      %v1608 = vpop.f32.mrf.mxu0
      %v1609 = vadd.f32 0.0, %v1608
      %v1610 = vpop.f32.mrf.mxu0
      %1611 = vmatprep.mubr.f32.mxu0 0.0
      %1612 = vmatmul.mubr.f32.gmra.mxu0 %v1415
      %v1613 = vpop.f32.mrf.mxu0
      %v1614 = vadd.f32 0.0, %v1613
      %v1615 = vpop.f32.mrf.mxu0
      %1616 = vmatprep.mubr.f32.mxu0 0.0
      %1617 = vmatmul.mubr.f32.gmra.mxu0 %v1418
      %v1618 = vpop.f32.mrf.mxu0
      %v1619 = vadd.f32 0.0, %v1618
      %v1620 = vpop.f32.mrf.mxu0
      %1621 = vmatprep.mubr.f32.mxu0 0.0
      %1622 = vmatmul.mubr.f32.gmra.mxu0 %v1421
      %v1623 = vpop.f32.mrf.mxu0
      %v1624 = vadd.f32 0.0, %v1623
      %v1625 = vpop.f32.mrf.mxu0
      %1626 = vmatprep.mubr.f32.mxu0 0.0
      %1627 = vmatmul.mubr.f32.gmra.mxu0 %v1424
      %v1628 = vpop.f32.mrf.mxu0
      %v1629 = vadd.f32 0.0, %v1628
      %v1630 = vpop.f32.mrf.mxu0
      %1631 = vmatprep.mubr.f32.mxu0 0.0
      %1632 = vmatmul.mubr.f32.gmra.mxu0 %v1427
      %v1633 = vpop.f32.mrf.mxu0
      %v1634 = vadd.f32 0.0, %v1633
      %v1635 = vpop.f32.mrf.mxu0
      %1636 = vmatprep.mubr.f32.mxu0 0.0
      %1637 = vmatmul.mubr.f32.gmra.mxu0 %v1430
      %v1638 = vpop.f32.mrf.mxu0
      %v1639 = vadd.f32 0.0, %v1638
      %v1640 = vpop.f32.mrf.mxu0
      %1641 = vmatprep.mubr.f32.mxu0 0.0
      %1642 = vmatmul.mubr.f32.gmra.mxu0 %v1433
      %v1643 = vpop.f32.mrf.mxu0
      %v1644 = vadd.f32 0.0, %v1643
      %v1645 = vpop.f32.mrf.mxu0
      %1646 = vmatprep.mubr.f32.mxu0 0.0
      %1647 = vmatmul.mubr.f32.gmra.mxu0 %v1436
      %v1648 = vpop.f32.mrf.mxu0
      %v1649 = vadd.f32 0.0, %v1648
      %v1650 = vpop.f32.mrf.mxu0
      %1651 = vmatprep.mubr.f32.mxu0 0.0
      %1652 = vmatmul.mubr.f32.gmra.mxu0 %v1439
      %v1653 = vpop.f32.mrf.mxu0
      %v1654 = vadd.f32 0.0, %v1653
      %v1655 = vpop.f32.mrf.mxu0
      %1656 = vmatprep.mubr.f32.mxu0 0.0
      %1657 = vmatmul.mubr.f32.gmra.mxu0 %v1442
      %v1658 = vpop.f32.mrf.mxu0
      %v1659 = vadd.f32 0.0, %v1658
      %v1660 = vpop.f32.mrf.mxu0
      %1661 = vmatprep.mubr.f32.mxu0 0.0
      %1662 = vmatmul.mubr.f32.gmra.mxu0 %v1445
      %v1663 = vpop.f32.mrf.mxu0
      %v1664 = vadd.f32 0.0, %v1663
      %v1665 = vpop.f32.mrf.mxu0
      %1666 = vmatprep.mubr.f32.mxu0 0.0
      %1667 = vmatmul.mubr.f32.gmra.mxu0 %v1448
      %v1668 = vpop.f32.mrf.mxu0
      %v1669 = vadd.f32 0.0, %v1668
      %v1670 = vpop.f32.mrf.mxu0
      %1671 = vmatprep.mubr.f32.mxu0 0.0
      %1672 = vmatmul.mubr.f32.gmra.mxu0 %v1451
      %v1673 = vpop.f32.mrf.mxu0
      %v1674 = vadd.f32 0.0, %v1673
      %v1675 = vpop.f32.mrf.mxu0
      %1676 = vmatprep.mubr.f32.mxu0 0.0
      %1677 = vmatmul.mubr.f32.gmra.mxu0 %v1454
      %v1678 = vpop.f32.mrf.mxu0
      %v1679 = vadd.f32 0.0, %v1678
      %v1680 = vpop.f32.mrf.mxu0
      %1681 = vmatprep.mubr.f32.mxu0 0.0
      %1682 = vmatmul.mubr.f32.gmra.mxu0 %v1457
      %v1683 = vpop.f32.mrf.mxu0
      %v1684 = vadd.f32 0.0, %v1683
      %v1685 = vpop.f32.mrf.mxu0
      %1686 = vdwg.mxu0
      %v1687 = vadd.f32 %v1297, %v1529
      %v1688 = vadd.f32 %v1298, %v1534
      %v1689 = vadd.f32 %v1299, %v1539
      %v1690 = vadd.f32 %v1300, %v1544
      %v1691 = vadd.f32 %v1301, %v1549
      %v1692 = vadd.f32 %v1302, %v1554
      %v1693 = vadd.f32 %v1303, %v1559
      %v1694 = vadd.f32 %v1304, %v1564
      %v1695 = vadd.f32 %v1305, %v1569
      %v1696 = vadd.f32 %v1306, %v1574
      %v1697 = vadd.f32 %v1307, %v1579
      %v1698 = vadd.f32 %v1308, %v1584
      %v1699 = vadd.f32 %v1309, %v1589
      %v1700 = vadd.f32 %v1310, %v1594
      %v1701 = vadd.f32 %v1311, %v1599
      %v1702 = vadd.f32 %v1312, %v1604
      %v1703 = vadd.f32 %v1313, %v1609
      %v1704 = vadd.f32 %v1314, %v1614
      %v1705 = vadd.f32 %v1315, %v1619
      %v1706 = vadd.f32 %v1316, %v1624
      %v1707 = vadd.f32 %v1317, %v1629
      %v1708 = vadd.f32 %v1318, %v1634
      %v1709 = vadd.f32 %v1319, %v1639
      %v1710 = vadd.f32 %v1320, %v1644
      %v1711 = vadd.f32 %v1321, %v1649
      %v1712 = vadd.f32 %v1322, %v1654
      %v1713 = vadd.f32 %v1323, %v1659
      %v1714 = vadd.f32 %v1324, %v1664
      %v1715 = vadd.f32 %v1325, %v1669
      %v1716 = vadd.f32 %v1326, %v1674
      %v1717 = vadd.f32 %v1327, %v1679
      %v1718 = vadd.f32 %v1328, %v1684
      %v1719 = vld [vmem:[%s206 + $0x4] sm:$0xff]
      %v1720 = vld [vmem:[%s206 + $0xc] sm:$0xff]
      %v1721 = vld [vmem:[%s206 + $0x1c] sm:$0xff]
      %v1722 = vld [vmem:[%s206 + $0x24] sm:$0xff]
      %v1723 = vld [vmem:[%s206 + $0x34] sm:$0xff]
      %v1724 = vld [vmem:[%s206 + $0x3c] sm:$0xff]
      %v1725 = vld [vmem:[%s206 + $0x4c] sm:$0xff]
      %v1726 = vld [vmem:[%s206 + $0x54] sm:$0xff]
      %v1727 = vld [vmem:[%s206 + $0x64] sm:$0xff]
      %v1728 = vld [vmem:[%s206 + $0x6c] sm:$0xff]
      %v1729 = vld [vmem:[%s206 + $0x7c] sm:$0xff]
      %v1730 = vld [vmem:[%s206 + $0x84] sm:$0xff]
      %v1731 = vld [vmem:[%s206 + $0x94] sm:$0xff]
      %v1732 = vld [vmem:[%s206 + $0x9c] sm:$0xff]
      %v1733 = vld [vmem:[%s206 + $0xac] sm:$0xff]
      %v1734 = vld [vmem:[%s206 + $0xb4] sm:$0xff]
      %v1735 = vld [vmem:[%s206 + $0xc4] sm:$0xff]
      %v1736 = vld [vmem:[%s206 + $0xcc] sm:$0xff]
      %v1737 = vld [vmem:[%s206 + $0xdc] sm:$0xff]
      %v1738 = vld [vmem:[%s206 + $0xe4] sm:$0xff]
      %v1739 = vld [vmem:[%s206 + $0xf4] sm:$0xff]
      %v1740 = vld [vmem:[%s206 + $0xfc] sm:$0xff]
      %v1741 = vld [vmem:[%s206 + $0x10c] sm:$0xff]
      %v1742 = vld [vmem:[%s206 + $0x114] sm:$0xff]
      %v1743 = vld [vmem:[%s206 + $0x124] sm:$0xff]
      %v1744 = vld [vmem:[%s206 + $0x12c] sm:$0xff]
      %v1745 = vld [vmem:[%s206 + $0x13c] sm:$0xff]
      %v1746 = vld [vmem:[%s206 + $0x144] sm:$0xff]
      %v1747 = vld [vmem:[%s206 + $0x154] sm:$0xff]
      %v1748 = vld [vmem:[%s206 + $0x15c] sm:$0xff]
      %v1749 = vld [vmem:[%s206 + $0x16c] sm:$0xff]
      %v1750 = vld [vmem:[%s206 + $0x174] sm:$0xff]
      %s1751 = scalar_lea.vmem %s210, 16
      %v1752 = vld [vmem:[%s1751] sm:$0xf]
      %v1754 = vsel %vm289, %v1719, 0
      %v1757 = vsel %vm289, %v1720, 0
      %v1760 = vsel %vm289, %v1721, 0
      %v1763 = vsel %vm289, %v1722, 0
      %v1766 = vsel %vm289, %v1723, 0
      %v1769 = vsel %vm289, %v1724, 0
      %v1772 = vsel %vm289, %v1725, 0
      %v1775 = vsel %vm289, %v1726, 0
      %v1778 = vsel %vm289, %v1727, 0
      %v1781 = vsel %vm289, %v1728, 0
      %v1784 = vsel %vm289, %v1729, 0
      %v1787 = vsel %vm289, %v1730, 0
      %v1790 = vsel %vm289, %v1731, 0
      %v1793 = vsel %vm289, %v1732, 0
      %v1796 = vsel %vm289, %v1733, 0
      %v1799 = vsel %vm289, %v1734, 0
      %v1802 = vsel %vm289, %v1735, 0
      %v1805 = vsel %vm289, %v1736, 0
      %v1808 = vsel %vm289, %v1737, 0
      %v1811 = vsel %vm289, %v1738, 0
      %v1814 = vsel %vm289, %v1739, 0
      %v1817 = vsel %vm289, %v1740, 0
      %v1820 = vsel %vm289, %v1741, 0
      %v1823 = vsel %vm289, %v1742, 0
      %v1826 = vsel %vm289, %v1743, 0
      %v1829 = vsel %vm289, %v1744, 0
      %v1832 = vsel %vm289, %v1745, 0
      %v1835 = vsel %vm289, %v1746, 0
      %v1838 = vsel %vm289, %v1747, 0
      %v1841 = vsel %vm289, %v1748, 0
      %v1844 = vsel %vm289, %v1749, 0
      %v1847 = vsel %vm289, %v1750, 0
      %v1850 = vsel %vm386, %v1752, 0
      %1852 = vmatprep.subr.mxu0 0.0
      %1853 = vmatpush1.msra.mxu0 0.0
      %1854 = vmatprep.subr.mxu0 0.0
      %1855 = vmatpush1.msra.mxu0 0.0
      %1856 = vmatprep.subr.mxu0 0.0
      %1857 = vmatpush1.msra.mxu0 0.0
      %1858 = vmatprep.subr.mxu0 0.0
      %1859 = vmatpush1.msra.mxu0 0.0
      %1860 = vmatprep.subr.mxu0 0.0
      %1861 = vmatpush1.msra.mxu0 0.0
      %1862 = vmatprep.subr.mxu0 0.0
      %1863 = vmatpush1.msra.mxu0 0.0
      %1864 = vmatprep.subr.mxu0 0.0
      %1865 = vmatpush1.msra.mxu0 0.0
      %1866 = vmatprep.subr.mxu0 0.0
      %1867 = vmatpush1.msra.mxu0 0.0
      %1868 = vmatprep.subr.mxu0 0.0
      %1869 = vmatpush1.msra.mxu0 0.0
      %1870 = vmatprep.subr.mxu0 0.0
      %1871 = vmatpush1.msra.mxu0 0.0
      %1872 = vmatprep.subr.mxu0 0.0
      %1873 = vmatpush1.msra.mxu0 0.0
      %1874 = vmatprep.subr.mxu0 0.0
      %1875 = vmatpush1.msra.mxu0 0.0
      %1876 = vmatprep.subr.mxu0 0.0
      %1877 = vmatpush1.msra.mxu0 0.0
      %1878 = vmatprep.subr.mxu0 0.0
      %1879 = vmatpush1.msra.mxu0 0.0
      %1880 = vmatprep.subr.mxu0 0.0
      %1881 = vmatpush1.msra.mxu0 0.0
      %1882 = vmatprep.subr.mxu0 0.0
      %1883 = vmatpush1.msra.mxu0 %v1850
      %1884 = vmatprep.subr.mxu0 0.0
      %1885 = vmatpush2.msra.mxu0 0.0
      %1886 = vmatprep.subr.mxu0 0.0
      %1887 = vmatpush2.msra.mxu0 0.0
      %1888 = vmatprep.subr.mxu0 0.0
      %1889 = vmatpush2.msra.mxu0 0.0
      %1890 = vmatprep.subr.mxu0 0.0
      %1891 = vmatpush2.msra.mxu0 0.0
      %1892 = vmatprep.subr.mxu0 0.0
      %1893 = vmatpush2.msra.mxu0 0.0
      %1894 = vmatprep.subr.mxu0 0.0
      %1895 = vmatpush2.msra.mxu0 0.0
      %1896 = vmatprep.subr.mxu0 0.0
      %1897 = vmatpush2.msra.mxu0 0.0
      %1898 = vmatprep.subr.mxu0 0.0
      %1899 = vmatpush2.msra.mxu0 0.0
      %1900 = vmatprep.subr.mxu0 0.0
      %1901 = vmatpush2.msra.mxu0 0.0
      %1902 = vmatprep.subr.mxu0 0.0
      %1903 = vmatpush2.msra.mxu0 0.0
      %1904 = vmatprep.subr.mxu0 0.0
      %1905 = vmatpush2.msra.mxu0 0.0
      %1906 = vmatprep.subr.mxu0 0.0
      %1907 = vmatpush2.msra.mxu0 0.0
      %1908 = vmatprep.subr.mxu0 0.0
      %1909 = vmatpush2.msra.mxu0 0.0
      %1910 = vmatprep.subr.mxu0 0.0
      %1911 = vmatpush2.msra.mxu0 0.0
      %1912 = vmatprep.subr.mxu0 0.0
      %1913 = vmatpush2.msra.mxu0 0.0
      %1914 = vmatprep.subr.mxu0 0.0
      %1915 = vmatpush2.msra.mxu0 0.0
      %1916 = vmatprep.mubr.f32.mxu0 0.0
      %1917 = vmatmul.mubr.f32.gmra.mxu0 %v1754
      %v1918 = vpop.f32.mrf.mxu0
      %v1919 = vadd.f32 0.0, %v1918
      %v1920 = vpop.f32.mrf.mxu0
      %1921 = vmatprep.mubr.f32.mxu0 0.0
      %1922 = vmatmul.mubr.f32.gmra.mxu0 %v1757
      %v1923 = vpop.f32.mrf.mxu0
      %v1924 = vadd.f32 0.0, %v1923
      %v1925 = vpop.f32.mrf.mxu0
      %1926 = vmatprep.mubr.f32.mxu0 0.0
      %1927 = vmatmul.mubr.f32.gmra.mxu0 %v1760
      %v1928 = vpop.f32.mrf.mxu0
      %v1929 = vadd.f32 0.0, %v1928
      %v1930 = vpop.f32.mrf.mxu0
      %1931 = vmatprep.mubr.f32.mxu0 0.0
      %1932 = vmatmul.mubr.f32.gmra.mxu0 %v1763
      %v1933 = vpop.f32.mrf.mxu0
      %v1934 = vadd.f32 0.0, %v1933
      %v1935 = vpop.f32.mrf.mxu0
      %1936 = vmatprep.mubr.f32.mxu0 0.0
      %1937 = vmatmul.mubr.f32.gmra.mxu0 %v1766
      %v1938 = vpop.f32.mrf.mxu0
      %v1939 = vadd.f32 0.0, %v1938
      %v1940 = vpop.f32.mrf.mxu0
      %1941 = vmatprep.mubr.f32.mxu0 0.0
      %1942 = vmatmul.mubr.f32.gmra.mxu0 %v1769
      %v1943 = vpop.f32.mrf.mxu0
      %v1944 = vadd.f32 0.0, %v1943
      %v1945 = vpop.f32.mrf.mxu0
      %1946 = vmatprep.mubr.f32.mxu0 0.0
      %1947 = vmatmul.mubr.f32.gmra.mxu0 %v1772
      %v1948 = vpop.f32.mrf.mxu0
      %v1949 = vadd.f32 0.0, %v1948
      %v1950 = vpop.f32.mrf.mxu0
      %1951 = vmatprep.mubr.f32.mxu0 0.0
      %1952 = vmatmul.mubr.f32.gmra.mxu0 %v1775
      %v1953 = vpop.f32.mrf.mxu0
      %v1954 = vadd.f32 0.0, %v1953
      %v1955 = vpop.f32.mrf.mxu0
      %1956 = vmatprep.mubr.f32.mxu0 0.0
      %1957 = vmatmul.mubr.f32.gmra.mxu0 %v1778
      %v1958 = vpop.f32.mrf.mxu0
      %v1959 = vadd.f32 0.0, %v1958
      %v1960 = vpop.f32.mrf.mxu0
      %1961 = vmatprep.mubr.f32.mxu0 0.0
      %1962 = vmatmul.mubr.f32.gmra.mxu0 %v1781
      %v1963 = vpop.f32.mrf.mxu0
      %v1964 = vadd.f32 0.0, %v1963
      %v1965 = vpop.f32.mrf.mxu0
      %1966 = vmatprep.mubr.f32.mxu0 0.0
      %1967 = vmatmul.mubr.f32.gmra.mxu0 %v1784
      %v1968 = vpop.f32.mrf.mxu0
      %v1969 = vadd.f32 0.0, %v1968
      %v1970 = vpop.f32.mrf.mxu0
      %1971 = vmatprep.mubr.f32.mxu0 0.0
      %1972 = vmatmul.mubr.f32.gmra.mxu0 %v1787
      %v1973 = vpop.f32.mrf.mxu0
      %v1974 = vadd.f32 0.0, %v1973
      %v1975 = vpop.f32.mrf.mxu0
      %1976 = vmatprep.mubr.f32.mxu0 0.0
      %1977 = vmatmul.mubr.f32.gmra.mxu0 %v1790
      %v1978 = vpop.f32.mrf.mxu0
      %v1979 = vadd.f32 0.0, %v1978
      %v1980 = vpop.f32.mrf.mxu0
      %1981 = vmatprep.mubr.f32.mxu0 0.0
      %1982 = vmatmul.mubr.f32.gmra.mxu0 %v1793
      %v1983 = vpop.f32.mrf.mxu0
      %v1984 = vadd.f32 0.0, %v1983
      %v1985 = vpop.f32.mrf.mxu0
      %1986 = vmatprep.mubr.f32.mxu0 0.0
      %1987 = vmatmul.mubr.f32.gmra.mxu0 %v1796
      %v1988 = vpop.f32.mrf.mxu0
      %v1989 = vadd.f32 0.0, %v1988
      %v1990 = vpop.f32.mrf.mxu0
      %1991 = vmatprep.mubr.f32.mxu0 0.0
      %1992 = vmatmul.mubr.f32.gmra.mxu0 %v1799
      %v1993 = vpop.f32.mrf.mxu0
      %v1994 = vadd.f32 0.0, %v1993
      %v1995 = vpop.f32.mrf.mxu0
      %1996 = vmatprep.mubr.f32.mxu0 0.0
      %1997 = vmatmul.mubr.f32.gmra.mxu0 %v1802
      %v1998 = vpop.f32.mrf.mxu0
      %v1999 = vadd.f32 0.0, %v1998
      %v2000 = vpop.f32.mrf.mxu0
      %2001 = vmatprep.mubr.f32.mxu0 0.0
      %2002 = vmatmul.mubr.f32.gmra.mxu0 %v1805
      %v2003 = vpop.f32.mrf.mxu0
      %v2004 = vadd.f32 0.0, %v2003
      %v2005 = vpop.f32.mrf.mxu0
      %2006 = vmatprep.mubr.f32.mxu0 0.0
      %2007 = vmatmul.mubr.f32.gmra.mxu0 %v1808
      %v2008 = vpop.f32.mrf.mxu0
      %v2009 = vadd.f32 0.0, %v2008
      %v2010 = vpop.f32.mrf.mxu0
      %2011 = vmatprep.mubr.f32.mxu0 0.0
      %2012 = vmatmul.mubr.f32.gmra.mxu0 %v1811
      %v2013 = vpop.f32.mrf.mxu0
      %v2014 = vadd.f32 0.0, %v2013
      %v2015 = vpop.f32.mrf.mxu0
      %2016 = vmatprep.mubr.f32.mxu0 0.0
      %2017 = vmatmul.mubr.f32.gmra.mxu0 %v1814
      %v2018 = vpop.f32.mrf.mxu0
      %v2019 = vadd.f32 0.0, %v2018
      %v2020 = vpop.f32.mrf.mxu0
      %2021 = vmatprep.mubr.f32.mxu0 0.0
      %2022 = vmatmul.mubr.f32.gmra.mxu0 %v1817
      %v2023 = vpop.f32.mrf.mxu0
      %v2024 = vadd.f32 0.0, %v2023
      %v2025 = vpop.f32.mrf.mxu0
      %2026 = vmatprep.mubr.f32.mxu0 0.0
      %2027 = vmatmul.mubr.f32.gmra.mxu0 %v1820
      %v2028 = vpop.f32.mrf.mxu0
      %v2029 = vadd.f32 0.0, %v2028
      %v2030 = vpop.f32.mrf.mxu0
      %2031 = vmatprep.mubr.f32.mxu0 0.0
      %2032 = vmatmul.mubr.f32.gmra.mxu0 %v1823
      %v2033 = vpop.f32.mrf.mxu0
      %v2034 = vadd.f32 0.0, %v2033
      %v2035 = vpop.f32.mrf.mxu0
      %2036 = vmatprep.mubr.f32.mxu0 0.0
      %2037 = vmatmul.mubr.f32.gmra.mxu0 %v1826
      %v2038 = vpop.f32.mrf.mxu0
      %v2039 = vadd.f32 0.0, %v2038
      %v2040 = vpop.f32.mrf.mxu0
      %2041 = vmatprep.mubr.f32.mxu0 0.0
      %2042 = vmatmul.mubr.f32.gmra.mxu0 %v1829
      %v2043 = vpop.f32.mrf.mxu0
      %v2044 = vadd.f32 0.0, %v2043
      %v2045 = vpop.f32.mrf.mxu0
      %2046 = vmatprep.mubr.f32.mxu0 0.0
      %2047 = vmatmul.mubr.f32.gmra.mxu0 %v1832
      %v2048 = vpop.f32.mrf.mxu0
      %v2049 = vadd.f32 0.0, %v2048
      %v2050 = vpop.f32.mrf.mxu0
      %2051 = vmatprep.mubr.f32.mxu0 0.0
      %2052 = vmatmul.mubr.f32.gmra.mxu0 %v1835
      %v2053 = vpop.f32.mrf.mxu0
      %v2054 = vadd.f32 0.0, %v2053
      %v2055 = vpop.f32.mrf.mxu0
      %2056 = vmatprep.mubr.f32.mxu0 0.0
      %2057 = vmatmul.mubr.f32.gmra.mxu0 %v1838
      %v2058 = vpop.f32.mrf.mxu0
      %v2059 = vadd.f32 0.0, %v2058
      %v2060 = vpop.f32.mrf.mxu0
      %2061 = vmatprep.mubr.f32.mxu0 0.0
      %2062 = vmatmul.mubr.f32.gmra.mxu0 %v1841
      %v2063 = vpop.f32.mrf.mxu0
      %v2064 = vadd.f32 0.0, %v2063
      %v2065 = vpop.f32.mrf.mxu0
      %2066 = vmatprep.mubr.f32.mxu0 0.0
      %2067 = vmatmul.mubr.f32.gmra.mxu0 %v1844
      %v2068 = vpop.f32.mrf.mxu0
      %v2069 = vadd.f32 0.0, %v2068
      %v2070 = vpop.f32.mrf.mxu0
      %2071 = vmatprep.mubr.f32.mxu0 0.0
      %2072 = vmatmul.mubr.f32.gmra.mxu0 %v1847
      %v2073 = vpop.f32.mrf.mxu0
      %v2074 = vadd.f32 0.0, %v2073
      %v2075 = vpop.f32.mrf.mxu0
      %2076 = vdwg.mxu0
      %v2077 = vadd.f32 %v1687, %v1919
      %v2078 = vadd.f32 %v1688, %v1924
      %v2079 = vadd.f32 %v1689, %v1929
      %v2080 = vadd.f32 %v1690, %v1934
      %v2081 = vadd.f32 %v1691, %v1939
      %v2082 = vadd.f32 %v1692, %v1944
      %v2083 = vadd.f32 %v1693, %v1949
      %v2084 = vadd.f32 %v1694, %v1954
      %v2085 = vadd.f32 %v1695, %v1959
      %v2086 = vadd.f32 %v1696, %v1964
      %v2087 = vadd.f32 %v1697, %v1969
      %v2088 = vadd.f32 %v1698, %v1974
      %v2089 = vadd.f32 %v1699, %v1979
      %v2090 = vadd.f32 %v1700, %v1984
      %v2091 = vadd.f32 %v1701, %v1989
      %v2092 = vadd.f32 %v1702, %v1994
      %v2093 = vadd.f32 %v1703, %v1999
      %v2094 = vadd.f32 %v1704, %v2004
      %v2095 = vadd.f32 %v1705, %v2009
      %v2096 = vadd.f32 %v1706, %v2014
      %v2097 = vadd.f32 %v1707, %v2019
      %v2098 = vadd.f32 %v1708, %v2024
      %v2099 = vadd.f32 %v1709, %v2029
      %v2100 = vadd.f32 %v1710, %v2034
      %v2101 = vadd.f32 %v1711, %v2039
      %v2102 = vadd.f32 %v1712, %v2044
      %v2103 = vadd.f32 %v1713, %v2049
      %v2104 = vadd.f32 %v1714, %v2054
      %v2105 = vadd.f32 %v1715, %v2059
      %v2106 = vadd.f32 %v1716, %v2064
      %v2107 = vadd.f32 %v1717, %v2069
      %v2108 = vadd.f32 %v1718, %v2074
      %s2109 = scalar_lea.vmem %s206, 24
      %v2110 = vld [vmem:[%s2109] sm:$0xff]
      %v2111 = vld [vmem:[%s2109 + $0x8] sm:$0xff]
      %v2112 = vld [vmem:[%s2109 + $0x18] sm:$0xff]
      %v2113 = vld [vmem:[%s2109 + $0x20] sm:$0xff]
      %v2114 = vld [vmem:[%s2109 + $0x30] sm:$0xff]
      %v2115 = vld [vmem:[%s2109 + $0x38] sm:$0xff]
      %v2116 = vld [vmem:[%s2109 + $0x48] sm:$0xff]
      %v2117 = vld [vmem:[%s2109 + $0x50] sm:$0xff]
      %v2118 = vld [vmem:[%s2109 + $0x60] sm:$0xff]
      %v2119 = vld [vmem:[%s2109 + $0x68] sm:$0xff]
      %v2120 = vld [vmem:[%s2109 + $0x78] sm:$0xff]
      %v2121 = vld [vmem:[%s2109 + $0x80] sm:$0xff]
      %v2122 = vld [vmem:[%s2109 + $0x90] sm:$0xff]
      %v2123 = vld [vmem:[%s2109 + $0x98] sm:$0xff]
      %v2124 = vld [vmem:[%s2109 + $0xa8] sm:$0xff]
      %v2125 = vld [vmem:[%s2109 + $0xb0] sm:$0xff]
      %v2126 = vld [vmem:[%s2109 + $0xc0] sm:$0xff]
      %v2127 = vld [vmem:[%s2109 + $0xc8] sm:$0xff]
      %v2128 = vld [vmem:[%s2109 + $0xd8] sm:$0xff]
      %v2129 = vld [vmem:[%s2109 + $0xe0] sm:$0xff]
      %v2130 = vld [vmem:[%s2109 + $0xf0] sm:$0xff]
      %v2131 = vld [vmem:[%s2109 + $0xf8] sm:$0xff]
      %v2132 = vld [vmem:[%s2109 + $0x108] sm:$0xff]
      %v2133 = vld [vmem:[%s2109 + $0x110] sm:$0xff]
      %v2134 = vld [vmem:[%s2109 + $0x120] sm:$0xff]
      %v2135 = vld [vmem:[%s2109 + $0x128] sm:$0xff]
      %v2136 = vld [vmem:[%s2109 + $0x138] sm:$0xff]
      %v2137 = vld [vmem:[%s2109 + $0x140] sm:$0xff]
      %v2138 = vld [vmem:[%s2109 + $0x150] sm:$0xff]
      %v2139 = vld [vmem:[%s2109 + $0x158] sm:$0xff]
      %v2140 = vld [vmem:[%s2109 + $0x168] sm:$0xff]
      %v2141 = vld [vmem:[%s2109 + $0x170] sm:$0xff]
      %s2142 = scalar_lea.vmem %s210, 20
      %v2143 = vld [vmem:[%s2142] sm:$0xf]
      %v2145 = vsel %vm289, %v2110, 0
      %v2148 = vsel %vm289, %v2111, 0
      %v2151 = vsel %vm289, %v2112, 0
      %v2154 = vsel %vm289, %v2113, 0
      %v2157 = vsel %vm289, %v2114, 0
      %v2160 = vsel %vm289, %v2115, 0
      %v2163 = vsel %vm289, %v2116, 0
      %v2166 = vsel %vm289, %v2117, 0
      %v2169 = vsel %vm289, %v2118, 0
      %v2172 = vsel %vm289, %v2119, 0
      %v2175 = vsel %vm289, %v2120, 0
      %v2178 = vsel %vm289, %v2121, 0
      %v2181 = vsel %vm289, %v2122, 0
      %v2184 = vsel %vm289, %v2123, 0
      %v2187 = vsel %vm289, %v2124, 0
      %v2190 = vsel %vm289, %v2125, 0
      %v2193 = vsel %vm289, %v2126, 0
      %v2196 = vsel %vm289, %v2127, 0
      %v2199 = vsel %vm289, %v2128, 0
      %v2202 = vsel %vm289, %v2129, 0
      %v2205 = vsel %vm289, %v2130, 0
      %v2208 = vsel %vm289, %v2131, 0
      %v2211 = vsel %vm289, %v2132, 0
      %v2214 = vsel %vm289, %v2133, 0
      %v2217 = vsel %vm289, %v2134, 0
      %v2220 = vsel %vm289, %v2135, 0
      %v2223 = vsel %vm289, %v2136, 0
      %v2226 = vsel %vm289, %v2137, 0
      %v2229 = vsel %vm289, %v2138, 0
      %v2232 = vsel %vm289, %v2139, 0
      %v2235 = vsel %vm289, %v2140, 0
      %v2238 = vsel %vm289, %v2141, 0
      %v2241 = vsel %vm386, %v2143, 0
      %2243 = vmatprep.subr.mxu0 0.0
      %2244 = vmatpush1.msra.mxu0 0.0
      %2245 = vmatprep.subr.mxu0 0.0
      %2246 = vmatpush1.msra.mxu0 0.0
      %2247 = vmatprep.subr.mxu0 0.0
      %2248 = vmatpush1.msra.mxu0 0.0
      %2249 = vmatprep.subr.mxu0 0.0
      %2250 = vmatpush1.msra.mxu0 0.0
      %2251 = vmatprep.subr.mxu0 0.0
      %2252 = vmatpush1.msra.mxu0 0.0
      %2253 = vmatprep.subr.mxu0 0.0
      %2254 = vmatpush1.msra.mxu0 0.0
      %2255 = vmatprep.subr.mxu0 0.0
      %2256 = vmatpush1.msra.mxu0 0.0
      %2257 = vmatprep.subr.mxu0 0.0
      %2258 = vmatpush1.msra.mxu0 0.0
      %2259 = vmatprep.subr.mxu0 0.0
      %2260 = vmatpush1.msra.mxu0 0.0
      %2261 = vmatprep.subr.mxu0 0.0
      %2262 = vmatpush1.msra.mxu0 0.0
      %2263 = vmatprep.subr.mxu0 0.0
      %2264 = vmatpush1.msra.mxu0 0.0
      %2265 = vmatprep.subr.mxu0 0.0
      %2266 = vmatpush1.msra.mxu0 0.0
      %2267 = vmatprep.subr.mxu0 0.0
      %2268 = vmatpush1.msra.mxu0 0.0
      %2269 = vmatprep.subr.mxu0 0.0
      %2270 = vmatpush1.msra.mxu0 0.0
      %2271 = vmatprep.subr.mxu0 0.0
      %2272 = vmatpush1.msra.mxu0 0.0
      %2273 = vmatprep.subr.mxu0 0.0
      %2274 = vmatpush1.msra.mxu0 %v2241
      %2275 = vmatprep.subr.mxu0 0.0
      %2276 = vmatpush2.msra.mxu0 0.0
      %2277 = vmatprep.subr.mxu0 0.0
      %2278 = vmatpush2.msra.mxu0 0.0
      %2279 = vmatprep.subr.mxu0 0.0
      %2280 = vmatpush2.msra.mxu0 0.0
      %2281 = vmatprep.subr.mxu0 0.0
      %2282 = vmatpush2.msra.mxu0 0.0
      %2283 = vmatprep.subr.mxu0 0.0
      %2284 = vmatpush2.msra.mxu0 0.0
      %2285 = vmatprep.subr.mxu0 0.0
      %2286 = vmatpush2.msra.mxu0 0.0
      %2287 = vmatprep.subr.mxu0 0.0
      %2288 = vmatpush2.msra.mxu0 0.0
      %2289 = vmatprep.subr.mxu0 0.0
      %2290 = vmatpush2.msra.mxu0 0.0
      %2291 = vmatprep.subr.mxu0 0.0
      %2292 = vmatpush2.msra.mxu0 0.0
      %2293 = vmatprep.subr.mxu0 0.0
      %2294 = vmatpush2.msra.mxu0 0.0
      %2295 = vmatprep.subr.mxu0 0.0
      %2296 = vmatpush2.msra.mxu0 0.0
      %2297 = vmatprep.subr.mxu0 0.0
      %2298 = vmatpush2.msra.mxu0 0.0
      %2299 = vmatprep.subr.mxu0 0.0
      %2300 = vmatpush2.msra.mxu0 0.0
      %2301 = vmatprep.subr.mxu0 0.0
      %2302 = vmatpush2.msra.mxu0 0.0
      %2303 = vmatprep.subr.mxu0 0.0
      %2304 = vmatpush2.msra.mxu0 0.0
      %2305 = vmatprep.subr.mxu0 0.0
      %2306 = vmatpush2.msra.mxu0 0.0
      %2307 = vmatprep.mubr.f32.mxu0 0.0
      %2308 = vmatmul.mubr.f32.gmra.mxu0 %v2145
      %v2309 = vpop.f32.mrf.mxu0
      %v2310 = vadd.f32 0.0, %v2309
      %v2311 = vpop.f32.mrf.mxu0
      %2312 = vmatprep.mubr.f32.mxu0 0.0
      %2313 = vmatmul.mubr.f32.gmra.mxu0 %v2148
      %v2314 = vpop.f32.mrf.mxu0
      %v2315 = vadd.f32 0.0, %v2314
      %v2316 = vpop.f32.mrf.mxu0
      %2317 = vmatprep.mubr.f32.mxu0 0.0
      %2318 = vmatmul.mubr.f32.gmra.mxu0 %v2151
      %v2319 = vpop.f32.mrf.mxu0
      %v2320 = vadd.f32 0.0, %v2319
      %v2321 = vpop.f32.mrf.mxu0
      %2322 = vmatprep.mubr.f32.mxu0 0.0
      %2323 = vmatmul.mubr.f32.gmra.mxu0 %v2154
      %v2324 = vpop.f32.mrf.mxu0
      %v2325 = vadd.f32 0.0, %v2324
      %v2326 = vpop.f32.mrf.mxu0
      %2327 = vmatprep.mubr.f32.mxu0 0.0
      %2328 = vmatmul.mubr.f32.gmra.mxu0 %v2157
      %v2329 = vpop.f32.mrf.mxu0
      %v2330 = vadd.f32 0.0, %v2329
      %v2331 = vpop.f32.mrf.mxu0
      %2332 = vmatprep.mubr.f32.mxu0 0.0
      %2333 = vmatmul.mubr.f32.gmra.mxu0 %v2160
      %v2334 = vpop.f32.mrf.mxu0
      %v2335 = vadd.f32 0.0, %v2334
      %v2336 = vpop.f32.mrf.mxu0
      %2337 = vmatprep.mubr.f32.mxu0 0.0
      %2338 = vmatmul.mubr.f32.gmra.mxu0 %v2163
      %v2339 = vpop.f32.mrf.mxu0
      %v2340 = vadd.f32 0.0, %v2339
      %v2341 = vpop.f32.mrf.mxu0
      %2342 = vmatprep.mubr.f32.mxu0 0.0
      %2343 = vmatmul.mubr.f32.gmra.mxu0 %v2166
      %v2344 = vpop.f32.mrf.mxu0
      %v2345 = vadd.f32 0.0, %v2344
      %v2346 = vpop.f32.mrf.mxu0
      %2347 = vmatprep.mubr.f32.mxu0 0.0
      %2348 = vmatmul.mubr.f32.gmra.mxu0 %v2169
      %v2349 = vpop.f32.mrf.mxu0
      %v2350 = vadd.f32 0.0, %v2349
      %v2351 = vpop.f32.mrf.mxu0
      %2352 = vmatprep.mubr.f32.mxu0 0.0
      %2353 = vmatmul.mubr.f32.gmra.mxu0 %v2172
      %v2354 = vpop.f32.mrf.mxu0
      %v2355 = vadd.f32 0.0, %v2354
      %v2356 = vpop.f32.mrf.mxu0
      %2357 = vmatprep.mubr.f32.mxu0 0.0
      %2358 = vmatmul.mubr.f32.gmra.mxu0 %v2175
      %v2359 = vpop.f32.mrf.mxu0
      %v2360 = vadd.f32 0.0, %v2359
      %v2361 = vpop.f32.mrf.mxu0
      %2362 = vmatprep.mubr.f32.mxu0 0.0
      %2363 = vmatmul.mubr.f32.gmra.mxu0 %v2178
      %v2364 = vpop.f32.mrf.mxu0
      %v2365 = vadd.f32 0.0, %v2364
      %v2366 = vpop.f32.mrf.mxu0
      %2367 = vmatprep.mubr.f32.mxu0 0.0
      %2368 = vmatmul.mubr.f32.gmra.mxu0 %v2181
      %v2369 = vpop.f32.mrf.mxu0
      %v2370 = vadd.f32 0.0, %v2369
      %v2371 = vpop.f32.mrf.mxu0
      %2372 = vmatprep.mubr.f32.mxu0 0.0
      %2373 = vmatmul.mubr.f32.gmra.mxu0 %v2184
      %v2374 = vpop.f32.mrf.mxu0
      %v2375 = vadd.f32 0.0, %v2374
      %v2376 = vpop.f32.mrf.mxu0
      %2377 = vmatprep.mubr.f32.mxu0 0.0
      %2378 = vmatmul.mubr.f32.gmra.mxu0 %v2187
      %v2379 = vpop.f32.mrf.mxu0
      %v2380 = vadd.f32 0.0, %v2379
      %v2381 = vpop.f32.mrf.mxu0
      %2382 = vmatprep.mubr.f32.mxu0 0.0
      %2383 = vmatmul.mubr.f32.gmra.mxu0 %v2190
      %v2384 = vpop.f32.mrf.mxu0
      %v2385 = vadd.f32 0.0, %v2384
      %v2386 = vpop.f32.mrf.mxu0
      %2387 = vmatprep.mubr.f32.mxu0 0.0
      %2388 = vmatmul.mubr.f32.gmra.mxu0 %v2193
      %v2389 = vpop.f32.mrf.mxu0
      %v2390 = vadd.f32 0.0, %v2389
      %v2391 = vpop.f32.mrf.mxu0
      %2392 = vmatprep.mubr.f32.mxu0 0.0
      %2393 = vmatmul.mubr.f32.gmra.mxu0 %v2196
      %v2394 = vpop.f32.mrf.mxu0
      %v2395 = vadd.f32 0.0, %v2394
      %v2396 = vpop.f32.mrf.mxu0
      %2397 = vmatprep.mubr.f32.mxu0 0.0
      %2398 = vmatmul.mubr.f32.gmra.mxu0 %v2199
      %v2399 = vpop.f32.mrf.mxu0
      %v2400 = vadd.f32 0.0, %v2399
      %v2401 = vpop.f32.mrf.mxu0
      %2402 = vmatprep.mubr.f32.mxu0 0.0
      %2403 = vmatmul.mubr.f32.gmra.mxu0 %v2202
      %v2404 = vpop.f32.mrf.mxu0
      %v2405 = vadd.f32 0.0, %v2404
      %v2406 = vpop.f32.mrf.mxu0
      %2407 = vmatprep.mubr.f32.mxu0 0.0
      %2408 = vmatmul.mubr.f32.gmra.mxu0 %v2205
      %v2409 = vpop.f32.mrf.mxu0
      %v2410 = vadd.f32 0.0, %v2409
      %v2411 = vpop.f32.mrf.mxu0
      %2412 = vmatprep.mubr.f32.mxu0 0.0
      %2413 = vmatmul.mubr.f32.gmra.mxu0 %v2208
      %v2414 = vpop.f32.mrf.mxu0
      %v2415 = vadd.f32 0.0, %v2414
      %v2416 = vpop.f32.mrf.mxu0
      %2417 = vmatprep.mubr.f32.mxu0 0.0
      %2418 = vmatmul.mubr.f32.gmra.mxu0 %v2211
      %v2419 = vpop.f32.mrf.mxu0
      %v2420 = vadd.f32 0.0, %v2419
      %v2421 = vpop.f32.mrf.mxu0
      %2422 = vmatprep.mubr.f32.mxu0 0.0
      %2423 = vmatmul.mubr.f32.gmra.mxu0 %v2214
      %v2424 = vpop.f32.mrf.mxu0
      %v2425 = vadd.f32 0.0, %v2424
      %v2426 = vpop.f32.mrf.mxu0
      %2427 = vmatprep.mubr.f32.mxu0 0.0
      %2428 = vmatmul.mubr.f32.gmra.mxu0 %v2217
      %v2429 = vpop.f32.mrf.mxu0
      %v2430 = vadd.f32 0.0, %v2429
      %v2431 = vpop.f32.mrf.mxu0
      %2432 = vmatprep.mubr.f32.mxu0 0.0
      %2433 = vmatmul.mubr.f32.gmra.mxu0 %v2220
      %v2434 = vpop.f32.mrf.mxu0
      %v2435 = vadd.f32 0.0, %v2434
      %v2436 = vpop.f32.mrf.mxu0
      %2437 = vmatprep.mubr.f32.mxu0 0.0
      %2438 = vmatmul.mubr.f32.gmra.mxu0 %v2223
      %v2439 = vpop.f32.mrf.mxu0
      %v2440 = vadd.f32 0.0, %v2439
      %v2441 = vpop.f32.mrf.mxu0
      %2442 = vmatprep.mubr.f32.mxu0 0.0
      %2443 = vmatmul.mubr.f32.gmra.mxu0 %v2226
      %v2444 = vpop.f32.mrf.mxu0
      %v2445 = vadd.f32 0.0, %v2444
      %v2446 = vpop.f32.mrf.mxu0
      %2447 = vmatprep.mubr.f32.mxu0 0.0
      %2448 = vmatmul.mubr.f32.gmra.mxu0 %v2229
      %v2449 = vpop.f32.mrf.mxu0
      %v2450 = vadd.f32 0.0, %v2449
      %v2451 = vpop.f32.mrf.mxu0
      %2452 = vmatprep.mubr.f32.mxu0 0.0
      %2453 = vmatmul.mubr.f32.gmra.mxu0 %v2232
      %v2454 = vpop.f32.mrf.mxu0
      %v2455 = vadd.f32 0.0, %v2454
      %v2456 = vpop.f32.mrf.mxu0
      %2457 = vmatprep.mubr.f32.mxu0 0.0
      %2458 = vmatmul.mubr.f32.gmra.mxu0 %v2235
      %v2459 = vpop.f32.mrf.mxu0
      %v2460 = vadd.f32 0.0, %v2459
      %v2461 = vpop.f32.mrf.mxu0
      %2462 = vmatprep.mubr.f32.mxu0 0.0
      %2463 = vmatmul.mubr.f32.gmra.mxu0 %v2238
      %v2464 = vpop.f32.mrf.mxu0
      %v2465 = vadd.f32 0.0, %v2464
      %v2466 = vpop.f32.mrf.mxu0
      %2467 = vdwg.mxu0
      %v2468 = vadd.f32 %v2077, %v2310
      %v2469 = vadd.f32 %v2078, %v2315
      %v2470 = vadd.f32 %v2079, %v2320
      %v2471 = vadd.f32 %v2080, %v2325
      %v2472 = vadd.f32 %v2081, %v2330
      %v2473 = vadd.f32 %v2082, %v2335
      %v2474 = vadd.f32 %v2083, %v2340
      %v2475 = vadd.f32 %v2084, %v2345
      %v2476 = vadd.f32 %v2085, %v2350
      %v2477 = vadd.f32 %v2086, %v2355
      %v2478 = vadd.f32 %v2087, %v2360
      %v2479 = vadd.f32 %v2088, %v2365
      %v2480 = vadd.f32 %v2089, %v2370
      %v2481 = vadd.f32 %v2090, %v2375
      %v2482 = vadd.f32 %v2091, %v2380
      %v2483 = vadd.f32 %v2092, %v2385
      %v2484 = vadd.f32 %v2093, %v2390
      %v2485 = vadd.f32 %v2094, %v2395
      %v2486 = vadd.f32 %v2095, %v2400
      %v2487 = vadd.f32 %v2096, %v2405
      %v2488 = vadd.f32 %v2097, %v2410
      %v2489 = vadd.f32 %v2098, %v2415
      %v2490 = vadd.f32 %v2099, %v2420
      %v2491 = vadd.f32 %v2100, %v2425
      %v2492 = vadd.f32 %v2101, %v2430
      %v2493 = vadd.f32 %v2102, %v2435
      %v2494 = vadd.f32 %v2103, %v2440
      %v2495 = vadd.f32 %v2104, %v2445
      %v2496 = vadd.f32 %v2105, %v2450
      %v2497 = vadd.f32 %v2106, %v2455
      %v2498 = vadd.f32 %v2107, %v2460
      %v2499 = vadd.f32 %v2108, %v2465
      %v2500 = vld [vmem:[%s2109 + $0x1] sm:$0xff]
      %v2501 = vld [vmem:[%s2109 + $0x9] sm:$0xff]
      %v2502 = vld [vmem:[%s2109 + $0x19] sm:$0xff]
      %v2503 = vld [vmem:[%s2109 + $0x21] sm:$0xff]
      %v2504 = vld [vmem:[%s2109 + $0x31] sm:$0xff]
      %v2505 = vld [vmem:[%s2109 + $0x39] sm:$0xff]
      %v2506 = vld [vmem:[%s2109 + $0x49] sm:$0xff]
      %v2507 = vld [vmem:[%s2109 + $0x51] sm:$0xff]
      %v2508 = vld [vmem:[%s2109 + $0x61] sm:$0xff]
      %v2509 = vld [vmem:[%s2109 + $0x69] sm:$0xff]
      %v2510 = vld [vmem:[%s2109 + $0x79] sm:$0xff]
      %v2511 = vld [vmem:[%s2109 + $0x81] sm:$0xff]
      %v2512 = vld [vmem:[%s2109 + $0x91] sm:$0xff]
      %v2513 = vld [vmem:[%s2109 + $0x99] sm:$0xff]
      %v2514 = vld [vmem:[%s2109 + $0xa9] sm:$0xff]
      %v2515 = vld [vmem:[%s2109 + $0xb1] sm:$0xff]
      %v2516 = vld [vmem:[%s2109 + $0xc1] sm:$0xff]
      %v2517 = vld [vmem:[%s2109 + $0xc9] sm:$0xff]
      %v2518 = vld [vmem:[%s2109 + $0xd9] sm:$0xff]
      %v2519 = vld [vmem:[%s2109 + $0xe1] sm:$0xff]
      %v2520 = vld [vmem:[%s2109 + $0xf1] sm:$0xff]
      %v2521 = vld [vmem:[%s2109 + $0xf9] sm:$0xff]
      %v2522 = vld [vmem:[%s2109 + $0x109] sm:$0xff]
      %v2523 = vld [vmem:[%s2109 + $0x111] sm:$0xff]
      %v2524 = vld [vmem:[%s2109 + $0x121] sm:$0xff]
      %v2525 = vld [vmem:[%s2109 + $0x129] sm:$0xff]
      %v2526 = vld [vmem:[%s2109 + $0x139] sm:$0xff]
      %v2527 = vld [vmem:[%s2109 + $0x141] sm:$0xff]
      %v2528 = vld [vmem:[%s2109 + $0x151] sm:$0xff]
      %v2529 = vld [vmem:[%s2109 + $0x159] sm:$0xff]
      %v2530 = vld [vmem:[%s2109 + $0x169] sm:$0xff]
      %v2531 = vld [vmem:[%s2109 + $0x171] sm:$0xff]
      %s2532 = scalar_lea.vmem %s210, 24
      %v2533 = vld [vmem:[%s2532] sm:$0xf]
      %v2535 = vsel %vm289, %v2500, 0
      %v2538 = vsel %vm289, %v2501, 0
      %v2541 = vsel %vm289, %v2502, 0
      %v2544 = vsel %vm289, %v2503, 0
      %v2547 = vsel %vm289, %v2504, 0
      %v2550 = vsel %vm289, %v2505, 0
      %v2553 = vsel %vm289, %v2506, 0
      %v2556 = vsel %vm289, %v2507, 0
      %v2559 = vsel %vm289, %v2508, 0
      %v2562 = vsel %vm289, %v2509, 0
      %v2565 = vsel %vm289, %v2510, 0
      %v2568 = vsel %vm289, %v2511, 0
      %v2571 = vsel %vm289, %v2512, 0
      %v2574 = vsel %vm289, %v2513, 0
      %v2577 = vsel %vm289, %v2514, 0
      %v2580 = vsel %vm289, %v2515, 0
      %v2583 = vsel %vm289, %v2516, 0
      %v2586 = vsel %vm289, %v2517, 0
      %v2589 = vsel %vm289, %v2518, 0
      %v2592 = vsel %vm289, %v2519, 0
      %v2595 = vsel %vm289, %v2520, 0
      %v2598 = vsel %vm289, %v2521, 0
      %v2601 = vsel %vm289, %v2522, 0
      %v2604 = vsel %vm289, %v2523, 0
      %v2607 = vsel %vm289, %v2524, 0
      %v2610 = vsel %vm289, %v2525, 0
      %v2613 = vsel %vm289, %v2526, 0
      %v2616 = vsel %vm289, %v2527, 0
      %v2619 = vsel %vm289, %v2528, 0
      %v2622 = vsel %vm289, %v2529, 0
      %v2625 = vsel %vm289, %v2530, 0
      %v2628 = vsel %vm289, %v2531, 0
      %v2631 = vsel %vm386, %v2533, 0
      %2633 = vmatprep.subr.mxu0 0.0
      %2634 = vmatpush1.msra.mxu0 0.0
      %2635 = vmatprep.subr.mxu0 0.0
      %2636 = vmatpush1.msra.mxu0 0.0
      %2637 = vmatprep.subr.mxu0 0.0
      %2638 = vmatpush1.msra.mxu0 0.0
      %2639 = vmatprep.subr.mxu0 0.0
      %2640 = vmatpush1.msra.mxu0 0.0
      %2641 = vmatprep.subr.mxu0 0.0
      %2642 = vmatpush1.msra.mxu0 0.0
      %2643 = vmatprep.subr.mxu0 0.0
      %2644 = vmatpush1.msra.mxu0 0.0
      %2645 = vmatprep.subr.mxu0 0.0
      %2646 = vmatpush1.msra.mxu0 0.0
      %2647 = vmatprep.subr.mxu0 0.0
      %2648 = vmatpush1.msra.mxu0 0.0
      %2649 = vmatprep.subr.mxu0 0.0
      %2650 = vmatpush1.msra.mxu0 0.0
      %2651 = vmatprep.subr.mxu0 0.0
      %2652 = vmatpush1.msra.mxu0 0.0
      %2653 = vmatprep.subr.mxu0 0.0
      %2654 = vmatpush1.msra.mxu0 0.0
      %2655 = vmatprep.subr.mxu0 0.0
      %2656 = vmatpush1.msra.mxu0 0.0
      %2657 = vmatprep.subr.mxu0 0.0
      %2658 = vmatpush1.msra.mxu0 0.0
      %2659 = vmatprep.subr.mxu0 0.0
      %2660 = vmatpush1.msra.mxu0 0.0
      %2661 = vmatprep.subr.mxu0 0.0
      %2662 = vmatpush1.msra.mxu0 0.0
      %2663 = vmatprep.subr.mxu0 0.0
      %2664 = vmatpush1.msra.mxu0 %v2631
      %2665 = vmatprep.subr.mxu0 0.0
      %2666 = vmatpush2.msra.mxu0 0.0
      %2667 = vmatprep.subr.mxu0 0.0
      %2668 = vmatpush2.msra.mxu0 0.0
      %2669 = vmatprep.subr.mxu0 0.0
      %2670 = vmatpush2.msra.mxu0 0.0
      %2671 = vmatprep.subr.mxu0 0.0
      %2672 = vmatpush2.msra.mxu0 0.0
      %2673 = vmatprep.subr.mxu0 0.0
      %2674 = vmatpush2.msra.mxu0 0.0
      %2675 = vmatprep.subr.mxu0 0.0
      %2676 = vmatpush2.msra.mxu0 0.0
      %2677 = vmatprep.subr.mxu0 0.0
      %2678 = vmatpush2.msra.mxu0 0.0
      %2679 = vmatprep.subr.mxu0 0.0
      %2680 = vmatpush2.msra.mxu0 0.0
      %2681 = vmatprep.subr.mxu0 0.0
      %2682 = vmatpush2.msra.mxu0 0.0
      %2683 = vmatprep.subr.mxu0 0.0
      %2684 = vmatpush2.msra.mxu0 0.0
      %2685 = vmatprep.subr.mxu0 0.0
      %2686 = vmatpush2.msra.mxu0 0.0
      %2687 = vmatprep.subr.mxu0 0.0
      %2688 = vmatpush2.msra.mxu0 0.0
      %2689 = vmatprep.subr.mxu0 0.0
      %2690 = vmatpush2.msra.mxu0 0.0
      %2691 = vmatprep.subr.mxu0 0.0
      %2692 = vmatpush2.msra.mxu0 0.0
      %2693 = vmatprep.subr.mxu0 0.0
      %2694 = vmatpush2.msra.mxu0 0.0
      %2695 = vmatprep.subr.mxu0 0.0
      %2696 = vmatpush2.msra.mxu0 0.0
      %2697 = vmatprep.mubr.f32.mxu0 0.0
      %2698 = vmatmul.mubr.f32.gmra.mxu0 %v2535
      %v2699 = vpop.f32.mrf.mxu0
      %v2700 = vadd.f32 0.0, %v2699
      %v2701 = vpop.f32.mrf.mxu0
      %2702 = vmatprep.mubr.f32.mxu0 0.0
      %2703 = vmatmul.mubr.f32.gmra.mxu0 %v2538
      %v2704 = vpop.f32.mrf.mxu0
      %v2705 = vadd.f32 0.0, %v2704
      %v2706 = vpop.f32.mrf.mxu0
      %2707 = vmatprep.mubr.f32.mxu0 0.0
      %2708 = vmatmul.mubr.f32.gmra.mxu0 %v2541
      %v2709 = vpop.f32.mrf.mxu0
      %v2710 = vadd.f32 0.0, %v2709
      %v2711 = vpop.f32.mrf.mxu0
      %2712 = vmatprep.mubr.f32.mxu0 0.0
      %2713 = vmatmul.mubr.f32.gmra.mxu0 %v2544
      %v2714 = vpop.f32.mrf.mxu0
      %v2715 = vadd.f32 0.0, %v2714
      %v2716 = vpop.f32.mrf.mxu0
      %2717 = vmatprep.mubr.f32.mxu0 0.0
      %2718 = vmatmul.mubr.f32.gmra.mxu0 %v2547
      %v2719 = vpop.f32.mrf.mxu0
      %v2720 = vadd.f32 0.0, %v2719
      %v2721 = vpop.f32.mrf.mxu0
      %2722 = vmatprep.mubr.f32.mxu0 0.0
      %2723 = vmatmul.mubr.f32.gmra.mxu0 %v2550
      %v2724 = vpop.f32.mrf.mxu0
      %v2725 = vadd.f32 0.0, %v2724
      %v2726 = vpop.f32.mrf.mxu0
      %2727 = vmatprep.mubr.f32.mxu0 0.0
      %2728 = vmatmul.mubr.f32.gmra.mxu0 %v2553
      %v2729 = vpop.f32.mrf.mxu0
      %v2730 = vadd.f32 0.0, %v2729
      %v2731 = vpop.f32.mrf.mxu0
      %2732 = vmatprep.mubr.f32.mxu0 0.0
      %2733 = vmatmul.mubr.f32.gmra.mxu0 %v2556
      %v2734 = vpop.f32.mrf.mxu0
      %v2735 = vadd.f32 0.0, %v2734
      %v2736 = vpop.f32.mrf.mxu0
      %2737 = vmatprep.mubr.f32.mxu0 0.0
      %2738 = vmatmul.mubr.f32.gmra.mxu0 %v2559
      %v2739 = vpop.f32.mrf.mxu0
      %v2740 = vadd.f32 0.0, %v2739
      %v2741 = vpop.f32.mrf.mxu0
      %2742 = vmatprep.mubr.f32.mxu0 0.0
      %2743 = vmatmul.mubr.f32.gmra.mxu0 %v2562
      %v2744 = vpop.f32.mrf.mxu0
      %v2745 = vadd.f32 0.0, %v2744
      %v2746 = vpop.f32.mrf.mxu0
      %2747 = vmatprep.mubr.f32.mxu0 0.0
      %2748 = vmatmul.mubr.f32.gmra.mxu0 %v2565
      %v2749 = vpop.f32.mrf.mxu0
      %v2750 = vadd.f32 0.0, %v2749
      %v2751 = vpop.f32.mrf.mxu0
      %2752 = vmatprep.mubr.f32.mxu0 0.0
      %2753 = vmatmul.mubr.f32.gmra.mxu0 %v2568
      %v2754 = vpop.f32.mrf.mxu0
      %v2755 = vadd.f32 0.0, %v2754
      %v2756 = vpop.f32.mrf.mxu0
      %2757 = vmatprep.mubr.f32.mxu0 0.0
      %2758 = vmatmul.mubr.f32.gmra.mxu0 %v2571
      %v2759 = vpop.f32.mrf.mxu0
      %v2760 = vadd.f32 0.0, %v2759
      %v2761 = vpop.f32.mrf.mxu0
      %2762 = vmatprep.mubr.f32.mxu0 0.0
      %2763 = vmatmul.mubr.f32.gmra.mxu0 %v2574
      %v2764 = vpop.f32.mrf.mxu0
      %v2765 = vadd.f32 0.0, %v2764
      %v2766 = vpop.f32.mrf.mxu0
      %2767 = vmatprep.mubr.f32.mxu0 0.0
      %2768 = vmatmul.mubr.f32.gmra.mxu0 %v2577
      %v2769 = vpop.f32.mrf.mxu0
      %v2770 = vadd.f32 0.0, %v2769
      %v2771 = vpop.f32.mrf.mxu0
      %2772 = vmatprep.mubr.f32.mxu0 0.0
      %2773 = vmatmul.mubr.f32.gmra.mxu0 %v2580
      %v2774 = vpop.f32.mrf.mxu0
      %v2775 = vadd.f32 0.0, %v2774
      %v2776 = vpop.f32.mrf.mxu0
      %2777 = vmatprep.mubr.f32.mxu0 0.0
      %2778 = vmatmul.mubr.f32.gmra.mxu0 %v2583
      %v2779 = vpop.f32.mrf.mxu0
      %v2780 = vadd.f32 0.0, %v2779
      %v2781 = vpop.f32.mrf.mxu0
      %2782 = vmatprep.mubr.f32.mxu0 0.0
      %2783 = vmatmul.mubr.f32.gmra.mxu0 %v2586
      %v2784 = vpop.f32.mrf.mxu0
      %v2785 = vadd.f32 0.0, %v2784
      %v2786 = vpop.f32.mrf.mxu0
      %2787 = vmatprep.mubr.f32.mxu0 0.0
      %2788 = vmatmul.mubr.f32.gmra.mxu0 %v2589
      %v2789 = vpop.f32.mrf.mxu0
      %v2790 = vadd.f32 0.0, %v2789
      %v2791 = vpop.f32.mrf.mxu0
      %2792 = vmatprep.mubr.f32.mxu0 0.0
      %2793 = vmatmul.mubr.f32.gmra.mxu0 %v2592
      %v2794 = vpop.f32.mrf.mxu0
      %v2795 = vadd.f32 0.0, %v2794
      %v2796 = vpop.f32.mrf.mxu0
      %2797 = vmatprep.mubr.f32.mxu0 0.0
      %2798 = vmatmul.mubr.f32.gmra.mxu0 %v2595
      %v2799 = vpop.f32.mrf.mxu0
      %v2800 = vadd.f32 0.0, %v2799
      %v2801 = vpop.f32.mrf.mxu0
      %2802 = vmatprep.mubr.f32.mxu0 0.0
      %2803 = vmatmul.mubr.f32.gmra.mxu0 %v2598
      %v2804 = vpop.f32.mrf.mxu0
      %v2805 = vadd.f32 0.0, %v2804
      %v2806 = vpop.f32.mrf.mxu0
      %2807 = vmatprep.mubr.f32.mxu0 0.0
      %2808 = vmatmul.mubr.f32.gmra.mxu0 %v2601
      %v2809 = vpop.f32.mrf.mxu0
      %v2810 = vadd.f32 0.0, %v2809
      %v2811 = vpop.f32.mrf.mxu0
      %2812 = vmatprep.mubr.f32.mxu0 0.0
      %2813 = vmatmul.mubr.f32.gmra.mxu0 %v2604
      %v2814 = vpop.f32.mrf.mxu0
      %v2815 = vadd.f32 0.0, %v2814
      %v2816 = vpop.f32.mrf.mxu0
      %2817 = vmatprep.mubr.f32.mxu0 0.0
      %2818 = vmatmul.mubr.f32.gmra.mxu0 %v2607
      %v2819 = vpop.f32.mrf.mxu0
      %v2820 = vadd.f32 0.0, %v2819
      %v2821 = vpop.f32.mrf.mxu0
      %2822 = vmatprep.mubr.f32.mxu0 0.0
      %2823 = vmatmul.mubr.f32.gmra.mxu0 %v2610
      %v2824 = vpop.f32.mrf.mxu0
      %v2825 = vadd.f32 0.0, %v2824
      %v2826 = vpop.f32.mrf.mxu0
      %2827 = vmatprep.mubr.f32.mxu0 0.0
      %2828 = vmatmul.mubr.f32.gmra.mxu0 %v2613
      %v2829 = vpop.f32.mrf.mxu0
      %v2830 = vadd.f32 0.0, %v2829
      %v2831 = vpop.f32.mrf.mxu0
      %2832 = vmatprep.mubr.f32.mxu0 0.0
      %2833 = vmatmul.mubr.f32.gmra.mxu0 %v2616
      %v2834 = vpop.f32.mrf.mxu0
      %v2835 = vadd.f32 0.0, %v2834
      %v2836 = vpop.f32.mrf.mxu0
      %2837 = vmatprep.mubr.f32.mxu0 0.0
      %2838 = vmatmul.mubr.f32.gmra.mxu0 %v2619
      %v2839 = vpop.f32.mrf.mxu0
      %v2840 = vadd.f32 0.0, %v2839
      %v2841 = vpop.f32.mrf.mxu0
      %2842 = vmatprep.mubr.f32.mxu0 0.0
      %2843 = vmatmul.mubr.f32.gmra.mxu0 %v2622
      %v2844 = vpop.f32.mrf.mxu0
      %v2845 = vadd.f32 0.0, %v2844
      %v2846 = vpop.f32.mrf.mxu0
      %2847 = vmatprep.mubr.f32.mxu0 0.0
      %2848 = vmatmul.mubr.f32.gmra.mxu0 %v2625
      %v2849 = vpop.f32.mrf.mxu0
      %v2850 = vadd.f32 0.0, %v2849
      %v2851 = vpop.f32.mrf.mxu0
      %2852 = vmatprep.mubr.f32.mxu0 0.0
      %2853 = vmatmul.mubr.f32.gmra.mxu0 %v2628
      %v2854 = vpop.f32.mrf.mxu0
      %v2855 = vadd.f32 0.0, %v2854
      %v2856 = vpop.f32.mrf.mxu0
      %2857 = vdwg.mxu0
      %v2858 = vadd.f32 %v2468, %v2700
      %v2859 = vadd.f32 %v2469, %v2705
      %v2860 = vadd.f32 %v2470, %v2710
      %v2861 = vadd.f32 %v2471, %v2715
      %v2862 = vadd.f32 %v2472, %v2720
      %v2863 = vadd.f32 %v2473, %v2725
      %v2864 = vadd.f32 %v2474, %v2730
      %v2865 = vadd.f32 %v2475, %v2735
      %v2866 = vadd.f32 %v2476, %v2740
      %v2867 = vadd.f32 %v2477, %v2745
      %v2868 = vadd.f32 %v2478, %v2750
      %v2869 = vadd.f32 %v2479, %v2755
      %v2870 = vadd.f32 %v2480, %v2760
      %v2871 = vadd.f32 %v2481, %v2765
      %v2872 = vadd.f32 %v2482, %v2770
      %v2873 = vadd.f32 %v2483, %v2775
      %v2874 = vadd.f32 %v2484, %v2780
      %v2875 = vadd.f32 %v2485, %v2785
      %v2876 = vadd.f32 %v2486, %v2790
      %v2877 = vadd.f32 %v2487, %v2795
      %v2878 = vadd.f32 %v2488, %v2800
      %v2879 = vadd.f32 %v2489, %v2805
      %v2880 = vadd.f32 %v2490, %v2810
      %v2881 = vadd.f32 %v2491, %v2815
      %v2882 = vadd.f32 %v2492, %v2820
      %v2883 = vadd.f32 %v2493, %v2825
      %v2884 = vadd.f32 %v2494, %v2830
      %v2885 = vadd.f32 %v2495, %v2835
      %v2886 = vadd.f32 %v2496, %v2840
      %v2887 = vadd.f32 %v2497, %v2845
      %v2888 = vadd.f32 %v2498, %v2850
      %v2889 = vadd.f32 %v2499, %v2855
      %v2890 = vld [vmem:[%s2109 + $0x2] sm:$0xff]
      %v2891 = vld [vmem:[%s2109 + $0xa] sm:$0xff]
      %v2892 = vld [vmem:[%s2109 + $0x1a] sm:$0xff]
      %v2893 = vld [vmem:[%s2109 + $0x22] sm:$0xff]
      %v2894 = vld [vmem:[%s2109 + $0x32] sm:$0xff]
      %v2895 = vld [vmem:[%s2109 + $0x3a] sm:$0xff]
      %v2896 = vld [vmem:[%s2109 + $0x4a] sm:$0xff]
      %v2897 = vld [vmem:[%s2109 + $0x52] sm:$0xff]
      %v2898 = vld [vmem:[%s2109 + $0x62] sm:$0xff]
      %v2899 = vld [vmem:[%s2109 + $0x6a] sm:$0xff]
      %v2900 = vld [vmem:[%s2109 + $0x7a] sm:$0xff]
      %v2901 = vld [vmem:[%s2109 + $0x82] sm:$0xff]
      %v2902 = vld [vmem:[%s2109 + $0x92] sm:$0xff]
      %v2903 = vld [vmem:[%s2109 + $0x9a] sm:$0xff]
      %v2904 = vld [vmem:[%s2109 + $0xaa] sm:$0xff]
      %v2905 = vld [vmem:[%s2109 + $0xb2] sm:$0xff]
      %v2906 = vld [vmem:[%s2109 + $0xc2] sm:$0xff]
      %v2907 = vld [vmem:[%s2109 + $0xca] sm:$0xff]
      %v2908 = vld [vmem:[%s2109 + $0xda] sm:$0xff]
      %v2909 = vld [vmem:[%s2109 + $0xe2] sm:$0xff]
      %v2910 = vld [vmem:[%s2109 + $0xf2] sm:$0xff]
      %v2911 = vld [vmem:[%s2109 + $0xfa] sm:$0xff]
      %v2912 = vld [vmem:[%s2109 + $0x10a] sm:$0xff]
      %v2913 = vld [vmem:[%s2109 + $0x112] sm:$0xff]
      %v2914 = vld [vmem:[%s2109 + $0x122] sm:$0xff]
      %v2915 = vld [vmem:[%s2109 + $0x12a] sm:$0xff]
      %v2916 = vld [vmem:[%s2109 + $0x13a] sm:$0xff]
      %v2917 = vld [vmem:[%s2109 + $0x142] sm:$0xff]
      %v2918 = vld [vmem:[%s2109 + $0x152] sm:$0xff]
      %v2919 = vld [vmem:[%s2109 + $0x15a] sm:$0xff]
      %v2920 = vld [vmem:[%s2109 + $0x16a] sm:$0xff]
      %v2921 = vld [vmem:[%s2109 + $0x172] sm:$0xff]
      %s2922 = scalar_lea.vmem %s210, 28
      %v2923 = vld [vmem:[%s2922] sm:$0xf]
      %v2925 = vsel %vm289, %v2890, 0
      %v2928 = vsel %vm289, %v2891, 0
      %v2931 = vsel %vm289, %v2892, 0
      %v2934 = vsel %vm289, %v2893, 0
      %v2937 = vsel %vm289, %v2894, 0
      %v2940 = vsel %vm289, %v2895, 0
      %v2943 = vsel %vm289, %v2896, 0
      %v2946 = vsel %vm289, %v2897, 0
      %v2949 = vsel %vm289, %v2898, 0
      %v2952 = vsel %vm289, %v2899, 0
      %v2955 = vsel %vm289, %v2900, 0
      %v2958 = vsel %vm289, %v2901, 0
      %v2961 = vsel %vm289, %v2902, 0
      %v2964 = vsel %vm289, %v2903, 0
      %v2967 = vsel %vm289, %v2904, 0
      %v2970 = vsel %vm289, %v2905, 0
      %v2973 = vsel %vm289, %v2906, 0
      %v2976 = vsel %vm289, %v2907, 0
      %v2979 = vsel %vm289, %v2908, 0
      %v2982 = vsel %vm289, %v2909, 0
      %v2985 = vsel %vm289, %v2910, 0
      %v2988 = vsel %vm289, %v2911, 0
      %v2991 = vsel %vm289, %v2912, 0
      %v2994 = vsel %vm289, %v2913, 0
      %v2997 = vsel %vm289, %v2914, 0
      %v3000 = vsel %vm289, %v2915, 0
      %v3003 = vsel %vm289, %v2916, 0
      %v3006 = vsel %vm289, %v2917, 0
      %v3009 = vsel %vm289, %v2918, 0
      %v3012 = vsel %vm289, %v2919, 0
      %v3015 = vsel %vm289, %v2920, 0
      %v3018 = vsel %vm289, %v2921, 0
      %v3021 = vsel %vm386, %v2923, 0
      %3023 = vmatprep.subr.mxu0 0.0
      %3024 = vmatpush1.msra.mxu0 0.0
      %3025 = vmatprep.subr.mxu0 0.0
      %3026 = vmatpush1.msra.mxu0 0.0
      %3027 = vmatprep.subr.mxu0 0.0
      %3028 = vmatpush1.msra.mxu0 0.0
      %3029 = vmatprep.subr.mxu0 0.0
      %3030 = vmatpush1.msra.mxu0 0.0
      %3031 = vmatprep.subr.mxu0 0.0
      %3032 = vmatpush1.msra.mxu0 0.0
      %3033 = vmatprep.subr.mxu0 0.0
      %3034 = vmatpush1.msra.mxu0 0.0
      %3035 = vmatprep.subr.mxu0 0.0
      %3036 = vmatpush1.msra.mxu0 0.0
      %3037 = vmatprep.subr.mxu0 0.0
      %3038 = vmatpush1.msra.mxu0 0.0
      %3039 = vmatprep.subr.mxu0 0.0
      %3040 = vmatpush1.msra.mxu0 0.0
      %3041 = vmatprep.subr.mxu0 0.0
      %3042 = vmatpush1.msra.mxu0 0.0
      %3043 = vmatprep.subr.mxu0 0.0
      %3044 = vmatpush1.msra.mxu0 0.0
      %3045 = vmatprep.subr.mxu0 0.0
      %3046 = vmatpush1.msra.mxu0 0.0
      %3047 = vmatprep.subr.mxu0 0.0
      %3048 = vmatpush1.msra.mxu0 0.0
      %3049 = vmatprep.subr.mxu0 0.0
      %3050 = vmatpush1.msra.mxu0 0.0
      %3051 = vmatprep.subr.mxu0 0.0
      %3052 = vmatpush1.msra.mxu0 0.0
      %3053 = vmatprep.subr.mxu0 0.0
      %3054 = vmatpush1.msra.mxu0 %v3021
      %3055 = vmatprep.subr.mxu0 0.0
      %3056 = vmatpush2.msra.mxu0 0.0
      %3057 = vmatprep.subr.mxu0 0.0
      %3058 = vmatpush2.msra.mxu0 0.0
      %3059 = vmatprep.subr.mxu0 0.0
      %3060 = vmatpush2.msra.mxu0 0.0
      %3061 = vmatprep.subr.mxu0 0.0
      %3062 = vmatpush2.msra.mxu0 0.0
      %3063 = vmatprep.subr.mxu0 0.0
      %3064 = vmatpush2.msra.mxu0 0.0
      %3065 = vmatprep.subr.mxu0 0.0
      %3066 = vmatpush2.msra.mxu0 0.0
      %3067 = vmatprep.subr.mxu0 0.0
      %3068 = vmatpush2.msra.mxu0 0.0
      %3069 = vmatprep.subr.mxu0 0.0
      %3070 = vmatpush2.msra.mxu0 0.0
      %3071 = vmatprep.subr.mxu0 0.0
      %3072 = vmatpush2.msra.mxu0 0.0
      %3073 = vmatprep.subr.mxu0 0.0
      %3074 = vmatpush2.msra.mxu0 0.0
      %3075 = vmatprep.subr.mxu0 0.0
      %3076 = vmatpush2.msra.mxu0 0.0
      %3077 = vmatprep.subr.mxu0 0.0
      %3078 = vmatpush2.msra.mxu0 0.0
      %3079 = vmatprep.subr.mxu0 0.0
      %3080 = vmatpush2.msra.mxu0 0.0
      %3081 = vmatprep.subr.mxu0 0.0
      %3082 = vmatpush2.msra.mxu0 0.0
      %3083 = vmatprep.subr.mxu0 0.0
      %3084 = vmatpush2.msra.mxu0 0.0
      %3085 = vmatprep.subr.mxu0 0.0
      %3086 = vmatpush2.msra.mxu0 0.0
      %3087 = vmatprep.mubr.f32.mxu0 0.0
      %3088 = vmatmul.mubr.f32.gmra.mxu0 %v2925
      %v3089 = vpop.f32.mrf.mxu0
      %v3090 = vadd.f32 0.0, %v3089
      %v3091 = vpop.f32.mrf.mxu0
      %3092 = vmatprep.mubr.f32.mxu0 0.0
      %3093 = vmatmul.mubr.f32.gmra.mxu0 %v2928
      %v3094 = vpop.f32.mrf.mxu0
      %v3095 = vadd.f32 0.0, %v3094
      %v3096 = vpop.f32.mrf.mxu0
      %3097 = vmatprep.mubr.f32.mxu0 0.0
      %3098 = vmatmul.mubr.f32.gmra.mxu0 %v2931
      %v3099 = vpop.f32.mrf.mxu0
      %v3100 = vadd.f32 0.0, %v3099
      %v3101 = vpop.f32.mrf.mxu0
      %3102 = vmatprep.mubr.f32.mxu0 0.0
      %3103 = vmatmul.mubr.f32.gmra.mxu0 %v2934
      %v3104 = vpop.f32.mrf.mxu0
      %v3105 = vadd.f32 0.0, %v3104
      %v3106 = vpop.f32.mrf.mxu0
      %3107 = vmatprep.mubr.f32.mxu0 0.0
      %3108 = vmatmul.mubr.f32.gmra.mxu0 %v2937
      %v3109 = vpop.f32.mrf.mxu0
      %v3110 = vadd.f32 0.0, %v3109
      %v3111 = vpop.f32.mrf.mxu0
      %3112 = vmatprep.mubr.f32.mxu0 0.0
      %3113 = vmatmul.mubr.f32.gmra.mxu0 %v2940
      %v3114 = vpop.f32.mrf.mxu0
      %v3115 = vadd.f32 0.0, %v3114
      %v3116 = vpop.f32.mrf.mxu0
      %3117 = vmatprep.mubr.f32.mxu0 0.0
      %3118 = vmatmul.mubr.f32.gmra.mxu0 %v2943
      %v3119 = vpop.f32.mrf.mxu0
      %v3120 = vadd.f32 0.0, %v3119
      %v3121 = vpop.f32.mrf.mxu0
      %3122 = vmatprep.mubr.f32.mxu0 0.0
      %3123 = vmatmul.mubr.f32.gmra.mxu0 %v2946
      %v3124 = vpop.f32.mrf.mxu0
      %v3125 = vadd.f32 0.0, %v3124
      %v3126 = vpop.f32.mrf.mxu0
      %3127 = vmatprep.mubr.f32.mxu0 0.0
      %3128 = vmatmul.mubr.f32.gmra.mxu0 %v2949
      %v3129 = vpop.f32.mrf.mxu0
      %v3130 = vadd.f32 0.0, %v3129
      %v3131 = vpop.f32.mrf.mxu0
      %3132 = vmatprep.mubr.f32.mxu0 0.0
      %3133 = vmatmul.mubr.f32.gmra.mxu0 %v2952
      %v3134 = vpop.f32.mrf.mxu0
      %v3135 = vadd.f32 0.0, %v3134
      %v3136 = vpop.f32.mrf.mxu0
      %3137 = vmatprep.mubr.f32.mxu0 0.0
      %3138 = vmatmul.mubr.f32.gmra.mxu0 %v2955
      %v3139 = vpop.f32.mrf.mxu0
      %v3140 = vadd.f32 0.0, %v3139
      %v3141 = vpop.f32.mrf.mxu0
      %3142 = vmatprep.mubr.f32.mxu0 0.0
      %3143 = vmatmul.mubr.f32.gmra.mxu0 %v2958
      %v3144 = vpop.f32.mrf.mxu0
      %v3145 = vadd.f32 0.0, %v3144
      %v3146 = vpop.f32.mrf.mxu0
      %3147 = vmatprep.mubr.f32.mxu0 0.0
      %3148 = vmatmul.mubr.f32.gmra.mxu0 %v2961
      %v3149 = vpop.f32.mrf.mxu0
      %v3150 = vadd.f32 0.0, %v3149
      %v3151 = vpop.f32.mrf.mxu0
      %3152 = vmatprep.mubr.f32.mxu0 0.0
      %3153 = vmatmul.mubr.f32.gmra.mxu0 %v2964
      %v3154 = vpop.f32.mrf.mxu0
      %v3155 = vadd.f32 0.0, %v3154
      %v3156 = vpop.f32.mrf.mxu0
      %3157 = vmatprep.mubr.f32.mxu0 0.0
      %3158 = vmatmul.mubr.f32.gmra.mxu0 %v2967
      %v3159 = vpop.f32.mrf.mxu0
      %v3160 = vadd.f32 0.0, %v3159
      %v3161 = vpop.f32.mrf.mxu0
      %3162 = vmatprep.mubr.f32.mxu0 0.0
      %3163 = vmatmul.mubr.f32.gmra.mxu0 %v2970
      %v3164 = vpop.f32.mrf.mxu0
      %v3165 = vadd.f32 0.0, %v3164
      %v3166 = vpop.f32.mrf.mxu0
      %3167 = vmatprep.mubr.f32.mxu0 0.0
      %3168 = vmatmul.mubr.f32.gmra.mxu0 %v2973
      %v3169 = vpop.f32.mrf.mxu0
      %v3170 = vadd.f32 0.0, %v3169
      %v3171 = vpop.f32.mrf.mxu0
      %3172 = vmatprep.mubr.f32.mxu0 0.0
      %3173 = vmatmul.mubr.f32.gmra.mxu0 %v2976
      %v3174 = vpop.f32.mrf.mxu0
      %v3175 = vadd.f32 0.0, %v3174
      %v3176 = vpop.f32.mrf.mxu0
      %3177 = vmatprep.mubr.f32.mxu0 0.0
      %3178 = vmatmul.mubr.f32.gmra.mxu0 %v2979
      %v3179 = vpop.f32.mrf.mxu0
      %v3180 = vadd.f32 0.0, %v3179
      %v3181 = vpop.f32.mrf.mxu0
      %3182 = vmatprep.mubr.f32.mxu0 0.0
      %3183 = vmatmul.mubr.f32.gmra.mxu0 %v2982
      %v3184 = vpop.f32.mrf.mxu0
      %v3185 = vadd.f32 0.0, %v3184
      %v3186 = vpop.f32.mrf.mxu0
      %3187 = vmatprep.mubr.f32.mxu0 0.0
      %3188 = vmatmul.mubr.f32.gmra.mxu0 %v2985
      %v3189 = vpop.f32.mrf.mxu0
      %v3190 = vadd.f32 0.0, %v3189
      %v3191 = vpop.f32.mrf.mxu0
      %3192 = vmatprep.mubr.f32.mxu0 0.0
      %3193 = vmatmul.mubr.f32.gmra.mxu0 %v2988
      %v3194 = vpop.f32.mrf.mxu0
      %v3195 = vadd.f32 0.0, %v3194
      %v3196 = vpop.f32.mrf.mxu0
      %3197 = vmatprep.mubr.f32.mxu0 0.0
      %3198 = vmatmul.mubr.f32.gmra.mxu0 %v2991
      %v3199 = vpop.f32.mrf.mxu0
      %v3200 = vadd.f32 0.0, %v3199
      %v3201 = vpop.f32.mrf.mxu0
      %3202 = vmatprep.mubr.f32.mxu0 0.0
      %3203 = vmatmul.mubr.f32.gmra.mxu0 %v2994
      %v3204 = vpop.f32.mrf.mxu0
      %v3205 = vadd.f32 0.0, %v3204
      %v3206 = vpop.f32.mrf.mxu0
      %3207 = vmatprep.mubr.f32.mxu0 0.0
      %3208 = vmatmul.mubr.f32.gmra.mxu0 %v2997
      %v3209 = vpop.f32.mrf.mxu0
      %v3210 = vadd.f32 0.0, %v3209
      %v3211 = vpop.f32.mrf.mxu0
      %3212 = vmatprep.mubr.f32.mxu0 0.0
      %3213 = vmatmul.mubr.f32.gmra.mxu0 %v3000
      %v3214 = vpop.f32.mrf.mxu0
      %v3215 = vadd.f32 0.0, %v3214
      %v3216 = vpop.f32.mrf.mxu0
      %3217 = vmatprep.mubr.f32.mxu0 0.0
      %3218 = vmatmul.mubr.f32.gmra.mxu0 %v3003
      %v3219 = vpop.f32.mrf.mxu0
      %v3220 = vadd.f32 0.0, %v3219
      %v3221 = vpop.f32.mrf.mxu0
      %3222 = vmatprep.mubr.f32.mxu0 0.0
      %3223 = vmatmul.mubr.f32.gmra.mxu0 %v3006
      %v3224 = vpop.f32.mrf.mxu0
      %v3225 = vadd.f32 0.0, %v3224
      %v3226 = vpop.f32.mrf.mxu0
      %3227 = vmatprep.mubr.f32.mxu0 0.0
      %3228 = vmatmul.mubr.f32.gmra.mxu0 %v3009
      %v3229 = vpop.f32.mrf.mxu0
      %v3230 = vadd.f32 0.0, %v3229
      %v3231 = vpop.f32.mrf.mxu0
      %3232 = vmatprep.mubr.f32.mxu0 0.0
      %3233 = vmatmul.mubr.f32.gmra.mxu0 %v3012
      %v3234 = vpop.f32.mrf.mxu0
      %v3235 = vadd.f32 0.0, %v3234
      %v3236 = vpop.f32.mrf.mxu0
      %3237 = vmatprep.mubr.f32.mxu0 0.0
      %3238 = vmatmul.mubr.f32.gmra.mxu0 %v3015
      %v3239 = vpop.f32.mrf.mxu0
      %v3240 = vadd.f32 0.0, %v3239
      %v3241 = vpop.f32.mrf.mxu0
      %3242 = vmatprep.mubr.f32.mxu0 0.0
      %3243 = vmatmul.mubr.f32.gmra.mxu0 %v3018
      %v3244 = vpop.f32.mrf.mxu0
      %v3245 = vadd.f32 0.0, %v3244
      %v3246 = vpop.f32.mrf.mxu0
      %3247 = vdwg.mxu0
      %v3248 = vadd.f32 %v2858, %v3090
      %v3249 = vadd.f32 %v2859, %v3095
      %v3250 = vadd.f32 %v2860, %v3100
      %v3251 = vadd.f32 %v2861, %v3105
      %v3252 = vadd.f32 %v2862, %v3110
      %v3253 = vadd.f32 %v2863, %v3115
      %v3254 = vadd.f32 %v2864, %v3120
      %v3255 = vadd.f32 %v2865, %v3125
      %v3256 = vadd.f32 %v2866, %v3130
      %v3257 = vadd.f32 %v2867, %v3135
      %v3258 = vadd.f32 %v2868, %v3140
      %v3259 = vadd.f32 %v2869, %v3145
      %v3260 = vadd.f32 %v2870, %v3150
      %v3261 = vadd.f32 %v2871, %v3155
      %v3262 = vadd.f32 %v2872, %v3160
      %v3263 = vadd.f32 %v2873, %v3165
      %v3264 = vadd.f32 %v2874, %v3170
      %v3265 = vadd.f32 %v2875, %v3175
      %v3266 = vadd.f32 %v2876, %v3180
      %v3267 = vadd.f32 %v2877, %v3185
      %v3268 = vadd.f32 %v2878, %v3190
      %v3269 = vadd.f32 %v2879, %v3195
      %v3270 = vadd.f32 %v2880, %v3200
      %v3271 = vadd.f32 %v2881, %v3205
      %v3272 = vadd.f32 %v2882, %v3210
      %v3273 = vadd.f32 %v2883, %v3215
      %v3274 = vadd.f32 %v2884, %v3220
      %v3275 = vadd.f32 %v2885, %v3225
      %v3276 = vadd.f32 %v2886, %v3230
      %v3277 = vadd.f32 %v2887, %v3235
      %v3278 = vadd.f32 %v2888, %v3240
      %v3279 = vadd.f32 %v2889, %v3245
      %v3280 = vld [vmem:[%s2109 + $0x3] sm:$0xff]
      %v3281 = vld [vmem:[%s2109 + $0xb] sm:$0xff]
      %v3282 = vld [vmem:[%s2109 + $0x1b] sm:$0xff]
      %v3283 = vld [vmem:[%s2109 + $0x23] sm:$0xff]
      %v3284 = vld [vmem:[%s2109 + $0x33] sm:$0xff]
      %v3285 = vld [vmem:[%s2109 + $0x3b] sm:$0xff]
      %v3286 = vld [vmem:[%s2109 + $0x4b] sm:$0xff]
      %v3287 = vld [vmem:[%s2109 + $0x53] sm:$0xff]
      %v3288 = vld [vmem:[%s2109 + $0x63] sm:$0xff]
      %v3289 = vld [vmem:[%s2109 + $0x6b] sm:$0xff]
      %v3290 = vld [vmem:[%s2109 + $0x7b] sm:$0xff]
      %v3291 = vld [vmem:[%s2109 + $0x83] sm:$0xff]
      %v3292 = vld [vmem:[%s2109 + $0x93] sm:$0xff]
      %v3293 = vld [vmem:[%s2109 + $0x9b] sm:$0xff]
      %v3294 = vld [vmem:[%s2109 + $0xab] sm:$0xff]
      %v3295 = vld [vmem:[%s2109 + $0xb3] sm:$0xff]
      %v3296 = vld [vmem:[%s2109 + $0xc3] sm:$0xff]
      %v3297 = vld [vmem:[%s2109 + $0xcb] sm:$0xff]
      %v3298 = vld [vmem:[%s2109 + $0xdb] sm:$0xff]
      %v3299 = vld [vmem:[%s2109 + $0xe3] sm:$0xff]
      %v3300 = vld [vmem:[%s2109 + $0xf3] sm:$0xff]
      %v3301 = vld [vmem:[%s2109 + $0xfb] sm:$0xff]
      %v3302 = vld [vmem:[%s2109 + $0x10b] sm:$0xff]
      %v3303 = vld [vmem:[%s2109 + $0x113] sm:$0xff]
      %v3304 = vld [vmem:[%s2109 + $0x123] sm:$0xff]
      %v3305 = vld [vmem:[%s2109 + $0x12b] sm:$0xff]
      %v3306 = vld [vmem:[%s2109 + $0x13b] sm:$0xff]
      %v3307 = vld [vmem:[%s2109 + $0x143] sm:$0xff]
      %v3308 = vld [vmem:[%s2109 + $0x153] sm:$0xff]
      %v3309 = vld [vmem:[%s2109 + $0x15b] sm:$0xff]
      %v3310 = vld [vmem:[%s2109 + $0x16b] sm:$0xff]
      %v3311 = vld [vmem:[%s2109 + $0x173] sm:$0xff]
      %s3312 = scalar_lea.vmem %s210, 32
      %v3313 = vld [vmem:[%s3312] sm:$0xf]
      %v3315 = vsel %vm289, %v3280, 0
      %v3318 = vsel %vm289, %v3281, 0
      %v3321 = vsel %vm289, %v3282, 0
      %v3324 = vsel %vm289, %v3283, 0
      %v3327 = vsel %vm289, %v3284, 0
      %v3330 = vsel %vm289, %v3285, 0
      %v3333 = vsel %vm289, %v3286, 0
      %v3336 = vsel %vm289, %v3287, 0
      %v3339 = vsel %vm289, %v3288, 0
      %v3342 = vsel %vm289, %v3289, 0
      %v3345 = vsel %vm289, %v3290, 0
      %v3348 = vsel %vm289, %v3291, 0
      %v3351 = vsel %vm289, %v3292, 0
      %v3354 = vsel %vm289, %v3293, 0
      %v3357 = vsel %vm289, %v3294, 0
      %v3360 = vsel %vm289, %v3295, 0
      %v3363 = vsel %vm289, %v3296, 0
      %v3366 = vsel %vm289, %v3297, 0
      %v3369 = vsel %vm289, %v3298, 0
      %v3372 = vsel %vm289, %v3299, 0
      %v3375 = vsel %vm289, %v3300, 0
      %v3378 = vsel %vm289, %v3301, 0
      %v3381 = vsel %vm289, %v3302, 0
      %v3384 = vsel %vm289, %v3303, 0
      %v3387 = vsel %vm289, %v3304, 0
      %v3390 = vsel %vm289, %v3305, 0
      %v3393 = vsel %vm289, %v3306, 0
      %v3396 = vsel %vm289, %v3307, 0
      %v3399 = vsel %vm289, %v3308, 0
      %v3402 = vsel %vm289, %v3309, 0
      %v3405 = vsel %vm289, %v3310, 0
      %v3408 = vsel %vm289, %v3311, 0
      %v3411 = vsel %vm386, %v3313, 0
      %3413 = vmatprep.subr.mxu0 0.0
      %3414 = vmatpush1.msra.mxu0 0.0
      %3415 = vmatprep.subr.mxu0 0.0
      %3416 = vmatpush1.msra.mxu0 0.0
      %3417 = vmatprep.subr.mxu0 0.0
      %3418 = vmatpush1.msra.mxu0 0.0
      %3419 = vmatprep.subr.mxu0 0.0
      %3420 = vmatpush1.msra.mxu0 0.0
      %3421 = vmatprep.subr.mxu0 0.0
      %3422 = vmatpush1.msra.mxu0 0.0
      %3423 = vmatprep.subr.mxu0 0.0
      %3424 = vmatpush1.msra.mxu0 0.0
      %3425 = vmatprep.subr.mxu0 0.0
      %3426 = vmatpush1.msra.mxu0 0.0
      %3427 = vmatprep.subr.mxu0 0.0
      %3428 = vmatpush1.msra.mxu0 0.0
      %3429 = vmatprep.subr.mxu0 0.0
      %3430 = vmatpush1.msra.mxu0 0.0
      %3431 = vmatprep.subr.mxu0 0.0
      %3432 = vmatpush1.msra.mxu0 0.0
      %3433 = vmatprep.subr.mxu0 0.0
      %3434 = vmatpush1.msra.mxu0 0.0
      %3435 = vmatprep.subr.mxu0 0.0
      %3436 = vmatpush1.msra.mxu0 0.0
      %3437 = vmatprep.subr.mxu0 0.0
      %3438 = vmatpush1.msra.mxu0 0.0
      %3439 = vmatprep.subr.mxu0 0.0
      %3440 = vmatpush1.msra.mxu0 0.0
      %3441 = vmatprep.subr.mxu0 0.0
      %3442 = vmatpush1.msra.mxu0 0.0
      %3443 = vmatprep.subr.mxu0 0.0
      %3444 = vmatpush1.msra.mxu0 %v3411
      %3445 = vmatprep.subr.mxu0 0.0
      %3446 = vmatpush2.msra.mxu0 0.0
      %3447 = vmatprep.subr.mxu0 0.0
      %3448 = vmatpush2.msra.mxu0 0.0
      %3449 = vmatprep.subr.mxu0 0.0
      %3450 = vmatpush2.msra.mxu0 0.0
      %3451 = vmatprep.subr.mxu0 0.0
      %3452 = vmatpush2.msra.mxu0 0.0
      %3453 = vmatprep.subr.mxu0 0.0
      %3454 = vmatpush2.msra.mxu0 0.0
      %3455 = vmatprep.subr.mxu0 0.0
      %3456 = vmatpush2.msra.mxu0 0.0
      %3457 = vmatprep.subr.mxu0 0.0
      %3458 = vmatpush2.msra.mxu0 0.0
      %3459 = vmatprep.subr.mxu0 0.0
      %3460 = vmatpush2.msra.mxu0 0.0
      %3461 = vmatprep.subr.mxu0 0.0
      %3462 = vmatpush2.msra.mxu0 0.0
      %3463 = vmatprep.subr.mxu0 0.0
      %3464 = vmatpush2.msra.mxu0 0.0
      %3465 = vmatprep.subr.mxu0 0.0
      %3466 = vmatpush2.msra.mxu0 0.0
      %3467 = vmatprep.subr.mxu0 0.0
      %3468 = vmatpush2.msra.mxu0 0.0
      %3469 = vmatprep.subr.mxu0 0.0
      %3470 = vmatpush2.msra.mxu0 0.0
      %3471 = vmatprep.subr.mxu0 0.0
      %3472 = vmatpush2.msra.mxu0 0.0
      %3473 = vmatprep.subr.mxu0 0.0
      %3474 = vmatpush2.msra.mxu0 0.0
      %3475 = vmatprep.subr.mxu0 0.0
      %3476 = vmatpush2.msra.mxu0 0.0
      %3477 = vmatprep.mubr.f32.mxu0 0.0
      %3478 = vmatmul.mubr.f32.gmra.mxu0 %v3315
      %v3479 = vpop.f32.mrf.mxu0
      %v3480 = vadd.f32 0.0, %v3479
      %v3481 = vpop.f32.mrf.mxu0
      %3482 = vmatprep.mubr.f32.mxu0 0.0
      %3483 = vmatmul.mubr.f32.gmra.mxu0 %v3318
      %v3484 = vpop.f32.mrf.mxu0
      %v3485 = vadd.f32 0.0, %v3484
      %v3486 = vpop.f32.mrf.mxu0
      %3487 = vmatprep.mubr.f32.mxu0 0.0
      %3488 = vmatmul.mubr.f32.gmra.mxu0 %v3321
      %v3489 = vpop.f32.mrf.mxu0
      %v3490 = vadd.f32 0.0, %v3489
      %v3491 = vpop.f32.mrf.mxu0
      %3492 = vmatprep.mubr.f32.mxu0 0.0
      %3493 = vmatmul.mubr.f32.gmra.mxu0 %v3324
      %v3494 = vpop.f32.mrf.mxu0
      %v3495 = vadd.f32 0.0, %v3494
      %v3496 = vpop.f32.mrf.mxu0
      %3497 = vmatprep.mubr.f32.mxu0 0.0
      %3498 = vmatmul.mubr.f32.gmra.mxu0 %v3327
      %v3499 = vpop.f32.mrf.mxu0
      %v3500 = vadd.f32 0.0, %v3499
      %v3501 = vpop.f32.mrf.mxu0
      %3502 = vmatprep.mubr.f32.mxu0 0.0
      %3503 = vmatmul.mubr.f32.gmra.mxu0 %v3330
      %v3504 = vpop.f32.mrf.mxu0
      %v3505 = vadd.f32 0.0, %v3504
      %v3506 = vpop.f32.mrf.mxu0
      %3507 = vmatprep.mubr.f32.mxu0 0.0
      %3508 = vmatmul.mubr.f32.gmra.mxu0 %v3333
      %v3509 = vpop.f32.mrf.mxu0
      %v3510 = vadd.f32 0.0, %v3509
      %v3511 = vpop.f32.mrf.mxu0
      %3512 = vmatprep.mubr.f32.mxu0 0.0
      %3513 = vmatmul.mubr.f32.gmra.mxu0 %v3336
      %v3514 = vpop.f32.mrf.mxu0
      %v3515 = vadd.f32 0.0, %v3514
      %v3516 = vpop.f32.mrf.mxu0
      %3517 = vmatprep.mubr.f32.mxu0 0.0
      %3518 = vmatmul.mubr.f32.gmra.mxu0 %v3339
      %v3519 = vpop.f32.mrf.mxu0
      %v3520 = vadd.f32 0.0, %v3519
      %v3521 = vpop.f32.mrf.mxu0
      %3522 = vmatprep.mubr.f32.mxu0 0.0
      %3523 = vmatmul.mubr.f32.gmra.mxu0 %v3342
      %v3524 = vpop.f32.mrf.mxu0
      %v3525 = vadd.f32 0.0, %v3524
      %v3526 = vpop.f32.mrf.mxu0
      %3527 = vmatprep.mubr.f32.mxu0 0.0
      %3528 = vmatmul.mubr.f32.gmra.mxu0 %v3345
      %v3529 = vpop.f32.mrf.mxu0
      %v3530 = vadd.f32 0.0, %v3529
      %v3531 = vpop.f32.mrf.mxu0
      %3532 = vmatprep.mubr.f32.mxu0 0.0
      %3533 = vmatmul.mubr.f32.gmra.mxu0 %v3348
      %v3534 = vpop.f32.mrf.mxu0
      %v3535 = vadd.f32 0.0, %v3534
      %v3536 = vpop.f32.mrf.mxu0
      %3537 = vmatprep.mubr.f32.mxu0 0.0
      %3538 = vmatmul.mubr.f32.gmra.mxu0 %v3351
      %v3539 = vpop.f32.mrf.mxu0
      %v3540 = vadd.f32 0.0, %v3539
      %v3541 = vpop.f32.mrf.mxu0
      %3542 = vmatprep.mubr.f32.mxu0 0.0
      %3543 = vmatmul.mubr.f32.gmra.mxu0 %v3354
      %v3544 = vpop.f32.mrf.mxu0
      %v3545 = vadd.f32 0.0, %v3544
      %v3546 = vpop.f32.mrf.mxu0
      %3547 = vmatprep.mubr.f32.mxu0 0.0
      %3548 = vmatmul.mubr.f32.gmra.mxu0 %v3357
      %v3549 = vpop.f32.mrf.mxu0
      %v3550 = vadd.f32 0.0, %v3549
      %v3551 = vpop.f32.mrf.mxu0
      %3552 = vmatprep.mubr.f32.mxu0 0.0
      %3553 = vmatmul.mubr.f32.gmra.mxu0 %v3360
      %v3554 = vpop.f32.mrf.mxu0
      %v3555 = vadd.f32 0.0, %v3554
      %v3556 = vpop.f32.mrf.mxu0
      %3557 = vmatprep.mubr.f32.mxu0 0.0
      %3558 = vmatmul.mubr.f32.gmra.mxu0 %v3363
      %v3559 = vpop.f32.mrf.mxu0
      %v3560 = vadd.f32 0.0, %v3559
      %v3561 = vpop.f32.mrf.mxu0
      %3562 = vmatprep.mubr.f32.mxu0 0.0
      %3563 = vmatmul.mubr.f32.gmra.mxu0 %v3366
      %v3564 = vpop.f32.mrf.mxu0
      %v3565 = vadd.f32 0.0, %v3564
      %v3566 = vpop.f32.mrf.mxu0
      %3567 = vmatprep.mubr.f32.mxu0 0.0
      %3568 = vmatmul.mubr.f32.gmra.mxu0 %v3369
      %v3569 = vpop.f32.mrf.mxu0
      %v3570 = vadd.f32 0.0, %v3569
      %v3571 = vpop.f32.mrf.mxu0
      %3572 = vmatprep.mubr.f32.mxu0 0.0
      %3573 = vmatmul.mubr.f32.gmra.mxu0 %v3372
      %v3574 = vpop.f32.mrf.mxu0
      %v3575 = vadd.f32 0.0, %v3574
      %v3576 = vpop.f32.mrf.mxu0
      %3577 = vmatprep.mubr.f32.mxu0 0.0
      %3578 = vmatmul.mubr.f32.gmra.mxu0 %v3375
      %v3579 = vpop.f32.mrf.mxu0
      %v3580 = vadd.f32 0.0, %v3579
      %v3581 = vpop.f32.mrf.mxu0
      %3582 = vmatprep.mubr.f32.mxu0 0.0
      %3583 = vmatmul.mubr.f32.gmra.mxu0 %v3378
      %v3584 = vpop.f32.mrf.mxu0
      %v3585 = vadd.f32 0.0, %v3584
      %v3586 = vpop.f32.mrf.mxu0
      %3587 = vmatprep.mubr.f32.mxu0 0.0
      %3588 = vmatmul.mubr.f32.gmra.mxu0 %v3381
      %v3589 = vpop.f32.mrf.mxu0
      %v3590 = vadd.f32 0.0, %v3589
      %v3591 = vpop.f32.mrf.mxu0
      %3592 = vmatprep.mubr.f32.mxu0 0.0
      %3593 = vmatmul.mubr.f32.gmra.mxu0 %v3384
      %v3594 = vpop.f32.mrf.mxu0
      %v3595 = vadd.f32 0.0, %v3594
      %v3596 = vpop.f32.mrf.mxu0
      %3597 = vmatprep.mubr.f32.mxu0 0.0
      %3598 = vmatmul.mubr.f32.gmra.mxu0 %v3387
      %v3599 = vpop.f32.mrf.mxu0
      %v3600 = vadd.f32 0.0, %v3599
      %v3601 = vpop.f32.mrf.mxu0
      %3602 = vmatprep.mubr.f32.mxu0 0.0
      %3603 = vmatmul.mubr.f32.gmra.mxu0 %v3390
      %v3604 = vpop.f32.mrf.mxu0
      %v3605 = vadd.f32 0.0, %v3604
      %v3606 = vpop.f32.mrf.mxu0
      %3607 = vmatprep.mubr.f32.mxu0 0.0
      %3608 = vmatmul.mubr.f32.gmra.mxu0 %v3393
      %v3609 = vpop.f32.mrf.mxu0
      %v3610 = vadd.f32 0.0, %v3609
      %v3611 = vpop.f32.mrf.mxu0
      %3612 = vmatprep.mubr.f32.mxu0 0.0
      %3613 = vmatmul.mubr.f32.gmra.mxu0 %v3396
      %v3614 = vpop.f32.mrf.mxu0
      %v3615 = vadd.f32 0.0, %v3614
      %v3616 = vpop.f32.mrf.mxu0
      %3617 = vmatprep.mubr.f32.mxu0 0.0
      %3618 = vmatmul.mubr.f32.gmra.mxu0 %v3399
      %v3619 = vpop.f32.mrf.mxu0
      %v3620 = vadd.f32 0.0, %v3619
      %v3621 = vpop.f32.mrf.mxu0
      %3622 = vmatprep.mubr.f32.mxu0 0.0
      %3623 = vmatmul.mubr.f32.gmra.mxu0 %v3402
      %v3624 = vpop.f32.mrf.mxu0
      %v3625 = vadd.f32 0.0, %v3624
      %v3626 = vpop.f32.mrf.mxu0
      %3627 = vmatprep.mubr.f32.mxu0 0.0
      %3628 = vmatmul.mubr.f32.gmra.mxu0 %v3405
      %v3629 = vpop.f32.mrf.mxu0
      %v3630 = vadd.f32 0.0, %v3629
      %v3631 = vpop.f32.mrf.mxu0
      %3632 = vmatprep.mubr.f32.mxu0 0.0
      %3633 = vmatmul.mubr.f32.gmra.mxu0 %v3408
      %v3634 = vpop.f32.mrf.mxu0
      %v3635 = vadd.f32 0.0, %v3634
      %v3636 = vpop.f32.mrf.mxu0
      %3637 = vdwg.mxu0
      %v3638 = vadd.f32 %v3248, %v3480
      %v3639 = vadd.f32 %v3249, %v3485
      %v3640 = vadd.f32 %v3250, %v3490
      %v3641 = vadd.f32 %v3251, %v3495
      %v3642 = vadd.f32 %v3252, %v3500
      %v3643 = vadd.f32 %v3253, %v3505
      %v3644 = vadd.f32 %v3254, %v3510
      %v3645 = vadd.f32 %v3255, %v3515
      %v3646 = vadd.f32 %v3256, %v3520
      %v3647 = vadd.f32 %v3257, %v3525
      %v3648 = vadd.f32 %v3258, %v3530
      %v3649 = vadd.f32 %v3259, %v3535
      %v3650 = vadd.f32 %v3260, %v3540
      %v3651 = vadd.f32 %v3261, %v3545
      %v3652 = vadd.f32 %v3262, %v3550
      %v3653 = vadd.f32 %v3263, %v3555
      %v3654 = vadd.f32 %v3264, %v3560
      %v3655 = vadd.f32 %v3265, %v3565
      %v3656 = vadd.f32 %v3266, %v3570
      %v3657 = vadd.f32 %v3267, %v3575
      %v3658 = vadd.f32 %v3268, %v3580
      %v3659 = vadd.f32 %v3269, %v3585
      %v3660 = vadd.f32 %v3270, %v3590
      %v3661 = vadd.f32 %v3271, %v3595
      %v3662 = vadd.f32 %v3272, %v3600
      %v3663 = vadd.f32 %v3273, %v3605
      %v3664 = vadd.f32 %v3274, %v3610
      %v3665 = vadd.f32 %v3275, %v3615
      %v3666 = vadd.f32 %v3276, %v3620
      %v3667 = vadd.f32 %v3277, %v3625
      %v3668 = vadd.f32 %v3278, %v3630
      %v3669 = vadd.f32 %v3279, %v3635
      %v3670 = vld [vmem:[%s2109 + $0x4] sm:$0xff]
      %v3671 = vld [vmem:[%s2109 + $0xc] sm:$0xff]
      %v3672 = vld [vmem:[%s2109 + $0x1c] sm:$0xff]
      %v3673 = vld [vmem:[%s2109 + $0x24] sm:$0xff]
      %v3674 = vld [vmem:[%s2109 + $0x34] sm:$0xff]
      %v3675 = vld [vmem:[%s2109 + $0x3c] sm:$0xff]
      %v3676 = vld [vmem:[%s2109 + $0x4c] sm:$0xff]
      %v3677 = vld [vmem:[%s2109 + $0x54] sm:$0xff]
      %v3678 = vld [vmem:[%s2109 + $0x64] sm:$0xff]
      %v3679 = vld [vmem:[%s2109 + $0x6c] sm:$0xff]
      %v3680 = vld [vmem:[%s2109 + $0x7c] sm:$0xff]
      %v3681 = vld [vmem:[%s2109 + $0x84] sm:$0xff]
      %v3682 = vld [vmem:[%s2109 + $0x94] sm:$0xff]
      %v3683 = vld [vmem:[%s2109 + $0x9c] sm:$0xff]
      %v3684 = vld [vmem:[%s2109 + $0xac] sm:$0xff]
      %v3685 = vld [vmem:[%s2109 + $0xb4] sm:$0xff]
      %v3686 = vld [vmem:[%s2109 + $0xc4] sm:$0xff]
      %v3687 = vld [vmem:[%s2109 + $0xcc] sm:$0xff]
      %v3688 = vld [vmem:[%s2109 + $0xdc] sm:$0xff]
      %v3689 = vld [vmem:[%s2109 + $0xe4] sm:$0xff]
      %v3690 = vld [vmem:[%s2109 + $0xf4] sm:$0xff]
      %v3691 = vld [vmem:[%s2109 + $0xfc] sm:$0xff]
      %v3692 = vld [vmem:[%s2109 + $0x10c] sm:$0xff]
      %v3693 = vld [vmem:[%s2109 + $0x114] sm:$0xff]
      %v3694 = vld [vmem:[%s2109 + $0x124] sm:$0xff]
      %v3695 = vld [vmem:[%s2109 + $0x12c] sm:$0xff]
      %v3696 = vld [vmem:[%s2109 + $0x13c] sm:$0xff]
      %v3697 = vld [vmem:[%s2109 + $0x144] sm:$0xff]
      %v3698 = vld [vmem:[%s2109 + $0x154] sm:$0xff]
      %v3699 = vld [vmem:[%s2109 + $0x15c] sm:$0xff]
      %v3700 = vld [vmem:[%s2109 + $0x16c] sm:$0xff]
      %v3701 = vld [vmem:[%s2109 + $0x174] sm:$0xff]
      %s3702 = scalar_lea.vmem %s210, 36
      %v3703 = vld [vmem:[%s3702] sm:$0xf]
      %v3705 = vsel %vm289, %v3670, 0
      %v3708 = vsel %vm289, %v3671, 0
      %v3711 = vsel %vm289, %v3672, 0
      %v3714 = vsel %vm289, %v3673, 0
      %v3717 = vsel %vm289, %v3674, 0
      %v3720 = vsel %vm289, %v3675, 0
      %v3723 = vsel %vm289, %v3676, 0
      %v3726 = vsel %vm289, %v3677, 0
      %v3729 = vsel %vm289, %v3678, 0
      %v3732 = vsel %vm289, %v3679, 0
      %v3735 = vsel %vm289, %v3680, 0
      %v3738 = vsel %vm289, %v3681, 0
      %v3741 = vsel %vm289, %v3682, 0
      %v3744 = vsel %vm289, %v3683, 0
      %v3747 = vsel %vm289, %v3684, 0
      %v3750 = vsel %vm289, %v3685, 0
      %v3753 = vsel %vm289, %v3686, 0
      %v3756 = vsel %vm289, %v3687, 0
      %v3759 = vsel %vm289, %v3688, 0
      %v3762 = vsel %vm289, %v3689, 0
      %v3765 = vsel %vm289, %v3690, 0
      %v3768 = vsel %vm289, %v3691, 0
      %v3771 = vsel %vm289, %v3692, 0
      %v3774 = vsel %vm289, %v3693, 0
      %v3777 = vsel %vm289, %v3694, 0
      %v3780 = vsel %vm289, %v3695, 0
      %v3783 = vsel %vm289, %v3696, 0
      %v3786 = vsel %vm289, %v3697, 0
      %v3789 = vsel %vm289, %v3698, 0
      %v3792 = vsel %vm289, %v3699, 0
      %v3795 = vsel %vm289, %v3700, 0
      %v3798 = vsel %vm289, %v3701, 0
      %v3801 = vsel %vm386, %v3703, 0
      %3803 = vmatprep.subr.mxu0 0.0
      %3804 = vmatpush1.msra.mxu0 0.0
      %3805 = vmatprep.subr.mxu0 0.0
      %3806 = vmatpush1.msra.mxu0 0.0
      %3807 = vmatprep.subr.mxu0 0.0
      %3808 = vmatpush1.msra.mxu0 0.0
      %3809 = vmatprep.subr.mxu0 0.0
      %3810 = vmatpush1.msra.mxu0 0.0
      %3811 = vmatprep.subr.mxu0 0.0
      %3812 = vmatpush1.msra.mxu0 0.0
      %3813 = vmatprep.subr.mxu0 0.0
      %3814 = vmatpush1.msra.mxu0 0.0
      %3815 = vmatprep.subr.mxu0 0.0
      %3816 = vmatpush1.msra.mxu0 0.0
      %3817 = vmatprep.subr.mxu0 0.0
      %3818 = vmatpush1.msra.mxu0 0.0
      %3819 = vmatprep.subr.mxu0 0.0
      %3820 = vmatpush1.msra.mxu0 0.0
      %3821 = vmatprep.subr.mxu0 0.0
      %3822 = vmatpush1.msra.mxu0 0.0
      %3823 = vmatprep.subr.mxu0 0.0
      %3824 = vmatpush1.msra.mxu0 0.0
      %3825 = vmatprep.subr.mxu0 0.0
      %3826 = vmatpush1.msra.mxu0 0.0
      %3827 = vmatprep.subr.mxu0 0.0
      %3828 = vmatpush1.msra.mxu0 0.0
      %3829 = vmatprep.subr.mxu0 0.0
      %3830 = vmatpush1.msra.mxu0 0.0
      %3831 = vmatprep.subr.mxu0 0.0
      %3832 = vmatpush1.msra.mxu0 0.0
      %3833 = vmatprep.subr.mxu0 0.0
      %3834 = vmatpush1.msra.mxu0 %v3801
      %3835 = vmatprep.subr.mxu0 0.0
      %3836 = vmatpush2.msra.mxu0 0.0
      %3837 = vmatprep.subr.mxu0 0.0
      %3838 = vmatpush2.msra.mxu0 0.0
      %3839 = vmatprep.subr.mxu0 0.0
      %3840 = vmatpush2.msra.mxu0 0.0
      %3841 = vmatprep.subr.mxu0 0.0
      %3842 = vmatpush2.msra.mxu0 0.0
      %3843 = vmatprep.subr.mxu0 0.0
      %3844 = vmatpush2.msra.mxu0 0.0
      %3845 = vmatprep.subr.mxu0 0.0
      %3846 = vmatpush2.msra.mxu0 0.0
      %3847 = vmatprep.subr.mxu0 0.0
      %3848 = vmatpush2.msra.mxu0 0.0
      %3849 = vmatprep.subr.mxu0 0.0
      %3850 = vmatpush2.msra.mxu0 0.0
      %3851 = vmatprep.subr.mxu0 0.0
      %3852 = vmatpush2.msra.mxu0 0.0
      %3853 = vmatprep.subr.mxu0 0.0
      %3854 = vmatpush2.msra.mxu0 0.0
      %3855 = vmatprep.subr.mxu0 0.0
      %3856 = vmatpush2.msra.mxu0 0.0
      %3857 = vmatprep.subr.mxu0 0.0
      %3858 = vmatpush2.msra.mxu0 0.0
      %3859 = vmatprep.subr.mxu0 0.0
      %3860 = vmatpush2.msra.mxu0 0.0
      %3861 = vmatprep.subr.mxu0 0.0
      %3862 = vmatpush2.msra.mxu0 0.0
      %3863 = vmatprep.subr.mxu0 0.0
      %3864 = vmatpush2.msra.mxu0 0.0
      %3865 = vmatprep.subr.mxu0 0.0
      %3866 = vmatpush2.msra.mxu0 0.0
      %3867 = vmatprep.mubr.f32.mxu0 0.0
      %3868 = vmatmul.mubr.f32.gmra.mxu0 %v3705
      %v3869 = vpop.f32.mrf.mxu0
      %v3870 = vadd.f32 0.0, %v3869
      %v3871 = vpop.f32.mrf.mxu0
      %3872 = vmatprep.mubr.f32.mxu0 0.0
      %3873 = vmatmul.mubr.f32.gmra.mxu0 %v3708
      %v3874 = vpop.f32.mrf.mxu0
      %v3875 = vadd.f32 0.0, %v3874
      %v3876 = vpop.f32.mrf.mxu0
      %3877 = vmatprep.mubr.f32.mxu0 0.0
      %3878 = vmatmul.mubr.f32.gmra.mxu0 %v3711
      %v3879 = vpop.f32.mrf.mxu0
      %v3880 = vadd.f32 0.0, %v3879
      %v3881 = vpop.f32.mrf.mxu0
      %3882 = vmatprep.mubr.f32.mxu0 0.0
      %3883 = vmatmul.mubr.f32.gmra.mxu0 %v3714
      %v3884 = vpop.f32.mrf.mxu0
      %v3885 = vadd.f32 0.0, %v3884
      %v3886 = vpop.f32.mrf.mxu0
      %3887 = vmatprep.mubr.f32.mxu0 0.0
      %3888 = vmatmul.mubr.f32.gmra.mxu0 %v3717
      %v3889 = vpop.f32.mrf.mxu0
      %v3890 = vadd.f32 0.0, %v3889
      %v3891 = vpop.f32.mrf.mxu0
      %3892 = vmatprep.mubr.f32.mxu0 0.0
      %3893 = vmatmul.mubr.f32.gmra.mxu0 %v3720
      %v3894 = vpop.f32.mrf.mxu0
      %v3895 = vadd.f32 0.0, %v3894
      %v3896 = vpop.f32.mrf.mxu0
      %3897 = vmatprep.mubr.f32.mxu0 0.0
      %3898 = vmatmul.mubr.f32.gmra.mxu0 %v3723
      %v3899 = vpop.f32.mrf.mxu0
      %v3900 = vadd.f32 0.0, %v3899
      %v3901 = vpop.f32.mrf.mxu0
      %3902 = vmatprep.mubr.f32.mxu0 0.0
      %3903 = vmatmul.mubr.f32.gmra.mxu0 %v3726
      %v3904 = vpop.f32.mrf.mxu0
      %v3905 = vadd.f32 0.0, %v3904
      %v3906 = vpop.f32.mrf.mxu0
      %3907 = vmatprep.mubr.f32.mxu0 0.0
      %3908 = vmatmul.mubr.f32.gmra.mxu0 %v3729
      %v3909 = vpop.f32.mrf.mxu0
      %v3910 = vadd.f32 0.0, %v3909
      %v3911 = vpop.f32.mrf.mxu0
      %3912 = vmatprep.mubr.f32.mxu0 0.0
      %3913 = vmatmul.mubr.f32.gmra.mxu0 %v3732
      %v3914 = vpop.f32.mrf.mxu0
      %v3915 = vadd.f32 0.0, %v3914
      %v3916 = vpop.f32.mrf.mxu0
      %3917 = vmatprep.mubr.f32.mxu0 0.0
      %3918 = vmatmul.mubr.f32.gmra.mxu0 %v3735
      %v3919 = vpop.f32.mrf.mxu0
      %v3920 = vadd.f32 0.0, %v3919
      %v3921 = vpop.f32.mrf.mxu0
      %3922 = vmatprep.mubr.f32.mxu0 0.0
      %3923 = vmatmul.mubr.f32.gmra.mxu0 %v3738
      %v3924 = vpop.f32.mrf.mxu0
      %v3925 = vadd.f32 0.0, %v3924
      %v3926 = vpop.f32.mrf.mxu0
      %3927 = vmatprep.mubr.f32.mxu0 0.0
      %3928 = vmatmul.mubr.f32.gmra.mxu0 %v3741
      %v3929 = vpop.f32.mrf.mxu0
      %v3930 = vadd.f32 0.0, %v3929
      %v3931 = vpop.f32.mrf.mxu0
      %3932 = vmatprep.mubr.f32.mxu0 0.0
      %3933 = vmatmul.mubr.f32.gmra.mxu0 %v3744
      %v3934 = vpop.f32.mrf.mxu0
      %v3935 = vadd.f32 0.0, %v3934
      %v3936 = vpop.f32.mrf.mxu0
      %3937 = vmatprep.mubr.f32.mxu0 0.0
      %3938 = vmatmul.mubr.f32.gmra.mxu0 %v3747
      %v3939 = vpop.f32.mrf.mxu0
      %v3940 = vadd.f32 0.0, %v3939
      %v3941 = vpop.f32.mrf.mxu0
      %3942 = vmatprep.mubr.f32.mxu0 0.0
      %3943 = vmatmul.mubr.f32.gmra.mxu0 %v3750
      %v3944 = vpop.f32.mrf.mxu0
      %v3945 = vadd.f32 0.0, %v3944
      %v3946 = vpop.f32.mrf.mxu0
      %3947 = vmatprep.mubr.f32.mxu0 0.0
      %3948 = vmatmul.mubr.f32.gmra.mxu0 %v3753
      %v3949 = vpop.f32.mrf.mxu0
      %v3950 = vadd.f32 0.0, %v3949
      %v3951 = vpop.f32.mrf.mxu0
      %3952 = vmatprep.mubr.f32.mxu0 0.0
      %3953 = vmatmul.mubr.f32.gmra.mxu0 %v3756
      %v3954 = vpop.f32.mrf.mxu0
      %v3955 = vadd.f32 0.0, %v3954
      %v3956 = vpop.f32.mrf.mxu0
      %3957 = vmatprep.mubr.f32.mxu0 0.0
      %3958 = vmatmul.mubr.f32.gmra.mxu0 %v3759
      %v3959 = vpop.f32.mrf.mxu0
      %v3960 = vadd.f32 0.0, %v3959
      %v3961 = vpop.f32.mrf.mxu0
      %3962 = vmatprep.mubr.f32.mxu0 0.0
      %3963 = vmatmul.mubr.f32.gmra.mxu0 %v3762
      %v3964 = vpop.f32.mrf.mxu0
      %v3965 = vadd.f32 0.0, %v3964
      %v3966 = vpop.f32.mrf.mxu0
      %3967 = vmatprep.mubr.f32.mxu0 0.0
      %3968 = vmatmul.mubr.f32.gmra.mxu0 %v3765
      %v3969 = vpop.f32.mrf.mxu0
      %v3970 = vadd.f32 0.0, %v3969
      %v3971 = vpop.f32.mrf.mxu0
      %3972 = vmatprep.mubr.f32.mxu0 0.0
      %3973 = vmatmul.mubr.f32.gmra.mxu0 %v3768
      %v3974 = vpop.f32.mrf.mxu0
      %v3975 = vadd.f32 0.0, %v3974
      %v3976 = vpop.f32.mrf.mxu0
      %3977 = vmatprep.mubr.f32.mxu0 0.0
      %3978 = vmatmul.mubr.f32.gmra.mxu0 %v3771
      %v3979 = vpop.f32.mrf.mxu0
      %v3980 = vadd.f32 0.0, %v3979
      %v3981 = vpop.f32.mrf.mxu0
      %3982 = vmatprep.mubr.f32.mxu0 0.0
      %3983 = vmatmul.mubr.f32.gmra.mxu0 %v3774
      %v3984 = vpop.f32.mrf.mxu0
      %v3985 = vadd.f32 0.0, %v3984
      %v3986 = vpop.f32.mrf.mxu0
      %3987 = vmatprep.mubr.f32.mxu0 0.0
      %3988 = vmatmul.mubr.f32.gmra.mxu0 %v3777
      %v3989 = vpop.f32.mrf.mxu0
      %v3990 = vadd.f32 0.0, %v3989
      %v3991 = vpop.f32.mrf.mxu0
      %3992 = vmatprep.mubr.f32.mxu0 0.0
      %3993 = vmatmul.mubr.f32.gmra.mxu0 %v3780
      %v3994 = vpop.f32.mrf.mxu0
      %v3995 = vadd.f32 0.0, %v3994
      %v3996 = vpop.f32.mrf.mxu0
      %3997 = vmatprep.mubr.f32.mxu0 0.0
      %3998 = vmatmul.mubr.f32.gmra.mxu0 %v3783
      %v3999 = vpop.f32.mrf.mxu0
      %v4000 = vadd.f32 0.0, %v3999
      %v4001 = vpop.f32.mrf.mxu0
      %4002 = vmatprep.mubr.f32.mxu0 0.0
      %4003 = vmatmul.mubr.f32.gmra.mxu0 %v3786
      %v4004 = vpop.f32.mrf.mxu0
      %v4005 = vadd.f32 0.0, %v4004
      %v4006 = vpop.f32.mrf.mxu0
      %4007 = vmatprep.mubr.f32.mxu0 0.0
      %4008 = vmatmul.mubr.f32.gmra.mxu0 %v3789
      %v4009 = vpop.f32.mrf.mxu0
      %v4010 = vadd.f32 0.0, %v4009
      %v4011 = vpop.f32.mrf.mxu0
      %4012 = vmatprep.mubr.f32.mxu0 0.0
      %4013 = vmatmul.mubr.f32.gmra.mxu0 %v3792
      %v4014 = vpop.f32.mrf.mxu0
      %v4015 = vadd.f32 0.0, %v4014
      %v4016 = vpop.f32.mrf.mxu0
      %4017 = vmatprep.mubr.f32.mxu0 0.0
      %4018 = vmatmul.mubr.f32.gmra.mxu0 %v3795
      %v4019 = vpop.f32.mrf.mxu0
      %v4020 = vadd.f32 0.0, %v4019
      %v4021 = vpop.f32.mrf.mxu0
      %4022 = vmatprep.mubr.f32.mxu0 0.0
      %4023 = vmatmul.mubr.f32.gmra.mxu0 %v3798
      %v4024 = vpop.f32.mrf.mxu0
      %v4025 = vadd.f32 0.0, %v4024
      %v4026 = vpop.f32.mrf.mxu0
      %4027 = vdwg.mxu0
      %v4028 = vadd.f32 %v3638, %v3870
      %v4029 = vadd.f32 %v3639, %v3875
      %v4030 = vadd.f32 %v3640, %v3880
      %v4031 = vadd.f32 %v3641, %v3885
      %v4032 = vadd.f32 %v3642, %v3890
      %v4033 = vadd.f32 %v3643, %v3895
      %v4034 = vadd.f32 %v3644, %v3900
      %v4035 = vadd.f32 %v3645, %v3905
      %v4036 = vadd.f32 %v3646, %v3910
      %v4037 = vadd.f32 %v3647, %v3915
      %v4038 = vadd.f32 %v3648, %v3920
      %v4039 = vadd.f32 %v3649, %v3925
      %v4040 = vadd.f32 %v3650, %v3930
      %v4041 = vadd.f32 %v3651, %v3935
      %v4042 = vadd.f32 %v3652, %v3940
      %v4043 = vadd.f32 %v3653, %v3945
      %v4044 = vadd.f32 %v3654, %v3950
      %v4045 = vadd.f32 %v3655, %v3955
      %v4046 = vadd.f32 %v3656, %v3960
      %v4047 = vadd.f32 %v3657, %v3965
      %v4048 = vadd.f32 %v3658, %v3970
      %v4049 = vadd.f32 %v3659, %v3975
      %v4050 = vadd.f32 %v3660, %v3980
      %v4051 = vadd.f32 %v3661, %v3985
      %v4052 = vadd.f32 %v3662, %v3990
      %v4053 = vadd.f32 %v3663, %v3995
      %v4054 = vadd.f32 %v3664, %v4000
      %v4055 = vadd.f32 %v3665, %v4005
      %v4056 = vadd.f32 %v3666, %v4010
      %v4057 = vadd.f32 %v3667, %v4015
      %v4058 = vadd.f32 %v3668, %v4020
      %v4059 = vadd.f32 %v3669, %v4025
      %s4060 = scalar_lea.vmem %s206, 48
      %v4061 = vld [vmem:[%s4060] sm:$0xff]
      %v4062 = vld [vmem:[%s4060 + $0x8] sm:$0xff]
      %v4063 = vld [vmem:[%s4060 + $0x18] sm:$0xff]
      %v4064 = vld [vmem:[%s4060 + $0x20] sm:$0xff]
      %v4065 = vld [vmem:[%s4060 + $0x30] sm:$0xff]
      %v4066 = vld [vmem:[%s4060 + $0x38] sm:$0xff]
      %v4067 = vld [vmem:[%s4060 + $0x48] sm:$0xff]
      %v4068 = vld [vmem:[%s4060 + $0x50] sm:$0xff]
      %v4069 = vld [vmem:[%s4060 + $0x60] sm:$0xff]
      %v4070 = vld [vmem:[%s4060 + $0x68] sm:$0xff]
      %v4071 = vld [vmem:[%s4060 + $0x78] sm:$0xff]
      %v4072 = vld [vmem:[%s4060 + $0x80] sm:$0xff]
      %v4073 = vld [vmem:[%s4060 + $0x90] sm:$0xff]
      %v4074 = vld [vmem:[%s4060 + $0x98] sm:$0xff]
      %v4075 = vld [vmem:[%s4060 + $0xa8] sm:$0xff]
      %v4076 = vld [vmem:[%s4060 + $0xb0] sm:$0xff]
      %v4077 = vld [vmem:[%s4060 + $0xc0] sm:$0xff]
      %v4078 = vld [vmem:[%s4060 + $0xc8] sm:$0xff]
      %v4079 = vld [vmem:[%s4060 + $0xd8] sm:$0xff]
      %v4080 = vld [vmem:[%s4060 + $0xe0] sm:$0xff]
      %v4081 = vld [vmem:[%s4060 + $0xf0] sm:$0xff]
      %v4082 = vld [vmem:[%s4060 + $0xf8] sm:$0xff]
      %v4083 = vld [vmem:[%s4060 + $0x108] sm:$0xff]
      %v4084 = vld [vmem:[%s4060 + $0x110] sm:$0xff]
      %v4085 = vld [vmem:[%s4060 + $0x120] sm:$0xff]
      %v4086 = vld [vmem:[%s4060 + $0x128] sm:$0xff]
      %v4087 = vld [vmem:[%s4060 + $0x138] sm:$0xff]
      %v4088 = vld [vmem:[%s4060 + $0x140] sm:$0xff]
      %v4089 = vld [vmem:[%s4060 + $0x150] sm:$0xff]
      %v4090 = vld [vmem:[%s4060 + $0x158] sm:$0xff]
      %v4091 = vld [vmem:[%s4060 + $0x168] sm:$0xff]
      %v4092 = vld [vmem:[%s4060 + $0x170] sm:$0xff]
      %s4093 = scalar_lea.vmem %s210, 40
      %v4094 = vld [vmem:[%s4093] sm:$0xf]
      %v4096 = vsel %vm289, %v4061, 0
      %v4099 = vsel %vm289, %v4062, 0
      %v4102 = vsel %vm289, %v4063, 0
      %v4105 = vsel %vm289, %v4064, 0
      %v4108 = vsel %vm289, %v4065, 0
      %v4111 = vsel %vm289, %v4066, 0
      %v4114 = vsel %vm289, %v4067, 0
      %v4117 = vsel %vm289, %v4068, 0
      %v4120 = vsel %vm289, %v4069, 0
      %v4123 = vsel %vm289, %v4070, 0
      %v4126 = vsel %vm289, %v4071, 0
      %v4129 = vsel %vm289, %v4072, 0
      %v4132 = vsel %vm289, %v4073, 0
      %v4135 = vsel %vm289, %v4074, 0
      %v4138 = vsel %vm289, %v4075, 0
      %v4141 = vsel %vm289, %v4076, 0
      %v4144 = vsel %vm289, %v4077, 0
      %v4147 = vsel %vm289, %v4078, 0
      %v4150 = vsel %vm289, %v4079, 0
      %v4153 = vsel %vm289, %v4080, 0
      %v4156 = vsel %vm289, %v4081, 0
      %v4159 = vsel %vm289, %v4082, 0
      %v4162 = vsel %vm289, %v4083, 0
      %v4165 = vsel %vm289, %v4084, 0
      %v4168 = vsel %vm289, %v4085, 0
      %v4171 = vsel %vm289, %v4086, 0
      %v4174 = vsel %vm289, %v4087, 0
      %v4177 = vsel %vm289, %v4088, 0
      %v4180 = vsel %vm289, %v4089, 0
      %v4183 = vsel %vm289, %v4090, 0
      %v4186 = vsel %vm289, %v4091, 0
      %v4189 = vsel %vm289, %v4092, 0
      %v4192 = vsel %vm386, %v4094, 0
      %4194 = vmatprep.subr.mxu0 0.0
      %4195 = vmatpush1.msra.mxu0 0.0
      %4196 = vmatprep.subr.mxu0 0.0
      %4197 = vmatpush1.msra.mxu0 0.0
      %4198 = vmatprep.subr.mxu0 0.0
      %4199 = vmatpush1.msra.mxu0 0.0
      %4200 = vmatprep.subr.mxu0 0.0
      %4201 = vmatpush1.msra.mxu0 0.0
      %4202 = vmatprep.subr.mxu0 0.0
      %4203 = vmatpush1.msra.mxu0 0.0
      %4204 = vmatprep.subr.mxu0 0.0
      %4205 = vmatpush1.msra.mxu0 0.0
      %4206 = vmatprep.subr.mxu0 0.0
      %4207 = vmatpush1.msra.mxu0 0.0
      %4208 = vmatprep.subr.mxu0 0.0
      %4209 = vmatpush1.msra.mxu0 0.0
      %4210 = vmatprep.subr.mxu0 0.0
      %4211 = vmatpush1.msra.mxu0 0.0
      %4212 = vmatprep.subr.mxu0 0.0
      %4213 = vmatpush1.msra.mxu0 0.0
      %4214 = vmatprep.subr.mxu0 0.0
      %4215 = vmatpush1.msra.mxu0 0.0
      %4216 = vmatprep.subr.mxu0 0.0
      %4217 = vmatpush1.msra.mxu0 0.0
      %4218 = vmatprep.subr.mxu0 0.0
      %4219 = vmatpush1.msra.mxu0 0.0
      %4220 = vmatprep.subr.mxu0 0.0
      %4221 = vmatpush1.msra.mxu0 0.0
      %4222 = vmatprep.subr.mxu0 0.0
      %4223 = vmatpush1.msra.mxu0 0.0
      %4224 = vmatprep.subr.mxu0 0.0
      %4225 = vmatpush1.msra.mxu0 %v4192
      %4226 = vmatprep.subr.mxu0 0.0
      %4227 = vmatpush2.msra.mxu0 0.0
      %4228 = vmatprep.subr.mxu0 0.0
      %4229 = vmatpush2.msra.mxu0 0.0
      %4230 = vmatprep.subr.mxu0 0.0
      %4231 = vmatpush2.msra.mxu0 0.0
      %4232 = vmatprep.subr.mxu0 0.0
      %4233 = vmatpush2.msra.mxu0 0.0
      %4234 = vmatprep.subr.mxu0 0.0
      %4235 = vmatpush2.msra.mxu0 0.0
      %4236 = vmatprep.subr.mxu0 0.0
      %4237 = vmatpush2.msra.mxu0 0.0
      %4238 = vmatprep.subr.mxu0 0.0
      %4239 = vmatpush2.msra.mxu0 0.0
      %4240 = vmatprep.subr.mxu0 0.0
      %4241 = vmatpush2.msra.mxu0 0.0
      %4242 = vmatprep.subr.mxu0 0.0
      %4243 = vmatpush2.msra.mxu0 0.0
      %4244 = vmatprep.subr.mxu0 0.0
      %4245 = vmatpush2.msra.mxu0 0.0
      %4246 = vmatprep.subr.mxu0 0.0
      %4247 = vmatpush2.msra.mxu0 0.0
      %4248 = vmatprep.subr.mxu0 0.0
      %4249 = vmatpush2.msra.mxu0 0.0
      %4250 = vmatprep.subr.mxu0 0.0
      %4251 = vmatpush2.msra.mxu0 0.0
      %4252 = vmatprep.subr.mxu0 0.0
      %4253 = vmatpush2.msra.mxu0 0.0
      %4254 = vmatprep.subr.mxu0 0.0
      %4255 = vmatpush2.msra.mxu0 0.0
      %4256 = vmatprep.subr.mxu0 0.0
      %4257 = vmatpush2.msra.mxu0 0.0
      %4258 = vmatprep.mubr.f32.mxu0 0.0
      %4259 = vmatmul.mubr.f32.gmra.mxu0 %v4096
      %v4260 = vpop.f32.mrf.mxu0
      %v4261 = vadd.f32 0.0, %v4260
      %v4262 = vpop.f32.mrf.mxu0
      %4263 = vmatprep.mubr.f32.mxu0 0.0
      %4264 = vmatmul.mubr.f32.gmra.mxu0 %v4099
      %v4265 = vpop.f32.mrf.mxu0
      %v4266 = vadd.f32 0.0, %v4265
      %v4267 = vpop.f32.mrf.mxu0
      %4268 = vmatprep.mubr.f32.mxu0 0.0
      %4269 = vmatmul.mubr.f32.gmra.mxu0 %v4102
      %v4270 = vpop.f32.mrf.mxu0
      %v4271 = vadd.f32 0.0, %v4270
      %v4272 = vpop.f32.mrf.mxu0
      %4273 = vmatprep.mubr.f32.mxu0 0.0
      %4274 = vmatmul.mubr.f32.gmra.mxu0 %v4105
      %v4275 = vpop.f32.mrf.mxu0
      %v4276 = vadd.f32 0.0, %v4275
      %v4277 = vpop.f32.mrf.mxu0
      %4278 = vmatprep.mubr.f32.mxu0 0.0
      %4279 = vmatmul.mubr.f32.gmra.mxu0 %v4108
      %v4280 = vpop.f32.mrf.mxu0
      %v4281 = vadd.f32 0.0, %v4280
      %v4282 = vpop.f32.mrf.mxu0
      %4283 = vmatprep.mubr.f32.mxu0 0.0
      %4284 = vmatmul.mubr.f32.gmra.mxu0 %v4111
      %v4285 = vpop.f32.mrf.mxu0
      %v4286 = vadd.f32 0.0, %v4285
      %v4287 = vpop.f32.mrf.mxu0
      %4288 = vmatprep.mubr.f32.mxu0 0.0
      %4289 = vmatmul.mubr.f32.gmra.mxu0 %v4114
      %v4290 = vpop.f32.mrf.mxu0
      %v4291 = vadd.f32 0.0, %v4290
      %v4292 = vpop.f32.mrf.mxu0
      %4293 = vmatprep.mubr.f32.mxu0 0.0
      %4294 = vmatmul.mubr.f32.gmra.mxu0 %v4117
      %v4295 = vpop.f32.mrf.mxu0
      %v4296 = vadd.f32 0.0, %v4295
      %v4297 = vpop.f32.mrf.mxu0
      %4298 = vmatprep.mubr.f32.mxu0 0.0
      %4299 = vmatmul.mubr.f32.gmra.mxu0 %v4120
      %v4300 = vpop.f32.mrf.mxu0
      %v4301 = vadd.f32 0.0, %v4300
      %v4302 = vpop.f32.mrf.mxu0
      %4303 = vmatprep.mubr.f32.mxu0 0.0
      %4304 = vmatmul.mubr.f32.gmra.mxu0 %v4123
      %v4305 = vpop.f32.mrf.mxu0
      %v4306 = vadd.f32 0.0, %v4305
      %v4307 = vpop.f32.mrf.mxu0
      %4308 = vmatprep.mubr.f32.mxu0 0.0
      %4309 = vmatmul.mubr.f32.gmra.mxu0 %v4126
      %v4310 = vpop.f32.mrf.mxu0
      %v4311 = vadd.f32 0.0, %v4310
      %v4312 = vpop.f32.mrf.mxu0
      %4313 = vmatprep.mubr.f32.mxu0 0.0
      %4314 = vmatmul.mubr.f32.gmra.mxu0 %v4129
      %v4315 = vpop.f32.mrf.mxu0
      %v4316 = vadd.f32 0.0, %v4315
      %v4317 = vpop.f32.mrf.mxu0
      %4318 = vmatprep.mubr.f32.mxu0 0.0
      %4319 = vmatmul.mubr.f32.gmra.mxu0 %v4132
      %v4320 = vpop.f32.mrf.mxu0
      %v4321 = vadd.f32 0.0, %v4320
      %v4322 = vpop.f32.mrf.mxu0
      %4323 = vmatprep.mubr.f32.mxu0 0.0
      %4324 = vmatmul.mubr.f32.gmra.mxu0 %v4135
      %v4325 = vpop.f32.mrf.mxu0
      %v4326 = vadd.f32 0.0, %v4325
      %v4327 = vpop.f32.mrf.mxu0
      %4328 = vmatprep.mubr.f32.mxu0 0.0
      %4329 = vmatmul.mubr.f32.gmra.mxu0 %v4138
      %v4330 = vpop.f32.mrf.mxu0
      %v4331 = vadd.f32 0.0, %v4330
      %v4332 = vpop.f32.mrf.mxu0
      %4333 = vmatprep.mubr.f32.mxu0 0.0
      %4334 = vmatmul.mubr.f32.gmra.mxu0 %v4141
      %v4335 = vpop.f32.mrf.mxu0
      %v4336 = vadd.f32 0.0, %v4335
      %v4337 = vpop.f32.mrf.mxu0
      %4338 = vmatprep.mubr.f32.mxu0 0.0
      %4339 = vmatmul.mubr.f32.gmra.mxu0 %v4144
      %v4340 = vpop.f32.mrf.mxu0
      %v4341 = vadd.f32 0.0, %v4340
      %v4342 = vpop.f32.mrf.mxu0
      %4343 = vmatprep.mubr.f32.mxu0 0.0
      %4344 = vmatmul.mubr.f32.gmra.mxu0 %v4147
      %v4345 = vpop.f32.mrf.mxu0
      %v4346 = vadd.f32 0.0, %v4345
      %v4347 = vpop.f32.mrf.mxu0
      %4348 = vmatprep.mubr.f32.mxu0 0.0
      %4349 = vmatmul.mubr.f32.gmra.mxu0 %v4150
      %v4350 = vpop.f32.mrf.mxu0
      %v4351 = vadd.f32 0.0, %v4350
      %v4352 = vpop.f32.mrf.mxu0
      %4353 = vmatprep.mubr.f32.mxu0 0.0
      %4354 = vmatmul.mubr.f32.gmra.mxu0 %v4153
      %v4355 = vpop.f32.mrf.mxu0
      %v4356 = vadd.f32 0.0, %v4355
      %v4357 = vpop.f32.mrf.mxu0
      %4358 = vmatprep.mubr.f32.mxu0 0.0
      %4359 = vmatmul.mubr.f32.gmra.mxu0 %v4156
      %v4360 = vpop.f32.mrf.mxu0
      %v4361 = vadd.f32 0.0, %v4360
      %v4362 = vpop.f32.mrf.mxu0
      %4363 = vmatprep.mubr.f32.mxu0 0.0
      %4364 = vmatmul.mubr.f32.gmra.mxu0 %v4159
      %v4365 = vpop.f32.mrf.mxu0
      %v4366 = vadd.f32 0.0, %v4365
      %v4367 = vpop.f32.mrf.mxu0
      %4368 = vmatprep.mubr.f32.mxu0 0.0
      %4369 = vmatmul.mubr.f32.gmra.mxu0 %v4162
      %v4370 = vpop.f32.mrf.mxu0
      %v4371 = vadd.f32 0.0, %v4370
      %v4372 = vpop.f32.mrf.mxu0
      %4373 = vmatprep.mubr.f32.mxu0 0.0
      %4374 = vmatmul.mubr.f32.gmra.mxu0 %v4165
      %v4375 = vpop.f32.mrf.mxu0
      %v4376 = vadd.f32 0.0, %v4375
      %v4377 = vpop.f32.mrf.mxu0
      %4378 = vmatprep.mubr.f32.mxu0 0.0
      %4379 = vmatmul.mubr.f32.gmra.mxu0 %v4168
      %v4380 = vpop.f32.mrf.mxu0
      %v4381 = vadd.f32 0.0, %v4380
      %v4382 = vpop.f32.mrf.mxu0
      %4383 = vmatprep.mubr.f32.mxu0 0.0
      %4384 = vmatmul.mubr.f32.gmra.mxu0 %v4171
      %v4385 = vpop.f32.mrf.mxu0
      %v4386 = vadd.f32 0.0, %v4385
      %v4387 = vpop.f32.mrf.mxu0
      %4388 = vmatprep.mubr.f32.mxu0 0.0
      %4389 = vmatmul.mubr.f32.gmra.mxu0 %v4174
      %v4390 = vpop.f32.mrf.mxu0
      %v4391 = vadd.f32 0.0, %v4390
      %v4392 = vpop.f32.mrf.mxu0
      %4393 = vmatprep.mubr.f32.mxu0 0.0
      %4394 = vmatmul.mubr.f32.gmra.mxu0 %v4177
      %v4395 = vpop.f32.mrf.mxu0
      %v4396 = vadd.f32 0.0, %v4395
      %v4397 = vpop.f32.mrf.mxu0
      %4398 = vmatprep.mubr.f32.mxu0 0.0
      %4399 = vmatmul.mubr.f32.gmra.mxu0 %v4180
      %v4400 = vpop.f32.mrf.mxu0
      %v4401 = vadd.f32 0.0, %v4400
      %v4402 = vpop.f32.mrf.mxu0
      %4403 = vmatprep.mubr.f32.mxu0 0.0
      %4404 = vmatmul.mubr.f32.gmra.mxu0 %v4183
      %v4405 = vpop.f32.mrf.mxu0
      %v4406 = vadd.f32 0.0, %v4405
      %v4407 = vpop.f32.mrf.mxu0
      %4408 = vmatprep.mubr.f32.mxu0 0.0
      %4409 = vmatmul.mubr.f32.gmra.mxu0 %v4186
      %v4410 = vpop.f32.mrf.mxu0
      %v4411 = vadd.f32 0.0, %v4410
      %v4412 = vpop.f32.mrf.mxu0
      %4413 = vmatprep.mubr.f32.mxu0 0.0
      %4414 = vmatmul.mubr.f32.gmra.mxu0 %v4189
      %v4415 = vpop.f32.mrf.mxu0
      %v4416 = vadd.f32 0.0, %v4415
      %v4417 = vpop.f32.mrf.mxu0
      %4418 = vdwg.mxu0
      %v4419 = vadd.f32 %v4028, %v4261
      %v4420 = vadd.f32 %v4029, %v4266
      %v4421 = vadd.f32 %v4030, %v4271
      %v4422 = vadd.f32 %v4031, %v4276
      %v4423 = vadd.f32 %v4032, %v4281
      %v4424 = vadd.f32 %v4033, %v4286
      %v4425 = vadd.f32 %v4034, %v4291
      %v4426 = vadd.f32 %v4035, %v4296
      %v4427 = vadd.f32 %v4036, %v4301
      %v4428 = vadd.f32 %v4037, %v4306
      %v4429 = vadd.f32 %v4038, %v4311
      %v4430 = vadd.f32 %v4039, %v4316
      %v4431 = vadd.f32 %v4040, %v4321
      %v4432 = vadd.f32 %v4041, %v4326
      %v4433 = vadd.f32 %v4042, %v4331
      %v4434 = vadd.f32 %v4043, %v4336
      %v4435 = vadd.f32 %v4044, %v4341
      %v4436 = vadd.f32 %v4045, %v4346
      %v4437 = vadd.f32 %v4046, %v4351
      %v4438 = vadd.f32 %v4047, %v4356
      %v4439 = vadd.f32 %v4048, %v4361
      %v4440 = vadd.f32 %v4049, %v4366
      %v4441 = vadd.f32 %v4050, %v4371
      %v4442 = vadd.f32 %v4051, %v4376
      %v4443 = vadd.f32 %v4052, %v4381
      %v4444 = vadd.f32 %v4053, %v4386
      %v4445 = vadd.f32 %v4054, %v4391
      %v4446 = vadd.f32 %v4055, %v4396
      %v4447 = vadd.f32 %v4056, %v4401
      %v4448 = vadd.f32 %v4057, %v4406
      %v4449 = vadd.f32 %v4058, %v4411
      %v4450 = vadd.f32 %v4059, %v4416
      %v4451 = vld [vmem:[%s4060 + $0x1] sm:$0xff]
      %v4452 = vld [vmem:[%s4060 + $0x9] sm:$0xff]
      %v4453 = vld [vmem:[%s4060 + $0x19] sm:$0xff]
      %v4454 = vld [vmem:[%s4060 + $0x21] sm:$0xff]
      %v4455 = vld [vmem:[%s4060 + $0x31] sm:$0xff]
      %v4456 = vld [vmem:[%s4060 + $0x39] sm:$0xff]
      %v4457 = vld [vmem:[%s4060 + $0x49] sm:$0xff]
      %v4458 = vld [vmem:[%s4060 + $0x51] sm:$0xff]
      %v4459 = vld [vmem:[%s4060 + $0x61] sm:$0xff]
      %v4460 = vld [vmem:[%s4060 + $0x69] sm:$0xff]
      %v4461 = vld [vmem:[%s4060 + $0x79] sm:$0xff]
      %v4462 = vld [vmem:[%s4060 + $0x81] sm:$0xff]
      %v4463 = vld [vmem:[%s4060 + $0x91] sm:$0xff]
      %v4464 = vld [vmem:[%s4060 + $0x99] sm:$0xff]
      %v4465 = vld [vmem:[%s4060 + $0xa9] sm:$0xff]
      %v4466 = vld [vmem:[%s4060 + $0xb1] sm:$0xff]
      %v4467 = vld [vmem:[%s4060 + $0xc1] sm:$0xff]
      %v4468 = vld [vmem:[%s4060 + $0xc9] sm:$0xff]
      %v4469 = vld [vmem:[%s4060 + $0xd9] sm:$0xff]
      %v4470 = vld [vmem:[%s4060 + $0xe1] sm:$0xff]
      %v4471 = vld [vmem:[%s4060 + $0xf1] sm:$0xff]
      %v4472 = vld [vmem:[%s4060 + $0xf9] sm:$0xff]
      %v4473 = vld [vmem:[%s4060 + $0x109] sm:$0xff]
      %v4474 = vld [vmem:[%s4060 + $0x111] sm:$0xff]
      %v4475 = vld [vmem:[%s4060 + $0x121] sm:$0xff]
      %v4476 = vld [vmem:[%s4060 + $0x129] sm:$0xff]
      %v4477 = vld [vmem:[%s4060 + $0x139] sm:$0xff]
      %v4478 = vld [vmem:[%s4060 + $0x141] sm:$0xff]
      %v4479 = vld [vmem:[%s4060 + $0x151] sm:$0xff]
      %v4480 = vld [vmem:[%s4060 + $0x159] sm:$0xff]
      %v4481 = vld [vmem:[%s4060 + $0x169] sm:$0xff]
      %v4482 = vld [vmem:[%s4060 + $0x171] sm:$0xff]
      %s4483 = scalar_lea.vmem %s210, 44
      %v4484 = vld [vmem:[%s4483] sm:$0xf]
      %v4486 = vsel %vm289, %v4451, 0
      %v4489 = vsel %vm289, %v4452, 0
      %v4492 = vsel %vm289, %v4453, 0
      %v4495 = vsel %vm289, %v4454, 0
      %v4498 = vsel %vm289, %v4455, 0
      %v4501 = vsel %vm289, %v4456, 0
      %v4504 = vsel %vm289, %v4457, 0
      %v4507 = vsel %vm289, %v4458, 0
      %v4510 = vsel %vm289, %v4459, 0
      %v4513 = vsel %vm289, %v4460, 0
      %v4516 = vsel %vm289, %v4461, 0
      %v4519 = vsel %vm289, %v4462, 0
      %v4522 = vsel %vm289, %v4463, 0
      %v4525 = vsel %vm289, %v4464, 0
      %v4528 = vsel %vm289, %v4465, 0
      %v4531 = vsel %vm289, %v4466, 0
      %v4534 = vsel %vm289, %v4467, 0
      %v4537 = vsel %vm289, %v4468, 0
      %v4540 = vsel %vm289, %v4469, 0
      %v4543 = vsel %vm289, %v4470, 0
      %v4546 = vsel %vm289, %v4471, 0
      %v4549 = vsel %vm289, %v4472, 0
      %v4552 = vsel %vm289, %v4473, 0
      %v4555 = vsel %vm289, %v4474, 0
      %v4558 = vsel %vm289, %v4475, 0
      %v4561 = vsel %vm289, %v4476, 0
      %v4564 = vsel %vm289, %v4477, 0
      %v4567 = vsel %vm289, %v4478, 0
      %v4570 = vsel %vm289, %v4479, 0
      %v4573 = vsel %vm289, %v4480, 0
      %v4576 = vsel %vm289, %v4481, 0
      %v4579 = vsel %vm289, %v4482, 0
      %v4582 = vsel %vm386, %v4484, 0
      %4584 = vmatprep.subr.mxu0 0.0
      %4585 = vmatpush1.msra.mxu0 0.0
      %4586 = vmatprep.subr.mxu0 0.0
      %4587 = vmatpush1.msra.mxu0 0.0
      %4588 = vmatprep.subr.mxu0 0.0
      %4589 = vmatpush1.msra.mxu0 0.0
      %4590 = vmatprep.subr.mxu0 0.0
      %4591 = vmatpush1.msra.mxu0 0.0
      %4592 = vmatprep.subr.mxu0 0.0
      %4593 = vmatpush1.msra.mxu0 0.0
      %4594 = vmatprep.subr.mxu0 0.0
      %4595 = vmatpush1.msra.mxu0 0.0
      %4596 = vmatprep.subr.mxu0 0.0
      %4597 = vmatpush1.msra.mxu0 0.0
      %4598 = vmatprep.subr.mxu0 0.0
      %4599 = vmatpush1.msra.mxu0 0.0
      %4600 = vmatprep.subr.mxu0 0.0
      %4601 = vmatpush1.msra.mxu0 0.0
      %4602 = vmatprep.subr.mxu0 0.0
      %4603 = vmatpush1.msra.mxu0 0.0
      %4604 = vmatprep.subr.mxu0 0.0
      %4605 = vmatpush1.msra.mxu0 0.0
      %4606 = vmatprep.subr.mxu0 0.0
      %4607 = vmatpush1.msra.mxu0 0.0
      %4608 = vmatprep.subr.mxu0 0.0
      %4609 = vmatpush1.msra.mxu0 0.0
      %4610 = vmatprep.subr.mxu0 0.0
      %4611 = vmatpush1.msra.mxu0 0.0
      %4612 = vmatprep.subr.mxu0 0.0
      %4613 = vmatpush1.msra.mxu0 0.0
      %4614 = vmatprep.subr.mxu0 0.0
      %4615 = vmatpush1.msra.mxu0 %v4582
      %4616 = vmatprep.subr.mxu0 0.0
      %4617 = vmatpush2.msra.mxu0 0.0
      %4618 = vmatprep.subr.mxu0 0.0
      %4619 = vmatpush2.msra.mxu0 0.0
      %4620 = vmatprep.subr.mxu0 0.0
      %4621 = vmatpush2.msra.mxu0 0.0
      %4622 = vmatprep.subr.mxu0 0.0
      %4623 = vmatpush2.msra.mxu0 0.0
      %4624 = vmatprep.subr.mxu0 0.0
      %4625 = vmatpush2.msra.mxu0 0.0
      %4626 = vmatprep.subr.mxu0 0.0
      %4627 = vmatpush2.msra.mxu0 0.0
      %4628 = vmatprep.subr.mxu0 0.0
      %4629 = vmatpush2.msra.mxu0 0.0
      %4630 = vmatprep.subr.mxu0 0.0
      %4631 = vmatpush2.msra.mxu0 0.0
      %4632 = vmatprep.subr.mxu0 0.0
      %4633 = vmatpush2.msra.mxu0 0.0
      %4634 = vmatprep.subr.mxu0 0.0
      %4635 = vmatpush2.msra.mxu0 0.0
      %4636 = vmatprep.subr.mxu0 0.0
      %4637 = vmatpush2.msra.mxu0 0.0
      %4638 = vmatprep.subr.mxu0 0.0
      %4639 = vmatpush2.msra.mxu0 0.0
      %4640 = vmatprep.subr.mxu0 0.0
      %4641 = vmatpush2.msra.mxu0 0.0
      %4642 = vmatprep.subr.mxu0 0.0
      %4643 = vmatpush2.msra.mxu0 0.0
      %4644 = vmatprep.subr.mxu0 0.0
      %4645 = vmatpush2.msra.mxu0 0.0
      %4646 = vmatprep.subr.mxu0 0.0
      %4647 = vmatpush2.msra.mxu0 0.0
      %4648 = vmatprep.mubr.f32.mxu0 0.0
      %4649 = vmatmul.mubr.f32.gmra.mxu0 %v4486
      %v4650 = vpop.f32.mrf.mxu0
      %v4651 = vadd.f32 0.0, %v4650
      %v4652 = vpop.f32.mrf.mxu0
      %4653 = vmatprep.mubr.f32.mxu0 0.0
      %4654 = vmatmul.mubr.f32.gmra.mxu0 %v4489
      %v4655 = vpop.f32.mrf.mxu0
      %v4656 = vadd.f32 0.0, %v4655
      %v4657 = vpop.f32.mrf.mxu0
      %4658 = vmatprep.mubr.f32.mxu0 0.0
      %4659 = vmatmul.mubr.f32.gmra.mxu0 %v4492
      %v4660 = vpop.f32.mrf.mxu0
      %v4661 = vadd.f32 0.0, %v4660
      %v4662 = vpop.f32.mrf.mxu0
      %4663 = vmatprep.mubr.f32.mxu0 0.0
      %4664 = vmatmul.mubr.f32.gmra.mxu0 %v4495
      %v4665 = vpop.f32.mrf.mxu0
      %v4666 = vadd.f32 0.0, %v4665
      %v4667 = vpop.f32.mrf.mxu0
      %4668 = vmatprep.mubr.f32.mxu0 0.0
      %4669 = vmatmul.mubr.f32.gmra.mxu0 %v4498
      %v4670 = vpop.f32.mrf.mxu0
      %v4671 = vadd.f32 0.0, %v4670
      %v4672 = vpop.f32.mrf.mxu0
      %4673 = vmatprep.mubr.f32.mxu0 0.0
      %4674 = vmatmul.mubr.f32.gmra.mxu0 %v4501
      %v4675 = vpop.f32.mrf.mxu0
      %v4676 = vadd.f32 0.0, %v4675
      %v4677 = vpop.f32.mrf.mxu0
      %4678 = vmatprep.mubr.f32.mxu0 0.0
      %4679 = vmatmul.mubr.f32.gmra.mxu0 %v4504
      %v4680 = vpop.f32.mrf.mxu0
      %v4681 = vadd.f32 0.0, %v4680
      %v4682 = vpop.f32.mrf.mxu0
      %4683 = vmatprep.mubr.f32.mxu0 0.0
      %4684 = vmatmul.mubr.f32.gmra.mxu0 %v4507
      %v4685 = vpop.f32.mrf.mxu0
      %v4686 = vadd.f32 0.0, %v4685
      %v4687 = vpop.f32.mrf.mxu0
      %4688 = vmatprep.mubr.f32.mxu0 0.0
      %4689 = vmatmul.mubr.f32.gmra.mxu0 %v4510
      %v4690 = vpop.f32.mrf.mxu0
      %v4691 = vadd.f32 0.0, %v4690
      %v4692 = vpop.f32.mrf.mxu0
      %4693 = vmatprep.mubr.f32.mxu0 0.0
      %4694 = vmatmul.mubr.f32.gmra.mxu0 %v4513
      %v4695 = vpop.f32.mrf.mxu0
      %v4696 = vadd.f32 0.0, %v4695
      %v4697 = vpop.f32.mrf.mxu0
      %4698 = vmatprep.mubr.f32.mxu0 0.0
      %4699 = vmatmul.mubr.f32.gmra.mxu0 %v4516
      %v4700 = vpop.f32.mrf.mxu0
      %v4701 = vadd.f32 0.0, %v4700
      %v4702 = vpop.f32.mrf.mxu0
      %4703 = vmatprep.mubr.f32.mxu0 0.0
      %4704 = vmatmul.mubr.f32.gmra.mxu0 %v4519
      %v4705 = vpop.f32.mrf.mxu0
      %v4706 = vadd.f32 0.0, %v4705
      %v4707 = vpop.f32.mrf.mxu0
      %4708 = vmatprep.mubr.f32.mxu0 0.0
      %4709 = vmatmul.mubr.f32.gmra.mxu0 %v4522
      %v4710 = vpop.f32.mrf.mxu0
      %v4711 = vadd.f32 0.0, %v4710
      %v4712 = vpop.f32.mrf.mxu0
      %4713 = vmatprep.mubr.f32.mxu0 0.0
      %4714 = vmatmul.mubr.f32.gmra.mxu0 %v4525
      %v4715 = vpop.f32.mrf.mxu0
      %v4716 = vadd.f32 0.0, %v4715
      %v4717 = vpop.f32.mrf.mxu0
      %4718 = vmatprep.mubr.f32.mxu0 0.0
      %4719 = vmatmul.mubr.f32.gmra.mxu0 %v4528
      %v4720 = vpop.f32.mrf.mxu0
      %v4721 = vadd.f32 0.0, %v4720
      %v4722 = vpop.f32.mrf.mxu0
      %4723 = vmatprep.mubr.f32.mxu0 0.0
      %4724 = vmatmul.mubr.f32.gmra.mxu0 %v4531
      %v4725 = vpop.f32.mrf.mxu0
      %v4726 = vadd.f32 0.0, %v4725
      %v4727 = vpop.f32.mrf.mxu0
      %4728 = vmatprep.mubr.f32.mxu0 0.0
      %4729 = vmatmul.mubr.f32.gmra.mxu0 %v4534
      %v4730 = vpop.f32.mrf.mxu0
      %v4731 = vadd.f32 0.0, %v4730
      %v4732 = vpop.f32.mrf.mxu0
      %4733 = vmatprep.mubr.f32.mxu0 0.0
      %4734 = vmatmul.mubr.f32.gmra.mxu0 %v4537
      %v4735 = vpop.f32.mrf.mxu0
      %v4736 = vadd.f32 0.0, %v4735
      %v4737 = vpop.f32.mrf.mxu0
      %4738 = vmatprep.mubr.f32.mxu0 0.0
      %4739 = vmatmul.mubr.f32.gmra.mxu0 %v4540
      %v4740 = vpop.f32.mrf.mxu0
      %v4741 = vadd.f32 0.0, %v4740
      %v4742 = vpop.f32.mrf.mxu0
      %4743 = vmatprep.mubr.f32.mxu0 0.0
      %4744 = vmatmul.mubr.f32.gmra.mxu0 %v4543
      %v4745 = vpop.f32.mrf.mxu0
      %v4746 = vadd.f32 0.0, %v4745
      %v4747 = vpop.f32.mrf.mxu0
      %4748 = vmatprep.mubr.f32.mxu0 0.0
      %4749 = vmatmul.mubr.f32.gmra.mxu0 %v4546
      %v4750 = vpop.f32.mrf.mxu0
      %v4751 = vadd.f32 0.0, %v4750
      %v4752 = vpop.f32.mrf.mxu0
      %4753 = vmatprep.mubr.f32.mxu0 0.0
      %4754 = vmatmul.mubr.f32.gmra.mxu0 %v4549
      %v4755 = vpop.f32.mrf.mxu0
      %v4756 = vadd.f32 0.0, %v4755
      %v4757 = vpop.f32.mrf.mxu0
      %4758 = vmatprep.mubr.f32.mxu0 0.0
      %4759 = vmatmul.mubr.f32.gmra.mxu0 %v4552
      %v4760 = vpop.f32.mrf.mxu0
      %v4761 = vadd.f32 0.0, %v4760
      %v4762 = vpop.f32.mrf.mxu0
      %4763 = vmatprep.mubr.f32.mxu0 0.0
      %4764 = vmatmul.mubr.f32.gmra.mxu0 %v4555
      %v4765 = vpop.f32.mrf.mxu0
      %v4766 = vadd.f32 0.0, %v4765
      %v4767 = vpop.f32.mrf.mxu0
      %4768 = vmatprep.mubr.f32.mxu0 0.0
      %4769 = vmatmul.mubr.f32.gmra.mxu0 %v4558
      %v4770 = vpop.f32.mrf.mxu0
      %v4771 = vadd.f32 0.0, %v4770
      %v4772 = vpop.f32.mrf.mxu0
      %4773 = vmatprep.mubr.f32.mxu0 0.0
      %4774 = vmatmul.mubr.f32.gmra.mxu0 %v4561
      %v4775 = vpop.f32.mrf.mxu0
      %v4776 = vadd.f32 0.0, %v4775
      %v4777 = vpop.f32.mrf.mxu0
      %4778 = vmatprep.mubr.f32.mxu0 0.0
      %4779 = vmatmul.mubr.f32.gmra.mxu0 %v4564
      %v4780 = vpop.f32.mrf.mxu0
      %v4781 = vadd.f32 0.0, %v4780
      %v4782 = vpop.f32.mrf.mxu0
      %4783 = vmatprep.mubr.f32.mxu0 0.0
      %4784 = vmatmul.mubr.f32.gmra.mxu0 %v4567
      %v4785 = vpop.f32.mrf.mxu0
      %v4786 = vadd.f32 0.0, %v4785
      %v4787 = vpop.f32.mrf.mxu0
      %4788 = vmatprep.mubr.f32.mxu0 0.0
      %4789 = vmatmul.mubr.f32.gmra.mxu0 %v4570
      %v4790 = vpop.f32.mrf.mxu0
      %v4791 = vadd.f32 0.0, %v4790
      %v4792 = vpop.f32.mrf.mxu0
      %4793 = vmatprep.mubr.f32.mxu0 0.0
      %4794 = vmatmul.mubr.f32.gmra.mxu0 %v4573
      %v4795 = vpop.f32.mrf.mxu0
      %v4796 = vadd.f32 0.0, %v4795
      %v4797 = vpop.f32.mrf.mxu0
      %4798 = vmatprep.mubr.f32.mxu0 0.0
      %4799 = vmatmul.mubr.f32.gmra.mxu0 %v4576
      %v4800 = vpop.f32.mrf.mxu0
      %v4801 = vadd.f32 0.0, %v4800
      %v4802 = vpop.f32.mrf.mxu0
      %4803 = vmatprep.mubr.f32.mxu0 0.0
      %4804 = vmatmul.mubr.f32.gmra.mxu0 %v4579
      %v4805 = vpop.f32.mrf.mxu0
      %v4806 = vadd.f32 0.0, %v4805
      %v4807 = vpop.f32.mrf.mxu0
      %4808 = vdwg.mxu0
      %v4809 = vadd.f32 %v4419, %v4651
      %v4810 = vadd.f32 %v4420, %v4656
      %v4811 = vadd.f32 %v4421, %v4661
      %v4812 = vadd.f32 %v4422, %v4666
      %v4813 = vadd.f32 %v4423, %v4671
      %v4814 = vadd.f32 %v4424, %v4676
      %v4815 = vadd.f32 %v4425, %v4681
      %v4816 = vadd.f32 %v4426, %v4686
      %v4817 = vadd.f32 %v4427, %v4691
      %v4818 = vadd.f32 %v4428, %v4696
      %v4819 = vadd.f32 %v4429, %v4701
      %v4820 = vadd.f32 %v4430, %v4706
      %v4821 = vadd.f32 %v4431, %v4711
      %v4822 = vadd.f32 %v4432, %v4716
      %v4823 = vadd.f32 %v4433, %v4721
      %v4824 = vadd.f32 %v4434, %v4726
      %v4825 = vadd.f32 %v4435, %v4731
      %v4826 = vadd.f32 %v4436, %v4736
      %v4827 = vadd.f32 %v4437, %v4741
      %v4828 = vadd.f32 %v4438, %v4746
      %v4829 = vadd.f32 %v4439, %v4751
      %v4830 = vadd.f32 %v4440, %v4756
      %v4831 = vadd.f32 %v4441, %v4761
      %v4832 = vadd.f32 %v4442, %v4766
      %v4833 = vadd.f32 %v4443, %v4771
      %v4834 = vadd.f32 %v4444, %v4776
      %v4835 = vadd.f32 %v4445, %v4781
      %v4836 = vadd.f32 %v4446, %v4786
      %v4837 = vadd.f32 %v4447, %v4791
      %v4838 = vadd.f32 %v4448, %v4796
      %v4839 = vadd.f32 %v4449, %v4801
      %v4840 = vadd.f32 %v4450, %v4806
      %v4841 = vld [vmem:[%s4060 + $0x2] sm:$0xff]
      %v4842 = vld [vmem:[%s4060 + $0xa] sm:$0xff]
      %v4843 = vld [vmem:[%s4060 + $0x1a] sm:$0xff]
      %v4844 = vld [vmem:[%s4060 + $0x22] sm:$0xff]
      %v4845 = vld [vmem:[%s4060 + $0x32] sm:$0xff]
      %v4846 = vld [vmem:[%s4060 + $0x3a] sm:$0xff]
      %v4847 = vld [vmem:[%s4060 + $0x4a] sm:$0xff]
      %v4848 = vld [vmem:[%s4060 + $0x52] sm:$0xff]
      %v4849 = vld [vmem:[%s4060 + $0x62] sm:$0xff]
      %v4850 = vld [vmem:[%s4060 + $0x6a] sm:$0xff]
      %v4851 = vld [vmem:[%s4060 + $0x7a] sm:$0xff]
      %v4852 = vld [vmem:[%s4060 + $0x82] sm:$0xff]
      %v4853 = vld [vmem:[%s4060 + $0x92] sm:$0xff]
      %v4854 = vld [vmem:[%s4060 + $0x9a] sm:$0xff]
      %v4855 = vld [vmem:[%s4060 + $0xaa] sm:$0xff]
      %v4856 = vld [vmem:[%s4060 + $0xb2] sm:$0xff]
      %v4857 = vld [vmem:[%s4060 + $0xc2] sm:$0xff]
      %v4858 = vld [vmem:[%s4060 + $0xca] sm:$0xff]
      %v4859 = vld [vmem:[%s4060 + $0xda] sm:$0xff]
      %v4860 = vld [vmem:[%s4060 + $0xe2] sm:$0xff]
      %v4861 = vld [vmem:[%s4060 + $0xf2] sm:$0xff]
      %v4862 = vld [vmem:[%s4060 + $0xfa] sm:$0xff]
      %v4863 = vld [vmem:[%s4060 + $0x10a] sm:$0xff]
      %v4864 = vld [vmem:[%s4060 + $0x112] sm:$0xff]
      %v4865 = vld [vmem:[%s4060 + $0x122] sm:$0xff]
      %v4866 = vld [vmem:[%s4060 + $0x12a] sm:$0xff]
      %v4867 = vld [vmem:[%s4060 + $0x13a] sm:$0xff]
      %v4868 = vld [vmem:[%s4060 + $0x142] sm:$0xff]
      %v4869 = vld [vmem:[%s4060 + $0x152] sm:$0xff]
      %v4870 = vld [vmem:[%s4060 + $0x15a] sm:$0xff]
      %v4871 = vld [vmem:[%s4060 + $0x16a] sm:$0xff]
      %v4872 = vld [vmem:[%s4060 + $0x172] sm:$0xff]
      %s4873 = scalar_lea.vmem %s210, 48
      %v4874 = vld [vmem:[%s4873] sm:$0xf]
      %v4876 = vsel %vm289, %v4841, 0
      %v4879 = vsel %vm289, %v4842, 0
      %v4882 = vsel %vm289, %v4843, 0
      %v4885 = vsel %vm289, %v4844, 0
      %v4888 = vsel %vm289, %v4845, 0
      %v4891 = vsel %vm289, %v4846, 0
      %v4894 = vsel %vm289, %v4847, 0
      %v4897 = vsel %vm289, %v4848, 0
      %v4900 = vsel %vm289, %v4849, 0
      %v4903 = vsel %vm289, %v4850, 0
      %v4906 = vsel %vm289, %v4851, 0
      %v4909 = vsel %vm289, %v4852, 0
      %v4912 = vsel %vm289, %v4853, 0
      %v4915 = vsel %vm289, %v4854, 0
      %v4918 = vsel %vm289, %v4855, 0
      %v4921 = vsel %vm289, %v4856, 0
      %v4924 = vsel %vm289, %v4857, 0
      %v4927 = vsel %vm289, %v4858, 0
      %v4930 = vsel %vm289, %v4859, 0
      %v4933 = vsel %vm289, %v4860, 0
      %v4936 = vsel %vm289, %v4861, 0
      %v4939 = vsel %vm289, %v4862, 0
      %v4942 = vsel %vm289, %v4863, 0
      %v4945 = vsel %vm289, %v4864, 0
      %v4948 = vsel %vm289, %v4865, 0
      %v4951 = vsel %vm289, %v4866, 0
      %v4954 = vsel %vm289, %v4867, 0
      %v4957 = vsel %vm289, %v4868, 0
      %v4960 = vsel %vm289, %v4869, 0
      %v4963 = vsel %vm289, %v4870, 0
      %v4966 = vsel %vm289, %v4871, 0
      %v4969 = vsel %vm289, %v4872, 0
      %v4972 = vsel %vm386, %v4874, 0
      %4974 = vmatprep.subr.mxu0 0.0
      %4975 = vmatpush1.msra.mxu0 0.0
      %4976 = vmatprep.subr.mxu0 0.0
      %4977 = vmatpush1.msra.mxu0 0.0
      %4978 = vmatprep.subr.mxu0 0.0
      %4979 = vmatpush1.msra.mxu0 0.0
      %4980 = vmatprep.subr.mxu0 0.0
      %4981 = vmatpush1.msra.mxu0 0.0
      %4982 = vmatprep.subr.mxu0 0.0
      %4983 = vmatpush1.msra.mxu0 0.0
      %4984 = vmatprep.subr.mxu0 0.0
      %4985 = vmatpush1.msra.mxu0 0.0
      %4986 = vmatprep.subr.mxu0 0.0
      %4987 = vmatpush1.msra.mxu0 0.0
      %4988 = vmatprep.subr.mxu0 0.0
      %4989 = vmatpush1.msra.mxu0 0.0
      %4990 = vmatprep.subr.mxu0 0.0
      %4991 = vmatpush1.msra.mxu0 0.0
      %4992 = vmatprep.subr.mxu0 0.0
      %4993 = vmatpush1.msra.mxu0 0.0
      %4994 = vmatprep.subr.mxu0 0.0
      %4995 = vmatpush1.msra.mxu0 0.0
      %4996 = vmatprep.subr.mxu0 0.0
      %4997 = vmatpush1.msra.mxu0 0.0
      %4998 = vmatprep.subr.mxu0 0.0
      %4999 = vmatpush1.msra.mxu0 0.0
      %5000 = vmatprep.subr.mxu0 0.0
      %5001 = vmatpush1.msra.mxu0 0.0
      %5002 = vmatprep.subr.mxu0 0.0
      %5003 = vmatpush1.msra.mxu0 0.0
      %5004 = vmatprep.subr.mxu0 0.0
      %5005 = vmatpush1.msra.mxu0 %v4972
      %5006 = vmatprep.subr.mxu0 0.0
      %5007 = vmatpush2.msra.mxu0 0.0
      %5008 = vmatprep.subr.mxu0 0.0
      %5009 = vmatpush2.msra.mxu0 0.0
      %5010 = vmatprep.subr.mxu0 0.0
      %5011 = vmatpush2.msra.mxu0 0.0
      %5012 = vmatprep.subr.mxu0 0.0
      %5013 = vmatpush2.msra.mxu0 0.0
      %5014 = vmatprep.subr.mxu0 0.0
      %5015 = vmatpush2.msra.mxu0 0.0
      %5016 = vmatprep.subr.mxu0 0.0
      %5017 = vmatpush2.msra.mxu0 0.0
      %5018 = vmatprep.subr.mxu0 0.0
      %5019 = vmatpush2.msra.mxu0 0.0
      %5020 = vmatprep.subr.mxu0 0.0
      %5021 = vmatpush2.msra.mxu0 0.0
      %5022 = vmatprep.subr.mxu0 0.0
      %5023 = vmatpush2.msra.mxu0 0.0
      %5024 = vmatprep.subr.mxu0 0.0
      %5025 = vmatpush2.msra.mxu0 0.0
      %5026 = vmatprep.subr.mxu0 0.0
      %5027 = vmatpush2.msra.mxu0 0.0
      %5028 = vmatprep.subr.mxu0 0.0
      %5029 = vmatpush2.msra.mxu0 0.0
      %5030 = vmatprep.subr.mxu0 0.0
      %5031 = vmatpush2.msra.mxu0 0.0
      %5032 = vmatprep.subr.mxu0 0.0
      %5033 = vmatpush2.msra.mxu0 0.0
      %5034 = vmatprep.subr.mxu0 0.0
      %5035 = vmatpush2.msra.mxu0 0.0
      %5036 = vmatprep.subr.mxu0 0.0
      %5037 = vmatpush2.msra.mxu0 0.0
      %5038 = vmatprep.mubr.f32.mxu0 0.0
      %5039 = vmatmul.mubr.f32.gmra.mxu0 %v4876
      %v5040 = vpop.f32.mrf.mxu0
      %v5041 = vadd.f32 0.0, %v5040
      %v5042 = vpop.f32.mrf.mxu0
      %5043 = vmatprep.mubr.f32.mxu0 0.0
      %5044 = vmatmul.mubr.f32.gmra.mxu0 %v4879
      %v5045 = vpop.f32.mrf.mxu0
      %v5046 = vadd.f32 0.0, %v5045
      %v5047 = vpop.f32.mrf.mxu0
      %5048 = vmatprep.mubr.f32.mxu0 0.0
      %5049 = vmatmul.mubr.f32.gmra.mxu0 %v4882
      %v5050 = vpop.f32.mrf.mxu0
      %v5051 = vadd.f32 0.0, %v5050
      %v5052 = vpop.f32.mrf.mxu0
      %5053 = vmatprep.mubr.f32.mxu0 0.0
      %5054 = vmatmul.mubr.f32.gmra.mxu0 %v4885
      %v5055 = vpop.f32.mrf.mxu0
      %v5056 = vadd.f32 0.0, %v5055
      %v5057 = vpop.f32.mrf.mxu0
      %5058 = vmatprep.mubr.f32.mxu0 0.0
      %5059 = vmatmul.mubr.f32.gmra.mxu0 %v4888
      %v5060 = vpop.f32.mrf.mxu0
      %v5061 = vadd.f32 0.0, %v5060
      %v5062 = vpop.f32.mrf.mxu0
      %5063 = vmatprep.mubr.f32.mxu0 0.0
      %5064 = vmatmul.mubr.f32.gmra.mxu0 %v4891
      %v5065 = vpop.f32.mrf.mxu0
      %v5066 = vadd.f32 0.0, %v5065
      %v5067 = vpop.f32.mrf.mxu0
      %5068 = vmatprep.mubr.f32.mxu0 0.0
      %5069 = vmatmul.mubr.f32.gmra.mxu0 %v4894
      %v5070 = vpop.f32.mrf.mxu0
      %v5071 = vadd.f32 0.0, %v5070
      %v5072 = vpop.f32.mrf.mxu0
      %5073 = vmatprep.mubr.f32.mxu0 0.0
      %5074 = vmatmul.mubr.f32.gmra.mxu0 %v4897
      %v5075 = vpop.f32.mrf.mxu0
      %v5076 = vadd.f32 0.0, %v5075
      %v5077 = vpop.f32.mrf.mxu0
      %5078 = vmatprep.mubr.f32.mxu0 0.0
      %5079 = vmatmul.mubr.f32.gmra.mxu0 %v4900
      %v5080 = vpop.f32.mrf.mxu0
      %v5081 = vadd.f32 0.0, %v5080
      %v5082 = vpop.f32.mrf.mxu0
      %5083 = vmatprep.mubr.f32.mxu0 0.0
      %5084 = vmatmul.mubr.f32.gmra.mxu0 %v4903
      %v5085 = vpop.f32.mrf.mxu0
      %v5086 = vadd.f32 0.0, %v5085
      %v5087 = vpop.f32.mrf.mxu0
      %5088 = vmatprep.mubr.f32.mxu0 0.0
      %5089 = vmatmul.mubr.f32.gmra.mxu0 %v4906
      %v5090 = vpop.f32.mrf.mxu0
      %v5091 = vadd.f32 0.0, %v5090
      %v5092 = vpop.f32.mrf.mxu0
      %5093 = vmatprep.mubr.f32.mxu0 0.0
      %5094 = vmatmul.mubr.f32.gmra.mxu0 %v4909
      %v5095 = vpop.f32.mrf.mxu0
      %v5096 = vadd.f32 0.0, %v5095
      %v5097 = vpop.f32.mrf.mxu0
      %5098 = vmatprep.mubr.f32.mxu0 0.0
      %5099 = vmatmul.mubr.f32.gmra.mxu0 %v4912
      %v5100 = vpop.f32.mrf.mxu0
      %v5101 = vadd.f32 0.0, %v5100
      %v5102 = vpop.f32.mrf.mxu0
      %5103 = vmatprep.mubr.f32.mxu0 0.0
      %5104 = vmatmul.mubr.f32.gmra.mxu0 %v4915
      %v5105 = vpop.f32.mrf.mxu0
      %v5106 = vadd.f32 0.0, %v5105
      %v5107 = vpop.f32.mrf.mxu0
      %5108 = vmatprep.mubr.f32.mxu0 0.0
      %5109 = vmatmul.mubr.f32.gmra.mxu0 %v4918
      %v5110 = vpop.f32.mrf.mxu0
      %v5111 = vadd.f32 0.0, %v5110
      %v5112 = vpop.f32.mrf.mxu0
      %5113 = vmatprep.mubr.f32.mxu0 0.0
      %5114 = vmatmul.mubr.f32.gmra.mxu0 %v4921
      %v5115 = vpop.f32.mrf.mxu0
      %v5116 = vadd.f32 0.0, %v5115
      %v5117 = vpop.f32.mrf.mxu0
      %5118 = vmatprep.mubr.f32.mxu0 0.0
      %5119 = vmatmul.mubr.f32.gmra.mxu0 %v4924
      %v5120 = vpop.f32.mrf.mxu0
      %v5121 = vadd.f32 0.0, %v5120
      %v5122 = vpop.f32.mrf.mxu0
      %5123 = vmatprep.mubr.f32.mxu0 0.0
      %5124 = vmatmul.mubr.f32.gmra.mxu0 %v4927
      %v5125 = vpop.f32.mrf.mxu0
      %v5126 = vadd.f32 0.0, %v5125
      %v5127 = vpop.f32.mrf.mxu0
      %5128 = vmatprep.mubr.f32.mxu0 0.0
      %5129 = vmatmul.mubr.f32.gmra.mxu0 %v4930
      %v5130 = vpop.f32.mrf.mxu0
      %v5131 = vadd.f32 0.0, %v5130
      %v5132 = vpop.f32.mrf.mxu0
      %5133 = vmatprep.mubr.f32.mxu0 0.0
      %5134 = vmatmul.mubr.f32.gmra.mxu0 %v4933
      %v5135 = vpop.f32.mrf.mxu0
      %v5136 = vadd.f32 0.0, %v5135
      %v5137 = vpop.f32.mrf.mxu0
      %5138 = vmatprep.mubr.f32.mxu0 0.0
      %5139 = vmatmul.mubr.f32.gmra.mxu0 %v4936
      %v5140 = vpop.f32.mrf.mxu0
      %v5141 = vadd.f32 0.0, %v5140
      %v5142 = vpop.f32.mrf.mxu0
      %5143 = vmatprep.mubr.f32.mxu0 0.0
      %5144 = vmatmul.mubr.f32.gmra.mxu0 %v4939
      %v5145 = vpop.f32.mrf.mxu0
      %v5146 = vadd.f32 0.0, %v5145
      %v5147 = vpop.f32.mrf.mxu0
      %5148 = vmatprep.mubr.f32.mxu0 0.0
      %5149 = vmatmul.mubr.f32.gmra.mxu0 %v4942
      %v5150 = vpop.f32.mrf.mxu0
      %v5151 = vadd.f32 0.0, %v5150
      %v5152 = vpop.f32.mrf.mxu0
      %5153 = vmatprep.mubr.f32.mxu0 0.0
      %5154 = vmatmul.mubr.f32.gmra.mxu0 %v4945
      %v5155 = vpop.f32.mrf.mxu0
      %v5156 = vadd.f32 0.0, %v5155
      %v5157 = vpop.f32.mrf.mxu0
      %5158 = vmatprep.mubr.f32.mxu0 0.0
      %5159 = vmatmul.mubr.f32.gmra.mxu0 %v4948
      %v5160 = vpop.f32.mrf.mxu0
      %v5161 = vadd.f32 0.0, %v5160
      %v5162 = vpop.f32.mrf.mxu0
      %5163 = vmatprep.mubr.f32.mxu0 0.0
      %5164 = vmatmul.mubr.f32.gmra.mxu0 %v4951
      %v5165 = vpop.f32.mrf.mxu0
      %v5166 = vadd.f32 0.0, %v5165
      %v5167 = vpop.f32.mrf.mxu0
      %5168 = vmatprep.mubr.f32.mxu0 0.0
      %5169 = vmatmul.mubr.f32.gmra.mxu0 %v4954
      %v5170 = vpop.f32.mrf.mxu0
      %v5171 = vadd.f32 0.0, %v5170
      %v5172 = vpop.f32.mrf.mxu0
      %5173 = vmatprep.mubr.f32.mxu0 0.0
      %5174 = vmatmul.mubr.f32.gmra.mxu0 %v4957
      %v5175 = vpop.f32.mrf.mxu0
      %v5176 = vadd.f32 0.0, %v5175
      %v5177 = vpop.f32.mrf.mxu0
      %5178 = vmatprep.mubr.f32.mxu0 0.0
      %5179 = vmatmul.mubr.f32.gmra.mxu0 %v4960
      %v5180 = vpop.f32.mrf.mxu0
      %v5181 = vadd.f32 0.0, %v5180
      %v5182 = vpop.f32.mrf.mxu0
      %5183 = vmatprep.mubr.f32.mxu0 0.0
      %5184 = vmatmul.mubr.f32.gmra.mxu0 %v4963
      %v5185 = vpop.f32.mrf.mxu0
      %v5186 = vadd.f32 0.0, %v5185
      %v5187 = vpop.f32.mrf.mxu0
      %5188 = vmatprep.mubr.f32.mxu0 0.0
      %5189 = vmatmul.mubr.f32.gmra.mxu0 %v4966
      %v5190 = vpop.f32.mrf.mxu0
      %v5191 = vadd.f32 0.0, %v5190
      %v5192 = vpop.f32.mrf.mxu0
      %5193 = vmatprep.mubr.f32.mxu0 0.0
      %5194 = vmatmul.mubr.f32.gmra.mxu0 %v4969
      %v5195 = vpop.f32.mrf.mxu0
      %v5196 = vadd.f32 0.0, %v5195
      %v5197 = vpop.f32.mrf.mxu0
      %5198 = vdwg.mxu0
      %v5199 = vadd.f32 %v4809, %v5041
      %v5200 = vadd.f32 %v4810, %v5046
      %v5201 = vadd.f32 %v4811, %v5051
      %v5202 = vadd.f32 %v4812, %v5056
      %v5203 = vadd.f32 %v4813, %v5061
      %v5204 = vadd.f32 %v4814, %v5066
      %v5205 = vadd.f32 %v4815, %v5071
      %v5206 = vadd.f32 %v4816, %v5076
      %v5207 = vadd.f32 %v4817, %v5081
      %v5208 = vadd.f32 %v4818, %v5086
      %v5209 = vadd.f32 %v4819, %v5091
      %v5210 = vadd.f32 %v4820, %v5096
      %v5211 = vadd.f32 %v4821, %v5101
      %v5212 = vadd.f32 %v4822, %v5106
      %v5213 = vadd.f32 %v4823, %v5111
      %v5214 = vadd.f32 %v4824, %v5116
      %v5215 = vadd.f32 %v4825, %v5121
      %v5216 = vadd.f32 %v4826, %v5126
      %v5217 = vadd.f32 %v4827, %v5131
      %v5218 = vadd.f32 %v4828, %v5136
      %v5219 = vadd.f32 %v4829, %v5141
      %v5220 = vadd.f32 %v4830, %v5146
      %v5221 = vadd.f32 %v4831, %v5151
      %v5222 = vadd.f32 %v4832, %v5156
      %v5223 = vadd.f32 %v4833, %v5161
      %v5224 = vadd.f32 %v4834, %v5166
      %v5225 = vadd.f32 %v4835, %v5171
      %v5226 = vadd.f32 %v4836, %v5176
      %v5227 = vadd.f32 %v4837, %v5181
      %v5228 = vadd.f32 %v4838, %v5186
      %v5229 = vadd.f32 %v4839, %v5191
      %v5230 = vadd.f32 %v4840, %v5196
      %v5231 = vld [vmem:[%s4060 + $0x3] sm:$0xff]
      %v5232 = vld [vmem:[%s4060 + $0xb] sm:$0xff]
      %v5233 = vld [vmem:[%s4060 + $0x1b] sm:$0xff]
      %v5234 = vld [vmem:[%s4060 + $0x23] sm:$0xff]
      %v5235 = vld [vmem:[%s4060 + $0x33] sm:$0xff]
      %v5236 = vld [vmem:[%s4060 + $0x3b] sm:$0xff]
      %v5237 = vld [vmem:[%s4060 + $0x4b] sm:$0xff]
      %v5238 = vld [vmem:[%s4060 + $0x53] sm:$0xff]
      %v5239 = vld [vmem:[%s4060 + $0x63] sm:$0xff]
      %v5240 = vld [vmem:[%s4060 + $0x6b] sm:$0xff]
      %v5241 = vld [vmem:[%s4060 + $0x7b] sm:$0xff]
      %v5242 = vld [vmem:[%s4060 + $0x83] sm:$0xff]
      %v5243 = vld [vmem:[%s4060 + $0x93] sm:$0xff]
      %v5244 = vld [vmem:[%s4060 + $0x9b] sm:$0xff]
      %v5245 = vld [vmem:[%s4060 + $0xab] sm:$0xff]
      %v5246 = vld [vmem:[%s4060 + $0xb3] sm:$0xff]
      %v5247 = vld [vmem:[%s4060 + $0xc3] sm:$0xff]
      %v5248 = vld [vmem:[%s4060 + $0xcb] sm:$0xff]
      %v5249 = vld [vmem:[%s4060 + $0xdb] sm:$0xff]
      %v5250 = vld [vmem:[%s4060 + $0xe3] sm:$0xff]
      %v5251 = vld [vmem:[%s4060 + $0xf3] sm:$0xff]
      %v5252 = vld [vmem:[%s4060 + $0xfb] sm:$0xff]
      %v5253 = vld [vmem:[%s4060 + $0x10b] sm:$0xff]
      %v5254 = vld [vmem:[%s4060 + $0x113] sm:$0xff]
      %v5255 = vld [vmem:[%s4060 + $0x123] sm:$0xff]
      %v5256 = vld [vmem:[%s4060 + $0x12b] sm:$0xff]
      %v5257 = vld [vmem:[%s4060 + $0x13b] sm:$0xff]
      %v5258 = vld [vmem:[%s4060 + $0x143] sm:$0xff]
      %v5259 = vld [vmem:[%s4060 + $0x153] sm:$0xff]
      %v5260 = vld [vmem:[%s4060 + $0x15b] sm:$0xff]
      %v5261 = vld [vmem:[%s4060 + $0x16b] sm:$0xff]
      %v5262 = vld [vmem:[%s4060 + $0x173] sm:$0xff]
      %s5263 = scalar_lea.vmem %s210, 52
      %v5264 = vld [vmem:[%s5263] sm:$0xf]
      %v5266 = vsel %vm289, %v5231, 0
      %v5269 = vsel %vm289, %v5232, 0
      %v5272 = vsel %vm289, %v5233, 0
      %v5275 = vsel %vm289, %v5234, 0
      %v5278 = vsel %vm289, %v5235, 0
      %v5281 = vsel %vm289, %v5236, 0
      %v5284 = vsel %vm289, %v5237, 0
      %v5287 = vsel %vm289, %v5238, 0
      %v5290 = vsel %vm289, %v5239, 0
      %v5293 = vsel %vm289, %v5240, 0
      %v5296 = vsel %vm289, %v5241, 0
      %v5299 = vsel %vm289, %v5242, 0
      %v5302 = vsel %vm289, %v5243, 0
      %v5305 = vsel %vm289, %v5244, 0
      %v5308 = vsel %vm289, %v5245, 0
      %v5311 = vsel %vm289, %v5246, 0
      %v5314 = vsel %vm289, %v5247, 0
      %v5317 = vsel %vm289, %v5248, 0
      %v5320 = vsel %vm289, %v5249, 0
      %v5323 = vsel %vm289, %v5250, 0
      %v5326 = vsel %vm289, %v5251, 0
      %v5329 = vsel %vm289, %v5252, 0
      %v5332 = vsel %vm289, %v5253, 0
      %v5335 = vsel %vm289, %v5254, 0
      %v5338 = vsel %vm289, %v5255, 0
      %v5341 = vsel %vm289, %v5256, 0
      %v5344 = vsel %vm289, %v5257, 0
      %v5347 = vsel %vm289, %v5258, 0
      %v5350 = vsel %vm289, %v5259, 0
      %v5353 = vsel %vm289, %v5260, 0
      %v5356 = vsel %vm289, %v5261, 0
      %v5359 = vsel %vm289, %v5262, 0
      %v5362 = vsel %vm386, %v5264, 0
      %5364 = vmatprep.subr.mxu0 0.0
      %5365 = vmatpush1.msra.mxu0 0.0
      %5366 = vmatprep.subr.mxu0 0.0
      %5367 = vmatpush1.msra.mxu0 0.0
      %5368 = vmatprep.subr.mxu0 0.0
      %5369 = vmatpush1.msra.mxu0 0.0
      %5370 = vmatprep.subr.mxu0 0.0
      %5371 = vmatpush1.msra.mxu0 0.0
      %5372 = vmatprep.subr.mxu0 0.0
      %5373 = vmatpush1.msra.mxu0 0.0
      %5374 = vmatprep.subr.mxu0 0.0
      %5375 = vmatpush1.msra.mxu0 0.0
      %5376 = vmatprep.subr.mxu0 0.0
      %5377 = vmatpush1.msra.mxu0 0.0
      %5378 = vmatprep.subr.mxu0 0.0
      %5379 = vmatpush1.msra.mxu0 0.0
      %5380 = vmatprep.subr.mxu0 0.0
      %5381 = vmatpush1.msra.mxu0 0.0
      %5382 = vmatprep.subr.mxu0 0.0
      %5383 = vmatpush1.msra.mxu0 0.0
      %5384 = vmatprep.subr.mxu0 0.0
      %5385 = vmatpush1.msra.mxu0 0.0
      %5386 = vmatprep.subr.mxu0 0.0
      %5387 = vmatpush1.msra.mxu0 0.0
      %5388 = vmatprep.subr.mxu0 0.0
      %5389 = vmatpush1.msra.mxu0 0.0
      %5390 = vmatprep.subr.mxu0 0.0
      %5391 = vmatpush1.msra.mxu0 0.0
      %5392 = vmatprep.subr.mxu0 0.0
      %5393 = vmatpush1.msra.mxu0 0.0
      %5394 = vmatprep.subr.mxu0 0.0
      %5395 = vmatpush1.msra.mxu0 %v5362
      %5396 = vmatprep.subr.mxu0 0.0
      %5397 = vmatpush2.msra.mxu0 0.0
      %5398 = vmatprep.subr.mxu0 0.0
      %5399 = vmatpush2.msra.mxu0 0.0
      %5400 = vmatprep.subr.mxu0 0.0
      %5401 = vmatpush2.msra.mxu0 0.0
      %5402 = vmatprep.subr.mxu0 0.0
      %5403 = vmatpush2.msra.mxu0 0.0
      %5404 = vmatprep.subr.mxu0 0.0
      %5405 = vmatpush2.msra.mxu0 0.0
      %5406 = vmatprep.subr.mxu0 0.0
      %5407 = vmatpush2.msra.mxu0 0.0
      %5408 = vmatprep.subr.mxu0 0.0
      %5409 = vmatpush2.msra.mxu0 0.0
      %5410 = vmatprep.subr.mxu0 0.0
      %5411 = vmatpush2.msra.mxu0 0.0
      %5412 = vmatprep.subr.mxu0 0.0
      %5413 = vmatpush2.msra.mxu0 0.0
      %5414 = vmatprep.subr.mxu0 0.0
      %5415 = vmatpush2.msra.mxu0 0.0
      %5416 = vmatprep.subr.mxu0 0.0
      %5417 = vmatpush2.msra.mxu0 0.0
      %5418 = vmatprep.subr.mxu0 0.0
      %5419 = vmatpush2.msra.mxu0 0.0
      %5420 = vmatprep.subr.mxu0 0.0
      %5421 = vmatpush2.msra.mxu0 0.0
      %5422 = vmatprep.subr.mxu0 0.0
      %5423 = vmatpush2.msra.mxu0 0.0
      %5424 = vmatprep.subr.mxu0 0.0
      %5425 = vmatpush2.msra.mxu0 0.0
      %5426 = vmatprep.subr.mxu0 0.0
      %5427 = vmatpush2.msra.mxu0 0.0
      %5428 = vmatprep.mubr.f32.mxu0 0.0
      %5429 = vmatmul.mubr.f32.gmra.mxu0 %v5266
      %v5430 = vpop.f32.mrf.mxu0
      %v5431 = vadd.f32 0.0, %v5430
      %v5432 = vpop.f32.mrf.mxu0
      %5433 = vmatprep.mubr.f32.mxu0 0.0
      %5434 = vmatmul.mubr.f32.gmra.mxu0 %v5269
      %v5435 = vpop.f32.mrf.mxu0
      %v5436 = vadd.f32 0.0, %v5435
      %v5437 = vpop.f32.mrf.mxu0
      %5438 = vmatprep.mubr.f32.mxu0 0.0
      %5439 = vmatmul.mubr.f32.gmra.mxu0 %v5272
      %v5440 = vpop.f32.mrf.mxu0
      %v5441 = vadd.f32 0.0, %v5440
      %v5442 = vpop.f32.mrf.mxu0
      %5443 = vmatprep.mubr.f32.mxu0 0.0
      %5444 = vmatmul.mubr.f32.gmra.mxu0 %v5275
      %v5445 = vpop.f32.mrf.mxu0
      %v5446 = vadd.f32 0.0, %v5445
      %v5447 = vpop.f32.mrf.mxu0
      %5448 = vmatprep.mubr.f32.mxu0 0.0
      %5449 = vmatmul.mubr.f32.gmra.mxu0 %v5278
      %v5450 = vpop.f32.mrf.mxu0
      %v5451 = vadd.f32 0.0, %v5450
      %v5452 = vpop.f32.mrf.mxu0
      %5453 = vmatprep.mubr.f32.mxu0 0.0
      %5454 = vmatmul.mubr.f32.gmra.mxu0 %v5281
      %v5455 = vpop.f32.mrf.mxu0
      %v5456 = vadd.f32 0.0, %v5455
      %v5457 = vpop.f32.mrf.mxu0
      %5458 = vmatprep.mubr.f32.mxu0 0.0
      %5459 = vmatmul.mubr.f32.gmra.mxu0 %v5284
      %v5460 = vpop.f32.mrf.mxu0
      %v5461 = vadd.f32 0.0, %v5460
      %v5462 = vpop.f32.mrf.mxu0
      %5463 = vmatprep.mubr.f32.mxu0 0.0
      %5464 = vmatmul.mubr.f32.gmra.mxu0 %v5287
      %v5465 = vpop.f32.mrf.mxu0
      %v5466 = vadd.f32 0.0, %v5465
      %v5467 = vpop.f32.mrf.mxu0
      %5468 = vmatprep.mubr.f32.mxu0 0.0
      %5469 = vmatmul.mubr.f32.gmra.mxu0 %v5290
      %v5470 = vpop.f32.mrf.mxu0
      %v5471 = vadd.f32 0.0, %v5470
      %v5472 = vpop.f32.mrf.mxu0
      %5473 = vmatprep.mubr.f32.mxu0 0.0
      %5474 = vmatmul.mubr.f32.gmra.mxu0 %v5293
      %v5475 = vpop.f32.mrf.mxu0
      %v5476 = vadd.f32 0.0, %v5475
      %v5477 = vpop.f32.mrf.mxu0
      %5478 = vmatprep.mubr.f32.mxu0 0.0
      %5479 = vmatmul.mubr.f32.gmra.mxu0 %v5296
      %v5480 = vpop.f32.mrf.mxu0
      %v5481 = vadd.f32 0.0, %v5480
      %v5482 = vpop.f32.mrf.mxu0
      %5483 = vmatprep.mubr.f32.mxu0 0.0
      %5484 = vmatmul.mubr.f32.gmra.mxu0 %v5299
      %v5485 = vpop.f32.mrf.mxu0
      %v5486 = vadd.f32 0.0, %v5485
      %v5487 = vpop.f32.mrf.mxu0
      %5488 = vmatprep.mubr.f32.mxu0 0.0
      %5489 = vmatmul.mubr.f32.gmra.mxu0 %v5302
      %v5490 = vpop.f32.mrf.mxu0
      %v5491 = vadd.f32 0.0, %v5490
      %v5492 = vpop.f32.mrf.mxu0
      %5493 = vmatprep.mubr.f32.mxu0 0.0
      %5494 = vmatmul.mubr.f32.gmra.mxu0 %v5305
      %v5495 = vpop.f32.mrf.mxu0
      %v5496 = vadd.f32 0.0, %v5495
      %v5497 = vpop.f32.mrf.mxu0
      %5498 = vmatprep.mubr.f32.mxu0 0.0
      %5499 = vmatmul.mubr.f32.gmra.mxu0 %v5308
      %v5500 = vpop.f32.mrf.mxu0
      %v5501 = vadd.f32 0.0, %v5500
      %v5502 = vpop.f32.mrf.mxu0
      %5503 = vmatprep.mubr.f32.mxu0 0.0
      %5504 = vmatmul.mubr.f32.gmra.mxu0 %v5311
      %v5505 = vpop.f32.mrf.mxu0
      %v5506 = vadd.f32 0.0, %v5505
      %v5507 = vpop.f32.mrf.mxu0
      %5508 = vmatprep.mubr.f32.mxu0 0.0
      %5509 = vmatmul.mubr.f32.gmra.mxu0 %v5314
      %v5510 = vpop.f32.mrf.mxu0
      %v5511 = vadd.f32 0.0, %v5510
      %v5512 = vpop.f32.mrf.mxu0
      %5513 = vmatprep.mubr.f32.mxu0 0.0
      %5514 = vmatmul.mubr.f32.gmra.mxu0 %v5317
      %v5515 = vpop.f32.mrf.mxu0
      %v5516 = vadd.f32 0.0, %v5515
      %v5517 = vpop.f32.mrf.mxu0
      %5518 = vmatprep.mubr.f32.mxu0 0.0
      %5519 = vmatmul.mubr.f32.gmra.mxu0 %v5320
      %v5520 = vpop.f32.mrf.mxu0
      %v5521 = vadd.f32 0.0, %v5520
      %v5522 = vpop.f32.mrf.mxu0
      %5523 = vmatprep.mubr.f32.mxu0 0.0
      %5524 = vmatmul.mubr.f32.gmra.mxu0 %v5323
      %v5525 = vpop.f32.mrf.mxu0
      %v5526 = vadd.f32 0.0, %v5525
      %v5527 = vpop.f32.mrf.mxu0
      %5528 = vmatprep.mubr.f32.mxu0 0.0
      %5529 = vmatmul.mubr.f32.gmra.mxu0 %v5326
      %v5530 = vpop.f32.mrf.mxu0
      %v5531 = vadd.f32 0.0, %v5530
      %v5532 = vpop.f32.mrf.mxu0
      %5533 = vmatprep.mubr.f32.mxu0 0.0
      %5534 = vmatmul.mubr.f32.gmra.mxu0 %v5329
      %v5535 = vpop.f32.mrf.mxu0
      %v5536 = vadd.f32 0.0, %v5535
      %v5537 = vpop.f32.mrf.mxu0
      %5538 = vmatprep.mubr.f32.mxu0 0.0
      %5539 = vmatmul.mubr.f32.gmra.mxu0 %v5332
      %v5540 = vpop.f32.mrf.mxu0
      %v5541 = vadd.f32 0.0, %v5540
      %v5542 = vpop.f32.mrf.mxu0
      %5543 = vmatprep.mubr.f32.mxu0 0.0
      %5544 = vmatmul.mubr.f32.gmra.mxu0 %v5335
      %v5545 = vpop.f32.mrf.mxu0
      %v5546 = vadd.f32 0.0, %v5545
      %v5547 = vpop.f32.mrf.mxu0
      %5548 = vmatprep.mubr.f32.mxu0 0.0
      %5549 = vmatmul.mubr.f32.gmra.mxu0 %v5338
      %v5550 = vpop.f32.mrf.mxu0
      %v5551 = vadd.f32 0.0, %v5550
      %v5552 = vpop.f32.mrf.mxu0
      %5553 = vmatprep.mubr.f32.mxu0 0.0
      %5554 = vmatmul.mubr.f32.gmra.mxu0 %v5341
      %v5555 = vpop.f32.mrf.mxu0
      %v5556 = vadd.f32 0.0, %v5555
      %v5557 = vpop.f32.mrf.mxu0
      %5558 = vmatprep.mubr.f32.mxu0 0.0
      %5559 = vmatmul.mubr.f32.gmra.mxu0 %v5344
      %v5560 = vpop.f32.mrf.mxu0
      %v5561 = vadd.f32 0.0, %v5560
      %v5562 = vpop.f32.mrf.mxu0
      %5563 = vmatprep.mubr.f32.mxu0 0.0
      %5564 = vmatmul.mubr.f32.gmra.mxu0 %v5347
      %v5565 = vpop.f32.mrf.mxu0
      %v5566 = vadd.f32 0.0, %v5565
      %v5567 = vpop.f32.mrf.mxu0
      %5568 = vmatprep.mubr.f32.mxu0 0.0
      %5569 = vmatmul.mubr.f32.gmra.mxu0 %v5350
      %v5570 = vpop.f32.mrf.mxu0
      %v5571 = vadd.f32 0.0, %v5570
      %v5572 = vpop.f32.mrf.mxu0
      %5573 = vmatprep.mubr.f32.mxu0 0.0
      %5574 = vmatmul.mubr.f32.gmra.mxu0 %v5353
      %v5575 = vpop.f32.mrf.mxu0
      %v5576 = vadd.f32 0.0, %v5575
      %v5577 = vpop.f32.mrf.mxu0
      %5578 = vmatprep.mubr.f32.mxu0 0.0
      %5579 = vmatmul.mubr.f32.gmra.mxu0 %v5356
      %v5580 = vpop.f32.mrf.mxu0
      %v5581 = vadd.f32 0.0, %v5580
      %v5582 = vpop.f32.mrf.mxu0
      %5583 = vmatprep.mubr.f32.mxu0 0.0
      %5584 = vmatmul.mubr.f32.gmra.mxu0 %v5359
      %v5585 = vpop.f32.mrf.mxu0
      %v5586 = vadd.f32 0.0, %v5585
      %v5587 = vpop.f32.mrf.mxu0
      %5588 = vdwg.mxu0
      %v5589 = vadd.f32 %v5199, %v5431
      %v5590 = vadd.f32 %v5200, %v5436
      %v5591 = vadd.f32 %v5201, %v5441
      %v5592 = vadd.f32 %v5202, %v5446
      %v5593 = vadd.f32 %v5203, %v5451
      %v5594 = vadd.f32 %v5204, %v5456
      %v5595 = vadd.f32 %v5205, %v5461
      %v5596 = vadd.f32 %v5206, %v5466
      %v5597 = vadd.f32 %v5207, %v5471
      %v5598 = vadd.f32 %v5208, %v5476
      %v5599 = vadd.f32 %v5209, %v5481
      %v5600 = vadd.f32 %v5210, %v5486
      %v5601 = vadd.f32 %v5211, %v5491
      %v5602 = vadd.f32 %v5212, %v5496
      %v5603 = vadd.f32 %v5213, %v5501
      %v5604 = vadd.f32 %v5214, %v5506
      %v5605 = vadd.f32 %v5215, %v5511
      %v5606 = vadd.f32 %v5216, %v5516
      %v5607 = vadd.f32 %v5217, %v5521
      %v5608 = vadd.f32 %v5218, %v5526
      %v5609 = vadd.f32 %v5219, %v5531
      %v5610 = vadd.f32 %v5220, %v5536
      %v5611 = vadd.f32 %v5221, %v5541
      %v5612 = vadd.f32 %v5222, %v5546
      %v5613 = vadd.f32 %v5223, %v5551
      %v5614 = vadd.f32 %v5224, %v5556
      %v5615 = vadd.f32 %v5225, %v5561
      %v5616 = vadd.f32 %v5226, %v5566
      %v5617 = vadd.f32 %v5227, %v5571
      %v5618 = vadd.f32 %v5228, %v5576
      %v5619 = vadd.f32 %v5229, %v5581
      %v5620 = vadd.f32 %v5230, %v5586
      %v5621 = vld [vmem:[%s4060 + $0x4] sm:$0xff]
      %v5622 = vld [vmem:[%s4060 + $0xc] sm:$0xff]
      %v5623 = vld [vmem:[%s4060 + $0x1c] sm:$0xff]
      %v5624 = vld [vmem:[%s4060 + $0x24] sm:$0xff]
      %v5625 = vld [vmem:[%s4060 + $0x34] sm:$0xff]
      %v5626 = vld [vmem:[%s4060 + $0x3c] sm:$0xff]
      %v5627 = vld [vmem:[%s4060 + $0x4c] sm:$0xff]
      %v5628 = vld [vmem:[%s4060 + $0x54] sm:$0xff]
      %v5629 = vld [vmem:[%s4060 + $0x64] sm:$0xff]
      %v5630 = vld [vmem:[%s4060 + $0x6c] sm:$0xff]
      %v5631 = vld [vmem:[%s4060 + $0x7c] sm:$0xff]
      %v5632 = vld [vmem:[%s4060 + $0x84] sm:$0xff]
      %v5633 = vld [vmem:[%s4060 + $0x94] sm:$0xff]
      %v5634 = vld [vmem:[%s4060 + $0x9c] sm:$0xff]
      %v5635 = vld [vmem:[%s4060 + $0xac] sm:$0xff]
      %v5636 = vld [vmem:[%s4060 + $0xb4] sm:$0xff]
      %v5637 = vld [vmem:[%s4060 + $0xc4] sm:$0xff]
      %v5638 = vld [vmem:[%s4060 + $0xcc] sm:$0xff]
      %v5639 = vld [vmem:[%s4060 + $0xdc] sm:$0xff]
      %v5640 = vld [vmem:[%s4060 + $0xe4] sm:$0xff]
      %v5641 = vld [vmem:[%s4060 + $0xf4] sm:$0xff]
      %v5642 = vld [vmem:[%s4060 + $0xfc] sm:$0xff]
      %v5643 = vld [vmem:[%s4060 + $0x10c] sm:$0xff]
      %v5644 = vld [vmem:[%s4060 + $0x114] sm:$0xff]
      %v5645 = vld [vmem:[%s4060 + $0x124] sm:$0xff]
      %v5646 = vld [vmem:[%s4060 + $0x12c] sm:$0xff]
      %v5647 = vld [vmem:[%s4060 + $0x13c] sm:$0xff]
      %v5648 = vld [vmem:[%s4060 + $0x144] sm:$0xff]
      %v5649 = vld [vmem:[%s4060 + $0x154] sm:$0xff]
      %v5650 = vld [vmem:[%s4060 + $0x15c] sm:$0xff]
      %v5651 = vld [vmem:[%s4060 + $0x16c] sm:$0xff]
      %v5652 = vld [vmem:[%s4060 + $0x174] sm:$0xff]
      %s5653 = scalar_lea.vmem %s210, 56
      %v5654 = vld [vmem:[%s5653] sm:$0xf]
      %v5656 = vsel %vm289, %v5621, 0
      %v5659 = vsel %vm289, %v5622, 0
      %v5662 = vsel %vm289, %v5623, 0
      %v5665 = vsel %vm289, %v5624, 0
      %v5668 = vsel %vm289, %v5625, 0
      %v5671 = vsel %vm289, %v5626, 0
      %v5674 = vsel %vm289, %v5627, 0
      %v5677 = vsel %vm289, %v5628, 0
      %v5680 = vsel %vm289, %v5629, 0
      %v5683 = vsel %vm289, %v5630, 0
      %v5686 = vsel %vm289, %v5631, 0
      %v5689 = vsel %vm289, %v5632, 0
      %v5692 = vsel %vm289, %v5633, 0
      %v5695 = vsel %vm289, %v5634, 0
      %v5698 = vsel %vm289, %v5635, 0
      %v5701 = vsel %vm289, %v5636, 0
      %v5704 = vsel %vm289, %v5637, 0
      %v5707 = vsel %vm289, %v5638, 0
      %v5710 = vsel %vm289, %v5639, 0
      %v5713 = vsel %vm289, %v5640, 0
      %v5716 = vsel %vm289, %v5641, 0
      %v5719 = vsel %vm289, %v5642, 0
      %v5722 = vsel %vm289, %v5643, 0
      %v5725 = vsel %vm289, %v5644, 0
      %v5728 = vsel %vm289, %v5645, 0
      %v5731 = vsel %vm289, %v5646, 0
      %v5734 = vsel %vm289, %v5647, 0
      %v5737 = vsel %vm289, %v5648, 0
      %v5740 = vsel %vm289, %v5649, 0
      %v5743 = vsel %vm289, %v5650, 0
      %v5746 = vsel %vm289, %v5651, 0
      %v5749 = vsel %vm289, %v5652, 0
      %v5752 = vsel %vm386, %v5654, 0
      %5754 = vmatprep.subr.mxu0 0.0
      %5755 = vmatpush1.msra.mxu0 0.0
      %5756 = vmatprep.subr.mxu0 0.0
      %5757 = vmatpush1.msra.mxu0 0.0
      %5758 = vmatprep.subr.mxu0 0.0
      %5759 = vmatpush1.msra.mxu0 0.0
      %5760 = vmatprep.subr.mxu0 0.0
      %5761 = vmatpush1.msra.mxu0 0.0
      %5762 = vmatprep.subr.mxu0 0.0
      %5763 = vmatpush1.msra.mxu0 0.0
      %5764 = vmatprep.subr.mxu0 0.0
      %5765 = vmatpush1.msra.mxu0 0.0
      %5766 = vmatprep.subr.mxu0 0.0
      %5767 = vmatpush1.msra.mxu0 0.0
      %5768 = vmatprep.subr.mxu0 0.0
      %5769 = vmatpush1.msra.mxu0 0.0
      %5770 = vmatprep.subr.mxu0 0.0
      %5771 = vmatpush1.msra.mxu0 0.0
      %5772 = vmatprep.subr.mxu0 0.0
      %5773 = vmatpush1.msra.mxu0 0.0
      %5774 = vmatprep.subr.mxu0 0.0
      %5775 = vmatpush1.msra.mxu0 0.0
      %5776 = vmatprep.subr.mxu0 0.0
      %5777 = vmatpush1.msra.mxu0 0.0
      %5778 = vmatprep.subr.mxu0 0.0
      %5779 = vmatpush1.msra.mxu0 0.0
      %5780 = vmatprep.subr.mxu0 0.0
      %5781 = vmatpush1.msra.mxu0 0.0
      %5782 = vmatprep.subr.mxu0 0.0
      %5783 = vmatpush1.msra.mxu0 0.0
      %5784 = vmatprep.subr.mxu0 0.0
      %5785 = vmatpush1.msra.mxu0 %v5752
      %5786 = vmatprep.subr.mxu0 0.0
      %5787 = vmatpush2.msra.mxu0 0.0
      %5788 = vmatprep.subr.mxu0 0.0
      %5789 = vmatpush2.msra.mxu0 0.0
      %5790 = vmatprep.subr.mxu0 0.0
      %5791 = vmatpush2.msra.mxu0 0.0
      %5792 = vmatprep.subr.mxu0 0.0
      %5793 = vmatpush2.msra.mxu0 0.0
      %5794 = vmatprep.subr.mxu0 0.0
      %5795 = vmatpush2.msra.mxu0 0.0
      %5796 = vmatprep.subr.mxu0 0.0
      %5797 = vmatpush2.msra.mxu0 0.0
      %5798 = vmatprep.subr.mxu0 0.0
      %5799 = vmatpush2.msra.mxu0 0.0
      %5800 = vmatprep.subr.mxu0 0.0
      %5801 = vmatpush2.msra.mxu0 0.0
      %5802 = vmatprep.subr.mxu0 0.0
      %5803 = vmatpush2.msra.mxu0 0.0
      %5804 = vmatprep.subr.mxu0 0.0
      %5805 = vmatpush2.msra.mxu0 0.0
      %5806 = vmatprep.subr.mxu0 0.0
      %5807 = vmatpush2.msra.mxu0 0.0
      %5808 = vmatprep.subr.mxu0 0.0
      %5809 = vmatpush2.msra.mxu0 0.0
      %5810 = vmatprep.subr.mxu0 0.0
      %5811 = vmatpush2.msra.mxu0 0.0
      %5812 = vmatprep.subr.mxu0 0.0
      %5813 = vmatpush2.msra.mxu0 0.0
      %5814 = vmatprep.subr.mxu0 0.0
      %5815 = vmatpush2.msra.mxu0 0.0
      %5816 = vmatprep.subr.mxu0 0.0
      %5817 = vmatpush2.msra.mxu0 0.0
      %5818 = vmatprep.mubr.f32.mxu0 0.0
      %5819 = vmatmul.mubr.f32.gmra.mxu0 %v5656
      %v5820 = vpop.f32.mrf.mxu0
      %v5821 = vadd.f32 0.0, %v5820
      %v5822 = vpop.f32.mrf.mxu0
      %5823 = vmatprep.mubr.f32.mxu0 0.0
      %5824 = vmatmul.mubr.f32.gmra.mxu0 %v5659
      %v5825 = vpop.f32.mrf.mxu0
      %v5826 = vadd.f32 0.0, %v5825
      %v5827 = vpop.f32.mrf.mxu0
      %5828 = vmatprep.mubr.f32.mxu0 0.0
      %5829 = vmatmul.mubr.f32.gmra.mxu0 %v5662
      %v5830 = vpop.f32.mrf.mxu0
      %v5831 = vadd.f32 0.0, %v5830
      %v5832 = vpop.f32.mrf.mxu0
      %5833 = vmatprep.mubr.f32.mxu0 0.0
      %5834 = vmatmul.mubr.f32.gmra.mxu0 %v5665
      %v5835 = vpop.f32.mrf.mxu0
      %v5836 = vadd.f32 0.0, %v5835
      %v5837 = vpop.f32.mrf.mxu0
      %5838 = vmatprep.mubr.f32.mxu0 0.0
      %5839 = vmatmul.mubr.f32.gmra.mxu0 %v5668
      %v5840 = vpop.f32.mrf.mxu0
      %v5841 = vadd.f32 0.0, %v5840
      %v5842 = vpop.f32.mrf.mxu0
      %5843 = vmatprep.mubr.f32.mxu0 0.0
      %5844 = vmatmul.mubr.f32.gmra.mxu0 %v5671
      %v5845 = vpop.f32.mrf.mxu0
      %v5846 = vadd.f32 0.0, %v5845
      %v5847 = vpop.f32.mrf.mxu0
      %5848 = vmatprep.mubr.f32.mxu0 0.0
      %5849 = vmatmul.mubr.f32.gmra.mxu0 %v5674
      %v5850 = vpop.f32.mrf.mxu0
      %v5851 = vadd.f32 0.0, %v5850
      %v5852 = vpop.f32.mrf.mxu0
      %5853 = vmatprep.mubr.f32.mxu0 0.0
      %5854 = vmatmul.mubr.f32.gmra.mxu0 %v5677
      %v5855 = vpop.f32.mrf.mxu0
      %v5856 = vadd.f32 0.0, %v5855
      %v5857 = vpop.f32.mrf.mxu0
      %5858 = vmatprep.mubr.f32.mxu0 0.0
      %5859 = vmatmul.mubr.f32.gmra.mxu0 %v5680
      %v5860 = vpop.f32.mrf.mxu0
      %v5861 = vadd.f32 0.0, %v5860
      %v5862 = vpop.f32.mrf.mxu0
      %5863 = vmatprep.mubr.f32.mxu0 0.0
      %5864 = vmatmul.mubr.f32.gmra.mxu0 %v5683
      %v5865 = vpop.f32.mrf.mxu0
      %v5866 = vadd.f32 0.0, %v5865
      %v5867 = vpop.f32.mrf.mxu0
      %5868 = vmatprep.mubr.f32.mxu0 0.0
      %5869 = vmatmul.mubr.f32.gmra.mxu0 %v5686
      %v5870 = vpop.f32.mrf.mxu0
      %v5871 = vadd.f32 0.0, %v5870
      %v5872 = vpop.f32.mrf.mxu0
      %5873 = vmatprep.mubr.f32.mxu0 0.0
      %5874 = vmatmul.mubr.f32.gmra.mxu0 %v5689
      %v5875 = vpop.f32.mrf.mxu0
      %v5876 = vadd.f32 0.0, %v5875
      %v5877 = vpop.f32.mrf.mxu0
      %5878 = vmatprep.mubr.f32.mxu0 0.0
      %5879 = vmatmul.mubr.f32.gmra.mxu0 %v5692
      %v5880 = vpop.f32.mrf.mxu0
      %v5881 = vadd.f32 0.0, %v5880
      %v5882 = vpop.f32.mrf.mxu0
      %5883 = vmatprep.mubr.f32.mxu0 0.0
      %5884 = vmatmul.mubr.f32.gmra.mxu0 %v5695
      %v5885 = vpop.f32.mrf.mxu0
      %v5886 = vadd.f32 0.0, %v5885
      %v5887 = vpop.f32.mrf.mxu0
      %5888 = vmatprep.mubr.f32.mxu0 0.0
      %5889 = vmatmul.mubr.f32.gmra.mxu0 %v5698
      %v5890 = vpop.f32.mrf.mxu0
      %v5891 = vadd.f32 0.0, %v5890
      %v5892 = vpop.f32.mrf.mxu0
      %5893 = vmatprep.mubr.f32.mxu0 0.0
      %5894 = vmatmul.mubr.f32.gmra.mxu0 %v5701
      %v5895 = vpop.f32.mrf.mxu0
      %v5896 = vadd.f32 0.0, %v5895
      %v5897 = vpop.f32.mrf.mxu0
      %5898 = vmatprep.mubr.f32.mxu0 0.0
      %5899 = vmatmul.mubr.f32.gmra.mxu0 %v5704
      %v5900 = vpop.f32.mrf.mxu0
      %v5901 = vadd.f32 0.0, %v5900
      %v5902 = vpop.f32.mrf.mxu0
      %5903 = vmatprep.mubr.f32.mxu0 0.0
      %5904 = vmatmul.mubr.f32.gmra.mxu0 %v5707
      %v5905 = vpop.f32.mrf.mxu0
      %v5906 = vadd.f32 0.0, %v5905
      %v5907 = vpop.f32.mrf.mxu0
      %5908 = vmatprep.mubr.f32.mxu0 0.0
      %5909 = vmatmul.mubr.f32.gmra.mxu0 %v5710
      %v5910 = vpop.f32.mrf.mxu0
      %v5911 = vadd.f32 0.0, %v5910
      %v5912 = vpop.f32.mrf.mxu0
      %5913 = vmatprep.mubr.f32.mxu0 0.0
      %5914 = vmatmul.mubr.f32.gmra.mxu0 %v5713
      %v5915 = vpop.f32.mrf.mxu0
      %v5916 = vadd.f32 0.0, %v5915
      %v5917 = vpop.f32.mrf.mxu0
      %5918 = vmatprep.mubr.f32.mxu0 0.0
      %5919 = vmatmul.mubr.f32.gmra.mxu0 %v5716
      %v5920 = vpop.f32.mrf.mxu0
      %v5921 = vadd.f32 0.0, %v5920
      %v5922 = vpop.f32.mrf.mxu0
      %5923 = vmatprep.mubr.f32.mxu0 0.0
      %5924 = vmatmul.mubr.f32.gmra.mxu0 %v5719
      %v5925 = vpop.f32.mrf.mxu0
      %v5926 = vadd.f32 0.0, %v5925
      %v5927 = vpop.f32.mrf.mxu0
      %5928 = vmatprep.mubr.f32.mxu0 0.0
      %5929 = vmatmul.mubr.f32.gmra.mxu0 %v5722
      %v5930 = vpop.f32.mrf.mxu0
      %v5931 = vadd.f32 0.0, %v5930
      %v5932 = vpop.f32.mrf.mxu0
      %5933 = vmatprep.mubr.f32.mxu0 0.0
      %5934 = vmatmul.mubr.f32.gmra.mxu0 %v5725
      %v5935 = vpop.f32.mrf.mxu0
      %v5936 = vadd.f32 0.0, %v5935
      %v5937 = vpop.f32.mrf.mxu0
      %5938 = vmatprep.mubr.f32.mxu0 0.0
      %5939 = vmatmul.mubr.f32.gmra.mxu0 %v5728
      %v5940 = vpop.f32.mrf.mxu0
      %v5941 = vadd.f32 0.0, %v5940
      %v5942 = vpop.f32.mrf.mxu0
      %5943 = vmatprep.mubr.f32.mxu0 0.0
      %5944 = vmatmul.mubr.f32.gmra.mxu0 %v5731
      %v5945 = vpop.f32.mrf.mxu0
      %v5946 = vadd.f32 0.0, %v5945
      %v5947 = vpop.f32.mrf.mxu0
      %5948 = vmatprep.mubr.f32.mxu0 0.0
      %5949 = vmatmul.mubr.f32.gmra.mxu0 %v5734
      %v5950 = vpop.f32.mrf.mxu0
      %v5951 = vadd.f32 0.0, %v5950
      %v5952 = vpop.f32.mrf.mxu0
      %5953 = vmatprep.mubr.f32.mxu0 0.0
      %5954 = vmatmul.mubr.f32.gmra.mxu0 %v5737
      %v5955 = vpop.f32.mrf.mxu0
      %v5956 = vadd.f32 0.0, %v5955
      %v5957 = vpop.f32.mrf.mxu0
      %5958 = vmatprep.mubr.f32.mxu0 0.0
      %5959 = vmatmul.mubr.f32.gmra.mxu0 %v5740
      %v5960 = vpop.f32.mrf.mxu0
      %v5961 = vadd.f32 0.0, %v5960
      %v5962 = vpop.f32.mrf.mxu0
      %5963 = vmatprep.mubr.f32.mxu0 0.0
      %5964 = vmatmul.mubr.f32.gmra.mxu0 %v5743
      %v5965 = vpop.f32.mrf.mxu0
      %v5966 = vadd.f32 0.0, %v5965
      %v5967 = vpop.f32.mrf.mxu0
      %5968 = vmatprep.mubr.f32.mxu0 0.0
      %5969 = vmatmul.mubr.f32.gmra.mxu0 %v5746
      %v5970 = vpop.f32.mrf.mxu0
      %v5971 = vadd.f32 0.0, %v5970
      %v5972 = vpop.f32.mrf.mxu0
      %5973 = vmatprep.mubr.f32.mxu0 0.0
      %5974 = vmatmul.mubr.f32.gmra.mxu0 %v5749
      %v5975 = vpop.f32.mrf.mxu0
      %v5976 = vadd.f32 0.0, %v5975
      %v5977 = vpop.f32.mrf.mxu0
      %5978 = vdwg.mxu0
      %v5979 = vadd.f32 %v5589, %v5821
      %v5980 = vadd.f32 %v5590, %v5826
      %v5981 = vadd.f32 %v5591, %v5831
      %v5982 = vadd.f32 %v5592, %v5836
      %v5983 = vadd.f32 %v5593, %v5841
      %v5984 = vadd.f32 %v5594, %v5846
      %v5985 = vadd.f32 %v5595, %v5851
      %v5986 = vadd.f32 %v5596, %v5856
      %v5987 = vadd.f32 %v5597, %v5861
      %v5988 = vadd.f32 %v5598, %v5866
      %v5989 = vadd.f32 %v5599, %v5871
      %v5990 = vadd.f32 %v5600, %v5876
      %v5991 = vadd.f32 %v5601, %v5881
      %v5992 = vadd.f32 %v5602, %v5886
      %v5993 = vadd.f32 %v5603, %v5891
      %v5994 = vadd.f32 %v5604, %v5896
      %v5995 = vadd.f32 %v5605, %v5901
      %v5996 = vadd.f32 %v5606, %v5906
      %v5997 = vadd.f32 %v5607, %v5911
      %v5998 = vadd.f32 %v5608, %v5916
      %v5999 = vadd.f32 %v5609, %v5921
      %v6000 = vadd.f32 %v5610, %v5926
      %v6001 = vadd.f32 %v5611, %v5931
      %v6002 = vadd.f32 %v5612, %v5936
      %v6003 = vadd.f32 %v5613, %v5941
      %v6004 = vadd.f32 %v5614, %v5946
      %v6005 = vadd.f32 %v5615, %v5951
      %v6006 = vadd.f32 %v5616, %v5956
      %v6007 = vadd.f32 %v5617, %v5961
      %v6008 = vadd.f32 %v5618, %v5966
      %v6009 = vadd.f32 %v5619, %v5971
      %v6010 = vadd.f32 %v5620, %v5976
      %s6011 = scalar_lea.vmem %s206, 72
      %v6012 = vld [vmem:[%s6011] sm:$0xff]
      %v6013 = vld [vmem:[%s6011 + $0x8] sm:$0xff]
      %v6014 = vld [vmem:[%s6011 + $0x18] sm:$0xff]
      %v6015 = vld [vmem:[%s6011 + $0x20] sm:$0xff]
      %v6016 = vld [vmem:[%s6011 + $0x30] sm:$0xff]
      %v6017 = vld [vmem:[%s6011 + $0x38] sm:$0xff]
      %v6018 = vld [vmem:[%s6011 + $0x48] sm:$0xff]
      %v6019 = vld [vmem:[%s6011 + $0x50] sm:$0xff]
      %v6020 = vld [vmem:[%s6011 + $0x60] sm:$0xff]
      %v6021 = vld [vmem:[%s6011 + $0x68] sm:$0xff]
      %v6022 = vld [vmem:[%s6011 + $0x78] sm:$0xff]
      %v6023 = vld [vmem:[%s6011 + $0x80] sm:$0xff]
      %v6024 = vld [vmem:[%s6011 + $0x90] sm:$0xff]
      %v6025 = vld [vmem:[%s6011 + $0x98] sm:$0xff]
      %v6026 = vld [vmem:[%s6011 + $0xa8] sm:$0xff]
      %v6027 = vld [vmem:[%s6011 + $0xb0] sm:$0xff]
      %v6028 = vld [vmem:[%s6011 + $0xc0] sm:$0xff]
      %v6029 = vld [vmem:[%s6011 + $0xc8] sm:$0xff]
      %v6030 = vld [vmem:[%s6011 + $0xd8] sm:$0xff]
      %v6031 = vld [vmem:[%s6011 + $0xe0] sm:$0xff]
      %v6032 = vld [vmem:[%s6011 + $0xf0] sm:$0xff]
      %v6033 = vld [vmem:[%s6011 + $0xf8] sm:$0xff]
      %v6034 = vld [vmem:[%s6011 + $0x108] sm:$0xff]
      %v6035 = vld [vmem:[%s6011 + $0x110] sm:$0xff]
      %v6036 = vld [vmem:[%s6011 + $0x120] sm:$0xff]
      %v6037 = vld [vmem:[%s6011 + $0x128] sm:$0xff]
      %v6038 = vld [vmem:[%s6011 + $0x138] sm:$0xff]
      %v6039 = vld [vmem:[%s6011 + $0x140] sm:$0xff]
      %v6040 = vld [vmem:[%s6011 + $0x150] sm:$0xff]
      %v6041 = vld [vmem:[%s6011 + $0x158] sm:$0xff]
      %v6042 = vld [vmem:[%s6011 + $0x168] sm:$0xff]
      %v6043 = vld [vmem:[%s6011 + $0x170] sm:$0xff]
      %s6044 = scalar_lea.vmem %s210, 60
      %v6045 = vld [vmem:[%s6044] sm:$0xf]
      %v6047 = vsel %vm289, %v6012, 0
      %v6050 = vsel %vm289, %v6013, 0
      %v6053 = vsel %vm289, %v6014, 0
      %v6056 = vsel %vm289, %v6015, 0
      %v6059 = vsel %vm289, %v6016, 0
      %v6062 = vsel %vm289, %v6017, 0
      %v6065 = vsel %vm289, %v6018, 0
      %v6068 = vsel %vm289, %v6019, 0
      %v6071 = vsel %vm289, %v6020, 0
      %v6074 = vsel %vm289, %v6021, 0
      %v6077 = vsel %vm289, %v6022, 0
      %v6080 = vsel %vm289, %v6023, 0
      %v6083 = vsel %vm289, %v6024, 0
      %v6086 = vsel %vm289, %v6025, 0
      %v6089 = vsel %vm289, %v6026, 0
      %v6092 = vsel %vm289, %v6027, 0
      %v6095 = vsel %vm289, %v6028, 0
      %v6098 = vsel %vm289, %v6029, 0
      %v6101 = vsel %vm289, %v6030, 0
      %v6104 = vsel %vm289, %v6031, 0
      %v6107 = vsel %vm289, %v6032, 0
      %v6110 = vsel %vm289, %v6033, 0
      %v6113 = vsel %vm289, %v6034, 0
      %v6116 = vsel %vm289, %v6035, 0
      %v6119 = vsel %vm289, %v6036, 0
      %v6122 = vsel %vm289, %v6037, 0
      %v6125 = vsel %vm289, %v6038, 0
      %v6128 = vsel %vm289, %v6039, 0
      %v6131 = vsel %vm289, %v6040, 0
      %v6134 = vsel %vm289, %v6041, 0
      %v6137 = vsel %vm289, %v6042, 0
      %v6140 = vsel %vm289, %v6043, 0
      %v6143 = vsel %vm386, %v6045, 0
      %6145 = vmatprep.subr.mxu0 0.0
      %6146 = vmatpush1.msra.mxu0 0.0
      %6147 = vmatprep.subr.mxu0 0.0
      %6148 = vmatpush1.msra.mxu0 0.0
      %6149 = vmatprep.subr.mxu0 0.0
      %6150 = vmatpush1.msra.mxu0 0.0
      %6151 = vmatprep.subr.mxu0 0.0
      %6152 = vmatpush1.msra.mxu0 0.0
      %6153 = vmatprep.subr.mxu0 0.0
      %6154 = vmatpush1.msra.mxu0 0.0
      %6155 = vmatprep.subr.mxu0 0.0
      %6156 = vmatpush1.msra.mxu0 0.0
      %6157 = vmatprep.subr.mxu0 0.0
      %6158 = vmatpush1.msra.mxu0 0.0
      %6159 = vmatprep.subr.mxu0 0.0
      %6160 = vmatpush1.msra.mxu0 0.0
      %6161 = vmatprep.subr.mxu0 0.0
      %6162 = vmatpush1.msra.mxu0 0.0
      %6163 = vmatprep.subr.mxu0 0.0
      %6164 = vmatpush1.msra.mxu0 0.0
      %6165 = vmatprep.subr.mxu0 0.0
      %6166 = vmatpush1.msra.mxu0 0.0
      %6167 = vmatprep.subr.mxu0 0.0
      %6168 = vmatpush1.msra.mxu0 0.0
      %6169 = vmatprep.subr.mxu0 0.0
      %6170 = vmatpush1.msra.mxu0 0.0
      %6171 = vmatprep.subr.mxu0 0.0
      %6172 = vmatpush1.msra.mxu0 0.0
      %6173 = vmatprep.subr.mxu0 0.0
      %6174 = vmatpush1.msra.mxu0 0.0
      %6175 = vmatprep.subr.mxu0 0.0
      %6176 = vmatpush1.msra.mxu0 %v6143
      %6177 = vmatprep.subr.mxu0 0.0
      %6178 = vmatpush2.msra.mxu0 0.0
      %6179 = vmatprep.subr.mxu0 0.0
      %6180 = vmatpush2.msra.mxu0 0.0
      %6181 = vmatprep.subr.mxu0 0.0
      %6182 = vmatpush2.msra.mxu0 0.0
      %6183 = vmatprep.subr.mxu0 0.0
      %6184 = vmatpush2.msra.mxu0 0.0
      %6185 = vmatprep.subr.mxu0 0.0
      %6186 = vmatpush2.msra.mxu0 0.0
      %6187 = vmatprep.subr.mxu0 0.0
      %6188 = vmatpush2.msra.mxu0 0.0
      %6189 = vmatprep.subr.mxu0 0.0
      %6190 = vmatpush2.msra.mxu0 0.0
      %6191 = vmatprep.subr.mxu0 0.0
      %6192 = vmatpush2.msra.mxu0 0.0
      %6193 = vmatprep.subr.mxu0 0.0
      %6194 = vmatpush2.msra.mxu0 0.0
      %6195 = vmatprep.subr.mxu0 0.0
      %6196 = vmatpush2.msra.mxu0 0.0
      %6197 = vmatprep.subr.mxu0 0.0
      %6198 = vmatpush2.msra.mxu0 0.0
      %6199 = vmatprep.subr.mxu0 0.0
      %6200 = vmatpush2.msra.mxu0 0.0
      %6201 = vmatprep.subr.mxu0 0.0
      %6202 = vmatpush2.msra.mxu0 0.0
      %6203 = vmatprep.subr.mxu0 0.0
      %6204 = vmatpush2.msra.mxu0 0.0
      %6205 = vmatprep.subr.mxu0 0.0
      %6206 = vmatpush2.msra.mxu0 0.0
      %6207 = vmatprep.subr.mxu0 0.0
      %6208 = vmatpush2.msra.mxu0 0.0
      %6209 = vmatprep.mubr.f32.mxu0 0.0
      %6210 = vmatmul.mubr.f32.gmra.mxu0 %v6047
      %v6211 = vpop.f32.mrf.mxu0
      %v6212 = vadd.f32 0.0, %v6211
      %v6213 = vpop.f32.mrf.mxu0
      %6214 = vmatprep.mubr.f32.mxu0 0.0
      %6215 = vmatmul.mubr.f32.gmra.mxu0 %v6050
      %v6216 = vpop.f32.mrf.mxu0
      %v6217 = vadd.f32 0.0, %v6216
      %v6218 = vpop.f32.mrf.mxu0
      %6219 = vmatprep.mubr.f32.mxu0 0.0
      %6220 = vmatmul.mubr.f32.gmra.mxu0 %v6053
      %v6221 = vpop.f32.mrf.mxu0
      %v6222 = vadd.f32 0.0, %v6221
      %v6223 = vpop.f32.mrf.mxu0
      %6224 = vmatprep.mubr.f32.mxu0 0.0
      %6225 = vmatmul.mubr.f32.gmra.mxu0 %v6056
      %v6226 = vpop.f32.mrf.mxu0
      %v6227 = vadd.f32 0.0, %v6226
      %v6228 = vpop.f32.mrf.mxu0
      %6229 = vmatprep.mubr.f32.mxu0 0.0
      %6230 = vmatmul.mubr.f32.gmra.mxu0 %v6059
      %v6231 = vpop.f32.mrf.mxu0
      %v6232 = vadd.f32 0.0, %v6231
      %v6233 = vpop.f32.mrf.mxu0
      %6234 = vmatprep.mubr.f32.mxu0 0.0
      %6235 = vmatmul.mubr.f32.gmra.mxu0 %v6062
      %v6236 = vpop.f32.mrf.mxu0
      %v6237 = vadd.f32 0.0, %v6236
      %v6238 = vpop.f32.mrf.mxu0
      %6239 = vmatprep.mubr.f32.mxu0 0.0
      %6240 = vmatmul.mubr.f32.gmra.mxu0 %v6065
      %v6241 = vpop.f32.mrf.mxu0
      %v6242 = vadd.f32 0.0, %v6241
      %v6243 = vpop.f32.mrf.mxu0
      %6244 = vmatprep.mubr.f32.mxu0 0.0
      %6245 = vmatmul.mubr.f32.gmra.mxu0 %v6068
      %v6246 = vpop.f32.mrf.mxu0
      %v6247 = vadd.f32 0.0, %v6246
      %v6248 = vpop.f32.mrf.mxu0
      %6249 = vmatprep.mubr.f32.mxu0 0.0
      %6250 = vmatmul.mubr.f32.gmra.mxu0 %v6071
      %v6251 = vpop.f32.mrf.mxu0
      %v6252 = vadd.f32 0.0, %v6251
      %v6253 = vpop.f32.mrf.mxu0
      %6254 = vmatprep.mubr.f32.mxu0 0.0
      %6255 = vmatmul.mubr.f32.gmra.mxu0 %v6074
      %v6256 = vpop.f32.mrf.mxu0
      %v6257 = vadd.f32 0.0, %v6256
      %v6258 = vpop.f32.mrf.mxu0
      %6259 = vmatprep.mubr.f32.mxu0 0.0
      %6260 = vmatmul.mubr.f32.gmra.mxu0 %v6077
      %v6261 = vpop.f32.mrf.mxu0
      %v6262 = vadd.f32 0.0, %v6261
      %v6263 = vpop.f32.mrf.mxu0
      %6264 = vmatprep.mubr.f32.mxu0 0.0
      %6265 = vmatmul.mubr.f32.gmra.mxu0 %v6080
      %v6266 = vpop.f32.mrf.mxu0
      %v6267 = vadd.f32 0.0, %v6266
      %v6268 = vpop.f32.mrf.mxu0
      %6269 = vmatprep.mubr.f32.mxu0 0.0
      %6270 = vmatmul.mubr.f32.gmra.mxu0 %v6083
      %v6271 = vpop.f32.mrf.mxu0
      %v6272 = vadd.f32 0.0, %v6271
      %v6273 = vpop.f32.mrf.mxu0
      %6274 = vmatprep.mubr.f32.mxu0 0.0
      %6275 = vmatmul.mubr.f32.gmra.mxu0 %v6086
      %v6276 = vpop.f32.mrf.mxu0
      %v6277 = vadd.f32 0.0, %v6276
      %v6278 = vpop.f32.mrf.mxu0
      %6279 = vmatprep.mubr.f32.mxu0 0.0
      %6280 = vmatmul.mubr.f32.gmra.mxu0 %v6089
      %v6281 = vpop.f32.mrf.mxu0
      %v6282 = vadd.f32 0.0, %v6281
      %v6283 = vpop.f32.mrf.mxu0
      %6284 = vmatprep.mubr.f32.mxu0 0.0
      %6285 = vmatmul.mubr.f32.gmra.mxu0 %v6092
      %v6286 = vpop.f32.mrf.mxu0
      %v6287 = vadd.f32 0.0, %v6286
      %v6288 = vpop.f32.mrf.mxu0
      %6289 = vmatprep.mubr.f32.mxu0 0.0
      %6290 = vmatmul.mubr.f32.gmra.mxu0 %v6095
      %v6291 = vpop.f32.mrf.mxu0
      %v6292 = vadd.f32 0.0, %v6291
      %v6293 = vpop.f32.mrf.mxu0
      %6294 = vmatprep.mubr.f32.mxu0 0.0
      %6295 = vmatmul.mubr.f32.gmra.mxu0 %v6098
      %v6296 = vpop.f32.mrf.mxu0
      %v6297 = vadd.f32 0.0, %v6296
      %v6298 = vpop.f32.mrf.mxu0
      %6299 = vmatprep.mubr.f32.mxu0 0.0
      %6300 = vmatmul.mubr.f32.gmra.mxu0 %v6101
      %v6301 = vpop.f32.mrf.mxu0
      %v6302 = vadd.f32 0.0, %v6301
      %v6303 = vpop.f32.mrf.mxu0
      %6304 = vmatprep.mubr.f32.mxu0 0.0
      %6305 = vmatmul.mubr.f32.gmra.mxu0 %v6104
      %v6306 = vpop.f32.mrf.mxu0
      %v6307 = vadd.f32 0.0, %v6306
      %v6308 = vpop.f32.mrf.mxu0
      %6309 = vmatprep.mubr.f32.mxu0 0.0
      %6310 = vmatmul.mubr.f32.gmra.mxu0 %v6107
      %v6311 = vpop.f32.mrf.mxu0
      %v6312 = vadd.f32 0.0, %v6311
      %v6313 = vpop.f32.mrf.mxu0
      %6314 = vmatprep.mubr.f32.mxu0 0.0
      %6315 = vmatmul.mubr.f32.gmra.mxu0 %v6110
      %v6316 = vpop.f32.mrf.mxu0
      %v6317 = vadd.f32 0.0, %v6316
      %v6318 = vpop.f32.mrf.mxu0
      %6319 = vmatprep.mubr.f32.mxu0 0.0
      %6320 = vmatmul.mubr.f32.gmra.mxu0 %v6113
      %v6321 = vpop.f32.mrf.mxu0
      %v6322 = vadd.f32 0.0, %v6321
      %v6323 = vpop.f32.mrf.mxu0
      %6324 = vmatprep.mubr.f32.mxu0 0.0
      %6325 = vmatmul.mubr.f32.gmra.mxu0 %v6116
      %v6326 = vpop.f32.mrf.mxu0
      %v6327 = vadd.f32 0.0, %v6326
      %v6328 = vpop.f32.mrf.mxu0
      %6329 = vmatprep.mubr.f32.mxu0 0.0
      %6330 = vmatmul.mubr.f32.gmra.mxu0 %v6119
      %v6331 = vpop.f32.mrf.mxu0
      %v6332 = vadd.f32 0.0, %v6331
      %v6333 = vpop.f32.mrf.mxu0
      %6334 = vmatprep.mubr.f32.mxu0 0.0
      %6335 = vmatmul.mubr.f32.gmra.mxu0 %v6122
      %v6336 = vpop.f32.mrf.mxu0
      %v6337 = vadd.f32 0.0, %v6336
      %v6338 = vpop.f32.mrf.mxu0
      %6339 = vmatprep.mubr.f32.mxu0 0.0
      %6340 = vmatmul.mubr.f32.gmra.mxu0 %v6125
      %v6341 = vpop.f32.mrf.mxu0
      %v6342 = vadd.f32 0.0, %v6341
      %v6343 = vpop.f32.mrf.mxu0
      %6344 = vmatprep.mubr.f32.mxu0 0.0
      %6345 = vmatmul.mubr.f32.gmra.mxu0 %v6128
      %v6346 = vpop.f32.mrf.mxu0
      %v6347 = vadd.f32 0.0, %v6346
      %v6348 = vpop.f32.mrf.mxu0
      %6349 = vmatprep.mubr.f32.mxu0 0.0
      %6350 = vmatmul.mubr.f32.gmra.mxu0 %v6131
      %v6351 = vpop.f32.mrf.mxu0
      %v6352 = vadd.f32 0.0, %v6351
      %v6353 = vpop.f32.mrf.mxu0
      %6354 = vmatprep.mubr.f32.mxu0 0.0
      %6355 = vmatmul.mubr.f32.gmra.mxu0 %v6134
      %v6356 = vpop.f32.mrf.mxu0
      %v6357 = vadd.f32 0.0, %v6356
      %v6358 = vpop.f32.mrf.mxu0
      %6359 = vmatprep.mubr.f32.mxu0 0.0
      %6360 = vmatmul.mubr.f32.gmra.mxu0 %v6137
      %v6361 = vpop.f32.mrf.mxu0
      %v6362 = vadd.f32 0.0, %v6361
      %v6363 = vpop.f32.mrf.mxu0
      %6364 = vmatprep.mubr.f32.mxu0 0.0
      %6365 = vmatmul.mubr.f32.gmra.mxu0 %v6140
      %v6366 = vpop.f32.mrf.mxu0
      %v6367 = vadd.f32 0.0, %v6366
      %v6368 = vpop.f32.mrf.mxu0
      %6369 = vdwg.mxu0
      %v6370 = vadd.f32 %v5979, %v6212
      %v6371 = vadd.f32 %v5980, %v6217
      %v6372 = vadd.f32 %v5981, %v6222
      %v6373 = vadd.f32 %v5982, %v6227
      %v6374 = vadd.f32 %v5983, %v6232
      %v6375 = vadd.f32 %v5984, %v6237
      %v6376 = vadd.f32 %v5985, %v6242
      %v6377 = vadd.f32 %v5986, %v6247
      %v6378 = vadd.f32 %v5987, %v6252
      %v6379 = vadd.f32 %v5988, %v6257
      %v6380 = vadd.f32 %v5989, %v6262
      %v6381 = vadd.f32 %v5990, %v6267
      %v6382 = vadd.f32 %v5991, %v6272
      %v6383 = vadd.f32 %v5992, %v6277
      %v6384 = vadd.f32 %v5993, %v6282
      %v6385 = vadd.f32 %v5994, %v6287
      %v6386 = vadd.f32 %v5995, %v6292
      %v6387 = vadd.f32 %v5996, %v6297
      %v6388 = vadd.f32 %v5997, %v6302
      %v6389 = vadd.f32 %v5998, %v6307
      %v6390 = vadd.f32 %v5999, %v6312
      %v6391 = vadd.f32 %v6000, %v6317
      %v6392 = vadd.f32 %v6001, %v6322
      %v6393 = vadd.f32 %v6002, %v6327
      %v6394 = vadd.f32 %v6003, %v6332
      %v6395 = vadd.f32 %v6004, %v6337
      %v6396 = vadd.f32 %v6005, %v6342
      %v6397 = vadd.f32 %v6006, %v6347
      %v6398 = vadd.f32 %v6007, %v6352
      %v6399 = vadd.f32 %v6008, %v6357
      %v6400 = vadd.f32 %v6009, %v6362
      %v6401 = vadd.f32 %v6010, %v6367
      %v6402 = vld [vmem:[%s6011 + $0x1] sm:$0xff]
      %v6403 = vld [vmem:[%s6011 + $0x9] sm:$0xff]
      %v6404 = vld [vmem:[%s6011 + $0x19] sm:$0xff]
      %v6405 = vld [vmem:[%s6011 + $0x21] sm:$0xff]
      %v6406 = vld [vmem:[%s6011 + $0x31] sm:$0xff]
      %v6407 = vld [vmem:[%s6011 + $0x39] sm:$0xff]
      %v6408 = vld [vmem:[%s6011 + $0x49] sm:$0xff]
      %v6409 = vld [vmem:[%s6011 + $0x51] sm:$0xff]
      %v6410 = vld [vmem:[%s6011 + $0x61] sm:$0xff]
      %v6411 = vld [vmem:[%s6011 + $0x69] sm:$0xff]
      %v6412 = vld [vmem:[%s6011 + $0x79] sm:$0xff]
      %v6413 = vld [vmem:[%s6011 + $0x81] sm:$0xff]
      %v6414 = vld [vmem:[%s6011 + $0x91] sm:$0xff]
      %v6415 = vld [vmem:[%s6011 + $0x99] sm:$0xff]
      %v6416 = vld [vmem:[%s6011 + $0xa9] sm:$0xff]
      %v6417 = vld [vmem:[%s6011 + $0xb1] sm:$0xff]
      %v6418 = vld [vmem:[%s6011 + $0xc1] sm:$0xff]
      %v6419 = vld [vmem:[%s6011 + $0xc9] sm:$0xff]
      %v6420 = vld [vmem:[%s6011 + $0xd9] sm:$0xff]
      %v6421 = vld [vmem:[%s6011 + $0xe1] sm:$0xff]
      %v6422 = vld [vmem:[%s6011 + $0xf1] sm:$0xff]
      %v6423 = vld [vmem:[%s6011 + $0xf9] sm:$0xff]
      %v6424 = vld [vmem:[%s6011 + $0x109] sm:$0xff]
      %v6425 = vld [vmem:[%s6011 + $0x111] sm:$0xff]
      %v6426 = vld [vmem:[%s6011 + $0x121] sm:$0xff]
      %v6427 = vld [vmem:[%s6011 + $0x129] sm:$0xff]
      %v6428 = vld [vmem:[%s6011 + $0x139] sm:$0xff]
      %v6429 = vld [vmem:[%s6011 + $0x141] sm:$0xff]
      %v6430 = vld [vmem:[%s6011 + $0x151] sm:$0xff]
      %v6431 = vld [vmem:[%s6011 + $0x159] sm:$0xff]
      %v6432 = vld [vmem:[%s6011 + $0x169] sm:$0xff]
      %v6433 = vld [vmem:[%s6011 + $0x171] sm:$0xff]
      %s6434 = scalar_lea.vmem %s210, 64
      %v6435 = vld [vmem:[%s6434] sm:$0xf]
      %v6437 = vsel %vm289, %v6402, 0
      %v6440 = vsel %vm289, %v6403, 0
      %v6443 = vsel %vm289, %v6404, 0
      %v6446 = vsel %vm289, %v6405, 0
      %v6449 = vsel %vm289, %v6406, 0
      %v6452 = vsel %vm289, %v6407, 0
      %v6455 = vsel %vm289, %v6408, 0
      %v6458 = vsel %vm289, %v6409, 0
      %v6461 = vsel %vm289, %v6410, 0
      %v6464 = vsel %vm289, %v6411, 0
      %v6467 = vsel %vm289, %v6412, 0
      %v6470 = vsel %vm289, %v6413, 0
      %v6473 = vsel %vm289, %v6414, 0
      %v6476 = vsel %vm289, %v6415, 0
      %v6479 = vsel %vm289, %v6416, 0
      %v6482 = vsel %vm289, %v6417, 0
      %v6485 = vsel %vm289, %v6418, 0
      %v6488 = vsel %vm289, %v6419, 0
      %v6491 = vsel %vm289, %v6420, 0
      %v6494 = vsel %vm289, %v6421, 0
      %v6497 = vsel %vm289, %v6422, 0
      %v6500 = vsel %vm289, %v6423, 0
      %v6503 = vsel %vm289, %v6424, 0
      %v6506 = vsel %vm289, %v6425, 0
      %v6509 = vsel %vm289, %v6426, 0
      %v6512 = vsel %vm289, %v6427, 0
      %v6515 = vsel %vm289, %v6428, 0
      %v6518 = vsel %vm289, %v6429, 0
      %v6521 = vsel %vm289, %v6430, 0
      %v6524 = vsel %vm289, %v6431, 0
      %v6527 = vsel %vm289, %v6432, 0
      %v6530 = vsel %vm289, %v6433, 0
      %v6533 = vsel %vm386, %v6435, 0
      %6535 = vmatprep.subr.mxu0 0.0
      %6536 = vmatpush1.msra.mxu0 0.0
      %6537 = vmatprep.subr.mxu0 0.0
      %6538 = vmatpush1.msra.mxu0 0.0
      %6539 = vmatprep.subr.mxu0 0.0
      %6540 = vmatpush1.msra.mxu0 0.0
      %6541 = vmatprep.subr.mxu0 0.0
      %6542 = vmatpush1.msra.mxu0 0.0
      %6543 = vmatprep.subr.mxu0 0.0
      %6544 = vmatpush1.msra.mxu0 0.0
      %6545 = vmatprep.subr.mxu0 0.0
      %6546 = vmatpush1.msra.mxu0 0.0
      %6547 = vmatprep.subr.mxu0 0.0
      %6548 = vmatpush1.msra.mxu0 0.0
      %6549 = vmatprep.subr.mxu0 0.0
      %6550 = vmatpush1.msra.mxu0 0.0
      %6551 = vmatprep.subr.mxu0 0.0
      %6552 = vmatpush1.msra.mxu0 0.0
      %6553 = vmatprep.subr.mxu0 0.0
      %6554 = vmatpush1.msra.mxu0 0.0
      %6555 = vmatprep.subr.mxu0 0.0
      %6556 = vmatpush1.msra.mxu0 0.0
      %6557 = vmatprep.subr.mxu0 0.0
      %6558 = vmatpush1.msra.mxu0 0.0
      %6559 = vmatprep.subr.mxu0 0.0
      %6560 = vmatpush1.msra.mxu0 0.0
      %6561 = vmatprep.subr.mxu0 0.0
      %6562 = vmatpush1.msra.mxu0 0.0
      %6563 = vmatprep.subr.mxu0 0.0
      %6564 = vmatpush1.msra.mxu0 0.0
      %6565 = vmatprep.subr.mxu0 0.0
      %6566 = vmatpush1.msra.mxu0 %v6533
      %6567 = vmatprep.subr.mxu0 0.0
      %6568 = vmatpush2.msra.mxu0 0.0
      %6569 = vmatprep.subr.mxu0 0.0
      %6570 = vmatpush2.msra.mxu0 0.0
      %6571 = vmatprep.subr.mxu0 0.0
      %6572 = vmatpush2.msra.mxu0 0.0
      %6573 = vmatprep.subr.mxu0 0.0
      %6574 = vmatpush2.msra.mxu0 0.0
      %6575 = vmatprep.subr.mxu0 0.0
      %6576 = vmatpush2.msra.mxu0 0.0
      %6577 = vmatprep.subr.mxu0 0.0
      %6578 = vmatpush2.msra.mxu0 0.0
      %6579 = vmatprep.subr.mxu0 0.0
      %6580 = vmatpush2.msra.mxu0 0.0
      %6581 = vmatprep.subr.mxu0 0.0
      %6582 = vmatpush2.msra.mxu0 0.0
      %6583 = vmatprep.subr.mxu0 0.0
      %6584 = vmatpush2.msra.mxu0 0.0
      %6585 = vmatprep.subr.mxu0 0.0
      %6586 = vmatpush2.msra.mxu0 0.0
      %6587 = vmatprep.subr.mxu0 0.0
      %6588 = vmatpush2.msra.mxu0 0.0
      %6589 = vmatprep.subr.mxu0 0.0
      %6590 = vmatpush2.msra.mxu0 0.0
      %6591 = vmatprep.subr.mxu0 0.0
      %6592 = vmatpush2.msra.mxu0 0.0
      %6593 = vmatprep.subr.mxu0 0.0
      %6594 = vmatpush2.msra.mxu0 0.0
      %6595 = vmatprep.subr.mxu0 0.0
      %6596 = vmatpush2.msra.mxu0 0.0
      %6597 = vmatprep.subr.mxu0 0.0
      %6598 = vmatpush2.msra.mxu0 0.0
      %6599 = vmatprep.mubr.f32.mxu0 0.0
      %6600 = vmatmul.mubr.f32.gmra.mxu0 %v6437
      %v6601 = vpop.f32.mrf.mxu0
      %v6602 = vadd.f32 0.0, %v6601
      %v6603 = vpop.f32.mrf.mxu0
      %6604 = vmatprep.mubr.f32.mxu0 0.0
      %6605 = vmatmul.mubr.f32.gmra.mxu0 %v6440
      %v6606 = vpop.f32.mrf.mxu0
      %v6607 = vadd.f32 0.0, %v6606
      %v6608 = vpop.f32.mrf.mxu0
      %6609 = vmatprep.mubr.f32.mxu0 0.0
      %6610 = vmatmul.mubr.f32.gmra.mxu0 %v6443
      %v6611 = vpop.f32.mrf.mxu0
      %v6612 = vadd.f32 0.0, %v6611
      %v6613 = vpop.f32.mrf.mxu0
      %6614 = vmatprep.mubr.f32.mxu0 0.0
      %6615 = vmatmul.mubr.f32.gmra.mxu0 %v6446
      %v6616 = vpop.f32.mrf.mxu0
      %v6617 = vadd.f32 0.0, %v6616
      %v6618 = vpop.f32.mrf.mxu0
      %6619 = vmatprep.mubr.f32.mxu0 0.0
      %6620 = vmatmul.mubr.f32.gmra.mxu0 %v6449
      %v6621 = vpop.f32.mrf.mxu0
      %v6622 = vadd.f32 0.0, %v6621
      %v6623 = vpop.f32.mrf.mxu0
      %6624 = vmatprep.mubr.f32.mxu0 0.0
      %6625 = vmatmul.mubr.f32.gmra.mxu0 %v6452
      %v6626 = vpop.f32.mrf.mxu0
      %v6627 = vadd.f32 0.0, %v6626
      %v6628 = vpop.f32.mrf.mxu0
      %6629 = vmatprep.mubr.f32.mxu0 0.0
      %6630 = vmatmul.mubr.f32.gmra.mxu0 %v6455
      %v6631 = vpop.f32.mrf.mxu0
      %v6632 = vadd.f32 0.0, %v6631
      %v6633 = vpop.f32.mrf.mxu0
      %6634 = vmatprep.mubr.f32.mxu0 0.0
      %6635 = vmatmul.mubr.f32.gmra.mxu0 %v6458
      %v6636 = vpop.f32.mrf.mxu0
      %v6637 = vadd.f32 0.0, %v6636
      %v6638 = vpop.f32.mrf.mxu0
      %6639 = vmatprep.mubr.f32.mxu0 0.0
      %6640 = vmatmul.mubr.f32.gmra.mxu0 %v6461
      %v6641 = vpop.f32.mrf.mxu0
      %v6642 = vadd.f32 0.0, %v6641
      %v6643 = vpop.f32.mrf.mxu0
      %6644 = vmatprep.mubr.f32.mxu0 0.0
      %6645 = vmatmul.mubr.f32.gmra.mxu0 %v6464
      %v6646 = vpop.f32.mrf.mxu0
      %v6647 = vadd.f32 0.0, %v6646
      %v6648 = vpop.f32.mrf.mxu0
      %6649 = vmatprep.mubr.f32.mxu0 0.0
      %6650 = vmatmul.mubr.f32.gmra.mxu0 %v6467
      %v6651 = vpop.f32.mrf.mxu0
      %v6652 = vadd.f32 0.0, %v6651
      %v6653 = vpop.f32.mrf.mxu0
      %6654 = vmatprep.mubr.f32.mxu0 0.0
      %6655 = vmatmul.mubr.f32.gmra.mxu0 %v6470
      %v6656 = vpop.f32.mrf.mxu0
      %v6657 = vadd.f32 0.0, %v6656
      %v6658 = vpop.f32.mrf.mxu0
      %6659 = vmatprep.mubr.f32.mxu0 0.0
      %6660 = vmatmul.mubr.f32.gmra.mxu0 %v6473
      %v6661 = vpop.f32.mrf.mxu0
      %v6662 = vadd.f32 0.0, %v6661
      %v6663 = vpop.f32.mrf.mxu0
      %6664 = vmatprep.mubr.f32.mxu0 0.0
      %6665 = vmatmul.mubr.f32.gmra.mxu0 %v6476
      %v6666 = vpop.f32.mrf.mxu0
      %v6667 = vadd.f32 0.0, %v6666
      %v6668 = vpop.f32.mrf.mxu0
      %6669 = vmatprep.mubr.f32.mxu0 0.0
      %6670 = vmatmul.mubr.f32.gmra.mxu0 %v6479
      %v6671 = vpop.f32.mrf.mxu0
      %v6672 = vadd.f32 0.0, %v6671
      %v6673 = vpop.f32.mrf.mxu0
      %6674 = vmatprep.mubr.f32.mxu0 0.0
      %6675 = vmatmul.mubr.f32.gmra.mxu0 %v6482
      %v6676 = vpop.f32.mrf.mxu0
      %v6677 = vadd.f32 0.0, %v6676
      %v6678 = vpop.f32.mrf.mxu0
      %6679 = vmatprep.mubr.f32.mxu0 0.0
      %6680 = vmatmul.mubr.f32.gmra.mxu0 %v6485
      %v6681 = vpop.f32.mrf.mxu0
      %v6682 = vadd.f32 0.0, %v6681
      %v6683 = vpop.f32.mrf.mxu0
      %6684 = vmatprep.mubr.f32.mxu0 0.0
      %6685 = vmatmul.mubr.f32.gmra.mxu0 %v6488
      %v6686 = vpop.f32.mrf.mxu0
      %v6687 = vadd.f32 0.0, %v6686
      %v6688 = vpop.f32.mrf.mxu0
      %6689 = vmatprep.mubr.f32.mxu0 0.0
      %6690 = vmatmul.mubr.f32.gmra.mxu0 %v6491
      %v6691 = vpop.f32.mrf.mxu0
      %v6692 = vadd.f32 0.0, %v6691
      %v6693 = vpop.f32.mrf.mxu0
      %6694 = vmatprep.mubr.f32.mxu0 0.0
      %6695 = vmatmul.mubr.f32.gmra.mxu0 %v6494
      %v6696 = vpop.f32.mrf.mxu0
      %v6697 = vadd.f32 0.0, %v6696
      %v6698 = vpop.f32.mrf.mxu0
      %6699 = vmatprep.mubr.f32.mxu0 0.0
      %6700 = vmatmul.mubr.f32.gmra.mxu0 %v6497
      %v6701 = vpop.f32.mrf.mxu0
      %v6702 = vadd.f32 0.0, %v6701
      %v6703 = vpop.f32.mrf.mxu0
      %6704 = vmatprep.mubr.f32.mxu0 0.0
      %6705 = vmatmul.mubr.f32.gmra.mxu0 %v6500
      %v6706 = vpop.f32.mrf.mxu0
      %v6707 = vadd.f32 0.0, %v6706
      %v6708 = vpop.f32.mrf.mxu0
      %6709 = vmatprep.mubr.f32.mxu0 0.0
      %6710 = vmatmul.mubr.f32.gmra.mxu0 %v6503
      %v6711 = vpop.f32.mrf.mxu0
      %v6712 = vadd.f32 0.0, %v6711
      %v6713 = vpop.f32.mrf.mxu0
      %6714 = vmatprep.mubr.f32.mxu0 0.0
      %6715 = vmatmul.mubr.f32.gmra.mxu0 %v6506
      %v6716 = vpop.f32.mrf.mxu0
      %v6717 = vadd.f32 0.0, %v6716
      %v6718 = vpop.f32.mrf.mxu0
      %6719 = vmatprep.mubr.f32.mxu0 0.0
      %6720 = vmatmul.mubr.f32.gmra.mxu0 %v6509
      %v6721 = vpop.f32.mrf.mxu0
      %v6722 = vadd.f32 0.0, %v6721
      %v6723 = vpop.f32.mrf.mxu0
      %6724 = vmatprep.mubr.f32.mxu0 0.0
      %6725 = vmatmul.mubr.f32.gmra.mxu0 %v6512
      %v6726 = vpop.f32.mrf.mxu0
      %v6727 = vadd.f32 0.0, %v6726
      %v6728 = vpop.f32.mrf.mxu0
      %6729 = vmatprep.mubr.f32.mxu0 0.0
      %6730 = vmatmul.mubr.f32.gmra.mxu0 %v6515
      %v6731 = vpop.f32.mrf.mxu0
      %v6732 = vadd.f32 0.0, %v6731
      %v6733 = vpop.f32.mrf.mxu0
      %6734 = vmatprep.mubr.f32.mxu0 0.0
      %6735 = vmatmul.mubr.f32.gmra.mxu0 %v6518
      %v6736 = vpop.f32.mrf.mxu0
      %v6737 = vadd.f32 0.0, %v6736
      %v6738 = vpop.f32.mrf.mxu0
      %6739 = vmatprep.mubr.f32.mxu0 0.0
      %6740 = vmatmul.mubr.f32.gmra.mxu0 %v6521
      %v6741 = vpop.f32.mrf.mxu0
      %v6742 = vadd.f32 0.0, %v6741
      %v6743 = vpop.f32.mrf.mxu0
      %6744 = vmatprep.mubr.f32.mxu0 0.0
      %6745 = vmatmul.mubr.f32.gmra.mxu0 %v6524
      %v6746 = vpop.f32.mrf.mxu0
      %v6747 = vadd.f32 0.0, %v6746
      %v6748 = vpop.f32.mrf.mxu0
      %6749 = vmatprep.mubr.f32.mxu0 0.0
      %6750 = vmatmul.mubr.f32.gmra.mxu0 %v6527
      %v6751 = vpop.f32.mrf.mxu0
      %v6752 = vadd.f32 0.0, %v6751
      %v6753 = vpop.f32.mrf.mxu0
      %6754 = vmatprep.mubr.f32.mxu0 0.0
      %6755 = vmatmul.mubr.f32.gmra.mxu0 %v6530
      %v6756 = vpop.f32.mrf.mxu0
      %v6757 = vadd.f32 0.0, %v6756
      %v6758 = vpop.f32.mrf.mxu0
      %6759 = vdwg.mxu0
      %v6760 = vadd.f32 %v6370, %v6602
      %v6761 = vadd.f32 %v6371, %v6607
      %v6762 = vadd.f32 %v6372, %v6612
      %v6763 = vadd.f32 %v6373, %v6617
      %v6764 = vadd.f32 %v6374, %v6622
      %v6765 = vadd.f32 %v6375, %v6627
      %v6766 = vadd.f32 %v6376, %v6632
      %v6767 = vadd.f32 %v6377, %v6637
      %v6768 = vadd.f32 %v6378, %v6642
      %v6769 = vadd.f32 %v6379, %v6647
      %v6770 = vadd.f32 %v6380, %v6652
      %v6771 = vadd.f32 %v6381, %v6657
      %v6772 = vadd.f32 %v6382, %v6662
      %v6773 = vadd.f32 %v6383, %v6667
      %v6774 = vadd.f32 %v6384, %v6672
      %v6775 = vadd.f32 %v6385, %v6677
      %v6776 = vadd.f32 %v6386, %v6682
      %v6777 = vadd.f32 %v6387, %v6687
      %v6778 = vadd.f32 %v6388, %v6692
      %v6779 = vadd.f32 %v6389, %v6697
      %v6780 = vadd.f32 %v6390, %v6702
      %v6781 = vadd.f32 %v6391, %v6707
      %v6782 = vadd.f32 %v6392, %v6712
      %v6783 = vadd.f32 %v6393, %v6717
      %v6784 = vadd.f32 %v6394, %v6722
      %v6785 = vadd.f32 %v6395, %v6727
      %v6786 = vadd.f32 %v6396, %v6732
      %v6787 = vadd.f32 %v6397, %v6737
      %v6788 = vadd.f32 %v6398, %v6742
      %v6789 = vadd.f32 %v6399, %v6747
      %v6790 = vadd.f32 %v6400, %v6752
      %v6791 = vadd.f32 %v6401, %v6757
      %v6792 = vld [vmem:[%s6011 + $0x2] sm:$0xff]
      %v6793 = vld [vmem:[%s6011 + $0xa] sm:$0xff]
      %v6794 = vld [vmem:[%s6011 + $0x1a] sm:$0xff]
      %v6795 = vld [vmem:[%s6011 + $0x22] sm:$0xff]
      %v6796 = vld [vmem:[%s6011 + $0x32] sm:$0xff]
      %v6797 = vld [vmem:[%s6011 + $0x3a] sm:$0xff]
      %v6798 = vld [vmem:[%s6011 + $0x4a] sm:$0xff]
      %v6799 = vld [vmem:[%s6011 + $0x52] sm:$0xff]
      %v6800 = vld [vmem:[%s6011 + $0x62] sm:$0xff]
      %v6801 = vld [vmem:[%s6011 + $0x6a] sm:$0xff]
      %v6802 = vld [vmem:[%s6011 + $0x7a] sm:$0xff]
      %v6803 = vld [vmem:[%s6011 + $0x82] sm:$0xff]
      %v6804 = vld [vmem:[%s6011 + $0x92] sm:$0xff]
      %v6805 = vld [vmem:[%s6011 + $0x9a] sm:$0xff]
      %v6806 = vld [vmem:[%s6011 + $0xaa] sm:$0xff]
      %v6807 = vld [vmem:[%s6011 + $0xb2] sm:$0xff]
      %v6808 = vld [vmem:[%s6011 + $0xc2] sm:$0xff]
      %v6809 = vld [vmem:[%s6011 + $0xca] sm:$0xff]
      %v6810 = vld [vmem:[%s6011 + $0xda] sm:$0xff]
      %v6811 = vld [vmem:[%s6011 + $0xe2] sm:$0xff]
      %v6812 = vld [vmem:[%s6011 + $0xf2] sm:$0xff]
      %v6813 = vld [vmem:[%s6011 + $0xfa] sm:$0xff]
      %v6814 = vld [vmem:[%s6011 + $0x10a] sm:$0xff]
      %v6815 = vld [vmem:[%s6011 + $0x112] sm:$0xff]
      %v6816 = vld [vmem:[%s6011 + $0x122] sm:$0xff]
      %v6817 = vld [vmem:[%s6011 + $0x12a] sm:$0xff]
      %v6818 = vld [vmem:[%s6011 + $0x13a] sm:$0xff]
      %v6819 = vld [vmem:[%s6011 + $0x142] sm:$0xff]
      %v6820 = vld [vmem:[%s6011 + $0x152] sm:$0xff]
      %v6821 = vld [vmem:[%s6011 + $0x15a] sm:$0xff]
      %v6822 = vld [vmem:[%s6011 + $0x16a] sm:$0xff]
      %v6823 = vld [vmem:[%s6011 + $0x172] sm:$0xff]
      %s6824 = scalar_lea.vmem %s210, 68
      %v6825 = vld [vmem:[%s6824] sm:$0xf]
      %v6827 = vsel %vm289, %v6792, 0
      %v6830 = vsel %vm289, %v6793, 0
      %v6833 = vsel %vm289, %v6794, 0
      %v6836 = vsel %vm289, %v6795, 0
      %v6839 = vsel %vm289, %v6796, 0
      %v6842 = vsel %vm289, %v6797, 0
      %v6845 = vsel %vm289, %v6798, 0
      %v6848 = vsel %vm289, %v6799, 0
      %v6851 = vsel %vm289, %v6800, 0
      %v6854 = vsel %vm289, %v6801, 0
      %v6857 = vsel %vm289, %v6802, 0
      %v6860 = vsel %vm289, %v6803, 0
      %v6863 = vsel %vm289, %v6804, 0
      %v6866 = vsel %vm289, %v6805, 0
      %v6869 = vsel %vm289, %v6806, 0
      %v6872 = vsel %vm289, %v6807, 0
      %v6875 = vsel %vm289, %v6808, 0
      %v6878 = vsel %vm289, %v6809, 0
      %v6881 = vsel %vm289, %v6810, 0
      %v6884 = vsel %vm289, %v6811, 0
      %v6887 = vsel %vm289, %v6812, 0
      %v6890 = vsel %vm289, %v6813, 0
      %v6893 = vsel %vm289, %v6814, 0
      %v6896 = vsel %vm289, %v6815, 0
      %v6899 = vsel %vm289, %v6816, 0
      %v6902 = vsel %vm289, %v6817, 0
      %v6905 = vsel %vm289, %v6818, 0
      %v6908 = vsel %vm289, %v6819, 0
      %v6911 = vsel %vm289, %v6820, 0
      %v6914 = vsel %vm289, %v6821, 0
      %v6917 = vsel %vm289, %v6822, 0
      %v6920 = vsel %vm289, %v6823, 0
      %v6923 = vsel %vm386, %v6825, 0
      %6925 = vmatprep.subr.mxu0 0.0
      %6926 = vmatpush1.msra.mxu0 0.0
      %6927 = vmatprep.subr.mxu0 0.0
      %6928 = vmatpush1.msra.mxu0 0.0
      %6929 = vmatprep.subr.mxu0 0.0
      %6930 = vmatpush1.msra.mxu0 0.0
      %6931 = vmatprep.subr.mxu0 0.0
      %6932 = vmatpush1.msra.mxu0 0.0
      %6933 = vmatprep.subr.mxu0 0.0
      %6934 = vmatpush1.msra.mxu0 0.0
      %6935 = vmatprep.subr.mxu0 0.0
      %6936 = vmatpush1.msra.mxu0 0.0
      %6937 = vmatprep.subr.mxu0 0.0
      %6938 = vmatpush1.msra.mxu0 0.0
      %6939 = vmatprep.subr.mxu0 0.0
      %6940 = vmatpush1.msra.mxu0 0.0
      %6941 = vmatprep.subr.mxu0 0.0
      %6942 = vmatpush1.msra.mxu0 0.0
      %6943 = vmatprep.subr.mxu0 0.0
      %6944 = vmatpush1.msra.mxu0 0.0
      %6945 = vmatprep.subr.mxu0 0.0
      %6946 = vmatpush1.msra.mxu0 0.0
      %6947 = vmatprep.subr.mxu0 0.0
      %6948 = vmatpush1.msra.mxu0 0.0
      %6949 = vmatprep.subr.mxu0 0.0
      %6950 = vmatpush1.msra.mxu0 0.0
      %6951 = vmatprep.subr.mxu0 0.0
      %6952 = vmatpush1.msra.mxu0 0.0
      %6953 = vmatprep.subr.mxu0 0.0
      %6954 = vmatpush1.msra.mxu0 0.0
      %6955 = vmatprep.subr.mxu0 0.0
      %6956 = vmatpush1.msra.mxu0 %v6923
      %6957 = vmatprep.subr.mxu0 0.0
      %6958 = vmatpush2.msra.mxu0 0.0
      %6959 = vmatprep.subr.mxu0 0.0
      %6960 = vmatpush2.msra.mxu0 0.0
      %6961 = vmatprep.subr.mxu0 0.0
      %6962 = vmatpush2.msra.mxu0 0.0
      %6963 = vmatprep.subr.mxu0 0.0
      %6964 = vmatpush2.msra.mxu0 0.0
      %6965 = vmatprep.subr.mxu0 0.0
      %6966 = vmatpush2.msra.mxu0 0.0
      %6967 = vmatprep.subr.mxu0 0.0
      %6968 = vmatpush2.msra.mxu0 0.0
      %6969 = vmatprep.subr.mxu0 0.0
      %6970 = vmatpush2.msra.mxu0 0.0
      %6971 = vmatprep.subr.mxu0 0.0
      %6972 = vmatpush2.msra.mxu0 0.0
      %6973 = vmatprep.subr.mxu0 0.0
      %6974 = vmatpush2.msra.mxu0 0.0
      %6975 = vmatprep.subr.mxu0 0.0
      %6976 = vmatpush2.msra.mxu0 0.0
      %6977 = vmatprep.subr.mxu0 0.0
      %6978 = vmatpush2.msra.mxu0 0.0
      %6979 = vmatprep.subr.mxu0 0.0
      %6980 = vmatpush2.msra.mxu0 0.0
      %6981 = vmatprep.subr.mxu0 0.0
      %6982 = vmatpush2.msra.mxu0 0.0
      %6983 = vmatprep.subr.mxu0 0.0
      %6984 = vmatpush2.msra.mxu0 0.0
      %6985 = vmatprep.subr.mxu0 0.0
      %6986 = vmatpush2.msra.mxu0 0.0
      %6987 = vmatprep.subr.mxu0 0.0
      %6988 = vmatpush2.msra.mxu0 0.0
      %6989 = vmatprep.mubr.f32.mxu0 0.0
      %6990 = vmatmul.mubr.f32.gmra.mxu0 %v6827
      %v6991 = vpop.f32.mrf.mxu0
      %v6992 = vadd.f32 0.0, %v6991
      %v6993 = vpop.f32.mrf.mxu0
      %6994 = vmatprep.mubr.f32.mxu0 0.0
      %6995 = vmatmul.mubr.f32.gmra.mxu0 %v6830
      %v6996 = vpop.f32.mrf.mxu0
      %v6997 = vadd.f32 0.0, %v6996
      %v6998 = vpop.f32.mrf.mxu0
      %6999 = vmatprep.mubr.f32.mxu0 0.0
      %7000 = vmatmul.mubr.f32.gmra.mxu0 %v6833
      %v7001 = vpop.f32.mrf.mxu0
      %v7002 = vadd.f32 0.0, %v7001
      %v7003 = vpop.f32.mrf.mxu0
      %7004 = vmatprep.mubr.f32.mxu0 0.0
      %7005 = vmatmul.mubr.f32.gmra.mxu0 %v6836
      %v7006 = vpop.f32.mrf.mxu0
      %v7007 = vadd.f32 0.0, %v7006
      %v7008 = vpop.f32.mrf.mxu0
      %7009 = vmatprep.mubr.f32.mxu0 0.0
      %7010 = vmatmul.mubr.f32.gmra.mxu0 %v6839
      %v7011 = vpop.f32.mrf.mxu0
      %v7012 = vadd.f32 0.0, %v7011
      %v7013 = vpop.f32.mrf.mxu0
      %7014 = vmatprep.mubr.f32.mxu0 0.0
      %7015 = vmatmul.mubr.f32.gmra.mxu0 %v6842
      %v7016 = vpop.f32.mrf.mxu0
      %v7017 = vadd.f32 0.0, %v7016
      %v7018 = vpop.f32.mrf.mxu0
      %7019 = vmatprep.mubr.f32.mxu0 0.0
      %7020 = vmatmul.mubr.f32.gmra.mxu0 %v6845
      %v7021 = vpop.f32.mrf.mxu0
      %v7022 = vadd.f32 0.0, %v7021
      %v7023 = vpop.f32.mrf.mxu0
      %7024 = vmatprep.mubr.f32.mxu0 0.0
      %7025 = vmatmul.mubr.f32.gmra.mxu0 %v6848
      %v7026 = vpop.f32.mrf.mxu0
      %v7027 = vadd.f32 0.0, %v7026
      %v7028 = vpop.f32.mrf.mxu0
      %7029 = vmatprep.mubr.f32.mxu0 0.0
      %7030 = vmatmul.mubr.f32.gmra.mxu0 %v6851
      %v7031 = vpop.f32.mrf.mxu0
      %v7032 = vadd.f32 0.0, %v7031
      %v7033 = vpop.f32.mrf.mxu0
      %7034 = vmatprep.mubr.f32.mxu0 0.0
      %7035 = vmatmul.mubr.f32.gmra.mxu0 %v6854
      %v7036 = vpop.f32.mrf.mxu0
      %v7037 = vadd.f32 0.0, %v7036
      %v7038 = vpop.f32.mrf.mxu0
      %7039 = vmatprep.mubr.f32.mxu0 0.0
      %7040 = vmatmul.mubr.f32.gmra.mxu0 %v6857
      %v7041 = vpop.f32.mrf.mxu0
      %v7042 = vadd.f32 0.0, %v7041
      %v7043 = vpop.f32.mrf.mxu0
      %7044 = vmatprep.mubr.f32.mxu0 0.0
      %7045 = vmatmul.mubr.f32.gmra.mxu0 %v6860
      %v7046 = vpop.f32.mrf.mxu0
      %v7047 = vadd.f32 0.0, %v7046
      %v7048 = vpop.f32.mrf.mxu0
      %7049 = vmatprep.mubr.f32.mxu0 0.0
      %7050 = vmatmul.mubr.f32.gmra.mxu0 %v6863
      %v7051 = vpop.f32.mrf.mxu0
      %v7052 = vadd.f32 0.0, %v7051
      %v7053 = vpop.f32.mrf.mxu0
      %7054 = vmatprep.mubr.f32.mxu0 0.0
      %7055 = vmatmul.mubr.f32.gmra.mxu0 %v6866
      %v7056 = vpop.f32.mrf.mxu0
      %v7057 = vadd.f32 0.0, %v7056
      %v7058 = vpop.f32.mrf.mxu0
      %7059 = vmatprep.mubr.f32.mxu0 0.0
      %7060 = vmatmul.mubr.f32.gmra.mxu0 %v6869
      %v7061 = vpop.f32.mrf.mxu0
      %v7062 = vadd.f32 0.0, %v7061
      %v7063 = vpop.f32.mrf.mxu0
      %7064 = vmatprep.mubr.f32.mxu0 0.0
      %7065 = vmatmul.mubr.f32.gmra.mxu0 %v6872
      %v7066 = vpop.f32.mrf.mxu0
      %v7067 = vadd.f32 0.0, %v7066
      %v7068 = vpop.f32.mrf.mxu0
      %7069 = vmatprep.mubr.f32.mxu0 0.0
      %7070 = vmatmul.mubr.f32.gmra.mxu0 %v6875
      %v7071 = vpop.f32.mrf.mxu0
      %v7072 = vadd.f32 0.0, %v7071
      %v7073 = vpop.f32.mrf.mxu0
      %7074 = vmatprep.mubr.f32.mxu0 0.0
      %7075 = vmatmul.mubr.f32.gmra.mxu0 %v6878
      %v7076 = vpop.f32.mrf.mxu0
      %v7077 = vadd.f32 0.0, %v7076
      %v7078 = vpop.f32.mrf.mxu0
      %7079 = vmatprep.mubr.f32.mxu0 0.0
      %7080 = vmatmul.mubr.f32.gmra.mxu0 %v6881
      %v7081 = vpop.f32.mrf.mxu0
      %v7082 = vadd.f32 0.0, %v7081
      %v7083 = vpop.f32.mrf.mxu0
      %7084 = vmatprep.mubr.f32.mxu0 0.0
      %7085 = vmatmul.mubr.f32.gmra.mxu0 %v6884
      %v7086 = vpop.f32.mrf.mxu0
      %v7087 = vadd.f32 0.0, %v7086
      %v7088 = vpop.f32.mrf.mxu0
      %7089 = vmatprep.mubr.f32.mxu0 0.0
      %7090 = vmatmul.mubr.f32.gmra.mxu0 %v6887
      %v7091 = vpop.f32.mrf.mxu0
      %v7092 = vadd.f32 0.0, %v7091
      %v7093 = vpop.f32.mrf.mxu0
      %7094 = vmatprep.mubr.f32.mxu0 0.0
      %7095 = vmatmul.mubr.f32.gmra.mxu0 %v6890
      %v7096 = vpop.f32.mrf.mxu0
      %v7097 = vadd.f32 0.0, %v7096
      %v7098 = vpop.f32.mrf.mxu0
      %7099 = vmatprep.mubr.f32.mxu0 0.0
      %7100 = vmatmul.mubr.f32.gmra.mxu0 %v6893
      %v7101 = vpop.f32.mrf.mxu0
      %v7102 = vadd.f32 0.0, %v7101
      %v7103 = vpop.f32.mrf.mxu0
      %7104 = vmatprep.mubr.f32.mxu0 0.0
      %7105 = vmatmul.mubr.f32.gmra.mxu0 %v6896
      %v7106 = vpop.f32.mrf.mxu0
      %v7107 = vadd.f32 0.0, %v7106
      %v7108 = vpop.f32.mrf.mxu0
      %7109 = vmatprep.mubr.f32.mxu0 0.0
      %7110 = vmatmul.mubr.f32.gmra.mxu0 %v6899
      %v7111 = vpop.f32.mrf.mxu0
      %v7112 = vadd.f32 0.0, %v7111
      %v7113 = vpop.f32.mrf.mxu0
      %7114 = vmatprep.mubr.f32.mxu0 0.0
      %7115 = vmatmul.mubr.f32.gmra.mxu0 %v6902
      %v7116 = vpop.f32.mrf.mxu0
      %v7117 = vadd.f32 0.0, %v7116
      %v7118 = vpop.f32.mrf.mxu0
      %7119 = vmatprep.mubr.f32.mxu0 0.0
      %7120 = vmatmul.mubr.f32.gmra.mxu0 %v6905
      %v7121 = vpop.f32.mrf.mxu0
      %v7122 = vadd.f32 0.0, %v7121
      %v7123 = vpop.f32.mrf.mxu0
      %7124 = vmatprep.mubr.f32.mxu0 0.0
      %7125 = vmatmul.mubr.f32.gmra.mxu0 %v6908
      %v7126 = vpop.f32.mrf.mxu0
      %v7127 = vadd.f32 0.0, %v7126
      %v7128 = vpop.f32.mrf.mxu0
      %7129 = vmatprep.mubr.f32.mxu0 0.0
      %7130 = vmatmul.mubr.f32.gmra.mxu0 %v6911
      %v7131 = vpop.f32.mrf.mxu0
      %v7132 = vadd.f32 0.0, %v7131
      %v7133 = vpop.f32.mrf.mxu0
      %7134 = vmatprep.mubr.f32.mxu0 0.0
      %7135 = vmatmul.mubr.f32.gmra.mxu0 %v6914
      %v7136 = vpop.f32.mrf.mxu0
      %v7137 = vadd.f32 0.0, %v7136
      %v7138 = vpop.f32.mrf.mxu0
      %7139 = vmatprep.mubr.f32.mxu0 0.0
      %7140 = vmatmul.mubr.f32.gmra.mxu0 %v6917
      %v7141 = vpop.f32.mrf.mxu0
      %v7142 = vadd.f32 0.0, %v7141
      %v7143 = vpop.f32.mrf.mxu0
      %7144 = vmatprep.mubr.f32.mxu0 0.0
      %7145 = vmatmul.mubr.f32.gmra.mxu0 %v6920
      %v7146 = vpop.f32.mrf.mxu0
      %v7147 = vadd.f32 0.0, %v7146
      %v7148 = vpop.f32.mrf.mxu0
      %7149 = vdwg.mxu0
      %v7150 = vadd.f32 %v6760, %v6992
      %v7151 = vadd.f32 %v6761, %v6997
      %v7152 = vadd.f32 %v6762, %v7002
      %v7153 = vadd.f32 %v6763, %v7007
      %v7154 = vadd.f32 %v6764, %v7012
      %v7155 = vadd.f32 %v6765, %v7017
      %v7156 = vadd.f32 %v6766, %v7022
      %v7157 = vadd.f32 %v6767, %v7027
      %v7158 = vadd.f32 %v6768, %v7032
      %v7159 = vadd.f32 %v6769, %v7037
      %v7160 = vadd.f32 %v6770, %v7042
      %v7161 = vadd.f32 %v6771, %v7047
      %v7162 = vadd.f32 %v6772, %v7052
      %v7163 = vadd.f32 %v6773, %v7057
      %v7164 = vadd.f32 %v6774, %v7062
      %v7165 = vadd.f32 %v6775, %v7067
      %v7166 = vadd.f32 %v6776, %v7072
      %v7167 = vadd.f32 %v6777, %v7077
      %v7168 = vadd.f32 %v6778, %v7082
      %v7169 = vadd.f32 %v6779, %v7087
      %v7170 = vadd.f32 %v6780, %v7092
      %v7171 = vadd.f32 %v6781, %v7097
      %v7172 = vadd.f32 %v6782, %v7102
      %v7173 = vadd.f32 %v6783, %v7107
      %v7174 = vadd.f32 %v6784, %v7112
      %v7175 = vadd.f32 %v6785, %v7117
      %v7176 = vadd.f32 %v6786, %v7122
      %v7177 = vadd.f32 %v6787, %v7127
      %v7178 = vadd.f32 %v6788, %v7132
      %v7179 = vadd.f32 %v6789, %v7137
      %v7180 = vadd.f32 %v6790, %v7142
      %v7181 = vadd.f32 %v6791, %v7147
      %v7182 = vld [vmem:[%s6011 + $0x3] sm:$0xff]
      %v7183 = vld [vmem:[%s6011 + $0xb] sm:$0xff]
      %v7184 = vld [vmem:[%s6011 + $0x1b] sm:$0xff]
      %v7185 = vld [vmem:[%s6011 + $0x23] sm:$0xff]
      %v7186 = vld [vmem:[%s6011 + $0x33] sm:$0xff]
      %v7187 = vld [vmem:[%s6011 + $0x3b] sm:$0xff]
      %v7188 = vld [vmem:[%s6011 + $0x4b] sm:$0xff]
      %v7189 = vld [vmem:[%s6011 + $0x53] sm:$0xff]
      %v7190 = vld [vmem:[%s6011 + $0x63] sm:$0xff]
      %v7191 = vld [vmem:[%s6011 + $0x6b] sm:$0xff]
      %v7192 = vld [vmem:[%s6011 + $0x7b] sm:$0xff]
      %v7193 = vld [vmem:[%s6011 + $0x83] sm:$0xff]
      %v7194 = vld [vmem:[%s6011 + $0x93] sm:$0xff]
      %v7195 = vld [vmem:[%s6011 + $0x9b] sm:$0xff]
      %v7196 = vld [vmem:[%s6011 + $0xab] sm:$0xff]
      %v7197 = vld [vmem:[%s6011 + $0xb3] sm:$0xff]
      %v7198 = vld [vmem:[%s6011 + $0xc3] sm:$0xff]
      %v7199 = vld [vmem:[%s6011 + $0xcb] sm:$0xff]
      %v7200 = vld [vmem:[%s6011 + $0xdb] sm:$0xff]
      %v7201 = vld [vmem:[%s6011 + $0xe3] sm:$0xff]
      %v7202 = vld [vmem:[%s6011 + $0xf3] sm:$0xff]
      %v7203 = vld [vmem:[%s6011 + $0xfb] sm:$0xff]
      %v7204 = vld [vmem:[%s6011 + $0x10b] sm:$0xff]
      %v7205 = vld [vmem:[%s6011 + $0x113] sm:$0xff]
      %v7206 = vld [vmem:[%s6011 + $0x123] sm:$0xff]
      %v7207 = vld [vmem:[%s6011 + $0x12b] sm:$0xff]
      %v7208 = vld [vmem:[%s6011 + $0x13b] sm:$0xff]
      %v7209 = vld [vmem:[%s6011 + $0x143] sm:$0xff]
      %v7210 = vld [vmem:[%s6011 + $0x153] sm:$0xff]
      %v7211 = vld [vmem:[%s6011 + $0x15b] sm:$0xff]
      %v7212 = vld [vmem:[%s6011 + $0x16b] sm:$0xff]
      %v7213 = vld [vmem:[%s6011 + $0x173] sm:$0xff]
      %s7214 = scalar_lea.vmem %s210, 72
      %v7215 = vld [vmem:[%s7214] sm:$0xf]
      %v7217 = vsel %vm289, %v7182, 0
      %v7220 = vsel %vm289, %v7183, 0
      %v7223 = vsel %vm289, %v7184, 0
      %v7226 = vsel %vm289, %v7185, 0
      %v7229 = vsel %vm289, %v7186, 0
      %v7232 = vsel %vm289, %v7187, 0
      %v7235 = vsel %vm289, %v7188, 0
      %v7238 = vsel %vm289, %v7189, 0
      %v7241 = vsel %vm289, %v7190, 0
      %v7244 = vsel %vm289, %v7191, 0
      %v7247 = vsel %vm289, %v7192, 0
      %v7250 = vsel %vm289, %v7193, 0
      %v7253 = vsel %vm289, %v7194, 0
      %v7256 = vsel %vm289, %v7195, 0
      %v7259 = vsel %vm289, %v7196, 0
      %v7262 = vsel %vm289, %v7197, 0
      %v7265 = vsel %vm289, %v7198, 0
      %v7268 = vsel %vm289, %v7199, 0
      %v7271 = vsel %vm289, %v7200, 0
      %v7274 = vsel %vm289, %v7201, 0
      %v7277 = vsel %vm289, %v7202, 0
      %v7280 = vsel %vm289, %v7203, 0
      %v7283 = vsel %vm289, %v7204, 0
      %v7286 = vsel %vm289, %v7205, 0
      %v7289 = vsel %vm289, %v7206, 0
      %v7292 = vsel %vm289, %v7207, 0
      %v7295 = vsel %vm289, %v7208, 0
      %v7298 = vsel %vm289, %v7209, 0
      %v7301 = vsel %vm289, %v7210, 0
      %v7304 = vsel %vm289, %v7211, 0
      %v7307 = vsel %vm289, %v7212, 0
      %v7310 = vsel %vm289, %v7213, 0
      %v7313 = vsel %vm386, %v7215, 0
      %7315 = vmatprep.subr.mxu0 0.0
      %7316 = vmatpush1.msra.mxu0 0.0
      %7317 = vmatprep.subr.mxu0 0.0
      %7318 = vmatpush1.msra.mxu0 0.0
      %7319 = vmatprep.subr.mxu0 0.0
      %7320 = vmatpush1.msra.mxu0 0.0
      %7321 = vmatprep.subr.mxu0 0.0
      %7322 = vmatpush1.msra.mxu0 0.0
      %7323 = vmatprep.subr.mxu0 0.0
      %7324 = vmatpush1.msra.mxu0 0.0
      %7325 = vmatprep.subr.mxu0 0.0
      %7326 = vmatpush1.msra.mxu0 0.0
      %7327 = vmatprep.subr.mxu0 0.0
      %7328 = vmatpush1.msra.mxu0 0.0
      %7329 = vmatprep.subr.mxu0 0.0
      %7330 = vmatpush1.msra.mxu0 0.0
      %7331 = vmatprep.subr.mxu0 0.0
      %7332 = vmatpush1.msra.mxu0 0.0
      %7333 = vmatprep.subr.mxu0 0.0
      %7334 = vmatpush1.msra.mxu0 0.0
      %7335 = vmatprep.subr.mxu0 0.0
      %7336 = vmatpush1.msra.mxu0 0.0
      %7337 = vmatprep.subr.mxu0 0.0
      %7338 = vmatpush1.msra.mxu0 0.0
      %7339 = vmatprep.subr.mxu0 0.0
      %7340 = vmatpush1.msra.mxu0 0.0
      %7341 = vmatprep.subr.mxu0 0.0
      %7342 = vmatpush1.msra.mxu0 0.0
      %7343 = vmatprep.subr.mxu0 0.0
      %7344 = vmatpush1.msra.mxu0 0.0
      %7345 = vmatprep.subr.mxu0 0.0
      %7346 = vmatpush1.msra.mxu0 %v7313
      %7347 = vmatprep.subr.mxu0 0.0
      %7348 = vmatpush2.msra.mxu0 0.0
      %7349 = vmatprep.subr.mxu0 0.0
      %7350 = vmatpush2.msra.mxu0 0.0
      %7351 = vmatprep.subr.mxu0 0.0
      %7352 = vmatpush2.msra.mxu0 0.0
      %7353 = vmatprep.subr.mxu0 0.0
      %7354 = vmatpush2.msra.mxu0 0.0
      %7355 = vmatprep.subr.mxu0 0.0
      %7356 = vmatpush2.msra.mxu0 0.0
      %7357 = vmatprep.subr.mxu0 0.0
      %7358 = vmatpush2.msra.mxu0 0.0
      %7359 = vmatprep.subr.mxu0 0.0
      %7360 = vmatpush2.msra.mxu0 0.0
      %7361 = vmatprep.subr.mxu0 0.0
      %7362 = vmatpush2.msra.mxu0 0.0
      %7363 = vmatprep.subr.mxu0 0.0
      %7364 = vmatpush2.msra.mxu0 0.0
      %7365 = vmatprep.subr.mxu0 0.0
      %7366 = vmatpush2.msra.mxu0 0.0
      %7367 = vmatprep.subr.mxu0 0.0
      %7368 = vmatpush2.msra.mxu0 0.0
      %7369 = vmatprep.subr.mxu0 0.0
      %7370 = vmatpush2.msra.mxu0 0.0
      %7371 = vmatprep.subr.mxu0 0.0
      %7372 = vmatpush2.msra.mxu0 0.0
      %7373 = vmatprep.subr.mxu0 0.0
      %7374 = vmatpush2.msra.mxu0 0.0
      %7375 = vmatprep.subr.mxu0 0.0
      %7376 = vmatpush2.msra.mxu0 0.0
      %7377 = vmatprep.subr.mxu0 0.0
      %7378 = vmatpush2.msra.mxu0 0.0
      %7379 = vmatprep.mubr.f32.mxu0 0.0
      %7380 = vmatmul.mubr.f32.gmra.mxu0 %v7217
      %v7381 = vpop.f32.mrf.mxu0
      %v7382 = vadd.f32 0.0, %v7381
      %v7383 = vpop.f32.mrf.mxu0
      %7384 = vmatprep.mubr.f32.mxu0 0.0
      %7385 = vmatmul.mubr.f32.gmra.mxu0 %v7220
      %v7386 = vpop.f32.mrf.mxu0
      %v7387 = vadd.f32 0.0, %v7386
      %v7388 = vpop.f32.mrf.mxu0
      %7389 = vmatprep.mubr.f32.mxu0 0.0
      %7390 = vmatmul.mubr.f32.gmra.mxu0 %v7223
      %v7391 = vpop.f32.mrf.mxu0
      %v7392 = vadd.f32 0.0, %v7391
      %v7393 = vpop.f32.mrf.mxu0
      %7394 = vmatprep.mubr.f32.mxu0 0.0
      %7395 = vmatmul.mubr.f32.gmra.mxu0 %v7226
      %v7396 = vpop.f32.mrf.mxu0
      %v7397 = vadd.f32 0.0, %v7396
      %v7398 = vpop.f32.mrf.mxu0
      %7399 = vmatprep.mubr.f32.mxu0 0.0
      %7400 = vmatmul.mubr.f32.gmra.mxu0 %v7229
      %v7401 = vpop.f32.mrf.mxu0
      %v7402 = vadd.f32 0.0, %v7401
      %v7403 = vpop.f32.mrf.mxu0
      %7404 = vmatprep.mubr.f32.mxu0 0.0
      %7405 = vmatmul.mubr.f32.gmra.mxu0 %v7232
      %v7406 = vpop.f32.mrf.mxu0
      %v7407 = vadd.f32 0.0, %v7406
      %v7408 = vpop.f32.mrf.mxu0
      %7409 = vmatprep.mubr.f32.mxu0 0.0
      %7410 = vmatmul.mubr.f32.gmra.mxu0 %v7235
      %v7411 = vpop.f32.mrf.mxu0
      %v7412 = vadd.f32 0.0, %v7411
      %v7413 = vpop.f32.mrf.mxu0
      %7414 = vmatprep.mubr.f32.mxu0 0.0
      %7415 = vmatmul.mubr.f32.gmra.mxu0 %v7238
      %v7416 = vpop.f32.mrf.mxu0
      %v7417 = vadd.f32 0.0, %v7416
      %v7418 = vpop.f32.mrf.mxu0
      %7419 = vmatprep.mubr.f32.mxu0 0.0
      %7420 = vmatmul.mubr.f32.gmra.mxu0 %v7241
      %v7421 = vpop.f32.mrf.mxu0
      %v7422 = vadd.f32 0.0, %v7421
      %v7423 = vpop.f32.mrf.mxu0
      %7424 = vmatprep.mubr.f32.mxu0 0.0
      %7425 = vmatmul.mubr.f32.gmra.mxu0 %v7244
      %v7426 = vpop.f32.mrf.mxu0
      %v7427 = vadd.f32 0.0, %v7426
      %v7428 = vpop.f32.mrf.mxu0
      %7429 = vmatprep.mubr.f32.mxu0 0.0
      %7430 = vmatmul.mubr.f32.gmra.mxu0 %v7247
      %v7431 = vpop.f32.mrf.mxu0
      %v7432 = vadd.f32 0.0, %v7431
      %v7433 = vpop.f32.mrf.mxu0
      %7434 = vmatprep.mubr.f32.mxu0 0.0
      %7435 = vmatmul.mubr.f32.gmra.mxu0 %v7250
      %v7436 = vpop.f32.mrf.mxu0
      %v7437 = vadd.f32 0.0, %v7436
      %v7438 = vpop.f32.mrf.mxu0
      %7439 = vmatprep.mubr.f32.mxu0 0.0
      %7440 = vmatmul.mubr.f32.gmra.mxu0 %v7253
      %v7441 = vpop.f32.mrf.mxu0
      %v7442 = vadd.f32 0.0, %v7441
      %v7443 = vpop.f32.mrf.mxu0
      %7444 = vmatprep.mubr.f32.mxu0 0.0
      %7445 = vmatmul.mubr.f32.gmra.mxu0 %v7256
      %v7446 = vpop.f32.mrf.mxu0
      %v7447 = vadd.f32 0.0, %v7446
      %v7448 = vpop.f32.mrf.mxu0
      %7449 = vmatprep.mubr.f32.mxu0 0.0
      %7450 = vmatmul.mubr.f32.gmra.mxu0 %v7259
      %v7451 = vpop.f32.mrf.mxu0
      %v7452 = vadd.f32 0.0, %v7451
      %v7453 = vpop.f32.mrf.mxu0
      %7454 = vmatprep.mubr.f32.mxu0 0.0
      %7455 = vmatmul.mubr.f32.gmra.mxu0 %v7262
      %v7456 = vpop.f32.mrf.mxu0
      %v7457 = vadd.f32 0.0, %v7456
      %v7458 = vpop.f32.mrf.mxu0
      %7459 = vmatprep.mubr.f32.mxu0 0.0
      %7460 = vmatmul.mubr.f32.gmra.mxu0 %v7265
      %v7461 = vpop.f32.mrf.mxu0
      %v7462 = vadd.f32 0.0, %v7461
      %v7463 = vpop.f32.mrf.mxu0
      %7464 = vmatprep.mubr.f32.mxu0 0.0
      %7465 = vmatmul.mubr.f32.gmra.mxu0 %v7268
      %v7466 = vpop.f32.mrf.mxu0
      %v7467 = vadd.f32 0.0, %v7466
      %v7468 = vpop.f32.mrf.mxu0
      %7469 = vmatprep.mubr.f32.mxu0 0.0
      %7470 = vmatmul.mubr.f32.gmra.mxu0 %v7271
      %v7471 = vpop.f32.mrf.mxu0
      %v7472 = vadd.f32 0.0, %v7471
      %v7473 = vpop.f32.mrf.mxu0
      %7474 = vmatprep.mubr.f32.mxu0 0.0
      %7475 = vmatmul.mubr.f32.gmra.mxu0 %v7274
      %v7476 = vpop.f32.mrf.mxu0
      %v7477 = vadd.f32 0.0, %v7476
      %v7478 = vpop.f32.mrf.mxu0
      %7479 = vmatprep.mubr.f32.mxu0 0.0
      %7480 = vmatmul.mubr.f32.gmra.mxu0 %v7277
      %v7481 = vpop.f32.mrf.mxu0
      %v7482 = vadd.f32 0.0, %v7481
      %v7483 = vpop.f32.mrf.mxu0
      %7484 = vmatprep.mubr.f32.mxu0 0.0
      %7485 = vmatmul.mubr.f32.gmra.mxu0 %v7280
      %v7486 = vpop.f32.mrf.mxu0
      %v7487 = vadd.f32 0.0, %v7486
      %v7488 = vpop.f32.mrf.mxu0
      %7489 = vmatprep.mubr.f32.mxu0 0.0
      %7490 = vmatmul.mubr.f32.gmra.mxu0 %v7283
      %v7491 = vpop.f32.mrf.mxu0
      %v7492 = vadd.f32 0.0, %v7491
      %v7493 = vpop.f32.mrf.mxu0
      %7494 = vmatprep.mubr.f32.mxu0 0.0
      %7495 = vmatmul.mubr.f32.gmra.mxu0 %v7286
      %v7496 = vpop.f32.mrf.mxu0
      %v7497 = vadd.f32 0.0, %v7496
      %v7498 = vpop.f32.mrf.mxu0
      %7499 = vmatprep.mubr.f32.mxu0 0.0
      %7500 = vmatmul.mubr.f32.gmra.mxu0 %v7289
      %v7501 = vpop.f32.mrf.mxu0
      %v7502 = vadd.f32 0.0, %v7501
      %v7503 = vpop.f32.mrf.mxu0
      %7504 = vmatprep.mubr.f32.mxu0 0.0
      %7505 = vmatmul.mubr.f32.gmra.mxu0 %v7292
      %v7506 = vpop.f32.mrf.mxu0
      %v7507 = vadd.f32 0.0, %v7506
      %v7508 = vpop.f32.mrf.mxu0
      %7509 = vmatprep.mubr.f32.mxu0 0.0
      %7510 = vmatmul.mubr.f32.gmra.mxu0 %v7295
      %v7511 = vpop.f32.mrf.mxu0
      %v7512 = vadd.f32 0.0, %v7511
      %v7513 = vpop.f32.mrf.mxu0
      %7514 = vmatprep.mubr.f32.mxu0 0.0
      %7515 = vmatmul.mubr.f32.gmra.mxu0 %v7298
      %v7516 = vpop.f32.mrf.mxu0
      %v7517 = vadd.f32 0.0, %v7516
      %v7518 = vpop.f32.mrf.mxu0
      %7519 = vmatprep.mubr.f32.mxu0 0.0
      %7520 = vmatmul.mubr.f32.gmra.mxu0 %v7301
      %v7521 = vpop.f32.mrf.mxu0
      %v7522 = vadd.f32 0.0, %v7521
      %v7523 = vpop.f32.mrf.mxu0
      %7524 = vmatprep.mubr.f32.mxu0 0.0
      %7525 = vmatmul.mubr.f32.gmra.mxu0 %v7304
      %v7526 = vpop.f32.mrf.mxu0
      %v7527 = vadd.f32 0.0, %v7526
      %v7528 = vpop.f32.mrf.mxu0
      %7529 = vmatprep.mubr.f32.mxu0 0.0
      %7530 = vmatmul.mubr.f32.gmra.mxu0 %v7307
      %v7531 = vpop.f32.mrf.mxu0
      %v7532 = vadd.f32 0.0, %v7531
      %v7533 = vpop.f32.mrf.mxu0
      %7534 = vmatprep.mubr.f32.mxu0 0.0
      %7535 = vmatmul.mubr.f32.gmra.mxu0 %v7310
      %v7536 = vpop.f32.mrf.mxu0
      %v7537 = vadd.f32 0.0, %v7536
      %v7538 = vpop.f32.mrf.mxu0
      %7539 = vdwg.mxu0
      %v7540 = vadd.f32 %v7150, %v7382
      %v7541 = vadd.f32 %v7151, %v7387
      %v7542 = vadd.f32 %v7152, %v7392
      %v7543 = vadd.f32 %v7153, %v7397
      %v7544 = vadd.f32 %v7154, %v7402
      %v7545 = vadd.f32 %v7155, %v7407
      %v7546 = vadd.f32 %v7156, %v7412
      %v7547 = vadd.f32 %v7157, %v7417
      %v7548 = vadd.f32 %v7158, %v7422
      %v7549 = vadd.f32 %v7159, %v7427
      %v7550 = vadd.f32 %v7160, %v7432
      %v7551 = vadd.f32 %v7161, %v7437
      %v7552 = vadd.f32 %v7162, %v7442
      %v7553 = vadd.f32 %v7163, %v7447
      %v7554 = vadd.f32 %v7164, %v7452
      %v7555 = vadd.f32 %v7165, %v7457
      %v7556 = vadd.f32 %v7166, %v7462
      %v7557 = vadd.f32 %v7167, %v7467
      %v7558 = vadd.f32 %v7168, %v7472
      %v7559 = vadd.f32 %v7169, %v7477
      %v7560 = vadd.f32 %v7170, %v7482
      %v7561 = vadd.f32 %v7171, %v7487
      %v7562 = vadd.f32 %v7172, %v7492
      %v7563 = vadd.f32 %v7173, %v7497
      %v7564 = vadd.f32 %v7174, %v7502
      %v7565 = vadd.f32 %v7175, %v7507
      %v7566 = vadd.f32 %v7176, %v7512
      %v7567 = vadd.f32 %v7177, %v7517
      %v7568 = vadd.f32 %v7178, %v7522
      %v7569 = vadd.f32 %v7179, %v7527
      %v7570 = vadd.f32 %v7180, %v7532
      %v7571 = vadd.f32 %v7181, %v7537
      %v7572 = vld [vmem:[%s6011 + $0x4] sm:$0xff]
      %v7573 = vld [vmem:[%s6011 + $0xc] sm:$0xff]
      %v7574 = vld [vmem:[%s6011 + $0x1c] sm:$0xff]
      %v7575 = vld [vmem:[%s6011 + $0x24] sm:$0xff]
      %v7576 = vld [vmem:[%s6011 + $0x34] sm:$0xff]
      %v7577 = vld [vmem:[%s6011 + $0x3c] sm:$0xff]
      %v7578 = vld [vmem:[%s6011 + $0x4c] sm:$0xff]
      %v7579 = vld [vmem:[%s6011 + $0x54] sm:$0xff]
      %v7580 = vld [vmem:[%s6011 + $0x64] sm:$0xff]
      %v7581 = vld [vmem:[%s6011 + $0x6c] sm:$0xff]
      %v7582 = vld [vmem:[%s6011 + $0x7c] sm:$0xff]
      %v7583 = vld [vmem:[%s6011 + $0x84] sm:$0xff]
      %v7584 = vld [vmem:[%s6011 + $0x94] sm:$0xff]
      %v7585 = vld [vmem:[%s6011 + $0x9c] sm:$0xff]
      %v7586 = vld [vmem:[%s6011 + $0xac] sm:$0xff]
      %v7587 = vld [vmem:[%s6011 + $0xb4] sm:$0xff]
      %v7588 = vld [vmem:[%s6011 + $0xc4] sm:$0xff]
      %v7589 = vld [vmem:[%s6011 + $0xcc] sm:$0xff]
      %v7590 = vld [vmem:[%s6011 + $0xdc] sm:$0xff]
      %v7591 = vld [vmem:[%s6011 + $0xe4] sm:$0xff]
      %v7592 = vld [vmem:[%s6011 + $0xf4] sm:$0xff]
      %v7593 = vld [vmem:[%s6011 + $0xfc] sm:$0xff]
      %v7594 = vld [vmem:[%s6011 + $0x10c] sm:$0xff]
      %v7595 = vld [vmem:[%s6011 + $0x114] sm:$0xff]
      %v7596 = vld [vmem:[%s6011 + $0x124] sm:$0xff]
      %v7597 = vld [vmem:[%s6011 + $0x12c] sm:$0xff]
      %v7598 = vld [vmem:[%s6011 + $0x13c] sm:$0xff]
      %v7599 = vld [vmem:[%s6011 + $0x144] sm:$0xff]
      %v7600 = vld [vmem:[%s6011 + $0x154] sm:$0xff]
      %v7601 = vld [vmem:[%s6011 + $0x15c] sm:$0xff]
      %v7602 = vld [vmem:[%s6011 + $0x16c] sm:$0xff]
      %v7603 = vld [vmem:[%s6011 + $0x174] sm:$0xff]
      %s7604 = scalar_lea.vmem %s210, 76
      %v7605 = vld [vmem:[%s7604] sm:$0xf]
      %v7607 = vsel %vm289, %v7572, 0
      %v7610 = vsel %vm289, %v7573, 0
      %v7613 = vsel %vm289, %v7574, 0
      %v7616 = vsel %vm289, %v7575, 0
      %v7619 = vsel %vm289, %v7576, 0
      %v7622 = vsel %vm289, %v7577, 0
      %v7625 = vsel %vm289, %v7578, 0
      %v7628 = vsel %vm289, %v7579, 0
      %v7631 = vsel %vm289, %v7580, 0
      %v7634 = vsel %vm289, %v7581, 0
      %v7637 = vsel %vm289, %v7582, 0
      %v7640 = vsel %vm289, %v7583, 0
      %v7643 = vsel %vm289, %v7584, 0
      %v7646 = vsel %vm289, %v7585, 0
      %v7649 = vsel %vm289, %v7586, 0
      %v7652 = vsel %vm289, %v7587, 0
      %v7655 = vsel %vm289, %v7588, 0
      %v7658 = vsel %vm289, %v7589, 0
      %v7661 = vsel %vm289, %v7590, 0
      %v7664 = vsel %vm289, %v7591, 0
      %v7667 = vsel %vm289, %v7592, 0
      %v7670 = vsel %vm289, %v7593, 0
      %v7673 = vsel %vm289, %v7594, 0
      %v7676 = vsel %vm289, %v7595, 0
      %v7679 = vsel %vm289, %v7596, 0
      %v7682 = vsel %vm289, %v7597, 0
      %v7685 = vsel %vm289, %v7598, 0
      %v7688 = vsel %vm289, %v7599, 0
      %v7691 = vsel %vm289, %v7600, 0
      %v7694 = vsel %vm289, %v7601, 0
      %v7697 = vsel %vm289, %v7602, 0
      %v7700 = vsel %vm289, %v7603, 0
      %v7703 = vsel %vm386, %v7605, 0
      %7705 = vmatprep.subr.mxu0 0.0
      %7706 = vmatpush1.msra.mxu0 0.0
      %7707 = vmatprep.subr.mxu0 0.0
      %7708 = vmatpush1.msra.mxu0 0.0
      %7709 = vmatprep.subr.mxu0 0.0
      %7710 = vmatpush1.msra.mxu0 0.0
      %7711 = vmatprep.subr.mxu0 0.0
      %7712 = vmatpush1.msra.mxu0 0.0
      %7713 = vmatprep.subr.mxu0 0.0
      %7714 = vmatpush1.msra.mxu0 0.0
      %7715 = vmatprep.subr.mxu0 0.0
      %7716 = vmatpush1.msra.mxu0 0.0
      %7717 = vmatprep.subr.mxu0 0.0
      %7718 = vmatpush1.msra.mxu0 0.0
      %7719 = vmatprep.subr.mxu0 0.0
      %7720 = vmatpush1.msra.mxu0 0.0
      %7721 = vmatprep.subr.mxu0 0.0
      %7722 = vmatpush1.msra.mxu0 0.0
      %7723 = vmatprep.subr.mxu0 0.0
      %7724 = vmatpush1.msra.mxu0 0.0
      %7725 = vmatprep.subr.mxu0 0.0
      %7726 = vmatpush1.msra.mxu0 0.0
      %7727 = vmatprep.subr.mxu0 0.0
      %7728 = vmatpush1.msra.mxu0 0.0
      %7729 = vmatprep.subr.mxu0 0.0
      %7730 = vmatpush1.msra.mxu0 0.0
      %7731 = vmatprep.subr.mxu0 0.0
      %7732 = vmatpush1.msra.mxu0 0.0
      %7733 = vmatprep.subr.mxu0 0.0
      %7734 = vmatpush1.msra.mxu0 0.0
      %7735 = vmatprep.subr.mxu0 0.0
      %7736 = vmatpush1.msra.mxu0 %v7703
      %7737 = vmatprep.subr.mxu0 0.0
      %7738 = vmatpush2.msra.mxu0 0.0
      %7739 = vmatprep.subr.mxu0 0.0
      %7740 = vmatpush2.msra.mxu0 0.0
      %7741 = vmatprep.subr.mxu0 0.0
      %7742 = vmatpush2.msra.mxu0 0.0
      %7743 = vmatprep.subr.mxu0 0.0
      %7744 = vmatpush2.msra.mxu0 0.0
      %7745 = vmatprep.subr.mxu0 0.0
      %7746 = vmatpush2.msra.mxu0 0.0
      %7747 = vmatprep.subr.mxu0 0.0
      %7748 = vmatpush2.msra.mxu0 0.0
      %7749 = vmatprep.subr.mxu0 0.0
      %7750 = vmatpush2.msra.mxu0 0.0
      %7751 = vmatprep.subr.mxu0 0.0
      %7752 = vmatpush2.msra.mxu0 0.0
      %7753 = vmatprep.subr.mxu0 0.0
      %7754 = vmatpush2.msra.mxu0 0.0
      %7755 = vmatprep.subr.mxu0 0.0
      %7756 = vmatpush2.msra.mxu0 0.0
      %7757 = vmatprep.subr.mxu0 0.0
      %7758 = vmatpush2.msra.mxu0 0.0
      %7759 = vmatprep.subr.mxu0 0.0
      %7760 = vmatpush2.msra.mxu0 0.0
      %7761 = vmatprep.subr.mxu0 0.0
      %7762 = vmatpush2.msra.mxu0 0.0
      %7763 = vmatprep.subr.mxu0 0.0
      %7764 = vmatpush2.msra.mxu0 0.0
      %7765 = vmatprep.subr.mxu0 0.0
      %7766 = vmatpush2.msra.mxu0 0.0
      %7767 = vmatprep.subr.mxu0 0.0
      %7768 = vmatpush2.msra.mxu0 0.0
      %7769 = vmatprep.mubr.f32.mxu0 0.0
      %7770 = vmatmul.mubr.f32.gmra.mxu0 %v7607
      %v7771 = vpop.f32.mrf.mxu0
      %v7772 = vadd.f32 0.0, %v7771
      %v7773 = vpop.f32.mrf.mxu0
      %7774 = vmatprep.mubr.f32.mxu0 0.0
      %7775 = vmatmul.mubr.f32.gmra.mxu0 %v7610
      %v7776 = vpop.f32.mrf.mxu0
      %v7777 = vadd.f32 0.0, %v7776
      %v7778 = vpop.f32.mrf.mxu0
      %7779 = vmatprep.mubr.f32.mxu0 0.0
      %7780 = vmatmul.mubr.f32.gmra.mxu0 %v7613
      %v7781 = vpop.f32.mrf.mxu0
      %v7782 = vadd.f32 0.0, %v7781
      %v7783 = vpop.f32.mrf.mxu0
      %7784 = vmatprep.mubr.f32.mxu0 0.0
      %7785 = vmatmul.mubr.f32.gmra.mxu0 %v7616
      %v7786 = vpop.f32.mrf.mxu0
      %v7787 = vadd.f32 0.0, %v7786
      %v7788 = vpop.f32.mrf.mxu0
      %7789 = vmatprep.mubr.f32.mxu0 0.0
      %7790 = vmatmul.mubr.f32.gmra.mxu0 %v7619
      %v7791 = vpop.f32.mrf.mxu0
      %v7792 = vadd.f32 0.0, %v7791
      %v7793 = vpop.f32.mrf.mxu0
      %7794 = vmatprep.mubr.f32.mxu0 0.0
      %7795 = vmatmul.mubr.f32.gmra.mxu0 %v7622
      %v7796 = vpop.f32.mrf.mxu0
      %v7797 = vadd.f32 0.0, %v7796
      %v7798 = vpop.f32.mrf.mxu0
      %7799 = vmatprep.mubr.f32.mxu0 0.0
      %7800 = vmatmul.mubr.f32.gmra.mxu0 %v7625
      %v7801 = vpop.f32.mrf.mxu0
      %v7802 = vadd.f32 0.0, %v7801
      %v7803 = vpop.f32.mrf.mxu0
      %7804 = vmatprep.mubr.f32.mxu0 0.0
      %7805 = vmatmul.mubr.f32.gmra.mxu0 %v7628
      %v7806 = vpop.f32.mrf.mxu0
      %v7807 = vadd.f32 0.0, %v7806
      %v7808 = vpop.f32.mrf.mxu0
      %7809 = vmatprep.mubr.f32.mxu0 0.0
      %7810 = vmatmul.mubr.f32.gmra.mxu0 %v7631
      %v7811 = vpop.f32.mrf.mxu0
      %v7812 = vadd.f32 0.0, %v7811
      %v7813 = vpop.f32.mrf.mxu0
      %7814 = vmatprep.mubr.f32.mxu0 0.0
      %7815 = vmatmul.mubr.f32.gmra.mxu0 %v7634
      %v7816 = vpop.f32.mrf.mxu0
      %v7817 = vadd.f32 0.0, %v7816
      %v7818 = vpop.f32.mrf.mxu0
      %7819 = vmatprep.mubr.f32.mxu0 0.0
      %7820 = vmatmul.mubr.f32.gmra.mxu0 %v7637
      %v7821 = vpop.f32.mrf.mxu0
      %v7822 = vadd.f32 0.0, %v7821
      %v7823 = vpop.f32.mrf.mxu0
      %7824 = vmatprep.mubr.f32.mxu0 0.0
      %7825 = vmatmul.mubr.f32.gmra.mxu0 %v7640
      %v7826 = vpop.f32.mrf.mxu0
      %v7827 = vadd.f32 0.0, %v7826
      %v7828 = vpop.f32.mrf.mxu0
      %7829 = vmatprep.mubr.f32.mxu0 0.0
      %7830 = vmatmul.mubr.f32.gmra.mxu0 %v7643
      %v7831 = vpop.f32.mrf.mxu0
      %v7832 = vadd.f32 0.0, %v7831
      %v7833 = vpop.f32.mrf.mxu0
      %7834 = vmatprep.mubr.f32.mxu0 0.0
      %7835 = vmatmul.mubr.f32.gmra.mxu0 %v7646
      %v7836 = vpop.f32.mrf.mxu0
      %v7837 = vadd.f32 0.0, %v7836
      %v7838 = vpop.f32.mrf.mxu0
      %7839 = vmatprep.mubr.f32.mxu0 0.0
      %7840 = vmatmul.mubr.f32.gmra.mxu0 %v7649
      %v7841 = vpop.f32.mrf.mxu0
      %v7842 = vadd.f32 0.0, %v7841
      %v7843 = vpop.f32.mrf.mxu0
      %7844 = vmatprep.mubr.f32.mxu0 0.0
      %7845 = vmatmul.mubr.f32.gmra.mxu0 %v7652
      %v7846 = vpop.f32.mrf.mxu0
      %v7847 = vadd.f32 0.0, %v7846
      %v7848 = vpop.f32.mrf.mxu0
      %7849 = vmatprep.mubr.f32.mxu0 0.0
      %7850 = vmatmul.mubr.f32.gmra.mxu0 %v7655
      %v7851 = vpop.f32.mrf.mxu0
      %v7852 = vadd.f32 0.0, %v7851
      %v7853 = vpop.f32.mrf.mxu0
      %7854 = vmatprep.mubr.f32.mxu0 0.0
      %7855 = vmatmul.mubr.f32.gmra.mxu0 %v7658
      %v7856 = vpop.f32.mrf.mxu0
      %v7857 = vadd.f32 0.0, %v7856
      %v7858 = vpop.f32.mrf.mxu0
      %7859 = vmatprep.mubr.f32.mxu0 0.0
      %7860 = vmatmul.mubr.f32.gmra.mxu0 %v7661
      %v7861 = vpop.f32.mrf.mxu0
      %v7862 = vadd.f32 0.0, %v7861
      %v7863 = vpop.f32.mrf.mxu0
      %7864 = vmatprep.mubr.f32.mxu0 0.0
      %7865 = vmatmul.mubr.f32.gmra.mxu0 %v7664
      %v7866 = vpop.f32.mrf.mxu0
      %v7867 = vadd.f32 0.0, %v7866
      %v7868 = vpop.f32.mrf.mxu0
      %7869 = vmatprep.mubr.f32.mxu0 0.0
      %7870 = vmatmul.mubr.f32.gmra.mxu0 %v7667
      %v7871 = vpop.f32.mrf.mxu0
      %v7872 = vadd.f32 0.0, %v7871
      %v7873 = vpop.f32.mrf.mxu0
      %7874 = vmatprep.mubr.f32.mxu0 0.0
      %7875 = vmatmul.mubr.f32.gmra.mxu0 %v7670
      %v7876 = vpop.f32.mrf.mxu0
      %v7877 = vadd.f32 0.0, %v7876
      %v7878 = vpop.f32.mrf.mxu0
      %7879 = vmatprep.mubr.f32.mxu0 0.0
      %7880 = vmatmul.mubr.f32.gmra.mxu0 %v7673
      %v7881 = vpop.f32.mrf.mxu0
      %v7882 = vadd.f32 0.0, %v7881
      %v7883 = vpop.f32.mrf.mxu0
      %7884 = vmatprep.mubr.f32.mxu0 0.0
      %7885 = vmatmul.mubr.f32.gmra.mxu0 %v7676
      %v7886 = vpop.f32.mrf.mxu0
      %v7887 = vadd.f32 0.0, %v7886
      %v7888 = vpop.f32.mrf.mxu0
      %7889 = vmatprep.mubr.f32.mxu0 0.0
      %7890 = vmatmul.mubr.f32.gmra.mxu0 %v7679
      %v7891 = vpop.f32.mrf.mxu0
      %v7892 = vadd.f32 0.0, %v7891
      %v7893 = vpop.f32.mrf.mxu0
      %7894 = vmatprep.mubr.f32.mxu0 0.0
      %7895 = vmatmul.mubr.f32.gmra.mxu0 %v7682
      %v7896 = vpop.f32.mrf.mxu0
      %v7897 = vadd.f32 0.0, %v7896
      %v7898 = vpop.f32.mrf.mxu0
      %7899 = vmatprep.mubr.f32.mxu0 0.0
      %7900 = vmatmul.mubr.f32.gmra.mxu0 %v7685
      %v7901 = vpop.f32.mrf.mxu0
      %v7902 = vadd.f32 0.0, %v7901
      %v7903 = vpop.f32.mrf.mxu0
      %7904 = vmatprep.mubr.f32.mxu0 0.0
      %7905 = vmatmul.mubr.f32.gmra.mxu0 %v7688
      %v7906 = vpop.f32.mrf.mxu0
      %v7907 = vadd.f32 0.0, %v7906
      %v7908 = vpop.f32.mrf.mxu0
      %7909 = vmatprep.mubr.f32.mxu0 0.0
      %7910 = vmatmul.mubr.f32.gmra.mxu0 %v7691
      %v7911 = vpop.f32.mrf.mxu0
      %v7912 = vadd.f32 0.0, %v7911
      %v7913 = vpop.f32.mrf.mxu0
      %7914 = vmatprep.mubr.f32.mxu0 0.0
      %7915 = vmatmul.mubr.f32.gmra.mxu0 %v7694
      %v7916 = vpop.f32.mrf.mxu0
      %v7917 = vadd.f32 0.0, %v7916
      %v7918 = vpop.f32.mrf.mxu0
      %7919 = vmatprep.mubr.f32.mxu0 0.0
      %7920 = vmatmul.mubr.f32.gmra.mxu0 %v7697
      %v7921 = vpop.f32.mrf.mxu0
      %v7922 = vadd.f32 0.0, %v7921
      %v7923 = vpop.f32.mrf.mxu0
      %7924 = vmatprep.mubr.f32.mxu0 0.0
      %7925 = vmatmul.mubr.f32.gmra.mxu0 %v7700
      %v7926 = vpop.f32.mrf.mxu0
      %v7927 = vadd.f32 0.0, %v7926
      %v7928 = vpop.f32.mrf.mxu0
      %7929 = vdwg.mxu0
      %v7930 = vadd.f32 %v7540, %v7772
      %v7931 = vadd.f32 %v7541, %v7777
      %v7932 = vadd.f32 %v7542, %v7782
      %v7933 = vadd.f32 %v7543, %v7787
      %v7934 = vadd.f32 %v7544, %v7792
      %v7935 = vadd.f32 %v7545, %v7797
      %v7936 = vadd.f32 %v7546, %v7802
      %v7937 = vadd.f32 %v7547, %v7807
      %v7938 = vadd.f32 %v7548, %v7812
      %v7939 = vadd.f32 %v7549, %v7817
      %v7940 = vadd.f32 %v7550, %v7822
      %v7941 = vadd.f32 %v7551, %v7827
      %v7942 = vadd.f32 %v7552, %v7832
      %v7943 = vadd.f32 %v7553, %v7837
      %v7944 = vadd.f32 %v7554, %v7842
      %v7945 = vadd.f32 %v7555, %v7847
      %v7946 = vadd.f32 %v7556, %v7852
      %v7947 = vadd.f32 %v7557, %v7857
      %v7948 = vadd.f32 %v7558, %v7862
      %v7949 = vadd.f32 %v7559, %v7867
      %v7950 = vadd.f32 %v7560, %v7872
      %v7951 = vadd.f32 %v7561, %v7877
      %v7952 = vadd.f32 %v7562, %v7882
      %v7953 = vadd.f32 %v7563, %v7887
      %v7954 = vadd.f32 %v7564, %v7892
      %v7955 = vadd.f32 %v7565, %v7897
      %v7956 = vadd.f32 %v7566, %v7902
      %v7957 = vadd.f32 %v7567, %v7907
      %v7958 = vadd.f32 %v7568, %v7912
      %v7959 = vadd.f32 %v7569, %v7917
      %v7960 = vadd.f32 %v7570, %v7922
      %v7961 = vadd.f32 %v7571, %v7927
      %s7962 = scalar_lea.vmem %s206, 96
      %v7963 = vld [vmem:[%s7962] sm:$0xff]
      %v7964 = vld [vmem:[%s7962 + $0x8] sm:$0xff]
      %v7965 = vld [vmem:[%s7962 + $0x18] sm:$0xff]
      %v7966 = vld [vmem:[%s7962 + $0x20] sm:$0xff]
      %v7967 = vld [vmem:[%s7962 + $0x30] sm:$0xff]
      %v7968 = vld [vmem:[%s7962 + $0x38] sm:$0xff]
      %v7969 = vld [vmem:[%s7962 + $0x48] sm:$0xff]
      %v7970 = vld [vmem:[%s7962 + $0x50] sm:$0xff]
      %v7971 = vld [vmem:[%s7962 + $0x60] sm:$0xff]
      %v7972 = vld [vmem:[%s7962 + $0x68] sm:$0xff]
      %v7973 = vld [vmem:[%s7962 + $0x78] sm:$0xff]
      %v7974 = vld [vmem:[%s7962 + $0x80] sm:$0xff]
      %v7975 = vld [vmem:[%s7962 + $0x90] sm:$0xff]
      %v7976 = vld [vmem:[%s7962 + $0x98] sm:$0xff]
      %v7977 = vld [vmem:[%s7962 + $0xa8] sm:$0xff]
      %v7978 = vld [vmem:[%s7962 + $0xb0] sm:$0xff]
      %v7979 = vld [vmem:[%s7962 + $0xc0] sm:$0xff]
      %v7980 = vld [vmem:[%s7962 + $0xc8] sm:$0xff]
      %v7981 = vld [vmem:[%s7962 + $0xd8] sm:$0xff]
      %v7982 = vld [vmem:[%s7962 + $0xe0] sm:$0xff]
      %v7983 = vld [vmem:[%s7962 + $0xf0] sm:$0xff]
      %v7984 = vld [vmem:[%s7962 + $0xf8] sm:$0xff]
      %v7985 = vld [vmem:[%s7962 + $0x108] sm:$0xff]
      %v7986 = vld [vmem:[%s7962 + $0x110] sm:$0xff]
      %v7987 = vld [vmem:[%s7962 + $0x120] sm:$0xff]
      %v7988 = vld [vmem:[%s7962 + $0x128] sm:$0xff]
      %v7989 = vld [vmem:[%s7962 + $0x138] sm:$0xff]
      %v7990 = vld [vmem:[%s7962 + $0x140] sm:$0xff]
      %v7991 = vld [vmem:[%s7962 + $0x150] sm:$0xff]
      %v7992 = vld [vmem:[%s7962 + $0x158] sm:$0xff]
      %v7993 = vld [vmem:[%s7962 + $0x168] sm:$0xff]
      %v7994 = vld [vmem:[%s7962 + $0x170] sm:$0xff]
      %s7995 = scalar_lea.vmem %s210, 80
      %v7996 = vld [vmem:[%s7995] sm:$0xf]
      %v7998 = vsel %vm289, %v7963, 0
      %v8001 = vsel %vm289, %v7964, 0
      %v8004 = vsel %vm289, %v7965, 0
      %v8007 = vsel %vm289, %v7966, 0
      %v8010 = vsel %vm289, %v7967, 0
      %v8013 = vsel %vm289, %v7968, 0
      %v8016 = vsel %vm289, %v7969, 0
      %v8019 = vsel %vm289, %v7970, 0
      %v8022 = vsel %vm289, %v7971, 0
      %v8025 = vsel %vm289, %v7972, 0
      %v8028 = vsel %vm289, %v7973, 0
      %v8031 = vsel %vm289, %v7974, 0
      %v8034 = vsel %vm289, %v7975, 0
      %v8037 = vsel %vm289, %v7976, 0
      %v8040 = vsel %vm289, %v7977, 0
      %v8043 = vsel %vm289, %v7978, 0
      %v8046 = vsel %vm289, %v7979, 0
      %v8049 = vsel %vm289, %v7980, 0
      %v8052 = vsel %vm289, %v7981, 0
      %v8055 = vsel %vm289, %v7982, 0
      %v8058 = vsel %vm289, %v7983, 0
      %v8061 = vsel %vm289, %v7984, 0
      %v8064 = vsel %vm289, %v7985, 0
      %v8067 = vsel %vm289, %v7986, 0
      %v8070 = vsel %vm289, %v7987, 0
      %v8073 = vsel %vm289, %v7988, 0
      %v8076 = vsel %vm289, %v7989, 0
      %v8079 = vsel %vm289, %v7990, 0
      %v8082 = vsel %vm289, %v7991, 0
      %v8085 = vsel %vm289, %v7992, 0
      %v8088 = vsel %vm289, %v7993, 0
      %v8091 = vsel %vm289, %v7994, 0
      %v8094 = vsel %vm386, %v7996, 0
      %8096 = vmatprep.subr.mxu0 0.0
      %8097 = vmatpush1.msra.mxu0 0.0
      %8098 = vmatprep.subr.mxu0 0.0
      %8099 = vmatpush1.msra.mxu0 0.0
      %8100 = vmatprep.subr.mxu0 0.0
      %8101 = vmatpush1.msra.mxu0 0.0
      %8102 = vmatprep.subr.mxu0 0.0
      %8103 = vmatpush1.msra.mxu0 0.0
      %8104 = vmatprep.subr.mxu0 0.0
      %8105 = vmatpush1.msra.mxu0 0.0
      %8106 = vmatprep.subr.mxu0 0.0
      %8107 = vmatpush1.msra.mxu0 0.0
      %8108 = vmatprep.subr.mxu0 0.0
      %8109 = vmatpush1.msra.mxu0 0.0
      %8110 = vmatprep.subr.mxu0 0.0
      %8111 = vmatpush1.msra.mxu0 0.0
      %8112 = vmatprep.subr.mxu0 0.0
      %8113 = vmatpush1.msra.mxu0 0.0
      %8114 = vmatprep.subr.mxu0 0.0
      %8115 = vmatpush1.msra.mxu0 0.0
      %8116 = vmatprep.subr.mxu0 0.0
      %8117 = vmatpush1.msra.mxu0 0.0
      %8118 = vmatprep.subr.mxu0 0.0
      %8119 = vmatpush1.msra.mxu0 0.0
      %8120 = vmatprep.subr.mxu0 0.0
      %8121 = vmatpush1.msra.mxu0 0.0
      %8122 = vmatprep.subr.mxu0 0.0
      %8123 = vmatpush1.msra.mxu0 0.0
      %8124 = vmatprep.subr.mxu0 0.0
      %8125 = vmatpush1.msra.mxu0 0.0
      %8126 = vmatprep.subr.mxu0 0.0
      %8127 = vmatpush1.msra.mxu0 %v8094
      %8128 = vmatprep.subr.mxu0 0.0
      %8129 = vmatpush2.msra.mxu0 0.0
      %8130 = vmatprep.subr.mxu0 0.0
      %8131 = vmatpush2.msra.mxu0 0.0
      %8132 = vmatprep.subr.mxu0 0.0
      %8133 = vmatpush2.msra.mxu0 0.0
      %8134 = vmatprep.subr.mxu0 0.0
      %8135 = vmatpush2.msra.mxu0 0.0
      %8136 = vmatprep.subr.mxu0 0.0
      %8137 = vmatpush2.msra.mxu0 0.0
      %8138 = vmatprep.subr.mxu0 0.0
      %8139 = vmatpush2.msra.mxu0 0.0
      %8140 = vmatprep.subr.mxu0 0.0
      %8141 = vmatpush2.msra.mxu0 0.0
      %8142 = vmatprep.subr.mxu0 0.0
      %8143 = vmatpush2.msra.mxu0 0.0
      %8144 = vmatprep.subr.mxu0 0.0
      %8145 = vmatpush2.msra.mxu0 0.0
      %8146 = vmatprep.subr.mxu0 0.0
      %8147 = vmatpush2.msra.mxu0 0.0
      %8148 = vmatprep.subr.mxu0 0.0
      %8149 = vmatpush2.msra.mxu0 0.0
      %8150 = vmatprep.subr.mxu0 0.0
      %8151 = vmatpush2.msra.mxu0 0.0
      %8152 = vmatprep.subr.mxu0 0.0
      %8153 = vmatpush2.msra.mxu0 0.0
      %8154 = vmatprep.subr.mxu0 0.0
      %8155 = vmatpush2.msra.mxu0 0.0
      %8156 = vmatprep.subr.mxu0 0.0
      %8157 = vmatpush2.msra.mxu0 0.0
      %8158 = vmatprep.subr.mxu0 0.0
      %8159 = vmatpush2.msra.mxu0 0.0
      %8160 = vmatprep.mubr.f32.mxu0 0.0
      %8161 = vmatmul.mubr.f32.gmra.mxu0 %v7998
      %v8162 = vpop.f32.mrf.mxu0
      %v8163 = vadd.f32 0.0, %v8162
      %v8164 = vpop.f32.mrf.mxu0
      %8165 = vmatprep.mubr.f32.mxu0 0.0
      %8166 = vmatmul.mubr.f32.gmra.mxu0 %v8001
      %v8167 = vpop.f32.mrf.mxu0
      %v8168 = vadd.f32 0.0, %v8167
      %v8169 = vpop.f32.mrf.mxu0
      %8170 = vmatprep.mubr.f32.mxu0 0.0
      %8171 = vmatmul.mubr.f32.gmra.mxu0 %v8004
      %v8172 = vpop.f32.mrf.mxu0
      %v8173 = vadd.f32 0.0, %v8172
      %v8174 = vpop.f32.mrf.mxu0
      %8175 = vmatprep.mubr.f32.mxu0 0.0
      %8176 = vmatmul.mubr.f32.gmra.mxu0 %v8007
      %v8177 = vpop.f32.mrf.mxu0
      %v8178 = vadd.f32 0.0, %v8177
      %v8179 = vpop.f32.mrf.mxu0
      %8180 = vmatprep.mubr.f32.mxu0 0.0
      %8181 = vmatmul.mubr.f32.gmra.mxu0 %v8010
      %v8182 = vpop.f32.mrf.mxu0
      %v8183 = vadd.f32 0.0, %v8182
      %v8184 = vpop.f32.mrf.mxu0
      %8185 = vmatprep.mubr.f32.mxu0 0.0
      %8186 = vmatmul.mubr.f32.gmra.mxu0 %v8013
      %v8187 = vpop.f32.mrf.mxu0
      %v8188 = vadd.f32 0.0, %v8187
      %v8189 = vpop.f32.mrf.mxu0
      %8190 = vmatprep.mubr.f32.mxu0 0.0
      %8191 = vmatmul.mubr.f32.gmra.mxu0 %v8016
      %v8192 = vpop.f32.mrf.mxu0
      %v8193 = vadd.f32 0.0, %v8192
      %v8194 = vpop.f32.mrf.mxu0
      %8195 = vmatprep.mubr.f32.mxu0 0.0
      %8196 = vmatmul.mubr.f32.gmra.mxu0 %v8019
      %v8197 = vpop.f32.mrf.mxu0
      %v8198 = vadd.f32 0.0, %v8197
      %v8199 = vpop.f32.mrf.mxu0
      %8200 = vmatprep.mubr.f32.mxu0 0.0
      %8201 = vmatmul.mubr.f32.gmra.mxu0 %v8022
      %v8202 = vpop.f32.mrf.mxu0
      %v8203 = vadd.f32 0.0, %v8202
      %v8204 = vpop.f32.mrf.mxu0
      %8205 = vmatprep.mubr.f32.mxu0 0.0
      %8206 = vmatmul.mubr.f32.gmra.mxu0 %v8025
      %v8207 = vpop.f32.mrf.mxu0
      %v8208 = vadd.f32 0.0, %v8207
      %v8209 = vpop.f32.mrf.mxu0
      %8210 = vmatprep.mubr.f32.mxu0 0.0
      %8211 = vmatmul.mubr.f32.gmra.mxu0 %v8028
      %v8212 = vpop.f32.mrf.mxu0
      %v8213 = vadd.f32 0.0, %v8212
      %v8214 = vpop.f32.mrf.mxu0
      %8215 = vmatprep.mubr.f32.mxu0 0.0
      %8216 = vmatmul.mubr.f32.gmra.mxu0 %v8031
      %v8217 = vpop.f32.mrf.mxu0
      %v8218 = vadd.f32 0.0, %v8217
      %v8219 = vpop.f32.mrf.mxu0
      %8220 = vmatprep.mubr.f32.mxu0 0.0
      %8221 = vmatmul.mubr.f32.gmra.mxu0 %v8034
      %v8222 = vpop.f32.mrf.mxu0
      %v8223 = vadd.f32 0.0, %v8222
      %v8224 = vpop.f32.mrf.mxu0
      %8225 = vmatprep.mubr.f32.mxu0 0.0
      %8226 = vmatmul.mubr.f32.gmra.mxu0 %v8037
      %v8227 = vpop.f32.mrf.mxu0
      %v8228 = vadd.f32 0.0, %v8227
      %v8229 = vpop.f32.mrf.mxu0
      %8230 = vmatprep.mubr.f32.mxu0 0.0
      %8231 = vmatmul.mubr.f32.gmra.mxu0 %v8040
      %v8232 = vpop.f32.mrf.mxu0
      %v8233 = vadd.f32 0.0, %v8232
      %v8234 = vpop.f32.mrf.mxu0
      %8235 = vmatprep.mubr.f32.mxu0 0.0
      %8236 = vmatmul.mubr.f32.gmra.mxu0 %v8043
      %v8237 = vpop.f32.mrf.mxu0
      %v8238 = vadd.f32 0.0, %v8237
      %v8239 = vpop.f32.mrf.mxu0
      %8240 = vmatprep.mubr.f32.mxu0 0.0
      %8241 = vmatmul.mubr.f32.gmra.mxu0 %v8046
      %v8242 = vpop.f32.mrf.mxu0
      %v8243 = vadd.f32 0.0, %v8242
      %v8244 = vpop.f32.mrf.mxu0
      %8245 = vmatprep.mubr.f32.mxu0 0.0
      %8246 = vmatmul.mubr.f32.gmra.mxu0 %v8049
      %v8247 = vpop.f32.mrf.mxu0
      %v8248 = vadd.f32 0.0, %v8247
      %v8249 = vpop.f32.mrf.mxu0
      %8250 = vmatprep.mubr.f32.mxu0 0.0
      %8251 = vmatmul.mubr.f32.gmra.mxu0 %v8052
      %v8252 = vpop.f32.mrf.mxu0
      %v8253 = vadd.f32 0.0, %v8252
      %v8254 = vpop.f32.mrf.mxu0
      %8255 = vmatprep.mubr.f32.mxu0 0.0
      %8256 = vmatmul.mubr.f32.gmra.mxu0 %v8055
      %v8257 = vpop.f32.mrf.mxu0
      %v8258 = vadd.f32 0.0, %v8257
      %v8259 = vpop.f32.mrf.mxu0
      %8260 = vmatprep.mubr.f32.mxu0 0.0
      %8261 = vmatmul.mubr.f32.gmra.mxu0 %v8058
      %v8262 = vpop.f32.mrf.mxu0
      %v8263 = vadd.f32 0.0, %v8262
      %v8264 = vpop.f32.mrf.mxu0
      %8265 = vmatprep.mubr.f32.mxu0 0.0
      %8266 = vmatmul.mubr.f32.gmra.mxu0 %v8061
      %v8267 = vpop.f32.mrf.mxu0
      %v8268 = vadd.f32 0.0, %v8267
      %v8269 = vpop.f32.mrf.mxu0
      %8270 = vmatprep.mubr.f32.mxu0 0.0
      %8271 = vmatmul.mubr.f32.gmra.mxu0 %v8064
      %v8272 = vpop.f32.mrf.mxu0
      %v8273 = vadd.f32 0.0, %v8272
      %v8274 = vpop.f32.mrf.mxu0
      %8275 = vmatprep.mubr.f32.mxu0 0.0
      %8276 = vmatmul.mubr.f32.gmra.mxu0 %v8067
      %v8277 = vpop.f32.mrf.mxu0
      %v8278 = vadd.f32 0.0, %v8277
      %v8279 = vpop.f32.mrf.mxu0
      %8280 = vmatprep.mubr.f32.mxu0 0.0
      %8281 = vmatmul.mubr.f32.gmra.mxu0 %v8070
      %v8282 = vpop.f32.mrf.mxu0
      %v8283 = vadd.f32 0.0, %v8282
      %v8284 = vpop.f32.mrf.mxu0
      %8285 = vmatprep.mubr.f32.mxu0 0.0
      %8286 = vmatmul.mubr.f32.gmra.mxu0 %v8073
      %v8287 = vpop.f32.mrf.mxu0
      %v8288 = vadd.f32 0.0, %v8287
      %v8289 = vpop.f32.mrf.mxu0
      %8290 = vmatprep.mubr.f32.mxu0 0.0
      %8291 = vmatmul.mubr.f32.gmra.mxu0 %v8076
      %v8292 = vpop.f32.mrf.mxu0
      %v8293 = vadd.f32 0.0, %v8292
      %v8294 = vpop.f32.mrf.mxu0
      %8295 = vmatprep.mubr.f32.mxu0 0.0
      %8296 = vmatmul.mubr.f32.gmra.mxu0 %v8079
      %v8297 = vpop.f32.mrf.mxu0
      %v8298 = vadd.f32 0.0, %v8297
      %v8299 = vpop.f32.mrf.mxu0
      %8300 = vmatprep.mubr.f32.mxu0 0.0
      %8301 = vmatmul.mubr.f32.gmra.mxu0 %v8082
      %v8302 = vpop.f32.mrf.mxu0
      %v8303 = vadd.f32 0.0, %v8302
      %v8304 = vpop.f32.mrf.mxu0
      %8305 = vmatprep.mubr.f32.mxu0 0.0
      %8306 = vmatmul.mubr.f32.gmra.mxu0 %v8085
      %v8307 = vpop.f32.mrf.mxu0
      %v8308 = vadd.f32 0.0, %v8307
      %v8309 = vpop.f32.mrf.mxu0
      %8310 = vmatprep.mubr.f32.mxu0 0.0
      %8311 = vmatmul.mubr.f32.gmra.mxu0 %v8088
      %v8312 = vpop.f32.mrf.mxu0
      %v8313 = vadd.f32 0.0, %v8312
      %v8314 = vpop.f32.mrf.mxu0
      %8315 = vmatprep.mubr.f32.mxu0 0.0
      %8316 = vmatmul.mubr.f32.gmra.mxu0 %v8091
      %v8317 = vpop.f32.mrf.mxu0
      %v8318 = vadd.f32 0.0, %v8317
      %v8319 = vpop.f32.mrf.mxu0
      %8320 = vdwg.mxu0
      %v8321 = vadd.f32 %v7930, %v8163
      %v8322 = vadd.f32 %v7931, %v8168
      %v8323 = vadd.f32 %v7932, %v8173
      %v8324 = vadd.f32 %v7933, %v8178
      %v8325 = vadd.f32 %v7934, %v8183
      %v8326 = vadd.f32 %v7935, %v8188
      %v8327 = vadd.f32 %v7936, %v8193
      %v8328 = vadd.f32 %v7937, %v8198
      %v8329 = vadd.f32 %v7938, %v8203
      %v8330 = vadd.f32 %v7939, %v8208
      %v8331 = vadd.f32 %v7940, %v8213
      %v8332 = vadd.f32 %v7941, %v8218
      %v8333 = vadd.f32 %v7942, %v8223
      %v8334 = vadd.f32 %v7943, %v8228
      %v8335 = vadd.f32 %v7944, %v8233
      %v8336 = vadd.f32 %v7945, %v8238
      %v8337 = vadd.f32 %v7946, %v8243
      %v8338 = vadd.f32 %v7947, %v8248
      %v8339 = vadd.f32 %v7948, %v8253
      %v8340 = vadd.f32 %v7949, %v8258
      %v8341 = vadd.f32 %v7950, %v8263
      %v8342 = vadd.f32 %v7951, %v8268
      %v8343 = vadd.f32 %v7952, %v8273
      %v8344 = vadd.f32 %v7953, %v8278
      %v8345 = vadd.f32 %v7954, %v8283
      %v8346 = vadd.f32 %v7955, %v8288
      %v8347 = vadd.f32 %v7956, %v8293
      %v8348 = vadd.f32 %v7957, %v8298
      %v8349 = vadd.f32 %v7958, %v8303
      %v8350 = vadd.f32 %v7959, %v8308
      %v8351 = vadd.f32 %v7960, %v8313
      %v8352 = vadd.f32 %v7961, %v8318
      %v8353 = vld [vmem:[%s7962 + $0x1] sm:$0xff]
      %v8354 = vld [vmem:[%s7962 + $0x9] sm:$0xff]
      %v8355 = vld [vmem:[%s7962 + $0x19] sm:$0xff]
      %v8356 = vld [vmem:[%s7962 + $0x21] sm:$0xff]
      %v8357 = vld [vmem:[%s7962 + $0x31] sm:$0xff]
      %v8358 = vld [vmem:[%s7962 + $0x39] sm:$0xff]
      %v8359 = vld [vmem:[%s7962 + $0x49] sm:$0xff]
      %v8360 = vld [vmem:[%s7962 + $0x51] sm:$0xff]
      %v8361 = vld [vmem:[%s7962 + $0x61] sm:$0xff]
      %v8362 = vld [vmem:[%s7962 + $0x69] sm:$0xff]
      %v8363 = vld [vmem:[%s7962 + $0x79] sm:$0xff]
      %v8364 = vld [vmem:[%s7962 + $0x81] sm:$0xff]
      %v8365 = vld [vmem:[%s7962 + $0x91] sm:$0xff]
      %v8366 = vld [vmem:[%s7962 + $0x99] sm:$0xff]
      %v8367 = vld [vmem:[%s7962 + $0xa9] sm:$0xff]
      %v8368 = vld [vmem:[%s7962 + $0xb1] sm:$0xff]
      %v8369 = vld [vmem:[%s7962 + $0xc1] sm:$0xff]
      %v8370 = vld [vmem:[%s7962 + $0xc9] sm:$0xff]
      %v8371 = vld [vmem:[%s7962 + $0xd9] sm:$0xff]
      %v8372 = vld [vmem:[%s7962 + $0xe1] sm:$0xff]
      %v8373 = vld [vmem:[%s7962 + $0xf1] sm:$0xff]
      %v8374 = vld [vmem:[%s7962 + $0xf9] sm:$0xff]
      %v8375 = vld [vmem:[%s7962 + $0x109] sm:$0xff]
      %v8376 = vld [vmem:[%s7962 + $0x111] sm:$0xff]
      %v8377 = vld [vmem:[%s7962 + $0x121] sm:$0xff]
      %v8378 = vld [vmem:[%s7962 + $0x129] sm:$0xff]
      %v8379 = vld [vmem:[%s7962 + $0x139] sm:$0xff]
      %v8380 = vld [vmem:[%s7962 + $0x141] sm:$0xff]
      %v8381 = vld [vmem:[%s7962 + $0x151] sm:$0xff]
      %v8382 = vld [vmem:[%s7962 + $0x159] sm:$0xff]
      %v8383 = vld [vmem:[%s7962 + $0x169] sm:$0xff]
      %v8384 = vld [vmem:[%s7962 + $0x171] sm:$0xff]
      %s8385 = scalar_lea.vmem %s210, 84
      %v8386 = vld [vmem:[%s8385] sm:$0xf]
      %v8388 = vsel %vm289, %v8353, 0
      %v8391 = vsel %vm289, %v8354, 0
      %v8394 = vsel %vm289, %v8355, 0
      %v8397 = vsel %vm289, %v8356, 0
      %v8400 = vsel %vm289, %v8357, 0
      %v8403 = vsel %vm289, %v8358, 0
      %v8406 = vsel %vm289, %v8359, 0
      %v8409 = vsel %vm289, %v8360, 0
      %v8412 = vsel %vm289, %v8361, 0
      %v8415 = vsel %vm289, %v8362, 0
      %v8418 = vsel %vm289, %v8363, 0
      %v8421 = vsel %vm289, %v8364, 0
      %v8424 = vsel %vm289, %v8365, 0
      %v8427 = vsel %vm289, %v8366, 0
      %v8430 = vsel %vm289, %v8367, 0
      %v8433 = vsel %vm289, %v8368, 0
      %v8436 = vsel %vm289, %v8369, 0
      %v8439 = vsel %vm289, %v8370, 0
      %v8442 = vsel %vm289, %v8371, 0
      %v8445 = vsel %vm289, %v8372, 0
      %v8448 = vsel %vm289, %v8373, 0
      %v8451 = vsel %vm289, %v8374, 0
      %v8454 = vsel %vm289, %v8375, 0
      %v8457 = vsel %vm289, %v8376, 0
      %v8460 = vsel %vm289, %v8377, 0
      %v8463 = vsel %vm289, %v8378, 0
      %v8466 = vsel %vm289, %v8379, 0
      %v8469 = vsel %vm289, %v8380, 0
      %v8472 = vsel %vm289, %v8381, 0
      %v8475 = vsel %vm289, %v8382, 0
      %v8478 = vsel %vm289, %v8383, 0
      %v8481 = vsel %vm289, %v8384, 0
      %v8484 = vsel %vm386, %v8386, 0
      %8486 = vmatprep.subr.mxu0 0.0
      %8487 = vmatpush1.msra.mxu0 0.0
      %8488 = vmatprep.subr.mxu0 0.0
      %8489 = vmatpush1.msra.mxu0 0.0
      %8490 = vmatprep.subr.mxu0 0.0
      %8491 = vmatpush1.msra.mxu0 0.0
      %8492 = vmatprep.subr.mxu0 0.0
      %8493 = vmatpush1.msra.mxu0 0.0
      %8494 = vmatprep.subr.mxu0 0.0
      %8495 = vmatpush1.msra.mxu0 0.0
      %8496 = vmatprep.subr.mxu0 0.0
      %8497 = vmatpush1.msra.mxu0 0.0
      %8498 = vmatprep.subr.mxu0 0.0
      %8499 = vmatpush1.msra.mxu0 0.0
      %8500 = vmatprep.subr.mxu0 0.0
      %8501 = vmatpush1.msra.mxu0 0.0
      %8502 = vmatprep.subr.mxu0 0.0
      %8503 = vmatpush1.msra.mxu0 0.0
      %8504 = vmatprep.subr.mxu0 0.0
      %8505 = vmatpush1.msra.mxu0 0.0
      %8506 = vmatprep.subr.mxu0 0.0
      %8507 = vmatpush1.msra.mxu0 0.0
      %8508 = vmatprep.subr.mxu0 0.0
      %8509 = vmatpush1.msra.mxu0 0.0
      %8510 = vmatprep.subr.mxu0 0.0
      %8511 = vmatpush1.msra.mxu0 0.0
      %8512 = vmatprep.subr.mxu0 0.0
      %8513 = vmatpush1.msra.mxu0 0.0
      %8514 = vmatprep.subr.mxu0 0.0
      %8515 = vmatpush1.msra.mxu0 0.0
      %8516 = vmatprep.subr.mxu0 0.0
      %8517 = vmatpush1.msra.mxu0 %v8484
      %8518 = vmatprep.subr.mxu0 0.0
      %8519 = vmatpush2.msra.mxu0 0.0
      %8520 = vmatprep.subr.mxu0 0.0
      %8521 = vmatpush2.msra.mxu0 0.0
      %8522 = vmatprep.subr.mxu0 0.0
      %8523 = vmatpush2.msra.mxu0 0.0
      %8524 = vmatprep.subr.mxu0 0.0
      %8525 = vmatpush2.msra.mxu0 0.0
      %8526 = vmatprep.subr.mxu0 0.0
      %8527 = vmatpush2.msra.mxu0 0.0
      %8528 = vmatprep.subr.mxu0 0.0
      %8529 = vmatpush2.msra.mxu0 0.0
      %8530 = vmatprep.subr.mxu0 0.0
      %8531 = vmatpush2.msra.mxu0 0.0
      %8532 = vmatprep.subr.mxu0 0.0
      %8533 = vmatpush2.msra.mxu0 0.0
      %8534 = vmatprep.subr.mxu0 0.0
      %8535 = vmatpush2.msra.mxu0 0.0
      %8536 = vmatprep.subr.mxu0 0.0
      %8537 = vmatpush2.msra.mxu0 0.0
      %8538 = vmatprep.subr.mxu0 0.0
      %8539 = vmatpush2.msra.mxu0 0.0
      %8540 = vmatprep.subr.mxu0 0.0
      %8541 = vmatpush2.msra.mxu0 0.0
      %8542 = vmatprep.subr.mxu0 0.0
      %8543 = vmatpush2.msra.mxu0 0.0
      %8544 = vmatprep.subr.mxu0 0.0
      %8545 = vmatpush2.msra.mxu0 0.0
      %8546 = vmatprep.subr.mxu0 0.0
      %8547 = vmatpush2.msra.mxu0 0.0
      %8548 = vmatprep.subr.mxu0 0.0
      %8549 = vmatpush2.msra.mxu0 0.0
      %8550 = vmatprep.mubr.f32.mxu0 0.0
      %8551 = vmatmul.mubr.f32.gmra.mxu0 %v8388
      %v8552 = vpop.f32.mrf.mxu0
      %v8553 = vadd.f32 0.0, %v8552
      %v8554 = vpop.f32.mrf.mxu0
      %8555 = vmatprep.mubr.f32.mxu0 0.0
      %8556 = vmatmul.mubr.f32.gmra.mxu0 %v8391
      %v8557 = vpop.f32.mrf.mxu0
      %v8558 = vadd.f32 0.0, %v8557
      %v8559 = vpop.f32.mrf.mxu0
      %8560 = vmatprep.mubr.f32.mxu0 0.0
      %8561 = vmatmul.mubr.f32.gmra.mxu0 %v8394
      %v8562 = vpop.f32.mrf.mxu0
      %v8563 = vadd.f32 0.0, %v8562
      %v8564 = vpop.f32.mrf.mxu0
      %8565 = vmatprep.mubr.f32.mxu0 0.0
      %8566 = vmatmul.mubr.f32.gmra.mxu0 %v8397
      %v8567 = vpop.f32.mrf.mxu0
      %v8568 = vadd.f32 0.0, %v8567
      %v8569 = vpop.f32.mrf.mxu0
      %8570 = vmatprep.mubr.f32.mxu0 0.0
      %8571 = vmatmul.mubr.f32.gmra.mxu0 %v8400
      %v8572 = vpop.f32.mrf.mxu0
      %v8573 = vadd.f32 0.0, %v8572
      %v8574 = vpop.f32.mrf.mxu0
      %8575 = vmatprep.mubr.f32.mxu0 0.0
      %8576 = vmatmul.mubr.f32.gmra.mxu0 %v8403
      %v8577 = vpop.f32.mrf.mxu0
      %v8578 = vadd.f32 0.0, %v8577
      %v8579 = vpop.f32.mrf.mxu0
      %8580 = vmatprep.mubr.f32.mxu0 0.0
      %8581 = vmatmul.mubr.f32.gmra.mxu0 %v8406
      %v8582 = vpop.f32.mrf.mxu0
      %v8583 = vadd.f32 0.0, %v8582
      %v8584 = vpop.f32.mrf.mxu0
      %8585 = vmatprep.mubr.f32.mxu0 0.0
      %8586 = vmatmul.mubr.f32.gmra.mxu0 %v8409
      %v8587 = vpop.f32.mrf.mxu0
      %v8588 = vadd.f32 0.0, %v8587
      %v8589 = vpop.f32.mrf.mxu0
      %8590 = vmatprep.mubr.f32.mxu0 0.0
      %8591 = vmatmul.mubr.f32.gmra.mxu0 %v8412
      %v8592 = vpop.f32.mrf.mxu0
      %v8593 = vadd.f32 0.0, %v8592
      %v8594 = vpop.f32.mrf.mxu0
      %8595 = vmatprep.mubr.f32.mxu0 0.0
      %8596 = vmatmul.mubr.f32.gmra.mxu0 %v8415
      %v8597 = vpop.f32.mrf.mxu0
      %v8598 = vadd.f32 0.0, %v8597
      %v8599 = vpop.f32.mrf.mxu0
      %8600 = vmatprep.mubr.f32.mxu0 0.0
      %8601 = vmatmul.mubr.f32.gmra.mxu0 %v8418
      %v8602 = vpop.f32.mrf.mxu0
      %v8603 = vadd.f32 0.0, %v8602
      %v8604 = vpop.f32.mrf.mxu0
      %8605 = vmatprep.mubr.f32.mxu0 0.0
      %8606 = vmatmul.mubr.f32.gmra.mxu0 %v8421
      %v8607 = vpop.f32.mrf.mxu0
      %v8608 = vadd.f32 0.0, %v8607
      %v8609 = vpop.f32.mrf.mxu0
      %8610 = vmatprep.mubr.f32.mxu0 0.0
      %8611 = vmatmul.mubr.f32.gmra.mxu0 %v8424
      %v8612 = vpop.f32.mrf.mxu0
      %v8613 = vadd.f32 0.0, %v8612
      %v8614 = vpop.f32.mrf.mxu0
      %8615 = vmatprep.mubr.f32.mxu0 0.0
      %8616 = vmatmul.mubr.f32.gmra.mxu0 %v8427
      %v8617 = vpop.f32.mrf.mxu0
      %v8618 = vadd.f32 0.0, %v8617
      %v8619 = vpop.f32.mrf.mxu0
      %8620 = vmatprep.mubr.f32.mxu0 0.0
      %8621 = vmatmul.mubr.f32.gmra.mxu0 %v8430
      %v8622 = vpop.f32.mrf.mxu0
      %v8623 = vadd.f32 0.0, %v8622
      %v8624 = vpop.f32.mrf.mxu0
      %8625 = vmatprep.mubr.f32.mxu0 0.0
      %8626 = vmatmul.mubr.f32.gmra.mxu0 %v8433
      %v8627 = vpop.f32.mrf.mxu0
      %v8628 = vadd.f32 0.0, %v8627
      %v8629 = vpop.f32.mrf.mxu0
      %8630 = vmatprep.mubr.f32.mxu0 0.0
      %8631 = vmatmul.mubr.f32.gmra.mxu0 %v8436
      %v8632 = vpop.f32.mrf.mxu0
      %v8633 = vadd.f32 0.0, %v8632
      %v8634 = vpop.f32.mrf.mxu0
      %8635 = vmatprep.mubr.f32.mxu0 0.0
      %8636 = vmatmul.mubr.f32.gmra.mxu0 %v8439
      %v8637 = vpop.f32.mrf.mxu0
      %v8638 = vadd.f32 0.0, %v8637
      %v8639 = vpop.f32.mrf.mxu0
      %8640 = vmatprep.mubr.f32.mxu0 0.0
      %8641 = vmatmul.mubr.f32.gmra.mxu0 %v8442
      %v8642 = vpop.f32.mrf.mxu0
      %v8643 = vadd.f32 0.0, %v8642
      %v8644 = vpop.f32.mrf.mxu0
      %8645 = vmatprep.mubr.f32.mxu0 0.0
      %8646 = vmatmul.mubr.f32.gmra.mxu0 %v8445
      %v8647 = vpop.f32.mrf.mxu0
      %v8648 = vadd.f32 0.0, %v8647
      %v8649 = vpop.f32.mrf.mxu0
      %8650 = vmatprep.mubr.f32.mxu0 0.0
      %8651 = vmatmul.mubr.f32.gmra.mxu0 %v8448
      %v8652 = vpop.f32.mrf.mxu0
      %v8653 = vadd.f32 0.0, %v8652
      %v8654 = vpop.f32.mrf.mxu0
      %8655 = vmatprep.mubr.f32.mxu0 0.0
      %8656 = vmatmul.mubr.f32.gmra.mxu0 %v8451
      %v8657 = vpop.f32.mrf.mxu0
      %v8658 = vadd.f32 0.0, %v8657
      %v8659 = vpop.f32.mrf.mxu0
      %8660 = vmatprep.mubr.f32.mxu0 0.0
      %8661 = vmatmul.mubr.f32.gmra.mxu0 %v8454
      %v8662 = vpop.f32.mrf.mxu0
      %v8663 = vadd.f32 0.0, %v8662
      %v8664 = vpop.f32.mrf.mxu0
      %8665 = vmatprep.mubr.f32.mxu0 0.0
      %8666 = vmatmul.mubr.f32.gmra.mxu0 %v8457
      %v8667 = vpop.f32.mrf.mxu0
      %v8668 = vadd.f32 0.0, %v8667
      %v8669 = vpop.f32.mrf.mxu0
      %8670 = vmatprep.mubr.f32.mxu0 0.0
      %8671 = vmatmul.mubr.f32.gmra.mxu0 %v8460
      %v8672 = vpop.f32.mrf.mxu0
      %v8673 = vadd.f32 0.0, %v8672
      %v8674 = vpop.f32.mrf.mxu0
      %8675 = vmatprep.mubr.f32.mxu0 0.0
      %8676 = vmatmul.mubr.f32.gmra.mxu0 %v8463
      %v8677 = vpop.f32.mrf.mxu0
      %v8678 = vadd.f32 0.0, %v8677
      %v8679 = vpop.f32.mrf.mxu0
      %8680 = vmatprep.mubr.f32.mxu0 0.0
      %8681 = vmatmul.mubr.f32.gmra.mxu0 %v8466
      %v8682 = vpop.f32.mrf.mxu0
      %v8683 = vadd.f32 0.0, %v8682
      %v8684 = vpop.f32.mrf.mxu0
      %8685 = vmatprep.mubr.f32.mxu0 0.0
      %8686 = vmatmul.mubr.f32.gmra.mxu0 %v8469
      %v8687 = vpop.f32.mrf.mxu0
      %v8688 = vadd.f32 0.0, %v8687
      %v8689 = vpop.f32.mrf.mxu0
      %8690 = vmatprep.mubr.f32.mxu0 0.0
      %8691 = vmatmul.mubr.f32.gmra.mxu0 %v8472
      %v8692 = vpop.f32.mrf.mxu0
      %v8693 = vadd.f32 0.0, %v8692
      %v8694 = vpop.f32.mrf.mxu0
      %8695 = vmatprep.mubr.f32.mxu0 0.0
      %8696 = vmatmul.mubr.f32.gmra.mxu0 %v8475
      %v8697 = vpop.f32.mrf.mxu0
      %v8698 = vadd.f32 0.0, %v8697
      %v8699 = vpop.f32.mrf.mxu0
      %8700 = vmatprep.mubr.f32.mxu0 0.0
      %8701 = vmatmul.mubr.f32.gmra.mxu0 %v8478
      %v8702 = vpop.f32.mrf.mxu0
      %v8703 = vadd.f32 0.0, %v8702
      %v8704 = vpop.f32.mrf.mxu0
      %8705 = vmatprep.mubr.f32.mxu0 0.0
      %8706 = vmatmul.mubr.f32.gmra.mxu0 %v8481
      %v8707 = vpop.f32.mrf.mxu0
      %v8708 = vadd.f32 0.0, %v8707
      %v8709 = vpop.f32.mrf.mxu0
      %8710 = vdwg.mxu0
      %v8711 = vadd.f32 %v8321, %v8553
      %v8712 = vadd.f32 %v8322, %v8558
      %v8713 = vadd.f32 %v8323, %v8563
      %v8714 = vadd.f32 %v8324, %v8568
      %v8715 = vadd.f32 %v8325, %v8573
      %v8716 = vadd.f32 %v8326, %v8578
      %v8717 = vadd.f32 %v8327, %v8583
      %v8718 = vadd.f32 %v8328, %v8588
      %v8719 = vadd.f32 %v8329, %v8593
      %v8720 = vadd.f32 %v8330, %v8598
      %v8721 = vadd.f32 %v8331, %v8603
      %v8722 = vadd.f32 %v8332, %v8608
      %v8723 = vadd.f32 %v8333, %v8613
      %v8724 = vadd.f32 %v8334, %v8618
      %v8725 = vadd.f32 %v8335, %v8623
      %v8726 = vadd.f32 %v8336, %v8628
      %v8727 = vadd.f32 %v8337, %v8633
      %v8728 = vadd.f32 %v8338, %v8638
      %v8729 = vadd.f32 %v8339, %v8643
      %v8730 = vadd.f32 %v8340, %v8648
      %v8731 = vadd.f32 %v8341, %v8653
      %v8732 = vadd.f32 %v8342, %v8658
      %v8733 = vadd.f32 %v8343, %v8663
      %v8734 = vadd.f32 %v8344, %v8668
      %v8735 = vadd.f32 %v8345, %v8673
      %v8736 = vadd.f32 %v8346, %v8678
      %v8737 = vadd.f32 %v8347, %v8683
      %v8738 = vadd.f32 %v8348, %v8688
      %v8739 = vadd.f32 %v8349, %v8693
      %v8740 = vadd.f32 %v8350, %v8698
      %v8741 = vadd.f32 %v8351, %v8703
      %v8742 = vadd.f32 %v8352, %v8708
      %v8743 = vld [vmem:[%s7962 + $0x2] sm:$0xff]
      %v8744 = vld [vmem:[%s7962 + $0xa] sm:$0xff]
      %v8745 = vld [vmem:[%s7962 + $0x1a] sm:$0xff]
      %v8746 = vld [vmem:[%s7962 + $0x22] sm:$0xff]
      %v8747 = vld [vmem:[%s7962 + $0x32] sm:$0xff]
      %v8748 = vld [vmem:[%s7962 + $0x3a] sm:$0xff]
      %v8749 = vld [vmem:[%s7962 + $0x4a] sm:$0xff]
      %v8750 = vld [vmem:[%s7962 + $0x52] sm:$0xff]
      %v8751 = vld [vmem:[%s7962 + $0x62] sm:$0xff]
      %v8752 = vld [vmem:[%s7962 + $0x6a] sm:$0xff]
      %v8753 = vld [vmem:[%s7962 + $0x7a] sm:$0xff]
      %v8754 = vld [vmem:[%s7962 + $0x82] sm:$0xff]
      %v8755 = vld [vmem:[%s7962 + $0x92] sm:$0xff]
      %v8756 = vld [vmem:[%s7962 + $0x9a] sm:$0xff]
      %v8757 = vld [vmem:[%s7962 + $0xaa] sm:$0xff]
      %v8758 = vld [vmem:[%s7962 + $0xb2] sm:$0xff]
      %v8759 = vld [vmem:[%s7962 + $0xc2] sm:$0xff]
      %v8760 = vld [vmem:[%s7962 + $0xca] sm:$0xff]
      %v8761 = vld [vmem:[%s7962 + $0xda] sm:$0xff]
      %v8762 = vld [vmem:[%s7962 + $0xe2] sm:$0xff]
      %v8763 = vld [vmem:[%s7962 + $0xf2] sm:$0xff]
      %v8764 = vld [vmem:[%s7962 + $0xfa] sm:$0xff]
      %v8765 = vld [vmem:[%s7962 + $0x10a] sm:$0xff]
      %v8766 = vld [vmem:[%s7962 + $0x112] sm:$0xff]
      %v8767 = vld [vmem:[%s7962 + $0x122] sm:$0xff]
      %v8768 = vld [vmem:[%s7962 + $0x12a] sm:$0xff]
      %v8769 = vld [vmem:[%s7962 + $0x13a] sm:$0xff]
      %v8770 = vld [vmem:[%s7962 + $0x142] sm:$0xff]
      %v8771 = vld [vmem:[%s7962 + $0x152] sm:$0xff]
      %v8772 = vld [vmem:[%s7962 + $0x15a] sm:$0xff]
      %v8773 = vld [vmem:[%s7962 + $0x16a] sm:$0xff]
      %v8774 = vld [vmem:[%s7962 + $0x172] sm:$0xff]
      %s8775 = scalar_lea.vmem %s210, 88
      %v8776 = vld [vmem:[%s8775] sm:$0xf]
      %v8778 = vsel %vm289, %v8743, 0
      %v8781 = vsel %vm289, %v8744, 0
      %v8784 = vsel %vm289, %v8745, 0
      %v8787 = vsel %vm289, %v8746, 0
      %v8790 = vsel %vm289, %v8747, 0
      %v8793 = vsel %vm289, %v8748, 0
      %v8796 = vsel %vm289, %v8749, 0
      %v8799 = vsel %vm289, %v8750, 0
      %v8802 = vsel %vm289, %v8751, 0
      %v8805 = vsel %vm289, %v8752, 0
      %v8808 = vsel %vm289, %v8753, 0
      %v8811 = vsel %vm289, %v8754, 0
      %v8814 = vsel %vm289, %v8755, 0
      %v8817 = vsel %vm289, %v8756, 0
      %v8820 = vsel %vm289, %v8757, 0
      %v8823 = vsel %vm289, %v8758, 0
      %v8826 = vsel %vm289, %v8759, 0
      %v8829 = vsel %vm289, %v8760, 0
      %v8832 = vsel %vm289, %v8761, 0
      %v8835 = vsel %vm289, %v8762, 0
      %v8838 = vsel %vm289, %v8763, 0
      %v8841 = vsel %vm289, %v8764, 0
      %v8844 = vsel %vm289, %v8765, 0
      %v8847 = vsel %vm289, %v8766, 0
      %v8850 = vsel %vm289, %v8767, 0
      %v8853 = vsel %vm289, %v8768, 0
      %v8856 = vsel %vm289, %v8769, 0
      %v8859 = vsel %vm289, %v8770, 0
      %v8862 = vsel %vm289, %v8771, 0
      %v8865 = vsel %vm289, %v8772, 0
      %v8868 = vsel %vm289, %v8773, 0
      %v8871 = vsel %vm289, %v8774, 0
      %v8874 = vsel %vm386, %v8776, 0
      %8876 = vmatprep.subr.mxu0 0.0
      %8877 = vmatpush1.msra.mxu0 0.0
      %8878 = vmatprep.subr.mxu0 0.0
      %8879 = vmatpush1.msra.mxu0 0.0
      %8880 = vmatprep.subr.mxu0 0.0
      %8881 = vmatpush1.msra.mxu0 0.0
      %8882 = vmatprep.subr.mxu0 0.0
      %8883 = vmatpush1.msra.mxu0 0.0
      %8884 = vmatprep.subr.mxu0 0.0
      %8885 = vmatpush1.msra.mxu0 0.0
      %8886 = vmatprep.subr.mxu0 0.0
      %8887 = vmatpush1.msra.mxu0 0.0
      %8888 = vmatprep.subr.mxu0 0.0
      %8889 = vmatpush1.msra.mxu0 0.0
      %8890 = vmatprep.subr.mxu0 0.0
      %8891 = vmatpush1.msra.mxu0 0.0
      %8892 = vmatprep.subr.mxu0 0.0
      %8893 = vmatpush1.msra.mxu0 0.0
      %8894 = vmatprep.subr.mxu0 0.0
      %8895 = vmatpush1.msra.mxu0 0.0
      %8896 = vmatprep.subr.mxu0 0.0
      %8897 = vmatpush1.msra.mxu0 0.0
      %8898 = vmatprep.subr.mxu0 0.0
      %8899 = vmatpush1.msra.mxu0 0.0
      %8900 = vmatprep.subr.mxu0 0.0
      %8901 = vmatpush1.msra.mxu0 0.0
      %8902 = vmatprep.subr.mxu0 0.0
      %8903 = vmatpush1.msra.mxu0 0.0
      %8904 = vmatprep.subr.mxu0 0.0
      %8905 = vmatpush1.msra.mxu0 0.0
      %8906 = vmatprep.subr.mxu0 0.0
      %8907 = vmatpush1.msra.mxu0 %v8874
      %8908 = vmatprep.subr.mxu0 0.0
      %8909 = vmatpush2.msra.mxu0 0.0
      %8910 = vmatprep.subr.mxu0 0.0
      %8911 = vmatpush2.msra.mxu0 0.0
      %8912 = vmatprep.subr.mxu0 0.0
      %8913 = vmatpush2.msra.mxu0 0.0
      %8914 = vmatprep.subr.mxu0 0.0
      %8915 = vmatpush2.msra.mxu0 0.0
      %8916 = vmatprep.subr.mxu0 0.0
      %8917 = vmatpush2.msra.mxu0 0.0
      %8918 = vmatprep.subr.mxu0 0.0
      %8919 = vmatpush2.msra.mxu0 0.0
      %8920 = vmatprep.subr.mxu0 0.0
      %8921 = vmatpush2.msra.mxu0 0.0
      %8922 = vmatprep.subr.mxu0 0.0
      %8923 = vmatpush2.msra.mxu0 0.0
      %8924 = vmatprep.subr.mxu0 0.0
      %8925 = vmatpush2.msra.mxu0 0.0
      %8926 = vmatprep.subr.mxu0 0.0
      %8927 = vmatpush2.msra.mxu0 0.0
      %8928 = vmatprep.subr.mxu0 0.0
      %8929 = vmatpush2.msra.mxu0 0.0
      %8930 = vmatprep.subr.mxu0 0.0
      %8931 = vmatpush2.msra.mxu0 0.0
      %8932 = vmatprep.subr.mxu0 0.0
      %8933 = vmatpush2.msra.mxu0 0.0
      %8934 = vmatprep.subr.mxu0 0.0
      %8935 = vmatpush2.msra.mxu0 0.0
      %8936 = vmatprep.subr.mxu0 0.0
      %8937 = vmatpush2.msra.mxu0 0.0
      %8938 = vmatprep.subr.mxu0 0.0
      %8939 = vmatpush2.msra.mxu0 0.0
      %8940 = vmatprep.mubr.f32.mxu0 0.0
      %8941 = vmatmul.mubr.f32.gmra.mxu0 %v8778
      %v8942 = vpop.f32.mrf.mxu0
      %v8943 = vadd.f32 0.0, %v8942
      %v8944 = vpop.f32.mrf.mxu0
      %8945 = vmatprep.mubr.f32.mxu0 0.0
      %8946 = vmatmul.mubr.f32.gmra.mxu0 %v8781
      %v8947 = vpop.f32.mrf.mxu0
      %v8948 = vadd.f32 0.0, %v8947
      %v8949 = vpop.f32.mrf.mxu0
      %8950 = vmatprep.mubr.f32.mxu0 0.0
      %8951 = vmatmul.mubr.f32.gmra.mxu0 %v8784
      %v8952 = vpop.f32.mrf.mxu0
      %v8953 = vadd.f32 0.0, %v8952
      %v8954 = vpop.f32.mrf.mxu0
      %8955 = vmatprep.mubr.f32.mxu0 0.0
      %8956 = vmatmul.mubr.f32.gmra.mxu0 %v8787
      %v8957 = vpop.f32.mrf.mxu0
      %v8958 = vadd.f32 0.0, %v8957
      %v8959 = vpop.f32.mrf.mxu0
      %8960 = vmatprep.mubr.f32.mxu0 0.0
      %8961 = vmatmul.mubr.f32.gmra.mxu0 %v8790
      %v8962 = vpop.f32.mrf.mxu0
      %v8963 = vadd.f32 0.0, %v8962
      %v8964 = vpop.f32.mrf.mxu0
      %8965 = vmatprep.mubr.f32.mxu0 0.0
      %8966 = vmatmul.mubr.f32.gmra.mxu0 %v8793
      %v8967 = vpop.f32.mrf.mxu0
      %v8968 = vadd.f32 0.0, %v8967
      %v8969 = vpop.f32.mrf.mxu0
      %8970 = vmatprep.mubr.f32.mxu0 0.0
      %8971 = vmatmul.mubr.f32.gmra.mxu0 %v8796
      %v8972 = vpop.f32.mrf.mxu0
      %v8973 = vadd.f32 0.0, %v8972
      %v8974 = vpop.f32.mrf.mxu0
      %8975 = vmatprep.mubr.f32.mxu0 0.0
      %8976 = vmatmul.mubr.f32.gmra.mxu0 %v8799
      %v8977 = vpop.f32.mrf.mxu0
      %v8978 = vadd.f32 0.0, %v8977
      %v8979 = vpop.f32.mrf.mxu0
      %8980 = vmatprep.mubr.f32.mxu0 0.0
      %8981 = vmatmul.mubr.f32.gmra.mxu0 %v8802
      %v8982 = vpop.f32.mrf.mxu0
      %v8983 = vadd.f32 0.0, %v8982
      %v8984 = vpop.f32.mrf.mxu0
      %8985 = vmatprep.mubr.f32.mxu0 0.0
      %8986 = vmatmul.mubr.f32.gmra.mxu0 %v8805
      %v8987 = vpop.f32.mrf.mxu0
      %v8988 = vadd.f32 0.0, %v8987
      %v8989 = vpop.f32.mrf.mxu0
      %8990 = vmatprep.mubr.f32.mxu0 0.0
      %8991 = vmatmul.mubr.f32.gmra.mxu0 %v8808
      %v8992 = vpop.f32.mrf.mxu0
      %v8993 = vadd.f32 0.0, %v8992
      %v8994 = vpop.f32.mrf.mxu0
      %8995 = vmatprep.mubr.f32.mxu0 0.0
      %8996 = vmatmul.mubr.f32.gmra.mxu0 %v8811
      %v8997 = vpop.f32.mrf.mxu0
      %v8998 = vadd.f32 0.0, %v8997
      %v8999 = vpop.f32.mrf.mxu0
      %9000 = vmatprep.mubr.f32.mxu0 0.0
      %9001 = vmatmul.mubr.f32.gmra.mxu0 %v8814
      %v9002 = vpop.f32.mrf.mxu0
      %v9003 = vadd.f32 0.0, %v9002
      %v9004 = vpop.f32.mrf.mxu0
      %9005 = vmatprep.mubr.f32.mxu0 0.0
      %9006 = vmatmul.mubr.f32.gmra.mxu0 %v8817
      %v9007 = vpop.f32.mrf.mxu0
      %v9008 = vadd.f32 0.0, %v9007
      %v9009 = vpop.f32.mrf.mxu0
      %9010 = vmatprep.mubr.f32.mxu0 0.0
      %9011 = vmatmul.mubr.f32.gmra.mxu0 %v8820
      %v9012 = vpop.f32.mrf.mxu0
      %v9013 = vadd.f32 0.0, %v9012
      %v9014 = vpop.f32.mrf.mxu0
      %9015 = vmatprep.mubr.f32.mxu0 0.0
      %9016 = vmatmul.mubr.f32.gmra.mxu0 %v8823
      %v9017 = vpop.f32.mrf.mxu0
      %v9018 = vadd.f32 0.0, %v9017
      %v9019 = vpop.f32.mrf.mxu0
      %9020 = vmatprep.mubr.f32.mxu0 0.0
      %9021 = vmatmul.mubr.f32.gmra.mxu0 %v8826
      %v9022 = vpop.f32.mrf.mxu0
      %v9023 = vadd.f32 0.0, %v9022
      %v9024 = vpop.f32.mrf.mxu0
      %9025 = vmatprep.mubr.f32.mxu0 0.0
      %9026 = vmatmul.mubr.f32.gmra.mxu0 %v8829
      %v9027 = vpop.f32.mrf.mxu0
      %v9028 = vadd.f32 0.0, %v9027
      %v9029 = vpop.f32.mrf.mxu0
      %9030 = vmatprep.mubr.f32.mxu0 0.0
      %9031 = vmatmul.mubr.f32.gmra.mxu0 %v8832
      %v9032 = vpop.f32.mrf.mxu0
      %v9033 = vadd.f32 0.0, %v9032
      %v9034 = vpop.f32.mrf.mxu0
      %9035 = vmatprep.mubr.f32.mxu0 0.0
      %9036 = vmatmul.mubr.f32.gmra.mxu0 %v8835
      %v9037 = vpop.f32.mrf.mxu0
      %v9038 = vadd.f32 0.0, %v9037
      %v9039 = vpop.f32.mrf.mxu0
      %9040 = vmatprep.mubr.f32.mxu0 0.0
      %9041 = vmatmul.mubr.f32.gmra.mxu0 %v8838
      %v9042 = vpop.f32.mrf.mxu0
      %v9043 = vadd.f32 0.0, %v9042
      %v9044 = vpop.f32.mrf.mxu0
      %9045 = vmatprep.mubr.f32.mxu0 0.0
      %9046 = vmatmul.mubr.f32.gmra.mxu0 %v8841
      %v9047 = vpop.f32.mrf.mxu0
      %v9048 = vadd.f32 0.0, %v9047
      %v9049 = vpop.f32.mrf.mxu0
      %9050 = vmatprep.mubr.f32.mxu0 0.0
      %9051 = vmatmul.mubr.f32.gmra.mxu0 %v8844
      %v9052 = vpop.f32.mrf.mxu0
      %v9053 = vadd.f32 0.0, %v9052
      %v9054 = vpop.f32.mrf.mxu0
      %9055 = vmatprep.mubr.f32.mxu0 0.0
      %9056 = vmatmul.mubr.f32.gmra.mxu0 %v8847
      %v9057 = vpop.f32.mrf.mxu0
      %v9058 = vadd.f32 0.0, %v9057
      %v9059 = vpop.f32.mrf.mxu0
      %9060 = vmatprep.mubr.f32.mxu0 0.0
      %9061 = vmatmul.mubr.f32.gmra.mxu0 %v8850
      %v9062 = vpop.f32.mrf.mxu0
      %v9063 = vadd.f32 0.0, %v9062
      %v9064 = vpop.f32.mrf.mxu0
      %9065 = vmatprep.mubr.f32.mxu0 0.0
      %9066 = vmatmul.mubr.f32.gmra.mxu0 %v8853
      %v9067 = vpop.f32.mrf.mxu0
      %v9068 = vadd.f32 0.0, %v9067
      %v9069 = vpop.f32.mrf.mxu0
      %9070 = vmatprep.mubr.f32.mxu0 0.0
      %9071 = vmatmul.mubr.f32.gmra.mxu0 %v8856
      %v9072 = vpop.f32.mrf.mxu0
      %v9073 = vadd.f32 0.0, %v9072
      %v9074 = vpop.f32.mrf.mxu0
      %9075 = vmatprep.mubr.f32.mxu0 0.0
      %9076 = vmatmul.mubr.f32.gmra.mxu0 %v8859
      %v9077 = vpop.f32.mrf.mxu0
      %v9078 = vadd.f32 0.0, %v9077
      %v9079 = vpop.f32.mrf.mxu0
      %9080 = vmatprep.mubr.f32.mxu0 0.0
      %9081 = vmatmul.mubr.f32.gmra.mxu0 %v8862
      %v9082 = vpop.f32.mrf.mxu0
      %v9083 = vadd.f32 0.0, %v9082
      %v9084 = vpop.f32.mrf.mxu0
      %9085 = vmatprep.mubr.f32.mxu0 0.0
      %9086 = vmatmul.mubr.f32.gmra.mxu0 %v8865
      %v9087 = vpop.f32.mrf.mxu0
      %v9088 = vadd.f32 0.0, %v9087
      %v9089 = vpop.f32.mrf.mxu0
      %9090 = vmatprep.mubr.f32.mxu0 0.0
      %9091 = vmatmul.mubr.f32.gmra.mxu0 %v8868
      %v9092 = vpop.f32.mrf.mxu0
      %v9093 = vadd.f32 0.0, %v9092
      %v9094 = vpop.f32.mrf.mxu0
      %9095 = vmatprep.mubr.f32.mxu0 0.0
      %9096 = vmatmul.mubr.f32.gmra.mxu0 %v8871
      %v9097 = vpop.f32.mrf.mxu0
      %v9098 = vadd.f32 0.0, %v9097
      %v9099 = vpop.f32.mrf.mxu0
      %9100 = vdwg.mxu0
      %v9101 = vadd.f32 %v8711, %v8943
      %v9102 = vadd.f32 %v8712, %v8948
      %v9103 = vadd.f32 %v8713, %v8953
      %v9104 = vadd.f32 %v8714, %v8958
      %v9105 = vadd.f32 %v8715, %v8963
      %v9106 = vadd.f32 %v8716, %v8968
      %v9107 = vadd.f32 %v8717, %v8973
      %v9108 = vadd.f32 %v8718, %v8978
      %v9109 = vadd.f32 %v8719, %v8983
      %v9110 = vadd.f32 %v8720, %v8988
      %v9111 = vadd.f32 %v8721, %v8993
      %v9112 = vadd.f32 %v8722, %v8998
      %v9113 = vadd.f32 %v8723, %v9003
      %v9114 = vadd.f32 %v8724, %v9008
      %v9115 = vadd.f32 %v8725, %v9013
      %v9116 = vadd.f32 %v8726, %v9018
      %v9117 = vadd.f32 %v8727, %v9023
      %v9118 = vadd.f32 %v8728, %v9028
      %v9119 = vadd.f32 %v8729, %v9033
      %v9120 = vadd.f32 %v8730, %v9038
      %v9121 = vadd.f32 %v8731, %v9043
      %v9122 = vadd.f32 %v8732, %v9048
      %v9123 = vadd.f32 %v8733, %v9053
      %v9124 = vadd.f32 %v8734, %v9058
      %v9125 = vadd.f32 %v8735, %v9063
      %v9126 = vadd.f32 %v8736, %v9068
      %v9127 = vadd.f32 %v8737, %v9073
      %v9128 = vadd.f32 %v8738, %v9078
      %v9129 = vadd.f32 %v8739, %v9083
      %v9130 = vadd.f32 %v8740, %v9088
      %v9131 = vadd.f32 %v8741, %v9093
      %v9132 = vadd.f32 %v8742, %v9098
      %v9133 = vld [vmem:[%s7962 + $0x3] sm:$0xff]
      %v9134 = vld [vmem:[%s7962 + $0xb] sm:$0xff]
      %v9135 = vld [vmem:[%s7962 + $0x1b] sm:$0xff]
      %v9136 = vld [vmem:[%s7962 + $0x23] sm:$0xff]
      %v9137 = vld [vmem:[%s7962 + $0x33] sm:$0xff]
      %v9138 = vld [vmem:[%s7962 + $0x3b] sm:$0xff]
      %v9139 = vld [vmem:[%s7962 + $0x4b] sm:$0xff]
      %v9140 = vld [vmem:[%s7962 + $0x53] sm:$0xff]
      %v9141 = vld [vmem:[%s7962 + $0x63] sm:$0xff]
      %v9142 = vld [vmem:[%s7962 + $0x6b] sm:$0xff]
      %v9143 = vld [vmem:[%s7962 + $0x7b] sm:$0xff]
      %v9144 = vld [vmem:[%s7962 + $0x83] sm:$0xff]
      %v9145 = vld [vmem:[%s7962 + $0x93] sm:$0xff]
      %v9146 = vld [vmem:[%s7962 + $0x9b] sm:$0xff]
      %v9147 = vld [vmem:[%s7962 + $0xab] sm:$0xff]
      %v9148 = vld [vmem:[%s7962 + $0xb3] sm:$0xff]
      %v9149 = vld [vmem:[%s7962 + $0xc3] sm:$0xff]
      %v9150 = vld [vmem:[%s7962 + $0xcb] sm:$0xff]
      %v9151 = vld [vmem:[%s7962 + $0xdb] sm:$0xff]
      %v9152 = vld [vmem:[%s7962 + $0xe3] sm:$0xff]
      %v9153 = vld [vmem:[%s7962 + $0xf3] sm:$0xff]
      %v9154 = vld [vmem:[%s7962 + $0xfb] sm:$0xff]
      %v9155 = vld [vmem:[%s7962 + $0x10b] sm:$0xff]
      %v9156 = vld [vmem:[%s7962 + $0x113] sm:$0xff]
      %v9157 = vld [vmem:[%s7962 + $0x123] sm:$0xff]
      %v9158 = vld [vmem:[%s7962 + $0x12b] sm:$0xff]
      %v9159 = vld [vmem:[%s7962 + $0x13b] sm:$0xff]
      %v9160 = vld [vmem:[%s7962 + $0x143] sm:$0xff]
      %v9161 = vld [vmem:[%s7962 + $0x153] sm:$0xff]
      %v9162 = vld [vmem:[%s7962 + $0x15b] sm:$0xff]
      %v9163 = vld [vmem:[%s7962 + $0x16b] sm:$0xff]
      %v9164 = vld [vmem:[%s7962 + $0x173] sm:$0xff]
      %s9165 = scalar_lea.vmem %s210, 92
      %v9166 = vld [vmem:[%s9165] sm:$0xf]
      %v9168 = vsel %vm289, %v9133, 0
      %v9171 = vsel %vm289, %v9134, 0
      %v9174 = vsel %vm289, %v9135, 0
      %v9177 = vsel %vm289, %v9136, 0
      %v9180 = vsel %vm289, %v9137, 0
      %v9183 = vsel %vm289, %v9138, 0
      %v9186 = vsel %vm289, %v9139, 0
      %v9189 = vsel %vm289, %v9140, 0
      %v9192 = vsel %vm289, %v9141, 0
      %v9195 = vsel %vm289, %v9142, 0
      %v9198 = vsel %vm289, %v9143, 0
      %v9201 = vsel %vm289, %v9144, 0
      %v9204 = vsel %vm289, %v9145, 0
      %v9207 = vsel %vm289, %v9146, 0
      %v9210 = vsel %vm289, %v9147, 0
      %v9213 = vsel %vm289, %v9148, 0
      %v9216 = vsel %vm289, %v9149, 0
      %v9219 = vsel %vm289, %v9150, 0
      %v9222 = vsel %vm289, %v9151, 0
      %v9225 = vsel %vm289, %v9152, 0
      %v9228 = vsel %vm289, %v9153, 0
      %v9231 = vsel %vm289, %v9154, 0
      %v9234 = vsel %vm289, %v9155, 0
      %v9237 = vsel %vm289, %v9156, 0
      %v9240 = vsel %vm289, %v9157, 0
      %v9243 = vsel %vm289, %v9158, 0
      %v9246 = vsel %vm289, %v9159, 0
      %v9249 = vsel %vm289, %v9160, 0
      %v9252 = vsel %vm289, %v9161, 0
      %v9255 = vsel %vm289, %v9162, 0
      %v9258 = vsel %vm289, %v9163, 0
      %v9261 = vsel %vm289, %v9164, 0
      %v9264 = vsel %vm386, %v9166, 0
      %9266 = vmatprep.subr.mxu0 0.0
      %9267 = vmatpush1.msra.mxu0 0.0
      %9268 = vmatprep.subr.mxu0 0.0
      %9269 = vmatpush1.msra.mxu0 0.0
      %9270 = vmatprep.subr.mxu0 0.0
      %9271 = vmatpush1.msra.mxu0 0.0
      %9272 = vmatprep.subr.mxu0 0.0
      %9273 = vmatpush1.msra.mxu0 0.0
      %9274 = vmatprep.subr.mxu0 0.0
      %9275 = vmatpush1.msra.mxu0 0.0
      %9276 = vmatprep.subr.mxu0 0.0
      %9277 = vmatpush1.msra.mxu0 0.0
      %9278 = vmatprep.subr.mxu0 0.0
      %9279 = vmatpush1.msra.mxu0 0.0
      %9280 = vmatprep.subr.mxu0 0.0
      %9281 = vmatpush1.msra.mxu0 0.0
      %9282 = vmatprep.subr.mxu0 0.0
      %9283 = vmatpush1.msra.mxu0 0.0
      %9284 = vmatprep.subr.mxu0 0.0
      %9285 = vmatpush1.msra.mxu0 0.0
      %9286 = vmatprep.subr.mxu0 0.0
      %9287 = vmatpush1.msra.mxu0 0.0
      %9288 = vmatprep.subr.mxu0 0.0
      %9289 = vmatpush1.msra.mxu0 0.0
      %9290 = vmatprep.subr.mxu0 0.0
      %9291 = vmatpush1.msra.mxu0 0.0
      %9292 = vmatprep.subr.mxu0 0.0
      %9293 = vmatpush1.msra.mxu0 0.0
      %9294 = vmatprep.subr.mxu0 0.0
      %9295 = vmatpush1.msra.mxu0 0.0
      %9296 = vmatprep.subr.mxu0 0.0
      %9297 = vmatpush1.msra.mxu0 %v9264
      %9298 = vmatprep.subr.mxu0 0.0
      %9299 = vmatpush2.msra.mxu0 0.0
      %9300 = vmatprep.subr.mxu0 0.0
      %9301 = vmatpush2.msra.mxu0 0.0
      %9302 = vmatprep.subr.mxu0 0.0
      %9303 = vmatpush2.msra.mxu0 0.0
      %9304 = vmatprep.subr.mxu0 0.0
      %9305 = vmatpush2.msra.mxu0 0.0
      %9306 = vmatprep.subr.mxu0 0.0
      %9307 = vmatpush2.msra.mxu0 0.0
      %9308 = vmatprep.subr.mxu0 0.0
      %9309 = vmatpush2.msra.mxu0 0.0
      %9310 = vmatprep.subr.mxu0 0.0
      %9311 = vmatpush2.msra.mxu0 0.0
      %9312 = vmatprep.subr.mxu0 0.0
      %9313 = vmatpush2.msra.mxu0 0.0
      %9314 = vmatprep.subr.mxu0 0.0
      %9315 = vmatpush2.msra.mxu0 0.0
      %9316 = vmatprep.subr.mxu0 0.0
      %9317 = vmatpush2.msra.mxu0 0.0
      %9318 = vmatprep.subr.mxu0 0.0
      %9319 = vmatpush2.msra.mxu0 0.0
      %9320 = vmatprep.subr.mxu0 0.0
      %9321 = vmatpush2.msra.mxu0 0.0
      %9322 = vmatprep.subr.mxu0 0.0
      %9323 = vmatpush2.msra.mxu0 0.0
      %9324 = vmatprep.subr.mxu0 0.0
      %9325 = vmatpush2.msra.mxu0 0.0
      %9326 = vmatprep.subr.mxu0 0.0
      %9327 = vmatpush2.msra.mxu0 0.0
      %9328 = vmatprep.subr.mxu0 0.0
      %9329 = vmatpush2.msra.mxu0 0.0
      %9330 = vmatprep.mubr.f32.mxu0 0.0
      %9331 = vmatmul.mubr.f32.gmra.mxu0 %v9168
      %v9332 = vpop.f32.mrf.mxu0
      %v9333 = vadd.f32 0.0, %v9332
      %v9334 = vpop.f32.mrf.mxu0
      %9335 = vmatprep.mubr.f32.mxu0 0.0
      %9336 = vmatmul.mubr.f32.gmra.mxu0 %v9171
      %v9337 = vpop.f32.mrf.mxu0
      %v9338 = vadd.f32 0.0, %v9337
      %v9339 = vpop.f32.mrf.mxu0
      %9340 = vmatprep.mubr.f32.mxu0 0.0
      %9341 = vmatmul.mubr.f32.gmra.mxu0 %v9174
      %v9342 = vpop.f32.mrf.mxu0
      %v9343 = vadd.f32 0.0, %v9342
      %v9344 = vpop.f32.mrf.mxu0
      %9345 = vmatprep.mubr.f32.mxu0 0.0
      %9346 = vmatmul.mubr.f32.gmra.mxu0 %v9177
      %v9347 = vpop.f32.mrf.mxu0
      %v9348 = vadd.f32 0.0, %v9347
      %v9349 = vpop.f32.mrf.mxu0
      %9350 = vmatprep.mubr.f32.mxu0 0.0
      %9351 = vmatmul.mubr.f32.gmra.mxu0 %v9180
      %v9352 = vpop.f32.mrf.mxu0
      %v9353 = vadd.f32 0.0, %v9352
      %v9354 = vpop.f32.mrf.mxu0
      %9355 = vmatprep.mubr.f32.mxu0 0.0
      %9356 = vmatmul.mubr.f32.gmra.mxu0 %v9183
      %v9357 = vpop.f32.mrf.mxu0
      %v9358 = vadd.f32 0.0, %v9357
      %v9359 = vpop.f32.mrf.mxu0
      %9360 = vmatprep.mubr.f32.mxu0 0.0
      %9361 = vmatmul.mubr.f32.gmra.mxu0 %v9186
      %v9362 = vpop.f32.mrf.mxu0
      %v9363 = vadd.f32 0.0, %v9362
      %v9364 = vpop.f32.mrf.mxu0
      %9365 = vmatprep.mubr.f32.mxu0 0.0
      %9366 = vmatmul.mubr.f32.gmra.mxu0 %v9189
      %v9367 = vpop.f32.mrf.mxu0
      %v9368 = vadd.f32 0.0, %v9367
      %v9369 = vpop.f32.mrf.mxu0
      %9370 = vmatprep.mubr.f32.mxu0 0.0
      %9371 = vmatmul.mubr.f32.gmra.mxu0 %v9192
      %v9372 = vpop.f32.mrf.mxu0
      %v9373 = vadd.f32 0.0, %v9372
      %v9374 = vpop.f32.mrf.mxu0
      %9375 = vmatprep.mubr.f32.mxu0 0.0
      %9376 = vmatmul.mubr.f32.gmra.mxu0 %v9195
      %v9377 = vpop.f32.mrf.mxu0
      %v9378 = vadd.f32 0.0, %v9377
      %v9379 = vpop.f32.mrf.mxu0
      %9380 = vmatprep.mubr.f32.mxu0 0.0
      %9381 = vmatmul.mubr.f32.gmra.mxu0 %v9198
      %v9382 = vpop.f32.mrf.mxu0
      %v9383 = vadd.f32 0.0, %v9382
      %v9384 = vpop.f32.mrf.mxu0
      %9385 = vmatprep.mubr.f32.mxu0 0.0
      %9386 = vmatmul.mubr.f32.gmra.mxu0 %v9201
      %v9387 = vpop.f32.mrf.mxu0
      %v9388 = vadd.f32 0.0, %v9387
      %v9389 = vpop.f32.mrf.mxu0
      %9390 = vmatprep.mubr.f32.mxu0 0.0
      %9391 = vmatmul.mubr.f32.gmra.mxu0 %v9204
      %v9392 = vpop.f32.mrf.mxu0
      %v9393 = vadd.f32 0.0, %v9392
      %v9394 = vpop.f32.mrf.mxu0
      %9395 = vmatprep.mubr.f32.mxu0 0.0
      %9396 = vmatmul.mubr.f32.gmra.mxu0 %v9207
      %v9397 = vpop.f32.mrf.mxu0
      %v9398 = vadd.f32 0.0, %v9397
      %v9399 = vpop.f32.mrf.mxu0
      %9400 = vmatprep.mubr.f32.mxu0 0.0
      %9401 = vmatmul.mubr.f32.gmra.mxu0 %v9210
      %v9402 = vpop.f32.mrf.mxu0
      %v9403 = vadd.f32 0.0, %v9402
      %v9404 = vpop.f32.mrf.mxu0
      %9405 = vmatprep.mubr.f32.mxu0 0.0
      %9406 = vmatmul.mubr.f32.gmra.mxu0 %v9213
      %v9407 = vpop.f32.mrf.mxu0
      %v9408 = vadd.f32 0.0, %v9407
      %v9409 = vpop.f32.mrf.mxu0
      %9410 = vmatprep.mubr.f32.mxu0 0.0
      %9411 = vmatmul.mubr.f32.gmra.mxu0 %v9216
      %v9412 = vpop.f32.mrf.mxu0
      %v9413 = vadd.f32 0.0, %v9412
      %v9414 = vpop.f32.mrf.mxu0
      %9415 = vmatprep.mubr.f32.mxu0 0.0
      %9416 = vmatmul.mubr.f32.gmra.mxu0 %v9219
      %v9417 = vpop.f32.mrf.mxu0
      %v9418 = vadd.f32 0.0, %v9417
      %v9419 = vpop.f32.mrf.mxu0
      %9420 = vmatprep.mubr.f32.mxu0 0.0
      %9421 = vmatmul.mubr.f32.gmra.mxu0 %v9222
      %v9422 = vpop.f32.mrf.mxu0
      %v9423 = vadd.f32 0.0, %v9422
      %v9424 = vpop.f32.mrf.mxu0
      %9425 = vmatprep.mubr.f32.mxu0 0.0
      %9426 = vmatmul.mubr.f32.gmra.mxu0 %v9225
      %v9427 = vpop.f32.mrf.mxu0
      %v9428 = vadd.f32 0.0, %v9427
      %v9429 = vpop.f32.mrf.mxu0
      %9430 = vmatprep.mubr.f32.mxu0 0.0
      %9431 = vmatmul.mubr.f32.gmra.mxu0 %v9228
      %v9432 = vpop.f32.mrf.mxu0
      %v9433 = vadd.f32 0.0, %v9432
      %v9434 = vpop.f32.mrf.mxu0
      %9435 = vmatprep.mubr.f32.mxu0 0.0
      %9436 = vmatmul.mubr.f32.gmra.mxu0 %v9231
      %v9437 = vpop.f32.mrf.mxu0
      %v9438 = vadd.f32 0.0, %v9437
      %v9439 = vpop.f32.mrf.mxu0
      %9440 = vmatprep.mubr.f32.mxu0 0.0
      %9441 = vmatmul.mubr.f32.gmra.mxu0 %v9234
      %v9442 = vpop.f32.mrf.mxu0
      %v9443 = vadd.f32 0.0, %v9442
      %v9444 = vpop.f32.mrf.mxu0
      %9445 = vmatprep.mubr.f32.mxu0 0.0
      %9446 = vmatmul.mubr.f32.gmra.mxu0 %v9237
      %v9447 = vpop.f32.mrf.mxu0
      %v9448 = vadd.f32 0.0, %v9447
      %v9449 = vpop.f32.mrf.mxu0
      %9450 = vmatprep.mubr.f32.mxu0 0.0
      %9451 = vmatmul.mubr.f32.gmra.mxu0 %v9240
      %v9452 = vpop.f32.mrf.mxu0
      %v9453 = vadd.f32 0.0, %v9452
      %v9454 = vpop.f32.mrf.mxu0
      %9455 = vmatprep.mubr.f32.mxu0 0.0
      %9456 = vmatmul.mubr.f32.gmra.mxu0 %v9243
      %v9457 = vpop.f32.mrf.mxu0
      %v9458 = vadd.f32 0.0, %v9457
      %v9459 = vpop.f32.mrf.mxu0
      %9460 = vmatprep.mubr.f32.mxu0 0.0
      %9461 = vmatmul.mubr.f32.gmra.mxu0 %v9246
      %v9462 = vpop.f32.mrf.mxu0
      %v9463 = vadd.f32 0.0, %v9462
      %v9464 = vpop.f32.mrf.mxu0
      %9465 = vmatprep.mubr.f32.mxu0 0.0
      %9466 = vmatmul.mubr.f32.gmra.mxu0 %v9249
      %v9467 = vpop.f32.mrf.mxu0
      %v9468 = vadd.f32 0.0, %v9467
      %v9469 = vpop.f32.mrf.mxu0
      %9470 = vmatprep.mubr.f32.mxu0 0.0
      %9471 = vmatmul.mubr.f32.gmra.mxu0 %v9252
      %v9472 = vpop.f32.mrf.mxu0
      %v9473 = vadd.f32 0.0, %v9472
      %v9474 = vpop.f32.mrf.mxu0
      %9475 = vmatprep.mubr.f32.mxu0 0.0
      %9476 = vmatmul.mubr.f32.gmra.mxu0 %v9255
      %v9477 = vpop.f32.mrf.mxu0
      %v9478 = vadd.f32 0.0, %v9477
      %v9479 = vpop.f32.mrf.mxu0
      %9480 = vmatprep.mubr.f32.mxu0 0.0
      %9481 = vmatmul.mubr.f32.gmra.mxu0 %v9258
      %v9482 = vpop.f32.mrf.mxu0
      %v9483 = vadd.f32 0.0, %v9482
      %v9484 = vpop.f32.mrf.mxu0
      %9485 = vmatprep.mubr.f32.mxu0 0.0
      %9486 = vmatmul.mubr.f32.gmra.mxu0 %v9261
      %v9487 = vpop.f32.mrf.mxu0
      %v9488 = vadd.f32 0.0, %v9487
      %v9489 = vpop.f32.mrf.mxu0
      %9490 = vdwg.mxu0
      %v9491 = vadd.f32 %v9101, %v9333
      %v9492 = vadd.f32 %v9102, %v9338
      %v9493 = vadd.f32 %v9103, %v9343
      %v9494 = vadd.f32 %v9104, %v9348
      %v9495 = vadd.f32 %v9105, %v9353
      %v9496 = vadd.f32 %v9106, %v9358
      %v9497 = vadd.f32 %v9107, %v9363
      %v9498 = vadd.f32 %v9108, %v9368
      %v9499 = vadd.f32 %v9109, %v9373
      %v9500 = vadd.f32 %v9110, %v9378
      %v9501 = vadd.f32 %v9111, %v9383
      %v9502 = vadd.f32 %v9112, %v9388
      %v9503 = vadd.f32 %v9113, %v9393
      %v9504 = vadd.f32 %v9114, %v9398
      %v9505 = vadd.f32 %v9115, %v9403
      %v9506 = vadd.f32 %v9116, %v9408
      %v9507 = vadd.f32 %v9117, %v9413
      %v9508 = vadd.f32 %v9118, %v9418
      %v9509 = vadd.f32 %v9119, %v9423
      %v9510 = vadd.f32 %v9120, %v9428
      %v9511 = vadd.f32 %v9121, %v9433
      %v9512 = vadd.f32 %v9122, %v9438
      %v9513 = vadd.f32 %v9123, %v9443
      %v9514 = vadd.f32 %v9124, %v9448
      %v9515 = vadd.f32 %v9125, %v9453
      %v9516 = vadd.f32 %v9126, %v9458
      %v9517 = vadd.f32 %v9127, %v9463
      %v9518 = vadd.f32 %v9128, %v9468
      %v9519 = vadd.f32 %v9129, %v9473
      %v9520 = vadd.f32 %v9130, %v9478
      %v9521 = vadd.f32 %v9131, %v9483
      %v9522 = vadd.f32 %v9132, %v9488
      %v9523 = vld [vmem:[%s7962 + $0x4] sm:$0xff]
      %v9524 = vld [vmem:[%s7962 + $0xc] sm:$0xff]
      %v9525 = vld [vmem:[%s7962 + $0x1c] sm:$0xff]
      %v9526 = vld [vmem:[%s7962 + $0x24] sm:$0xff]
      %v9527 = vld [vmem:[%s7962 + $0x34] sm:$0xff]
      %v9528 = vld [vmem:[%s7962 + $0x3c] sm:$0xff]
      %v9529 = vld [vmem:[%s7962 + $0x4c] sm:$0xff]
      %v9530 = vld [vmem:[%s7962 + $0x54] sm:$0xff]
      %v9531 = vld [vmem:[%s7962 + $0x64] sm:$0xff]
      %v9532 = vld [vmem:[%s7962 + $0x6c] sm:$0xff]
      %v9533 = vld [vmem:[%s7962 + $0x7c] sm:$0xff]
      %v9534 = vld [vmem:[%s7962 + $0x84] sm:$0xff]
      %v9535 = vld [vmem:[%s7962 + $0x94] sm:$0xff]
      %v9536 = vld [vmem:[%s7962 + $0x9c] sm:$0xff]
      %v9537 = vld [vmem:[%s7962 + $0xac] sm:$0xff]
      %v9538 = vld [vmem:[%s7962 + $0xb4] sm:$0xff]
      %v9539 = vld [vmem:[%s7962 + $0xc4] sm:$0xff]
      %v9540 = vld [vmem:[%s7962 + $0xcc] sm:$0xff]
      %v9541 = vld [vmem:[%s7962 + $0xdc] sm:$0xff]
      %v9542 = vld [vmem:[%s7962 + $0xe4] sm:$0xff]
      %v9543 = vld [vmem:[%s7962 + $0xf4] sm:$0xff]
      %v9544 = vld [vmem:[%s7962 + $0xfc] sm:$0xff]
      %v9545 = vld [vmem:[%s7962 + $0x10c] sm:$0xff]
      %v9546 = vld [vmem:[%s7962 + $0x114] sm:$0xff]
      %v9547 = vld [vmem:[%s7962 + $0x124] sm:$0xff]
      %v9548 = vld [vmem:[%s7962 + $0x12c] sm:$0xff]
      %v9549 = vld [vmem:[%s7962 + $0x13c] sm:$0xff]
      %v9550 = vld [vmem:[%s7962 + $0x144] sm:$0xff]
      %v9551 = vld [vmem:[%s7962 + $0x154] sm:$0xff]
      %v9552 = vld [vmem:[%s7962 + $0x15c] sm:$0xff]
      %v9553 = vld [vmem:[%s7962 + $0x16c] sm:$0xff]
      %v9554 = vld [vmem:[%s7962 + $0x174] sm:$0xff]
      %s9555 = scalar_lea.vmem %s210, 96
      %v9556 = vld [vmem:[%s9555] sm:$0xf]
      %v9558 = vsel %vm289, %v9523, 0
      %v9561 = vsel %vm289, %v9524, 0
      %v9564 = vsel %vm289, %v9525, 0
      %v9567 = vsel %vm289, %v9526, 0
      %v9570 = vsel %vm289, %v9527, 0
      %v9573 = vsel %vm289, %v9528, 0
      %v9576 = vsel %vm289, %v9529, 0
      %v9579 = vsel %vm289, %v9530, 0
      %v9582 = vsel %vm289, %v9531, 0
      %v9585 = vsel %vm289, %v9532, 0
      %v9588 = vsel %vm289, %v9533, 0
      %v9591 = vsel %vm289, %v9534, 0
      %v9594 = vsel %vm289, %v9535, 0
      %v9597 = vsel %vm289, %v9536, 0
      %v9600 = vsel %vm289, %v9537, 0
      %v9603 = vsel %vm289, %v9538, 0
      %v9606 = vsel %vm289, %v9539, 0
      %v9609 = vsel %vm289, %v9540, 0
      %v9612 = vsel %vm289, %v9541, 0
      %v9615 = vsel %vm289, %v9542, 0
      %v9618 = vsel %vm289, %v9543, 0
      %v9621 = vsel %vm289, %v9544, 0
      %v9624 = vsel %vm289, %v9545, 0
      %v9627 = vsel %vm289, %v9546, 0
      %v9630 = vsel %vm289, %v9547, 0
      %v9633 = vsel %vm289, %v9548, 0
      %v9636 = vsel %vm289, %v9549, 0
      %v9639 = vsel %vm289, %v9550, 0
      %v9642 = vsel %vm289, %v9551, 0
      %v9645 = vsel %vm289, %v9552, 0
      %v9648 = vsel %vm289, %v9553, 0
      %v9651 = vsel %vm289, %v9554, 0
      %v9654 = vsel %vm386, %v9556, 0
      %9656 = vmatprep.subr.mxu0 0.0
      %9657 = vmatpush1.msra.mxu0 0.0
      %9658 = vmatprep.subr.mxu0 0.0
      %9659 = vmatpush1.msra.mxu0 0.0
      %9660 = vmatprep.subr.mxu0 0.0
      %9661 = vmatpush1.msra.mxu0 0.0
      %9662 = vmatprep.subr.mxu0 0.0
      %9663 = vmatpush1.msra.mxu0 0.0
      %9664 = vmatprep.subr.mxu0 0.0
      %9665 = vmatpush1.msra.mxu0 0.0
      %9666 = vmatprep.subr.mxu0 0.0
      %9667 = vmatpush1.msra.mxu0 0.0
      %9668 = vmatprep.subr.mxu0 0.0
      %9669 = vmatpush1.msra.mxu0 0.0
      %9670 = vmatprep.subr.mxu0 0.0
      %9671 = vmatpush1.msra.mxu0 0.0
      %9672 = vmatprep.subr.mxu0 0.0
      %9673 = vmatpush1.msra.mxu0 0.0
      %9674 = vmatprep.subr.mxu0 0.0
      %9675 = vmatpush1.msra.mxu0 0.0
      %9676 = vmatprep.subr.mxu0 0.0
      %9677 = vmatpush1.msra.mxu0 0.0
      %9678 = vmatprep.subr.mxu0 0.0
      %9679 = vmatpush1.msra.mxu0 0.0
      %9680 = vmatprep.subr.mxu0 0.0
      %9681 = vmatpush1.msra.mxu0 0.0
      %9682 = vmatprep.subr.mxu0 0.0
      %9683 = vmatpush1.msra.mxu0 0.0
      %9684 = vmatprep.subr.mxu0 0.0
      %9685 = vmatpush1.msra.mxu0 0.0
      %9686 = vmatprep.subr.mxu0 0.0
      %9687 = vmatpush1.msra.mxu0 %v9654
      %9688 = vmatprep.subr.mxu0 0.0
      %9689 = vmatpush2.msra.mxu0 0.0
      %9690 = vmatprep.subr.mxu0 0.0
      %9691 = vmatpush2.msra.mxu0 0.0
      %9692 = vmatprep.subr.mxu0 0.0
      %9693 = vmatpush2.msra.mxu0 0.0
      %9694 = vmatprep.subr.mxu0 0.0
      %9695 = vmatpush2.msra.mxu0 0.0
      %9696 = vmatprep.subr.mxu0 0.0
      %9697 = vmatpush2.msra.mxu0 0.0
      %9698 = vmatprep.subr.mxu0 0.0
      %9699 = vmatpush2.msra.mxu0 0.0
      %9700 = vmatprep.subr.mxu0 0.0
      %9701 = vmatpush2.msra.mxu0 0.0
      %9702 = vmatprep.subr.mxu0 0.0
      %9703 = vmatpush2.msra.mxu0 0.0
      %9704 = vmatprep.subr.mxu0 0.0
      %9705 = vmatpush2.msra.mxu0 0.0
      %9706 = vmatprep.subr.mxu0 0.0
      %9707 = vmatpush2.msra.mxu0 0.0
      %9708 = vmatprep.subr.mxu0 0.0
      %9709 = vmatpush2.msra.mxu0 0.0
      %9710 = vmatprep.subr.mxu0 0.0
      %9711 = vmatpush2.msra.mxu0 0.0
      %9712 = vmatprep.subr.mxu0 0.0
      %9713 = vmatpush2.msra.mxu0 0.0
      %9714 = vmatprep.subr.mxu0 0.0
      %9715 = vmatpush2.msra.mxu0 0.0
      %9716 = vmatprep.subr.mxu0 0.0
      %9717 = vmatpush2.msra.mxu0 0.0
      %9718 = vmatprep.subr.mxu0 0.0
      %9719 = vmatpush2.msra.mxu0 0.0
      %9720 = vmatprep.mubr.f32.mxu0 0.0
      %9721 = vmatmul.mubr.f32.gmra.mxu0 %v9558
      %v9722 = vpop.f32.mrf.mxu0
      %v9723 = vadd.f32 0.0, %v9722
      %v9724 = vpop.f32.mrf.mxu0
      %9725 = vmatprep.mubr.f32.mxu0 0.0
      %9726 = vmatmul.mubr.f32.gmra.mxu0 %v9561
      %v9727 = vpop.f32.mrf.mxu0
      %v9728 = vadd.f32 0.0, %v9727
      %v9729 = vpop.f32.mrf.mxu0
      %9730 = vmatprep.mubr.f32.mxu0 0.0
      %9731 = vmatmul.mubr.f32.gmra.mxu0 %v9564
      %v9732 = vpop.f32.mrf.mxu0
      %v9733 = vadd.f32 0.0, %v9732
      %v9734 = vpop.f32.mrf.mxu0
      %9735 = vmatprep.mubr.f32.mxu0 0.0
      %9736 = vmatmul.mubr.f32.gmra.mxu0 %v9567
      %v9737 = vpop.f32.mrf.mxu0
      %v9738 = vadd.f32 0.0, %v9737
      %v9739 = vpop.f32.mrf.mxu0
      %9740 = vmatprep.mubr.f32.mxu0 0.0
      %9741 = vmatmul.mubr.f32.gmra.mxu0 %v9570
      %v9742 = vpop.f32.mrf.mxu0
      %v9743 = vadd.f32 0.0, %v9742
      %v9744 = vpop.f32.mrf.mxu0
      %9745 = vmatprep.mubr.f32.mxu0 0.0
      %9746 = vmatmul.mubr.f32.gmra.mxu0 %v9573
      %v9747 = vpop.f32.mrf.mxu0
      %v9748 = vadd.f32 0.0, %v9747
      %v9749 = vpop.f32.mrf.mxu0
      %9750 = vmatprep.mubr.f32.mxu0 0.0
      %9751 = vmatmul.mubr.f32.gmra.mxu0 %v9576
      %v9752 = vpop.f32.mrf.mxu0
      %v9753 = vadd.f32 0.0, %v9752
      %v9754 = vpop.f32.mrf.mxu0
      %9755 = vmatprep.mubr.f32.mxu0 0.0
      %9756 = vmatmul.mubr.f32.gmra.mxu0 %v9579
      %v9757 = vpop.f32.mrf.mxu0
      %v9758 = vadd.f32 0.0, %v9757
      %v9759 = vpop.f32.mrf.mxu0
      %9760 = vmatprep.mubr.f32.mxu0 0.0
      %9761 = vmatmul.mubr.f32.gmra.mxu0 %v9582
      %v9762 = vpop.f32.mrf.mxu0
      %v9763 = vadd.f32 0.0, %v9762
      %v9764 = vpop.f32.mrf.mxu0
      %9765 = vmatprep.mubr.f32.mxu0 0.0
      %9766 = vmatmul.mubr.f32.gmra.mxu0 %v9585
      %v9767 = vpop.f32.mrf.mxu0
      %v9768 = vadd.f32 0.0, %v9767
      %v9769 = vpop.f32.mrf.mxu0
      %9770 = vmatprep.mubr.f32.mxu0 0.0
      %9771 = vmatmul.mubr.f32.gmra.mxu0 %v9588
      %v9772 = vpop.f32.mrf.mxu0
      %v9773 = vadd.f32 0.0, %v9772
      %v9774 = vpop.f32.mrf.mxu0
      %9775 = vmatprep.mubr.f32.mxu0 0.0
      %9776 = vmatmul.mubr.f32.gmra.mxu0 %v9591
      %v9777 = vpop.f32.mrf.mxu0
      %v9778 = vadd.f32 0.0, %v9777
      %v9779 = vpop.f32.mrf.mxu0
      %9780 = vmatprep.mubr.f32.mxu0 0.0
      %9781 = vmatmul.mubr.f32.gmra.mxu0 %v9594
      %v9782 = vpop.f32.mrf.mxu0
      %v9783 = vadd.f32 0.0, %v9782
      %v9784 = vpop.f32.mrf.mxu0
      %9785 = vmatprep.mubr.f32.mxu0 0.0
      %9786 = vmatmul.mubr.f32.gmra.mxu0 %v9597
      %v9787 = vpop.f32.mrf.mxu0
      %v9788 = vadd.f32 0.0, %v9787
      %v9789 = vpop.f32.mrf.mxu0
      %9790 = vmatprep.mubr.f32.mxu0 0.0
      %9791 = vmatmul.mubr.f32.gmra.mxu0 %v9600
      %v9792 = vpop.f32.mrf.mxu0
      %v9793 = vadd.f32 0.0, %v9792
      %v9794 = vpop.f32.mrf.mxu0
      %9795 = vmatprep.mubr.f32.mxu0 0.0
      %9796 = vmatmul.mubr.f32.gmra.mxu0 %v9603
      %v9797 = vpop.f32.mrf.mxu0
      %v9798 = vadd.f32 0.0, %v9797
      %v9799 = vpop.f32.mrf.mxu0
      %9800 = vmatprep.mubr.f32.mxu0 0.0
      %9801 = vmatmul.mubr.f32.gmra.mxu0 %v9606
      %v9802 = vpop.f32.mrf.mxu0
      %v9803 = vadd.f32 0.0, %v9802
      %v9804 = vpop.f32.mrf.mxu0
      %9805 = vmatprep.mubr.f32.mxu0 0.0
      %9806 = vmatmul.mubr.f32.gmra.mxu0 %v9609
      %v9807 = vpop.f32.mrf.mxu0
      %v9808 = vadd.f32 0.0, %v9807
      %v9809 = vpop.f32.mrf.mxu0
      %9810 = vmatprep.mubr.f32.mxu0 0.0
      %9811 = vmatmul.mubr.f32.gmra.mxu0 %v9612
      %v9812 = vpop.f32.mrf.mxu0
      %v9813 = vadd.f32 0.0, %v9812
      %v9814 = vpop.f32.mrf.mxu0
      %9815 = vmatprep.mubr.f32.mxu0 0.0
      %9816 = vmatmul.mubr.f32.gmra.mxu0 %v9615
      %v9817 = vpop.f32.mrf.mxu0
      %v9818 = vadd.f32 0.0, %v9817
      %v9819 = vpop.f32.mrf.mxu0
      %9820 = vmatprep.mubr.f32.mxu0 0.0
      %9821 = vmatmul.mubr.f32.gmra.mxu0 %v9618
      %v9822 = vpop.f32.mrf.mxu0
      %v9823 = vadd.f32 0.0, %v9822
      %v9824 = vpop.f32.mrf.mxu0
      %9825 = vmatprep.mubr.f32.mxu0 0.0
      %9826 = vmatmul.mubr.f32.gmra.mxu0 %v9621
      %v9827 = vpop.f32.mrf.mxu0
      %v9828 = vadd.f32 0.0, %v9827
      %v9829 = vpop.f32.mrf.mxu0
      %9830 = vmatprep.mubr.f32.mxu0 0.0
      %9831 = vmatmul.mubr.f32.gmra.mxu0 %v9624
      %v9832 = vpop.f32.mrf.mxu0
      %v9833 = vadd.f32 0.0, %v9832
      %v9834 = vpop.f32.mrf.mxu0
      %9835 = vmatprep.mubr.f32.mxu0 0.0
      %9836 = vmatmul.mubr.f32.gmra.mxu0 %v9627
      %v9837 = vpop.f32.mrf.mxu0
      %v9838 = vadd.f32 0.0, %v9837
      %v9839 = vpop.f32.mrf.mxu0
      %9840 = vmatprep.mubr.f32.mxu0 0.0
      %9841 = vmatmul.mubr.f32.gmra.mxu0 %v9630
      %v9842 = vpop.f32.mrf.mxu0
      %v9843 = vadd.f32 0.0, %v9842
      %v9844 = vpop.f32.mrf.mxu0
      %9845 = vmatprep.mubr.f32.mxu0 0.0
      %9846 = vmatmul.mubr.f32.gmra.mxu0 %v9633
      %v9847 = vpop.f32.mrf.mxu0
      %v9848 = vadd.f32 0.0, %v9847
      %v9849 = vpop.f32.mrf.mxu0
      %9850 = vmatprep.mubr.f32.mxu0 0.0
      %9851 = vmatmul.mubr.f32.gmra.mxu0 %v9636
      %v9852 = vpop.f32.mrf.mxu0
      %v9853 = vadd.f32 0.0, %v9852
      %v9854 = vpop.f32.mrf.mxu0
      %9855 = vmatprep.mubr.f32.mxu0 0.0
      %9856 = vmatmul.mubr.f32.gmra.mxu0 %v9639
      %v9857 = vpop.f32.mrf.mxu0
      %v9858 = vadd.f32 0.0, %v9857
      %v9859 = vpop.f32.mrf.mxu0
      %9860 = vmatprep.mubr.f32.mxu0 0.0
      %9861 = vmatmul.mubr.f32.gmra.mxu0 %v9642
      %v9862 = vpop.f32.mrf.mxu0
      %v9863 = vadd.f32 0.0, %v9862
      %v9864 = vpop.f32.mrf.mxu0
      %9865 = vmatprep.mubr.f32.mxu0 0.0
      %9866 = vmatmul.mubr.f32.gmra.mxu0 %v9645
      %v9867 = vpop.f32.mrf.mxu0
      %v9868 = vadd.f32 0.0, %v9867
      %v9869 = vpop.f32.mrf.mxu0
      %9870 = vmatprep.mubr.f32.mxu0 0.0
      %9871 = vmatmul.mubr.f32.gmra.mxu0 %v9648
      %v9872 = vpop.f32.mrf.mxu0
      %v9873 = vadd.f32 0.0, %v9872
      %v9874 = vpop.f32.mrf.mxu0
      %9875 = vmatprep.mubr.f32.mxu0 0.0
      %9876 = vmatmul.mubr.f32.gmra.mxu0 %v9651
      %v9877 = vpop.f32.mrf.mxu0
      %v9878 = vadd.f32 0.0, %v9877
      %v9879 = vpop.f32.mrf.mxu0
      %9880 = vdwg.mxu0
      %v9881 = vadd.f32 %v9491, %v9723
      %v9882 = vadd.f32 %v9492, %v9728
      %v9883 = vadd.f32 %v9493, %v9733
      %v9884 = vadd.f32 %v9494, %v9738
      %v9885 = vadd.f32 %v9495, %v9743
      %v9886 = vadd.f32 %v9496, %v9748
      %v9887 = vadd.f32 %v9497, %v9753
      %v9888 = vadd.f32 %v9498, %v9758
      %v9889 = vadd.f32 %v9499, %v9763
      %v9890 = vadd.f32 %v9500, %v9768
      %v9891 = vadd.f32 %v9501, %v9773
      %v9892 = vadd.f32 %v9502, %v9778
      %v9893 = vadd.f32 %v9503, %v9783
      %v9894 = vadd.f32 %v9504, %v9788
      %v9895 = vadd.f32 %v9505, %v9793
      %v9896 = vadd.f32 %v9506, %v9798
      %v9897 = vadd.f32 %v9507, %v9803
      %v9898 = vadd.f32 %v9508, %v9808
      %v9899 = vadd.f32 %v9509, %v9813
      %v9900 = vadd.f32 %v9510, %v9818
      %v9901 = vadd.f32 %v9511, %v9823
      %v9902 = vadd.f32 %v9512, %v9828
      %v9903 = vadd.f32 %v9513, %v9833
      %v9904 = vadd.f32 %v9514, %v9838
      %v9905 = vadd.f32 %v9515, %v9843
      %v9906 = vadd.f32 %v9516, %v9848
      %v9907 = vadd.f32 %v9517, %v9853
      %v9908 = vadd.f32 %v9518, %v9858
      %v9909 = vadd.f32 %v9519, %v9863
      %v9910 = vadd.f32 %v9520, %v9868
      %v9911 = vadd.f32 %v9521, %v9873
      %v9912 = vadd.f32 %v9522, %v9878
      %v9913 = vld [vmem:[%s213] sm:$0x1]
      %v9915 = vlaneseq
      %v9916 = vshrl.u32 %v9915, 7
      %v9917 = vsub.s32 0, %v9916
      %v9918 = vrot.slane %v9913, %v9917
      %v9920 = vadd.f32 %v9881, %v9918
      %v9921 = vadd.f32 %v9882, %v9918
      %v9922 = vadd.f32 %v9883, %v9918
      %v9923 = vadd.f32 %v9884, %v9918
      %v9924 = vadd.f32 %v9885, %v9918
      %v9925 = vadd.f32 %v9886, %v9918
      %v9926 = vadd.f32 %v9887, %v9918
      %v9927 = vadd.f32 %v9888, %v9918
      %v9928 = vadd.f32 %v9889, %v9918
      %v9929 = vadd.f32 %v9890, %v9918
      %v9930 = vadd.f32 %v9891, %v9918
      %v9931 = vadd.f32 %v9892, %v9918
      %v9932 = vadd.f32 %v9893, %v9918
      %v9933 = vadd.f32 %v9894, %v9918
      %v9934 = vadd.f32 %v9895, %v9918
      %v9935 = vadd.f32 %v9896, %v9918
      %v9936 = vadd.f32 %v9897, %v9918
      %v9937 = vadd.f32 %v9898, %v9918
      %v9938 = vadd.f32 %v9899, %v9918
      %v9939 = vadd.f32 %v9900, %v9918
      %v9940 = vadd.f32 %v9901, %v9918
      %v9941 = vadd.f32 %v9902, %v9918
      %v9942 = vadd.f32 %v9903, %v9918
      %v9943 = vadd.f32 %v9904, %v9918
      %v9944 = vadd.f32 %v9905, %v9918
      %v9945 = vadd.f32 %v9906, %v9918
      %v9946 = vadd.f32 %v9907, %v9918
      %v9947 = vadd.f32 %v9908, %v9918
      %v9948 = vadd.f32 %v9909, %v9918
      %v9949 = vadd.f32 %v9910, %v9918
      %v9950 = vadd.f32 %v9911, %v9918
      %v9951 = vadd.f32 %v9912, %v9918
      %vm9952 = vcmask 64512
      %9953 = vst.msk [vmem:[%s221] sm:$0xff] %vm9952, %v9920
      %9954 = vst.msk [vmem:[%s221 + $0x8] sm:$0xff] %vm9952, %v9921
      %9955 = vst.msk [vmem:[%s221 + $0x10] sm:$0xff] %vm9952, %v9922
      %9956 = vst.msk [vmem:[%s221 + $0x18] sm:$0xff] %vm9952, %v9923
      %9957 = vst.msk [vmem:[%s221 + $0x20] sm:$0xff] %vm9952, %v9924
      %9958 = vst.msk [vmem:[%s221 + $0x28] sm:$0xff] %vm9952, %v9925
      %9959 = vst.msk [vmem:[%s221 + $0x30] sm:$0xff] %vm9952, %v9926
      %9960 = vst.msk [vmem:[%s221 + $0x38] sm:$0xff] %vm9952, %v9927
      %9961 = vst.msk [vmem:[%s221 + $0x40] sm:$0xff] %vm9952, %v9928
      %9962 = vst.msk [vmem:[%s221 + $0x48] sm:$0xff] %vm9952, %v9929
      %9963 = vst.msk [vmem:[%s221 + $0x50] sm:$0xff] %vm9952, %v9930
      %9964 = vst.msk [vmem:[%s221 + $0x58] sm:$0xff] %vm9952, %v9931
      %9965 = vst.msk [vmem:[%s221 + $0x60] sm:$0xff] %vm9952, %v9932
      %9966 = vst.msk [vmem:[%s221 + $0x68] sm:$0xff] %vm9952, %v9933
      %9967 = vst.msk [vmem:[%s221 + $0x70] sm:$0xff] %vm9952, %v9934
      %9968 = vst.msk [vmem:[%s221 + $0x78] sm:$0xff] %vm9952, %v9935
      %9969 = vst.msk [vmem:[%s221 + $0x80] sm:$0xff] %vm9952, %v9936
      %9970 = vst.msk [vmem:[%s221 + $0x88] sm:$0xff] %vm9952, %v9937
      %9971 = vst.msk [vmem:[%s221 + $0x90] sm:$0xff] %vm9952, %v9938
      %9972 = vst.msk [vmem:[%s221 + $0x98] sm:$0xff] %vm9952, %v9939
      %9973 = vst.msk [vmem:[%s221 + $0xa0] sm:$0xff] %vm9952, %v9940
      %9974 = vst.msk [vmem:[%s221 + $0xa8] sm:$0xff] %vm9952, %v9941
      %9975 = vst.msk [vmem:[%s221 + $0xb0] sm:$0xff] %vm9952, %v9942
      %9976 = vst.msk [vmem:[%s221 + $0xb8] sm:$0xff] %vm9952, %v9943
      %9977 = vst.msk [vmem:[%s221 + $0xc0] sm:$0xff] %vm9952, %v9944
      %9978 = vst.msk [vmem:[%s221 + $0xc8] sm:$0xff] %vm9952, %v9945
      %9979 = vst.msk [vmem:[%s221 + $0xd0] sm:$0xff] %vm9952, %v9946
      %9980 = vst.msk [vmem:[%s221 + $0xd8] sm:$0xff] %vm9952, %v9947
      %9981 = vst.msk [vmem:[%s221 + $0xe0] sm:$0xff] %vm9952, %v9948
      %9982 = vst.msk [vmem:[%s221 + $0xe8] sm:$0xff] %vm9952, %v9949
      %9983 = vst.msk [vmem:[%s221 + $0xf0] sm:$0xff] %vm9952, %v9950
      %9984 = vst.msk [vmem:[%s221 + $0xf8] sm:$0xff] %vm9952, %v9951
      %p9985 = scmp.lt.s32.totalorder %s18, 1
      %s9986 = scalar_select %p9985, %s18, 1
      %p9987 = scmp.lt.s32.totalorder %s19, 0
      %s9988 = scalar_select %p9987, %s19, 0
      %s9989 = smul.addr %s9986, 32
      %s9990 = sadd.s32 %s9988, %s9989
      %s9991 = smul.addr %s9990, 8
      %s9992 = scalar_lea.vmem %s3, %s9991
      // Predicated region
      $region33: #{conv2d_pallas.1} parent=31 // pred_check
        %p9993 = pneg %p124
      $region34: #{conv2d_pallas.1} parent=31 // pred_check_branch
        %9995 = sbr.rel (%p9993) target = $region36
      $region35: #{conv2d_pallas.1} parent=31 // pred_region
        _
      $region36: #{conv2d_pallas.1} parent=31 // pred_fallthru
        _
    $region32: #{conv2d_pallas.1} parent=5 // pred_fallthru
      _
    %p9996 = scmp.le.s32.totalorder 2, %s9
    // Predicated region
    $region37: #{conv2d_pallas.1} parent=5 // pred_check
      %p9997 = pneg %p9996
    $region38: #{conv2d_pallas.1} parent=5 // pred_check_branch
      %9999 = sbr.rel (%p9997) target = $region40
    $region39: #{conv2d_pallas.1} parent=5 // pred_region
      %s10000 = ssub.s32 %s9, 2
      // Predicated region
      $region41: #{conv2d_pallas.1} parent=39 // pred_check
        %p10001 = pneg %p130
      $region42: #{conv2d_pallas.1} parent=39 // pred_check_branch
        %10003 = sbr.rel (%p10001) target = $region44
      $region43: #{conv2d_pallas.1} parent=39 // pred_region
        %p10004 = scmp.lt.s32.totalorder %s20, 1
        %s10005 = scalar_select %p10004, %s20, 1
        %p10006 = scmp.lt.s32.totalorder %s21, 0
        %s10007 = scalar_select %p10006, %s21, 0
        %s10008 = smul.addr %s10005, 32
        %s10009 = sadd.s32 %s10007, %s10008
        %s10010 = smul.addr %s10009, 8
        %s10011 = scalar_lea.vmem %s3, %s10010
      $region44: #{conv2d_pallas.1} parent=39 // pred_fallthru
        _
    $region40: #{conv2d_pallas.1} parent=5 // pred_fallthru
      _
  $region6: #{conv2d_pallas.1} parent=0 // loop_footer
    %s13 = sadd.s32 1, %s9
  $region7: #{conv2d_pallas.1} parent=0 // loop_footer_branch
    %8 = sbr.rel target = $region3
  $region8: #{conv2d_pallas.1} parent=0 // loop_exit
    _

</llo_original>
